<compile_context>
chip_gen: v5e
topology: v5e:2x2
jax: 0.10.0
libtpu: 0.0.40
codegen_flags: <defaults>
</compile_context>

<pallas_src>
import jax
import jax.numpy as jnp
from jax.experimental import pallas as pl
from jax.experimental.pallas import tpu as pltpu

EPS = 1e-5
IN_FEATURES = 512
OUT_FEATURES = 2048

TN = 512                                   # N tile width (lane-dense, multiple of 128)
N_OUTER = 2                                # megacore-parallel axis (2 TCs on v7x)
N_INNER = OUT_FEATURES // TN // N_OUTER    # pipelined ("arbitrary") axis per core


def ln_linear_gelu_kernel(x_ref, g_ref, b_ref, w_ref, bias_ref, o_ref, xn_ref):
    # x_ref:    (M, 512)   full rows (resident across N tiles)
    # g_ref:    (1, 512)   layernorm gamma
    # b_ref:    (1, 512)   layernorm beta
    # w_ref:    (512, TN)  linear weight slice (pre-transposed, in x out)
    # bias_ref: (1, TN)    linear bias slice
    # o_ref:    (M, TN)    output slice
    # xn_ref:   (M, 512)   VMEM scratch: cached LayerNorm output
    ij = pl.program_id(1)

    # Compute LayerNorm once per core (inner axis is "arbitrary", so every core
    # starts it at ij == 0); reuse the cached result for every N tile.
    @pl.when(ij == 0)
    def _():
        x = x_ref[...].astype(jnp.float32)
        mean = jnp.mean(x, axis=-1, keepdims=True)
        xc = x - mean
        var = jnp.mean(xc * xc, axis=-1, keepdims=True)
        xn = xc * jax.lax.rsqrt(var + EPS)
        xn_ref[...] = xn * g_ref[...] + b_ref[...]

    # Linear (MXU, f32 accumulation) + bias
    y = jnp.dot(xn_ref[...], w_ref[...], preferred_element_type=jnp.float32)
    y = y + bias_ref[...]

    # GELU (exact, approximate='none'): 0.5 * y * (1 + erf(y / sqrt(2)))
    inv_sqrt2 = jnp.float32(0.7071067811865476)
    o_ref[...] = (0.5 * y * (1.0 + jax.lax.erf(y * inv_sqrt2))).astype(o_ref.dtype)


@jax.jit
def layernorm_linear_gelu(x, gamma, beta, weight_t, bias):
    """x: [B, H, W, 512] f32. weight_t: [512, 2048] (pre-transposed). Returns [B, H, W, 2048]."""
    B, H, W, C = x.shape
    assert C == IN_FEATURES
    M = B * H * W
    x2d = x.reshape(M, C)
    g2d = gamma.reshape(1, C)
    b2d = beta.reshape(1, C)
    bias2d = bias.reshape(1, OUT_FEATURES)

    # Combined N-tile index for a (outer, inner) grid point.
    def n_idx(io, ij):
        return io * N_INNER + ij

    cost = pl.CostEstimate(
        flops=2 * M * IN_FEATURES * OUT_FEATURES,
        transcendentals=M * OUT_FEATURES,
        bytes_accessed=(M * C + C * OUT_FEATURES + M * OUT_FEATURES
                        + 2 * C + OUT_FEATURES) * 4,
    )

    out = pl.pallas_call(
        ln_linear_gelu_kernel,
        out_shape=jax.ShapeDtypeStruct((M, OUT_FEATURES), x.dtype),
        grid_spec=pltpu.PrefetchScalarGridSpec(
            num_scalar_prefetch=0,
            grid=(N_OUTER, N_INNER),
            in_specs=[
                pl.BlockSpec((M, C), lambda io, ij: (0, 0)),          # x rows (resident)
                pl.BlockSpec((1, C), lambda io, ij: (0, 0)),          # gamma
                pl.BlockSpec((1, C), lambda io, ij: (0, 0)),          # beta
                pl.BlockSpec((C, TN), lambda io, ij: (0, n_idx(io, ij))),   # weight slice
                pl.BlockSpec((1, TN), lambda io, ij: (0, n_idx(io, ij))),   # bias slice
            ],
            out_specs=pl.BlockSpec((M, TN), lambda io, ij: (0, n_idx(io, ij))),
            scratch_shapes=[pltpu.VMEM((M, C), jnp.float32)],         # cached LN output
        ),
        compiler_params=pltpu.CompilerParams(
            dimension_semantics=("parallel", "arbitrary"),
        ),
        cost_estimate=cost,
    )(x2d, g2d, b2d, weight_t, bias2d)
    return out.reshape(B, H, W, OUT_FEATURES)


def reference(x, gamma, beta, weight, bias):
    mean = jnp.mean(x, axis=-1, keepdims=True)
    var = jnp.mean((x - mean) ** 2, axis=-1, keepdims=True)
    xn = (x - mean) / jnp.sqrt(var + EPS) * gamma + beta
    y = xn @ weight.T + bias
    return 0.5 * y * (1.0 + jax.lax.erf(y / jnp.sqrt(2.0)))


if __name__ == "__main__":
    key = jax.random.PRNGKey(0)
    kx, kg, kb, kw, kbi = jax.random.split(key, 5)

    # Input matching the module's forward: [1, 14, 14, 512]
    x = jax.random.normal(kx, (1, 14, 14, 512), dtype=jnp.float32)

    # Deterministic parameter init (shapes from module __init__)
    gamma = 1.0 + 0.01 * jax.random.normal(kg, (IN_FEATURES,), dtype=jnp.float32)
    beta = 0.01 * jax.random.normal(kb, (IN_FEATURES,), dtype=jnp.float32)
    weight = jax.random.normal(kw, (OUT_FEATURES, IN_FEATURES), dtype=jnp.float32) * 0.02
    bias = 0.01 * jax.random.normal(kbi, (OUT_FEATURES,), dtype=jnp.float32)

    # Pre-transpose the weight ONCE at parameter setup (in x out layout for the MXU).
    weight_t = jax.block_until_ready(jnp.asarray(weight.T))

    out = layernorm_linear_gelu(x, gamma, beta, weight_t, bias)
    out = jax.block_until_ready(out)

    ref = reference(x, gamma, beta, weight, bias)
    assert out.shape == (1, 14, 14, OUT_FEATURES)
    assert jnp.allclose(out, ref, atol=1e-4, rtol=1e-4), float(jnp.max(jnp.abs(out - ref)))
    print("KERNEL_OK")
</pallas_src>

<mosaic_0001>
module attributes {stable_mosaic.version = 11 : i64} {
  func.func @ln_linear_gelu_kernel(%arg0: i32, %arg1: i32, %arg2: memref<196x512xf32, #tpu.memory_space<vmem>>, %arg3: memref<1x512xf32, #tpu.memory_space<vmem>>, %arg4: memref<1x512xf32, #tpu.memory_space<vmem>>, %arg5: memref<512x512xf32, #tpu.memory_space<vmem>>, %arg6: memref<1x512xf32, #tpu.memory_space<vmem>>, %arg7: memref<196x512xf32, #tpu.memory_space<vmem>>, %arg8: memref<196x512xf32, #tpu.memory_space<vmem>>) attributes {dimension_semantics = [#tpu.dimension_semantics<parallel>, #tpu.dimension_semantics<arbitrary>], iteration_bounds = array<i64: 2, 2>, scalar_prefetch = 0 : i64, scratch_operands = 1 : i64, tpu.core_type = #tpu.core_type<tc>, window_params = [{pipeline_mode = #tpu.pipeline_mode<synchronous>, transform_indices = @transform_0, window_bounds = array<i64: 196, 512>}, {pipeline_mode = #tpu.pipeline_mode<synchronous>, transform_indices = @transform_1, window_bounds = array<i64: 1, 512>}, {pipeline_mode = #tpu.pipeline_mode<synchronous>, transform_indices = @transform_2, window_bounds = array<i64: 1, 512>}, {transform_indices = @transform_3, window_bounds = array<i64: 512, 512>}, {transform_indices = @transform_4, window_bounds = array<i64: 1, 512>}, {transform_indices = @transform_5, window_bounds = array<i64: 196, 512>}]} {
    %c0_i32 = arith.constant 0 : i32
    %0 = arith.cmpi eq, %arg1, %c0_i32 : i32
    %1 = arith.extui %0 : i1 to i32
    %c0_i32_0 = arith.constant 0 : i32
    %2 = arith.cmpi ne, %1, %c0_i32_0 : i32
    scf.if %2 {
      %c0_11 = arith.constant 0 : index
      %c0_12 = arith.constant 0 : index
      %18 = vector.load %arg2[%c0_11, %c0_12] : memref<196x512xf32, #tpu.memory_space<vmem>>, vector<196x512xf32>
      %cst_13 = arith.constant dense<0.000000e+00> : vector<196xf32>
      %19 = vector.multi_reduction <add>, %18, %cst_13 [1] : vector<196x512xf32> to vector<196xf32>
      %20 = vector.shape_cast %19 : vector<196xf32> to vector<196x1xf32>
      %cst_14 = arith.constant 5.120000e+02 : f32
      %21 = vector.broadcast %cst_14 : f32 to vector<196x1xf32>
      %22 = arith.divf %20, %21 : vector<196x1xf32>
      %23 = vector.broadcast %22 : vector<196x1xf32> to vector<196x512xf32>
      %24 = arith.subf %18, %23 : vector<196x512xf32>
      %25 = arith.mulf %24, %24 : vector<196x512xf32>
      %cst_15 = arith.constant dense<0.000000e+00> : vector<196xf32>
      %26 = vector.multi_reduction <add>, %25, %cst_15 [1] : vector<196x512xf32> to vector<196xf32>
      %27 = vector.shape_cast %26 : vector<196xf32> to vector<196x1xf32>
      %cst_16 = arith.constant 5.120000e+02 : f32
      %28 = vector.broadcast %cst_16 : f32 to vector<196x1xf32>
      %29 = arith.divf %27, %28 : vector<196x1xf32>
      %cst_17 = arith.constant 9.99999974E-6 : f32
      %30 = vector.broadcast %cst_17 : f32 to vector<196x1xf32>
      %31 = arith.addf %29, %30 : vector<196x1xf32>
      %32 = math.rsqrt %31 : vector<196x1xf32>
      %33 = vector.broadcast %32 : vector<196x1xf32> to vector<196x512xf32>
      %34 = arith.mulf %24, %33 : vector<196x512xf32>
      %c0_18 = arith.constant 0 : index
      %c0_19 = arith.constant 0 : index
      %35 = vector.load %arg3[%c0_18, %c0_19] : memref<1x512xf32, #tpu.memory_space<vmem>>, vector<1x512xf32>
      %36 = vector.broadcast %35 : vector<1x512xf32> to vector<196x512xf32>
      %37 = arith.mulf %34, %36 : vector<196x512xf32>
      %c0_20 = arith.constant 0 : index
      %c0_21 = arith.constant 0 : index
      %38 = vector.load %arg4[%c0_20, %c0_21] : memref<1x512xf32, #tpu.memory_space<vmem>>, vector<1x512xf32>
      %39 = vector.broadcast %38 : vector<1x512xf32> to vector<196x512xf32>
      %40 = arith.addf %37, %39 : vector<196x512xf32>
      %c0_22 = arith.constant 0 : index
      %c0_23 = arith.constant 0 : index
      %41 = vector.load %arg8[%c0_22, %c0_23] : memref<196x512xf32, #tpu.memory_space<vmem>>, vector<196x512xf32>
      tpu.vector_store %arg8[%c0_22, %c0_23], %40 {strides = array<i32>} : memref<196x512xf32, #tpu.memory_space<vmem>>, vector<196x512xf32>,
    } else {
    }
    %c0 = arith.constant 0 : index
    %c0_1 = arith.constant 0 : index
    %3 = vector.load %arg8[%c0, %c0_1] : memref<196x512xf32, #tpu.memory_space<vmem>>, vector<196x512xf32>
    %c0_2 = arith.constant 0 : index
    %c0_3 = arith.constant 0 : index
    %4 = vector.load %arg5[%c0_2, %c0_3] : memref<512x512xf32, #tpu.memory_space<vmem>>, vector<512x512xf32>
    %cst = arith.constant dense<0.000000e+00> : vector<196x512xf32>
    %5 = tpu.matmul %3, %4, %cst {dimension_numbers = #tpu.dot_dimension_numbers<[1], [0], [0], [1], [0, 0, 1, 1], [], []>} : vector<196x512xf32>, vector<512x512xf32>, vector<196x512xf32> -> vector<196x512xf32>
    %c0_4 = arith.constant 0 : index
    %c0_5 = arith.constant 0 : index
    %6 = vector.load %arg6[%c0_4, %c0_5] : memref<1x512xf32, #tpu.memory_space<vmem>>, vector<1x512xf32>
    %7 = vector.broadcast %6 : vector<1x512xf32> to vector<196x512xf32>
    %8 = arith.addf %5, %7 : vector<196x512xf32>
    %cst_6 = arith.constant 5.000000e-01 : f32
    %9 = vector.broadcast %cst_6 : f32 to vector<196x512xf32>
    %10 = arith.mulf %9, %8 : vector<196x512xf32>
    %cst_7 = arith.constant 0.707106769 : f32
    %11 = vector.broadcast %cst_7 : f32 to vector<196x512xf32>
    %12 = arith.mulf %8, %11 : vector<196x512xf32>
    %13 = math.erf %12 : vector<196x512xf32>
    %cst_8 = arith.constant 1.000000e+00 : f32
    %14 = vector.broadcast %cst_8 : f32 to vector<196x512xf32>
    %15 = arith.addf %14, %13 : vector<196x512xf32>
    %16 = arith.mulf %10, %15 : vector<196x512xf32>
    %c0_9 = arith.constant 0 : index
    %c0_10 = arith.constant 0 : index
    %17 = vector.load %arg7[%c0_9, %c0_10] : memref<196x512xf32, #tpu.memory_space<vmem>>, vector<196x512xf32>
    tpu.vector_store %arg7[%c0_9, %c0_10], %16 {strides = array<i32>} : memref<196x512xf32, #tpu.memory_space<vmem>>, vector<196x512xf32>,
    return
  }
  func.func @transform_0(%arg0: i32, %arg1: i32) -> (i32, i32) {
    %c0_i32 = arith.constant 0 : i32
    %c0_i32_0 = arith.constant 0 : i32
    %c0_i32_1 = arith.constant 0 : i32
    return %c0_i32, %c0_i32_0 : i32, i32
  }
  func.func @transform_1(%arg0: i32, %arg1: i32) -> (i32, i32) {
    %c0_i32 = arith.constant 0 : i32
    %c0_i32_0 = arith.constant 0 : i32
    %c0_i32_1 = arith.constant 0 : i32
    return %c0_i32, %c0_i32_0 : i32, i32
  }
  func.func @transform_2(%arg0: i32, %arg1: i32) -> (i32, i32) {
    %c0_i32 = arith.constant 0 : i32
    %c0_i32_0 = arith.constant 0 : i32
    %c0_i32_1 = arith.constant 0 : i32
    return %c0_i32, %c0_i32_0 : i32, i32
  }
  func.func @transform_3(%arg0: i32, %arg1: i32) -> (i32, i32) {
    %c2_i32 = arith.constant 2 : i32
    %0 = arith.muli %arg0, %c2_i32 : i32
    %1 = arith.addi %0, %arg1 : i32
    %c0_i32 = arith.constant 0 : i32
    %c0_i32_0 = arith.constant 0 : i32
    return %c0_i32, %1 : i32, i32
  }
  func.func @transform_4(%arg0: i32, %arg1: i32) -> (i32, i32) {
    %c2_i32 = arith.constant 2 : i32
    %0 = arith.muli %arg0, %c2_i32 : i32
    %1 = arith.addi %0, %arg1 : i32
    %c0_i32 = arith.constant 0 : i32
    %c0_i32_0 = arith.constant 0 : i32
    return %c0_i32, %1 : i32, i32
  }
  func.func @transform_5(%arg0: i32, %arg1: i32) -> (i32, i32) {
    %c2_i32 = arith.constant 2 : i32
    %0 = arith.muli %arg0, %c2_i32 : i32
    %1 = arith.addi %0, %arg1 : i32
    %c0_i32 = arith.constant 0 : i32
    %c0_i32_0 = arith.constant 0 : i32
    return %c0_i32, %1 : i32, i32
  }
}

</mosaic_0001>

<llo_original>
// kernel: layernorm_linear_gelu.1
$region0: #{layernorm_linear_gelu.1}
  #allocation0 [shape = 'u32[]', space=smem, size = 0x4, offset = 0x4, fixed_abs, tag = 'smem constant byte address 0x4 - core index']
  #allocation1 [shape = 'u32[72,128]{1,0:T(1,128)}', space=vmem, size = 0x9000, scoped, tag = 'internal scratch']
  #allocation2 [shape = 'f32[196,512]{1,0:T(8,128)}', space=vmem, size = 0x64000, scoped, tag = 'scratch operand']
  %s0 = inlined_call_operand.vmem [shape: f32[196,512], index: 0, kind: input, shape index: {}]
  %s1 = inlined_call_operand.vmem [shape: f32[1,512], index: 1, kind: input, shape index: {}]
  %s2 = inlined_call_operand.vmem [shape: f32[1,512], index: 2, kind: input, shape index: {}]
  %s3 = inlined_call_operand.hbm [shape: f32[512,2048], index: 3, kind: input, shape index: {}]
  %s4 = inlined_call_operand.vmem [shape: f32[1,2048], index: 4, kind: input, shape index: {}]
  %s5 = inlined_call_operand.vmem [shape: f32[196,2048], index: 5, kind: output, shape index: {}]
  %s6 = sld [smem:[#allocation0]]
  $region80: #{layernorm_linear_gelu.1} parent=0
    _
  %s8 = ssub.s32 1, %s6
  %s9 = scalar_select 0, %s8, %s6
  $region1: #{layernorm_linear_gelu.1} parent=0
    #allocation3 [shape = 'u8[2097152]{0}', space=vmem, size = 0x200000, scoped, tag = 'input window, operand 3']
    #allocation4 [shape = 's32[2]{0}', space=sflag, size = 0x8, scoped, tag = 'scoped memory for layernorm_linear_gelu.1']
    #allocation5 [shape = 'u8[819200]{0}', space=vmem, size = 0xc8000, scoped, tag = 'output window, operand 0']
    %10 = vsyncpa [#allocation4], 0
    %s11 = scalar_lea.sflag [#allocation4], 1
    %12 = vsyncpa %s11, 0
    loop: start=0, step=1, limit=6
    $region2: #{layernorm_linear_gelu.1} parent=1 // loop_pre_header
      _
    $region3: #{layernorm_linear_gelu.1} parent=1 // loop_header
      %s14 = sphi 0, %s18
      %p15 = scmp.ge.s32.totalorder %s14, 6
      %s21 = sphi 0, %s33
      %s22 = sphi 0, %s29
      %s23 = sphi 0, %s21
      %s24 = sphi 0, %s22
      %s25 = sphi 0, %s23
      %s26 = sphi 0, %s24
      %s34 = sphi 0, %s34
      %s36 = sphi 0, %s34
      %s37 = sphi 0, %s36
      %s51 = sphi 0, %s37
      %s55 = sphi 0, %s55
      %s57 = sphi 0, %s55
      %s58 = sphi 0, %s57
      %s72 = sphi 0, %s58
      %s76 = sphi 0, %s76
      %s78 = sphi 0, %s76
      %s79 = sphi 0, %s78
      %s93 = sphi 0, %s79
      %s103 = sphi 0, %s105
      %s106 = sphi 0, %s103
      %s107 = sphi 0, %s106
      %s123 = sphi 0, %s107
      %s133 = sphi 0, %s135
      %s136 = sphi 0, %s133
      %s137 = sphi 0, %s136
      %s153 = sphi 0, %s137
      %s163 = sphi 0, %s165
      %s166 = sphi 0, %s163
      %s167 = sphi 0, %s166
      %s183 = sphi 0, %s167
    $region4: #{layernorm_linear_gelu.1} parent=1 // loop_header_branch
      %17 = sbr.rel (%p15) target = $region8
    $region5: #{layernorm_linear_gelu.1} parent=1 // loop_body
      %s19 = ssub.s32 %s14, 1
      %s20 = ssub.s32 %s14, 2
      %s27 = sadd.s32 1, %s22
      %p28 = scmp.ge.s32.totalorder %s27, 2
      %s29 = scalar_select %p28, 0, %s27
      %s30 = sadd.s32 1, %s21
      %s31 = scalar_select %p28, %s30, %s21
      %p32 = scmp.ge.s32.totalorder %s31, 2
      %s33 = scalar_select %p32, 0, %s31
      %s35 = sadd.s32 %s34, 1
      %p38 = scmp.eq.s32.totalorder %s14, 3
      %p39 = scmp.ne.s32.totalorder %s34, %s36
      %p40 = scmp.eq.s32.totalorder %s14, 0
      %p41 = por %p39, %p40
      %p42 = scmp.ne.s32.totalorder %s34, %s36
      %p43 = scmp.eq.s32.totalorder %s19, 3
      %p44 = por %p42, %p43
      %p45 = scmp.ne.s32.totalorder %s36, %s37
      %p46 = scmp.eq.s32.totalorder %s19, 0
      %p47 = por %p45, %p46
      %p48 = scmp.ne.s32.totalorder %s36, %s37
      %p49 = scmp.eq.s32.totalorder %s20, 3
      %p50 = por %p48, %p49
      %p52 = scmp.ne.s32.totalorder %s37, %s51
      %p53 = scmp.eq.s32.totalorder %s20, 0
      %p54 = por %p52, %p53
      %s56 = sadd.s32 %s55, 1
      %p59 = scmp.eq.s32.totalorder %s14, 3
      %p60 = scmp.ne.s32.totalorder %s55, %s57
      %p61 = scmp.eq.s32.totalorder %s14, 0
      %p62 = por %p60, %p61
      %p63 = scmp.ne.s32.totalorder %s55, %s57
      %p64 = scmp.eq.s32.totalorder %s19, 3
      %p65 = por %p63, %p64
      %p66 = scmp.ne.s32.totalorder %s57, %s58
      %p67 = scmp.eq.s32.totalorder %s19, 0
      %p68 = por %p66, %p67
      %p69 = scmp.ne.s32.totalorder %s57, %s58
      %p70 = scmp.eq.s32.totalorder %s20, 3
      %p71 = por %p69, %p70
      %p73 = scmp.ne.s32.totalorder %s58, %s72
      %p74 = scmp.eq.s32.totalorder %s20, 0
      %p75 = por %p73, %p74
      %s77 = sadd.s32 %s76, 1
      %p80 = scmp.eq.s32.totalorder %s14, 3
      %p81 = scmp.ne.s32.totalorder %s76, %s78
      %p82 = scmp.eq.s32.totalorder %s14, 0
      %p83 = por %p81, %p82
      %p84 = scmp.ne.s32.totalorder %s76, %s78
      %p85 = scmp.eq.s32.totalorder %s19, 3
      %p86 = por %p84, %p85
      %p87 = scmp.ne.s32.totalorder %s78, %s79
      %p88 = scmp.eq.s32.totalorder %s19, 0
      %p89 = por %p87, %p88
      %p90 = scmp.ne.s32.totalorder %s78, %s79
      %p91 = scmp.eq.s32.totalorder %s20, 3
      %p92 = por %p90, %p91
      %p94 = scmp.ne.s32.totalorder %s79, %s93
      %p95 = scmp.eq.s32.totalorder %s20, 0
      %p96 = por %p94, %p95
      %s97 = smul.u32 %s21, 2
      %s98 = sadd.s32 %s97, %s22
      %s99 = smul.u32 %s33, 2
      %s100 = sadd.s32 %s99, %s29
      %s101 = ssub.s32 %s98, %s100
      %p102 = scmp.eq.s32.totalorder %s101, 0
      %s104 = sadd.s32 %s103, 1
      %s105 = scalar_select %p102, %s103, %s104
      %p108 = pneg %p102
      %p109 = scmp.eq.s32.totalorder %s14, 3
      %p110 = por %p108, %p109
      %p111 = scmp.ne.s32.totalorder %s103, %s106
      %p112 = scmp.eq.s32.totalorder %s14, 0
      %p113 = por %p111, %p112
      %p114 = scmp.ne.s32.totalorder %s103, %s106
      %p115 = scmp.eq.s32.totalorder %s19, 3
      %p116 = por %p114, %p115
      %p117 = scmp.ne.s32.totalorder %s106, %s107
      %p118 = scmp.eq.s32.totalorder %s19, 0
      %p119 = por %p117, %p118
      %p120 = scmp.ne.s32.totalorder %s106, %s107
      %p121 = scmp.eq.s32.totalorder %s20, 3
      %p122 = por %p120, %p121
      %p124 = scmp.ne.s32.totalorder %s107, %s123
      %p125 = scmp.eq.s32.totalorder %s20, 0
      %p126 = por %p124, %p125
      %s127 = smul.u32 %s21, 2
      %s128 = sadd.s32 %s127, %s22
      %s129 = smul.u32 %s33, 2
      %s130 = sadd.s32 %s129, %s29
      %s131 = ssub.s32 %s128, %s130
      %p132 = scmp.eq.s32.totalorder %s131, 0
      %s134 = sadd.s32 %s133, 1
      %s135 = scalar_select %p132, %s133, %s134
      %p138 = pneg %p132
      %p139 = scmp.eq.s32.totalorder %s14, 3
      %p140 = por %p138, %p139
      %p141 = scmp.ne.s32.totalorder %s133, %s136
      %p142 = scmp.eq.s32.totalorder %s14, 0
      %p143 = por %p141, %p142
      %p144 = scmp.ne.s32.totalorder %s133, %s136
      %p145 = scmp.eq.s32.totalorder %s19, 3
      %p146 = por %p144, %p145
      %p147 = scmp.ne.s32.totalorder %s136, %s137
      %p148 = scmp.eq.s32.totalorder %s19, 0
      %p149 = por %p147, %p148
      %p150 = scmp.ne.s32.totalorder %s136, %s137
      %p151 = scmp.eq.s32.totalorder %s20, 3
      %p152 = por %p150, %p151
      %p154 = scmp.ne.s32.totalorder %s137, %s153
      %p155 = scmp.eq.s32.totalorder %s20, 0
      %p156 = por %p154, %p155
      %s157 = smul.u32 %s21, 2
      %s158 = sadd.s32 %s157, %s22
      %s159 = smul.u32 %s33, 2
      %s160 = sadd.s32 %s159, %s29
      %s161 = ssub.s32 %s158, %s160
      %p162 = scmp.eq.s32.totalorder %s161, 0
      %s164 = sadd.s32 %s163, 1
      %s165 = scalar_select %p162, %s163, %s164
      %p168 = pneg %p162
      %p169 = scmp.eq.s32.totalorder %s14, 3
      %p170 = por %p168, %p169
      %p171 = scmp.ne.s32.totalorder %s163, %s166
      %p172 = scmp.eq.s32.totalorder %s14, 0
      %p173 = por %p171, %p172
      %p174 = scmp.ne.s32.totalorder %s163, %s166
      %p175 = scmp.eq.s32.totalorder %s19, 3
      %p176 = por %p174, %p175
      %p177 = scmp.ne.s32.totalorder %s166, %s167
      %p178 = scmp.eq.s32.totalorder %s19, 0
      %p179 = por %p177, %p178
      %p180 = scmp.ne.s32.totalorder %s166, %s167
      %p181 = scmp.eq.s32.totalorder %s20, 3
      %p182 = por %p180, %p181
      %p184 = scmp.ne.s32.totalorder %s167, %s183
      %p185 = scmp.eq.s32.totalorder %s20, 0
      %p186 = por %p184, %p185
      %p187 = scmp.le.s32.totalorder 1, %s14
      %p188 = scmp.lt.s32.totalorder %s14, 5
      %p189 = pnand %p187, %p188
      %p190 = pneg %p189
      // Predicated region
      $region9: #{layernorm_linear_gelu.1} parent=5 // pred_check
        _
      $region10: #{layernorm_linear_gelu.1} parent=5 // pred_check_branch
        %192 = sbr.rel (%p189) target = $region12
      $region11: #{layernorm_linear_gelu.1} parent=5 // pred_region
        %s193 = ssub.s32 %s14, 1
        // Predicated region
        $region13: #{layernorm_linear_gelu.1} parent=11 // pred_check
          %p194 = pneg %p47
        $region14: #{layernorm_linear_gelu.1} parent=11 // pred_check_branch
          %196 = sbr.rel (%p194) target = $region16
        $region15: #{layernorm_linear_gelu.1} parent=11 // pred_region
          _
        $region16: #{layernorm_linear_gelu.1} parent=11 // pred_fallthru
          _
        // Predicated region
        $region17: #{layernorm_linear_gelu.1} parent=11 // pred_check
          %p197 = pneg %p68
        $region18: #{layernorm_linear_gelu.1} parent=11 // pred_check_branch
          %199 = sbr.rel (%p197) target = $region20
        $region19: #{layernorm_linear_gelu.1} parent=11 // pred_region
          _
        $region20: #{layernorm_linear_gelu.1} parent=11 // pred_fallthru
          _
        // Predicated region
        $region21: #{layernorm_linear_gelu.1} parent=11 // pred_check
          %p200 = pneg %p89
        $region22: #{layernorm_linear_gelu.1} parent=11 // pred_check_branch
          %202 = sbr.rel (%p200) target = $region24
        $region23: #{layernorm_linear_gelu.1} parent=11 // pred_region
          _
        $region24: #{layernorm_linear_gelu.1} parent=11 // pred_fallthru
          _
      $region12: #{layernorm_linear_gelu.1} parent=5 // pred_fallthru
        _
      %p203 = scmp.lt.s32.totalorder %s14, 4
      // Predicated region
      $region25: #{layernorm_linear_gelu.1} parent=5 // pred_check
        %p204 = pneg %p203
      $region26: #{layernorm_linear_gelu.1} parent=5 // pred_check_branch
        %206 = sbr.rel (%p204) target = $region28
      $region27: #{layernorm_linear_gelu.1} parent=5 // pred_region
        // Predicated region
        $region29: #{layernorm_linear_gelu.1} parent=27 // pred_check
          %p207 = pneg %p113
        $region30: #{layernorm_linear_gelu.1} parent=27 // pred_check_branch
          %209 = sbr.rel (%p207) target = $region32
        $region31: #{layernorm_linear_gelu.1} parent=27 // pred_region
          %s210 = sand.u32 %s103, 1
          %s211 = scalar_lea.sflag [#allocation4], %s210
          %s212 = sand.u32 %s103, 1
          %s213 = smul.addr %s212, 2048
          %s214 = scalar_lea.vmem [#allocation3], %s213
          %s215 = smul.u32 %s21, 2
          %s216 = sadd.s32 %s215, %s22
          %s217 = smul.u32 4, %s216
          %219 = vsyncadd %s211, 0
          %s220 = smul.addr %s217, 8
          %s221 = scalar_lea.hbm %s3, %s220
          %s222 = sshll.u32 %s221, 4
          %s223 = int_to_ptr.hbm [resolvable:$true] %s222
          %s224 = sshll.u32 %s214, 4
          %s225 = int_to_ptr.vmem [resolvable:$true] %s224
          %230 = dma.hbm_to_vmem [thread:$0]  %s223, 32768, %s225, %s211, 2048, 512, 32
        $region32: #{layernorm_linear_gelu.1} parent=27 // pred_fallthru
          _
        // Predicated region
        $region33: #{layernorm_linear_gelu.1} parent=27 // pred_check
          %p231 = pneg %p143
        $region34: #{layernorm_linear_gelu.1} parent=27 // pred_check_branch
          %233 = sbr.rel (%p231) target = $region36
        $region35: #{layernorm_linear_gelu.1} parent=27 // pred_region
          %s234 = smul.u32 %s21, 2
          %s235 = sadd.s32 %s234, %s22
          %s236 = smul.u32 4, %s235
          %p237 = scmp.lt.s32.totalorder %s236, 15
          %s238 = scalar_select %p237, %s236, 15
          %s239 = scalar_lea.vmem %s4, %s238
          %s240 = smul.u32 %s21, 2
          %s241 = sadd.s32 %s240, %s22
          %s242 = smul.u32 4, %s241
        $region36: #{layernorm_linear_gelu.1} parent=27 // pred_fallthru
          _
      $region28: #{layernorm_linear_gelu.1} parent=5 // pred_fallthru
        _
      %p243 = scmp.le.s32.totalorder 1, %s14
      %p244 = scmp.lt.s32.totalorder %s14, 5
      %p245 = pnand %p243, %p244
      %p246 = pneg %p245
      // Predicated region
      $region37: #{layernorm_linear_gelu.1} parent=5 // pred_check
        _
      $region38: #{layernorm_linear_gelu.1} parent=5 // pred_check_branch
        %248 = sbr.rel (%p245) target = $region40
      $region39: #{layernorm_linear_gelu.1} parent=5 // pred_region
        %s249 = ssub.s32 %s14, 1
        %s250 = sand.u32 %s106, 1
        %s251 = scalar_lea.sflag [#allocation4], %s250
        %s252 = sand.u32 %s106, 1
        %s253 = smul.addr %s252, 2048
        %s254 = scalar_lea.vmem [#allocation3], %s253
        // Predicated region
        $region41: #{layernorm_linear_gelu.1} parent=39 // pred_check
          %p255 = pneg %p119
        $region42: #{layernorm_linear_gelu.1} parent=39 // pred_check_branch
          %257 = sbr.rel (%p255) target = $region44
        $region43: #{layernorm_linear_gelu.1} parent=39 // pred_region
          %259 = dma.done %s251, 32768
        $region44: #{layernorm_linear_gelu.1} parent=39 // pred_fallthru
          _
        %p260 = pneg %p47
        %p261 = pneg %p44
        %p262 = pneg %p68
        %p263 = pneg %p65
        %p264 = pneg %p89
        %p265 = pneg %p86
        %s266 = sand.u32 %s106, 1
        %s267 = scalar_lea.sflag [#allocation4], %s266
        %s268 = sand.u32 %s106, 1
        %s269 = smul.addr %s268, 2048
        %s270 = scalar_lea.vmem [#allocation3], %s269
        %p271 = pneg %p119
        %p272 = pneg %p116
        %s273 = smul.u32 %s23, 2
        %s274 = sadd.s32 %s273, %s24
        %s275 = smul.u32 4, %s274
        %p276 = scmp.lt.s32.totalorder %s275, 15
        %s277 = scalar_select %p276, %s275, 15
        %s278 = scalar_lea.vmem %s4, %s277
        %p279 = pneg %p149
        %p280 = pneg %p146
        %p281 = pneg %p179
        %p282 = pneg %p176
        %s283 = sand.u32 %s166, 1
        %s284 = sand.u32 %s166, 1
        %s285 = smul.addr %s284, 800
        %s286 = scalar_lea.vmem [#allocation5], %s285
        %s287 = smul.u32 %s23, 2
        %s288 = sadd.s32 %s287, %s24
        %s289 = smul.u32 4, %s288
        %s290 = smul.u32 %s23, 2
        %s291 = sadd.s32 %s290, %s24
        %s292 = smul.u32 4, %s291
        %p293 = scmp.lt.s32.totalorder %s292, 15
        %s294 = scalar_select %p293, %s292, 15
        %s295 = scalar_lea.vmem %s4, %s294
        %s296 = smul.u32 %s23, 2
        %s297 = sadd.s32 %s296, %s24
        %s298 = smul.u32 4, %s297
        %s299 = smul.u32 %s23, 2
        %s300 = sadd.s32 %s299, %s24
        %s301 = smul.u32 4, %s300
        %p302 = scmp.eq.s32.totalorder %s24, 0
        // Predicated region
        $region45: #{layernorm_linear_gelu.1} parent=39 // pred_check
          %p303 = pneg %p302
        $region46: #{layernorm_linear_gelu.1} parent=39 // pred_check_branch
          %305 = sbr.rel (%p303) target = $region48
        $region47: #{layernorm_linear_gelu.1} parent=39 // pred_region
          %v306 = vld [vmem:[%s0] sm:$0xff]
          %v307 = vld [vmem:[%s0 + $0x8] sm:$0xff]
          %v308 = vld [vmem:[%s0 + $0x10] sm:$0xff]
          %v309 = vld [vmem:[%s0 + $0x18] sm:$0xff]
          %v310 = vld [vmem:[%s0 + $0x20] sm:$0xff]
          %v311 = vld [vmem:[%s0 + $0x28] sm:$0xff]
          %v312 = vld [vmem:[%s0 + $0x30] sm:$0xff]
          %v313 = vld [vmem:[%s0 + $0x38] sm:$0xff]
          %v314 = vld [vmem:[%s0 + $0x40] sm:$0xff]
          %v315 = vld [vmem:[%s0 + $0x48] sm:$0xff]
          %v316 = vld [vmem:[%s0 + $0x50] sm:$0xff]
          %v317 = vld [vmem:[%s0 + $0x58] sm:$0xff]
          %v318 = vld [vmem:[%s0 + $0x60] sm:$0xff]
          %v319 = vld [vmem:[%s0 + $0x68] sm:$0xff]
          %v320 = vld [vmem:[%s0 + $0x70] sm:$0xff]
          %v321 = vld [vmem:[%s0 + $0x78] sm:$0xff]
          %v322 = vld [vmem:[%s0 + $0x80] sm:$0xff]
          %v323 = vld [vmem:[%s0 + $0x88] sm:$0xff]
          %v324 = vld [vmem:[%s0 + $0x90] sm:$0xff]
          %v325 = vld [vmem:[%s0 + $0x98] sm:$0xff]
          %v326 = vld [vmem:[%s0 + $0xa0] sm:$0xff]
          %v327 = vld [vmem:[%s0 + $0xa8] sm:$0xff]
          %v328 = vld [vmem:[%s0 + $0xb0] sm:$0xff]
          %v329 = vld [vmem:[%s0 + $0xb8] sm:$0xff]
          %v330 = vld [vmem:[%s0 + $0xc0] sm:$0xff]
          %v331 = vld [vmem:[%s0 + $0xc8] sm:$0xff]
          %v332 = vld [vmem:[%s0 + $0xd0] sm:$0xff]
          %v333 = vld [vmem:[%s0 + $0xd8] sm:$0xff]
          %v334 = vld [vmem:[%s0 + $0xe0] sm:$0xff]
          %v335 = vld [vmem:[%s0 + $0xe8] sm:$0xff]
          %v336 = vld [vmem:[%s0 + $0xf0] sm:$0xff]
          %v337 = vld [vmem:[%s0 + $0xf8] sm:$0xff]
          %v338 = vld [vmem:[%s0 + $0x100] sm:$0xff]
          %v339 = vld [vmem:[%s0 + $0x108] sm:$0xff]
          %v340 = vld [vmem:[%s0 + $0x110] sm:$0xff]
          %v341 = vld [vmem:[%s0 + $0x118] sm:$0xff]
          %v342 = vld [vmem:[%s0 + $0x120] sm:$0xff]
          %v343 = vld [vmem:[%s0 + $0x128] sm:$0xff]
          %v344 = vld [vmem:[%s0 + $0x130] sm:$0xff]
          %v345 = vld [vmem:[%s0 + $0x138] sm:$0xff]
          %v346 = vld [vmem:[%s0 + $0x140] sm:$0xff]
          %v347 = vld [vmem:[%s0 + $0x148] sm:$0xff]
          %v348 = vld [vmem:[%s0 + $0x150] sm:$0xff]
          %v349 = vld [vmem:[%s0 + $0x158] sm:$0xff]
          %v350 = vld [vmem:[%s0 + $0x160] sm:$0xff]
          %v351 = vld [vmem:[%s0 + $0x168] sm:$0xff]
          %v352 = vld [vmem:[%s0 + $0x170] sm:$0xff]
          %v353 = vld [vmem:[%s0 + $0x178] sm:$0xff]
          %v354 = vld [vmem:[%s0 + $0x180] sm:$0xff]
          %v355 = vld [vmem:[%s0 + $0x188] sm:$0xff]
          %v356 = vld [vmem:[%s0 + $0x190] sm:$0xff]
          %v357 = vld [vmem:[%s0 + $0x198] sm:$0xff]
          %v358 = vld [vmem:[%s0 + $0x1a0] sm:$0xff]
          %v359 = vld [vmem:[%s0 + $0x1a8] sm:$0xff]
          %v360 = vld [vmem:[%s0 + $0x1b0] sm:$0xff]
          %v361 = vld [vmem:[%s0 + $0x1b8] sm:$0xff]
          %v362 = vld [vmem:[%s0 + $0x1c0] sm:$0xff]
          %v363 = vld [vmem:[%s0 + $0x1c8] sm:$0xff]
          %v364 = vld [vmem:[%s0 + $0x1d0] sm:$0xff]
          %v365 = vld [vmem:[%s0 + $0x1d8] sm:$0xff]
          %v366 = vld [vmem:[%s0 + $0x1e0] sm:$0xff]
          %v367 = vld [vmem:[%s0 + $0x1e8] sm:$0xff]
          %v368 = vld [vmem:[%s0 + $0x1f0] sm:$0xff]
          %v369 = vld [vmem:[%s0 + $0x1f8] sm:$0xff]
          %v370 = vld [vmem:[%s0 + $0x200] sm:$0xff]
          %v371 = vld [vmem:[%s0 + $0x208] sm:$0xff]
          %v372 = vld [vmem:[%s0 + $0x210] sm:$0xff]
          %v373 = vld [vmem:[%s0 + $0x218] sm:$0xff]
          %v374 = vld [vmem:[%s0 + $0x220] sm:$0xff]
          %v375 = vld [vmem:[%s0 + $0x228] sm:$0xff]
          %v376 = vld [vmem:[%s0 + $0x230] sm:$0xff]
          %v377 = vld [vmem:[%s0 + $0x238] sm:$0xff]
          %v378 = vld [vmem:[%s0 + $0x240] sm:$0xff]
          %v379 = vld [vmem:[%s0 + $0x248] sm:$0xff]
          %v380 = vld [vmem:[%s0 + $0x250] sm:$0xff]
          %v381 = vld [vmem:[%s0 + $0x258] sm:$0xff]
          %v382 = vld [vmem:[%s0 + $0x260] sm:$0xff]
          %v383 = vld [vmem:[%s0 + $0x268] sm:$0xff]
          %v384 = vld [vmem:[%s0 + $0x270] sm:$0xff]
          %v385 = vld [vmem:[%s0 + $0x278] sm:$0xff]
          %v386 = vld [vmem:[%s0 + $0x280] sm:$0xff]
          %v387 = vld [vmem:[%s0 + $0x288] sm:$0xff]
          %v388 = vld [vmem:[%s0 + $0x290] sm:$0xff]
          %v389 = vld [vmem:[%s0 + $0x298] sm:$0xff]
          %v390 = vld [vmem:[%s0 + $0x2a0] sm:$0xff]
          %v391 = vld [vmem:[%s0 + $0x2a8] sm:$0xff]
          %v392 = vld [vmem:[%s0 + $0x2b0] sm:$0xff]
          %v393 = vld [vmem:[%s0 + $0x2b8] sm:$0xff]
          %v394 = vld [vmem:[%s0 + $0x2c0] sm:$0xff]
          %v395 = vld [vmem:[%s0 + $0x2c8] sm:$0xff]
          %v396 = vld [vmem:[%s0 + $0x2d0] sm:$0xff]
          %v397 = vld [vmem:[%s0 + $0x2d8] sm:$0xff]
          %v398 = vld [vmem:[%s0 + $0x2e0] sm:$0xff]
          %v399 = vld [vmem:[%s0 + $0x2e8] sm:$0xff]
          %v400 = vld [vmem:[%s0 + $0x2f0] sm:$0xff]
          %v401 = vld [vmem:[%s0 + $0x2f8] sm:$0xff]
          %v402 = vld [vmem:[%s0 + $0x300] sm:$0xf]
          %v403 = vld [vmem:[%s0 + $0x308] sm:$0xf]
          %v404 = vld [vmem:[%s0 + $0x310] sm:$0xf]
          %v405 = vld [vmem:[%s0 + $0x318] sm:$0xf]
          %v406 = vadd.f32 %v306, %v307
          %v407 = vadd.f32 %v406, %v308
          %v408 = vadd.f32 %v407, %v309
          %409 = vadd.xlane.f32.xlu0 %v408
          %v410 = vpop.xlane.xlu0 %409
          %v411 = vadd.f32 %v310, %v311
          %v412 = vadd.f32 %v411, %v312
          %v413 = vadd.f32 %v412, %v313
          %414 = vadd.xlane.f32.xlu0 %v413
          %v415 = vpop.xlane.xlu0 %414
          %v416 = vadd.f32 %v314, %v315
          %v417 = vadd.f32 %v416, %v316
          %v418 = vadd.f32 %v417, %v317
          %419 = vadd.xlane.f32.xlu0 %v418
          %v420 = vpop.xlane.xlu0 %419
          %v421 = vadd.f32 %v318, %v319
          %v422 = vadd.f32 %v421, %v320
          %v423 = vadd.f32 %v422, %v321
          %424 = vadd.xlane.f32.xlu0 %v423
          %v425 = vpop.xlane.xlu0 %424
          %v426 = vadd.f32 %v322, %v323
          %v427 = vadd.f32 %v426, %v324
          %v428 = vadd.f32 %v427, %v325
          %429 = vadd.xlane.f32.xlu0 %v428
          %v430 = vpop.xlane.xlu0 %429
          %v431 = vadd.f32 %v326, %v327
          %v432 = vadd.f32 %v431, %v328
          %v433 = vadd.f32 %v432, %v329
          %434 = vadd.xlane.f32.xlu0 %v433
          %v435 = vpop.xlane.xlu0 %434
          %v436 = vadd.f32 %v330, %v331
          %v437 = vadd.f32 %v436, %v332
          %v438 = vadd.f32 %v437, %v333
          %439 = vadd.xlane.f32.xlu0 %v438
          %v440 = vpop.xlane.xlu0 %439
          %v441 = vadd.f32 %v334, %v335
          %v442 = vadd.f32 %v441, %v336
          %v443 = vadd.f32 %v442, %v337
          %444 = vadd.xlane.f32.xlu0 %v443
          %v445 = vpop.xlane.xlu0 %444
          %v446 = vadd.f32 %v338, %v339
          %v447 = vadd.f32 %v446, %v340
          %v448 = vadd.f32 %v447, %v341
          %449 = vadd.xlane.f32.xlu0 %v448
          %v450 = vpop.xlane.xlu0 %449
          %v451 = vadd.f32 %v342, %v343
          %v452 = vadd.f32 %v451, %v344
          %v453 = vadd.f32 %v452, %v345
          %454 = vadd.xlane.f32.xlu0 %v453
          %v455 = vpop.xlane.xlu0 %454
          %v456 = vadd.f32 %v346, %v347
          %v457 = vadd.f32 %v456, %v348
          %v458 = vadd.f32 %v457, %v349
          %459 = vadd.xlane.f32.xlu0 %v458
          %v460 = vpop.xlane.xlu0 %459
          %v461 = vadd.f32 %v350, %v351
          %v462 = vadd.f32 %v461, %v352
          %v463 = vadd.f32 %v462, %v353
          %464 = vadd.xlane.f32.xlu0 %v463
          %v465 = vpop.xlane.xlu0 %464
          %v466 = vadd.f32 %v354, %v355
          %v467 = vadd.f32 %v466, %v356
          %v468 = vadd.f32 %v467, %v357
          %469 = vadd.xlane.f32.xlu0 %v468
          %v470 = vpop.xlane.xlu0 %469
          %v471 = vadd.f32 %v358, %v359
          %v472 = vadd.f32 %v471, %v360
          %v473 = vadd.f32 %v472, %v361
          %474 = vadd.xlane.f32.xlu0 %v473
          %v475 = vpop.xlane.xlu0 %474
          %v476 = vadd.f32 %v362, %v363
          %v477 = vadd.f32 %v476, %v364
          %v478 = vadd.f32 %v477, %v365
          %479 = vadd.xlane.f32.xlu0 %v478
          %v480 = vpop.xlane.xlu0 %479
          %v481 = vadd.f32 %v366, %v367
          %v482 = vadd.f32 %v481, %v368
          %v483 = vadd.f32 %v482, %v369
          %484 = vadd.xlane.f32.xlu0 %v483
          %v485 = vpop.xlane.xlu0 %484
          %v486 = vadd.f32 %v370, %v371
          %v487 = vadd.f32 %v486, %v372
          %v488 = vadd.f32 %v487, %v373
          %489 = vadd.xlane.f32.xlu0 %v488
          %v490 = vpop.xlane.xlu0 %489
          %v491 = vadd.f32 %v374, %v375
          %v492 = vadd.f32 %v491, %v376
          %v493 = vadd.f32 %v492, %v377
          %494 = vadd.xlane.f32.xlu0 %v493
          %v495 = vpop.xlane.xlu0 %494
          %v496 = vadd.f32 %v378, %v379
          %v497 = vadd.f32 %v496, %v380
          %v498 = vadd.f32 %v497, %v381
          %499 = vadd.xlane.f32.xlu0 %v498
          %v500 = vpop.xlane.xlu0 %499
          %v501 = vadd.f32 %v382, %v383
          %v502 = vadd.f32 %v501, %v384
          %v503 = vadd.f32 %v502, %v385
          %504 = vadd.xlane.f32.xlu0 %v503
          %v505 = vpop.xlane.xlu0 %504
          %v506 = vadd.f32 %v386, %v387
          %v507 = vadd.f32 %v506, %v388
          %v508 = vadd.f32 %v507, %v389
          %509 = vadd.xlane.f32.xlu0 %v508
          %v510 = vpop.xlane.xlu0 %509
          %v511 = vadd.f32 %v390, %v391
          %v512 = vadd.f32 %v511, %v392
          %v513 = vadd.f32 %v512, %v393
          %514 = vadd.xlane.f32.xlu0 %v513
          %v515 = vpop.xlane.xlu0 %514
          %v516 = vadd.f32 %v394, %v395
          %v517 = vadd.f32 %v516, %v396
          %v518 = vadd.f32 %v517, %v397
          %519 = vadd.xlane.f32.xlu0 %v518
          %v520 = vpop.xlane.xlu0 %519
          %v521 = vadd.f32 %v398, %v399
          %v522 = vadd.f32 %v521, %v400
          %v523 = vadd.f32 %v522, %v401
          %524 = vadd.xlane.f32.xlu0 %v523
          %v525 = vpop.xlane.xlu0 %524
          %vm526 = vcmask 1043456
          %v527 = vsel %vm526, %v402, 0.0
          %v528 = vsel %vm526, %v403, 0.0
          %v529 = vadd.f32 %v527, %v528
          %v530 = vsel %vm526, %v404, 0.0
          %v531 = vadd.f32 %v529, %v530
          %v532 = vsel %vm526, %v405, 0.0
          %v533 = vadd.f32 %v531, %v532
          %534 = vadd.xlane.f32.xlu0 %v533
          %v535 = vpop.xlane.xlu0 %534
          %v536 = vrcp.pop 512.0
          %v537 = vmul.f32 512.0, %v536
          %v538 = vsub.f32 1.0, %v537
          %v539 = vmul.f32 %v536, %v538
          %v540 = vadd.f32 %v536, %v539
          %vm541 = vweird.f32 %v536
          %v542 = vsel %vm541, %v536, %v540
          %v543 = vmul.f32 %v410, %v542
          %v544 = vmul.f32 %v415, %v542
          %v545 = vmul.f32 %v420, %v542
          %v546 = vmul.f32 %v425, %v542
          %v547 = vmul.f32 %v430, %v542
          %v548 = vmul.f32 %v435, %v542
          %v549 = vmul.f32 %v440, %v542
          %v550 = vmul.f32 %v445, %v542
          %v551 = vmul.f32 %v450, %v542
          %v552 = vmul.f32 %v455, %v542
          %v553 = vmul.f32 %v460, %v542
          %v554 = vmul.f32 %v465, %v542
          %v555 = vmul.f32 %v470, %v542
          %v556 = vmul.f32 %v475, %v542
          %v557 = vmul.f32 %v480, %v542
          %v558 = vmul.f32 %v485, %v542
          %v559 = vmul.f32 %v490, %v542
          %v560 = vmul.f32 %v495, %v542
          %v561 = vmul.f32 %v500, %v542
          %v562 = vmul.f32 %v505, %v542
          %v563 = vmul.f32 %v510, %v542
          %v564 = vmul.f32 %v515, %v542
          %v565 = vmul.f32 %v520, %v542
          %v566 = vmul.f32 %v525, %v542
          %v567 = vmul.f32 %v535, %v542
          %v568 = vsub.f32 %v306, %v543
          %v569 = vsub.f32 %v307, %v543
          %v570 = vsub.f32 %v308, %v543
          %v571 = vsub.f32 %v309, %v543
          %v572 = vsub.f32 %v310, %v544
          %v573 = vsub.f32 %v311, %v544
          %v574 = vsub.f32 %v312, %v544
          %v575 = vsub.f32 %v313, %v544
          %v576 = vsub.f32 %v314, %v545
          %v577 = vsub.f32 %v315, %v545
          %v578 = vsub.f32 %v316, %v545
          %v579 = vsub.f32 %v317, %v545
          %v580 = vsub.f32 %v318, %v546
          %v581 = vsub.f32 %v319, %v546
          %v582 = vsub.f32 %v320, %v546
          %v583 = vsub.f32 %v321, %v546
          %v584 = vsub.f32 %v322, %v547
          %v585 = vsub.f32 %v323, %v547
          %v586 = vsub.f32 %v324, %v547
          %v587 = vsub.f32 %v325, %v547
          %v588 = vsub.f32 %v326, %v548
          %v589 = vsub.f32 %v327, %v548
          %v590 = vsub.f32 %v328, %v548
          %v591 = vsub.f32 %v329, %v548
          %v592 = vsub.f32 %v330, %v549
          %v593 = vsub.f32 %v331, %v549
          %v594 = vsub.f32 %v332, %v549
          %v595 = vsub.f32 %v333, %v549
          %v596 = vsub.f32 %v334, %v550
          %v597 = vsub.f32 %v335, %v550
          %v598 = vsub.f32 %v336, %v550
          %v599 = vsub.f32 %v337, %v550
          %v600 = vsub.f32 %v338, %v551
          %v601 = vsub.f32 %v339, %v551
          %v602 = vsub.f32 %v340, %v551
          %v603 = vsub.f32 %v341, %v551
          %v604 = vsub.f32 %v342, %v552
          %v605 = vsub.f32 %v343, %v552
          %v606 = vsub.f32 %v344, %v552
          %v607 = vsub.f32 %v345, %v552
          %v608 = vsub.f32 %v346, %v553
          %v609 = vsub.f32 %v347, %v553
          %v610 = vsub.f32 %v348, %v553
          %v611 = vsub.f32 %v349, %v553
          %v612 = vsub.f32 %v350, %v554
          %v613 = vsub.f32 %v351, %v554
          %v614 = vsub.f32 %v352, %v554
          %v615 = vsub.f32 %v353, %v554
          %v616 = vsub.f32 %v354, %v555
          %v617 = vsub.f32 %v355, %v555
          %v618 = vsub.f32 %v356, %v555
          %v619 = vsub.f32 %v357, %v555
          %v620 = vsub.f32 %v358, %v556
          %v621 = vsub.f32 %v359, %v556
          %v622 = vsub.f32 %v360, %v556
          %v623 = vsub.f32 %v361, %v556
          %v624 = vsub.f32 %v362, %v557
          %v625 = vsub.f32 %v363, %v557
          %v626 = vsub.f32 %v364, %v557
          %v627 = vsub.f32 %v365, %v557
          %v628 = vsub.f32 %v366, %v558
          %v629 = vsub.f32 %v367, %v558
          %v630 = vsub.f32 %v368, %v558
          %v631 = vsub.f32 %v369, %v558
          %v632 = vsub.f32 %v370, %v559
          %v633 = vsub.f32 %v371, %v559
          %v634 = vsub.f32 %v372, %v559
          %v635 = vsub.f32 %v373, %v559
          %v636 = vsub.f32 %v374, %v560
          %v637 = vsub.f32 %v375, %v560
          %v638 = vsub.f32 %v376, %v560
          %v639 = vsub.f32 %v377, %v560
          %v640 = vsub.f32 %v378, %v561
          %v641 = vsub.f32 %v379, %v561
          %v642 = vsub.f32 %v380, %v561
          %v643 = vsub.f32 %v381, %v561
          %v644 = vsub.f32 %v382, %v562
          %v645 = vsub.f32 %v383, %v562
          %v646 = vsub.f32 %v384, %v562
          %v647 = vsub.f32 %v385, %v562
          %v648 = vsub.f32 %v386, %v563
          %v649 = vsub.f32 %v387, %v563
          %v650 = vsub.f32 %v388, %v563
          %v651 = vsub.f32 %v389, %v563
          %v652 = vsub.f32 %v390, %v564
          %v653 = vsub.f32 %v391, %v564
          %v654 = vsub.f32 %v392, %v564
          %v655 = vsub.f32 %v393, %v564
          %v656 = vsub.f32 %v394, %v565
          %v657 = vsub.f32 %v395, %v565
          %v658 = vsub.f32 %v396, %v565
          %v659 = vsub.f32 %v397, %v565
          %v660 = vsub.f32 %v398, %v566
          %v661 = vsub.f32 %v399, %v566
          %v662 = vsub.f32 %v400, %v566
          %v663 = vsub.f32 %v401, %v566
          %v664 = vsub.f32 %v402, %v567
          %v665 = vsub.f32 %v403, %v567
          %v666 = vsub.f32 %v404, %v567
          %v667 = vsub.f32 %v405, %v567
          %v668 = vmul.f32 %v568, %v568
          %v669 = vmul.f32 %v569, %v569
          %v670 = vmul.f32 %v570, %v570
          %v671 = vmul.f32 %v571, %v571
          %v672 = vmul.f32 %v572, %v572
          %v673 = vmul.f32 %v573, %v573
          %v674 = vmul.f32 %v574, %v574
          %v675 = vmul.f32 %v575, %v575
          %v676 = vmul.f32 %v576, %v576
          %v677 = vmul.f32 %v577, %v577
          %v678 = vmul.f32 %v578, %v578
          %v679 = vmul.f32 %v579, %v579
          %v680 = vmul.f32 %v580, %v580
          %v681 = vmul.f32 %v581, %v581
          %v682 = vmul.f32 %v582, %v582
          %v683 = vmul.f32 %v583, %v583
          %v684 = vmul.f32 %v584, %v584
          %v685 = vmul.f32 %v585, %v585
          %v686 = vmul.f32 %v586, %v586
          %v687 = vmul.f32 %v587, %v587
          %v688 = vmul.f32 %v588, %v588
          %v689 = vmul.f32 %v589, %v589
          %v690 = vmul.f32 %v590, %v590
          %v691 = vmul.f32 %v591, %v591
          %v692 = vmul.f32 %v592, %v592
          %v693 = vmul.f32 %v593, %v593
          %v694 = vmul.f32 %v594, %v594
          %v695 = vmul.f32 %v595, %v595
          %v696 = vmul.f32 %v596, %v596
          %v697 = vmul.f32 %v597, %v597
          %v698 = vmul.f32 %v598, %v598
          %v699 = vmul.f32 %v599, %v599
          %v700 = vmul.f32 %v600, %v600
          %v701 = vmul.f32 %v601, %v601
          %v702 = vmul.f32 %v602, %v602
          %v703 = vmul.f32 %v603, %v603
          %v704 = vmul.f32 %v604, %v604
          %v705 = vmul.f32 %v605, %v605
          %v706 = vmul.f32 %v606, %v606
          %v707 = vmul.f32 %v607, %v607
          %v708 = vmul.f32 %v608, %v608
          %v709 = vmul.f32 %v609, %v609
          %v710 = vmul.f32 %v610, %v610
          %v711 = vmul.f32 %v611, %v611
          %v712 = vmul.f32 %v612, %v612
          %v713 = vmul.f32 %v613, %v613
          %v714 = vmul.f32 %v614, %v614
          %v715 = vmul.f32 %v615, %v615
          %v716 = vmul.f32 %v616, %v616
          %v717 = vmul.f32 %v617, %v617
          %v718 = vmul.f32 %v618, %v618
          %v719 = vmul.f32 %v619, %v619
          %v720 = vmul.f32 %v620, %v620
          %v721 = vmul.f32 %v621, %v621
          %v722 = vmul.f32 %v622, %v622
          %v723 = vmul.f32 %v623, %v623
          %v724 = vmul.f32 %v624, %v624
          %v725 = vmul.f32 %v625, %v625
          %v726 = vmul.f32 %v626, %v626
          %v727 = vmul.f32 %v627, %v627
          %v728 = vmul.f32 %v628, %v628
          %v729 = vmul.f32 %v629, %v629
          %v730 = vmul.f32 %v630, %v630
          %v731 = vmul.f32 %v631, %v631
          %v732 = vmul.f32 %v632, %v632
          %v733 = vmul.f32 %v633, %v633
          %v734 = vmul.f32 %v634, %v634
          %v735 = vmul.f32 %v635, %v635
          %v736 = vmul.f32 %v636, %v636
          %v737 = vmul.f32 %v637, %v637
          %v738 = vmul.f32 %v638, %v638
          %v739 = vmul.f32 %v639, %v639
          %v740 = vmul.f32 %v640, %v640
          %v741 = vmul.f32 %v641, %v641
          %v742 = vmul.f32 %v642, %v642
          %v743 = vmul.f32 %v643, %v643
          %v744 = vmul.f32 %v644, %v644
          %v745 = vmul.f32 %v645, %v645
          %v746 = vmul.f32 %v646, %v646
          %v747 = vmul.f32 %v647, %v647
          %v748 = vmul.f32 %v648, %v648
          %v749 = vmul.f32 %v649, %v649
          %v750 = vmul.f32 %v650, %v650
          %v751 = vmul.f32 %v651, %v651
          %v752 = vmul.f32 %v652, %v652
          %v753 = vmul.f32 %v653, %v653
          %v754 = vmul.f32 %v654, %v654
          %v755 = vmul.f32 %v655, %v655
          %v756 = vmul.f32 %v656, %v656
          %v757 = vmul.f32 %v657, %v657
          %v758 = vmul.f32 %v658, %v658
          %v759 = vmul.f32 %v659, %v659
          %v760 = vmul.f32 %v660, %v660
          %v761 = vmul.f32 %v661, %v661
          %v762 = vmul.f32 %v662, %v662
          %v763 = vmul.f32 %v663, %v663
          %v764 = vmul.f32 %v664, %v664
          %v765 = vmul.f32 %v665, %v665
          %v766 = vmul.f32 %v666, %v666
          %v767 = vmul.f32 %v667, %v667
          %v768 = vadd.f32 %v668, %v669
          %v769 = vadd.f32 %v768, %v670
          %v770 = vadd.f32 %v769, %v671
          %771 = vadd.xlane.f32.xlu0 %v770
          %v772 = vpop.xlane.xlu0 %771
          %v773 = vadd.f32 %v672, %v673
          %v774 = vadd.f32 %v773, %v674
          %v775 = vadd.f32 %v774, %v675
          %776 = vadd.xlane.f32.xlu0 %v775
          %v777 = vpop.xlane.xlu0 %776
          %v778 = vadd.f32 %v676, %v677
          %v779 = vadd.f32 %v778, %v678
          %v780 = vadd.f32 %v779, %v679
          %781 = vadd.xlane.f32.xlu0 %v780
          %v782 = vpop.xlane.xlu0 %781
          %v783 = vadd.f32 %v680, %v681
          %v784 = vadd.f32 %v783, %v682
          %v785 = vadd.f32 %v784, %v683
          %786 = vadd.xlane.f32.xlu0 %v785
          %v787 = vpop.xlane.xlu0 %786
          %v788 = vadd.f32 %v684, %v685
          %v789 = vadd.f32 %v788, %v686
          %v790 = vadd.f32 %v789, %v687
          %791 = vadd.xlane.f32.xlu0 %v790
          %v792 = vpop.xlane.xlu0 %791
          %v793 = vadd.f32 %v688, %v689
          %v794 = vadd.f32 %v793, %v690
          %v795 = vadd.f32 %v794, %v691
          %796 = vadd.xlane.f32.xlu0 %v795
          %v797 = vpop.xlane.xlu0 %796
          %v798 = vadd.f32 %v692, %v693
          %v799 = vadd.f32 %v798, %v694
          %v800 = vadd.f32 %v799, %v695
          %801 = vadd.xlane.f32.xlu0 %v800
          %v802 = vpop.xlane.xlu0 %801
          %v803 = vadd.f32 %v696, %v697
          %v804 = vadd.f32 %v803, %v698
          %v805 = vadd.f32 %v804, %v699
          %806 = vadd.xlane.f32.xlu0 %v805
          %v807 = vpop.xlane.xlu0 %806
          %v808 = vadd.f32 %v700, %v701
          %v809 = vadd.f32 %v808, %v702
          %v810 = vadd.f32 %v809, %v703
          %811 = vadd.xlane.f32.xlu0 %v810
          %v812 = vpop.xlane.xlu0 %811
          %v813 = vadd.f32 %v704, %v705
          %v814 = vadd.f32 %v813, %v706
          %v815 = vadd.f32 %v814, %v707
          %816 = vadd.xlane.f32.xlu0 %v815
          %v817 = vpop.xlane.xlu0 %816
          %v818 = vadd.f32 %v708, %v709
          %v819 = vadd.f32 %v818, %v710
          %v820 = vadd.f32 %v819, %v711
          %821 = vadd.xlane.f32.xlu0 %v820
          %v822 = vpop.xlane.xlu0 %821
          %v823 = vadd.f32 %v712, %v713
          %v824 = vadd.f32 %v823, %v714
          %v825 = vadd.f32 %v824, %v715
          %826 = vadd.xlane.f32.xlu0 %v825
          %v827 = vpop.xlane.xlu0 %826
          %v828 = vadd.f32 %v716, %v717
          %v829 = vadd.f32 %v828, %v718
          %v830 = vadd.f32 %v829, %v719
          %831 = vadd.xlane.f32.xlu0 %v830
          %v832 = vpop.xlane.xlu0 %831
          %v833 = vadd.f32 %v720, %v721
          %v834 = vadd.f32 %v833, %v722
          %v835 = vadd.f32 %v834, %v723
          %836 = vadd.xlane.f32.xlu0 %v835
          %v837 = vpop.xlane.xlu0 %836
          %v838 = vadd.f32 %v724, %v725
          %v839 = vadd.f32 %v838, %v726
          %v840 = vadd.f32 %v839, %v727
          %841 = vadd.xlane.f32.xlu0 %v840
          %v842 = vpop.xlane.xlu0 %841
          %v843 = vadd.f32 %v728, %v729
          %v844 = vadd.f32 %v843, %v730
          %v845 = vadd.f32 %v844, %v731
          %846 = vadd.xlane.f32.xlu0 %v845
          %v847 = vpop.xlane.xlu0 %846
          %v848 = vadd.f32 %v732, %v733
          %v849 = vadd.f32 %v848, %v734
          %v850 = vadd.f32 %v849, %v735
          %851 = vadd.xlane.f32.xlu0 %v850
          %v852 = vpop.xlane.xlu0 %851
          %v853 = vadd.f32 %v736, %v737
          %v854 = vadd.f32 %v853, %v738
          %v855 = vadd.f32 %v854, %v739
          %856 = vadd.xlane.f32.xlu0 %v855
          %v857 = vpop.xlane.xlu0 %856
          %v858 = vadd.f32 %v740, %v741
          %v859 = vadd.f32 %v858, %v742
          %v860 = vadd.f32 %v859, %v743
          %861 = vadd.xlane.f32.xlu0 %v860
          %v862 = vpop.xlane.xlu0 %861
          %v863 = vadd.f32 %v744, %v745
          %v864 = vadd.f32 %v863, %v746
          %v865 = vadd.f32 %v864, %v747
          %866 = vadd.xlane.f32.xlu0 %v865
          %v867 = vpop.xlane.xlu0 %866
          %v868 = vadd.f32 %v748, %v749
          %v869 = vadd.f32 %v868, %v750
          %v870 = vadd.f32 %v869, %v751
          %871 = vadd.xlane.f32.xlu0 %v870
          %v872 = vpop.xlane.xlu0 %871
          %v873 = vadd.f32 %v752, %v753
          %v874 = vadd.f32 %v873, %v754
          %v875 = vadd.f32 %v874, %v755
          %876 = vadd.xlane.f32.xlu0 %v875
          %v877 = vpop.xlane.xlu0 %876
          %v878 = vadd.f32 %v756, %v757
          %v879 = vadd.f32 %v878, %v758
          %v880 = vadd.f32 %v879, %v759
          %881 = vadd.xlane.f32.xlu0 %v880
          %v882 = vpop.xlane.xlu0 %881
          %v883 = vadd.f32 %v760, %v761
          %v884 = vadd.f32 %v883, %v762
          %v885 = vadd.f32 %v884, %v763
          %886 = vadd.xlane.f32.xlu0 %v885
          %v887 = vpop.xlane.xlu0 %886
          %v888 = vsel %vm526, %v764, 0.0
          %v889 = vsel %vm526, %v765, 0.0
          %v890 = vadd.f32 %v888, %v889
          %v891 = vsel %vm526, %v766, 0.0
          %v892 = vadd.f32 %v890, %v891
          %v893 = vsel %vm526, %v767, 0.0
          %v894 = vadd.f32 %v892, %v893
          %895 = vadd.xlane.f32.xlu0 %v894
          %v896 = vpop.xlane.xlu0 %895
          %v897 = vmul.f32 %v772, %v542
          %v898 = vmul.f32 %v777, %v542
          %v899 = vmul.f32 %v782, %v542
          %v900 = vmul.f32 %v787, %v542
          %v901 = vmul.f32 %v792, %v542
          %v902 = vmul.f32 %v797, %v542
          %v903 = vmul.f32 %v802, %v542
          %v904 = vmul.f32 %v807, %v542
          %v905 = vmul.f32 %v812, %v542
          %v906 = vmul.f32 %v817, %v542
          %v907 = vmul.f32 %v822, %v542
          %v908 = vmul.f32 %v827, %v542
          %v909 = vmul.f32 %v832, %v542
          %v910 = vmul.f32 %v837, %v542
          %v911 = vmul.f32 %v842, %v542
          %v912 = vmul.f32 %v847, %v542
          %v913 = vmul.f32 %v852, %v542
          %v914 = vmul.f32 %v857, %v542
          %v915 = vmul.f32 %v862, %v542
          %v916 = vmul.f32 %v867, %v542
          %v917 = vmul.f32 %v872, %v542
          %v918 = vmul.f32 %v877, %v542
          %v919 = vmul.f32 %v882, %v542
          %v920 = vmul.f32 %v887, %v542
          %v921 = vmul.f32 %v896, %v542
          %v922 = vadd.f32 %v897, 1e-05
          %v923 = vadd.f32 %v898, 1e-05
          %v924 = vadd.f32 %v899, 1e-05
          %v925 = vadd.f32 %v900, 1e-05
          %v926 = vadd.f32 %v901, 1e-05
          %v927 = vadd.f32 %v902, 1e-05
          %v928 = vadd.f32 %v903, 1e-05
          %v929 = vadd.f32 %v904, 1e-05
          %v930 = vadd.f32 %v905, 1e-05
          %v931 = vadd.f32 %v906, 1e-05
          %v932 = vadd.f32 %v907, 1e-05
          %v933 = vadd.f32 %v908, 1e-05
          %v934 = vadd.f32 %v909, 1e-05
          %v935 = vadd.f32 %v910, 1e-05
          %v936 = vadd.f32 %v911, 1e-05
          %v937 = vadd.f32 %v912, 1e-05
          %v938 = vadd.f32 %v913, 1e-05
          %v939 = vadd.f32 %v914, 1e-05
          %v940 = vadd.f32 %v915, 1e-05
          %v941 = vadd.f32 %v916, 1e-05
          %v942 = vadd.f32 %v917, 1e-05
          %v943 = vadd.f32 %v918, 1e-05
          %v944 = vadd.f32 %v919, 1e-05
          %v945 = vadd.f32 %v920, 1e-05
          %v946 = vadd.f32 %v921, 1e-05
          %v947 = vrsqrt.pop %v922
          %v948 = vmul.f32 %v947, %v922
          %v949 = vmul.f32 %v948, %v947
          %v950 = vmul.f32 0.5, %v949
          %v951 = vsub.f32 1.5, %v950
          %v952 = vmul.f32 %v947, %v951
          %vm953 = vweird.f32 %v922
          %vm954 = vweird.f32 %v947
          %vm955 = vmor %vm953, %vm954
          %v956 = vsel %vm955, %v947, %v952
          %v957 = vrsqrt.pop %v923
          %v958 = vmul.f32 %v957, %v923
          %v959 = vmul.f32 %v958, %v957
          %v960 = vmul.f32 0.5, %v959
          %v961 = vsub.f32 1.5, %v960
          %v962 = vmul.f32 %v957, %v961
          %vm963 = vweird.f32 %v923
          %vm964 = vweird.f32 %v957
          %vm965 = vmor %vm963, %vm964
          %v966 = vsel %vm965, %v957, %v962
          %v967 = vrsqrt.pop %v924
          %v968 = vmul.f32 %v967, %v924
          %v969 = vmul.f32 %v968, %v967
          %v970 = vmul.f32 0.5, %v969
          %v971 = vsub.f32 1.5, %v970
          %v972 = vmul.f32 %v967, %v971
          %vm973 = vweird.f32 %v924
          %vm974 = vweird.f32 %v967
          %vm975 = vmor %vm973, %vm974
          %v976 = vsel %vm975, %v967, %v972
          %v977 = vrsqrt.pop %v925
          %v978 = vmul.f32 %v977, %v925
          %v979 = vmul.f32 %v978, %v977
          %v980 = vmul.f32 0.5, %v979
          %v981 = vsub.f32 1.5, %v980
          %v982 = vmul.f32 %v977, %v981
          %vm983 = vweird.f32 %v925
          %vm984 = vweird.f32 %v977
          %vm985 = vmor %vm983, %vm984
          %v986 = vsel %vm985, %v977, %v982
          %v987 = vrsqrt.pop %v926
          %v988 = vmul.f32 %v987, %v926
          %v989 = vmul.f32 %v988, %v987
          %v990 = vmul.f32 0.5, %v989
          %v991 = vsub.f32 1.5, %v990
          %v992 = vmul.f32 %v987, %v991
          %vm993 = vweird.f32 %v926
          %vm994 = vweird.f32 %v987
          %vm995 = vmor %vm993, %vm994
          %v996 = vsel %vm995, %v987, %v992
          %v997 = vrsqrt.pop %v927
          %v998 = vmul.f32 %v997, %v927
          %v999 = vmul.f32 %v998, %v997
          %v1000 = vmul.f32 0.5, %v999
          %v1001 = vsub.f32 1.5, %v1000
          %v1002 = vmul.f32 %v997, %v1001
          %vm1003 = vweird.f32 %v927
          %vm1004 = vweird.f32 %v997
          %vm1005 = vmor %vm1003, %vm1004
          %v1006 = vsel %vm1005, %v997, %v1002
          %v1007 = vrsqrt.pop %v928
          %v1008 = vmul.f32 %v1007, %v928
          %v1009 = vmul.f32 %v1008, %v1007
          %v1010 = vmul.f32 0.5, %v1009
          %v1011 = vsub.f32 1.5, %v1010
          %v1012 = vmul.f32 %v1007, %v1011
          %vm1013 = vweird.f32 %v928
          %vm1014 = vweird.f32 %v1007
          %vm1015 = vmor %vm1013, %vm1014
          %v1016 = vsel %vm1015, %v1007, %v1012
          %v1017 = vrsqrt.pop %v929
          %v1018 = vmul.f32 %v1017, %v929
          %v1019 = vmul.f32 %v1018, %v1017
          %v1020 = vmul.f32 0.5, %v1019
          %v1021 = vsub.f32 1.5, %v1020
          %v1022 = vmul.f32 %v1017, %v1021
          %vm1023 = vweird.f32 %v929
          %vm1024 = vweird.f32 %v1017
          %vm1025 = vmor %vm1023, %vm1024
          %v1026 = vsel %vm1025, %v1017, %v1022
          %v1027 = vrsqrt.pop %v930
          %v1028 = vmul.f32 %v1027, %v930
          %v1029 = vmul.f32 %v1028, %v1027
          %v1030 = vmul.f32 0.5, %v1029
          %v1031 = vsub.f32 1.5, %v1030
          %v1032 = vmul.f32 %v1027, %v1031
          %vm1033 = vweird.f32 %v930
          %vm1034 = vweird.f32 %v1027
          %vm1035 = vmor %vm1033, %vm1034
          %v1036 = vsel %vm1035, %v1027, %v1032
          %v1037 = vrsqrt.pop %v931
          %v1038 = vmul.f32 %v1037, %v931
          %v1039 = vmul.f32 %v1038, %v1037
          %v1040 = vmul.f32 0.5, %v1039
          %v1041 = vsub.f32 1.5, %v1040
          %v1042 = vmul.f32 %v1037, %v1041
          %vm1043 = vweird.f32 %v931
          %vm1044 = vweird.f32 %v1037
          %vm1045 = vmor %vm1043, %vm1044
          %v1046 = vsel %vm1045, %v1037, %v1042
          %v1047 = vrsqrt.pop %v932
          %v1048 = vmul.f32 %v1047, %v932
          %v1049 = vmul.f32 %v1048, %v1047
          %v1050 = vmul.f32 0.5, %v1049
          %v1051 = vsub.f32 1.5, %v1050
          %v1052 = vmul.f32 %v1047, %v1051
          %vm1053 = vweird.f32 %v932
          %vm1054 = vweird.f32 %v1047
          %vm1055 = vmor %vm1053, %vm1054
          %v1056 = vsel %vm1055, %v1047, %v1052
          %v1057 = vrsqrt.pop %v933
          %v1058 = vmul.f32 %v1057, %v933
          %v1059 = vmul.f32 %v1058, %v1057
          %v1060 = vmul.f32 0.5, %v1059
          %v1061 = vsub.f32 1.5, %v1060
          %v1062 = vmul.f32 %v1057, %v1061
          %vm1063 = vweird.f32 %v933
          %vm1064 = vweird.f32 %v1057
          %vm1065 = vmor %vm1063, %vm1064
          %v1066 = vsel %vm1065, %v1057, %v1062
          %v1067 = vrsqrt.pop %v934
          %v1068 = vmul.f32 %v1067, %v934
          %v1069 = vmul.f32 %v1068, %v1067
          %v1070 = vmul.f32 0.5, %v1069
          %v1071 = vsub.f32 1.5, %v1070
          %v1072 = vmul.f32 %v1067, %v1071
          %vm1073 = vweird.f32 %v934
          %vm1074 = vweird.f32 %v1067
          %vm1075 = vmor %vm1073, %vm1074
          %v1076 = vsel %vm1075, %v1067, %v1072
          %v1077 = vrsqrt.pop %v935
          %v1078 = vmul.f32 %v1077, %v935
          %v1079 = vmul.f32 %v1078, %v1077
          %v1080 = vmul.f32 0.5, %v1079
          %v1081 = vsub.f32 1.5, %v1080
          %v1082 = vmul.f32 %v1077, %v1081
          %vm1083 = vweird.f32 %v935
          %vm1084 = vweird.f32 %v1077
          %vm1085 = vmor %vm1083, %vm1084
          %v1086 = vsel %vm1085, %v1077, %v1082
          %v1087 = vrsqrt.pop %v936
          %v1088 = vmul.f32 %v1087, %v936
          %v1089 = vmul.f32 %v1088, %v1087
          %v1090 = vmul.f32 0.5, %v1089
          %v1091 = vsub.f32 1.5, %v1090
          %v1092 = vmul.f32 %v1087, %v1091
          %vm1093 = vweird.f32 %v936
          %vm1094 = vweird.f32 %v1087
          %vm1095 = vmor %vm1093, %vm1094
          %v1096 = vsel %vm1095, %v1087, %v1092
          %v1097 = vrsqrt.pop %v937
          %v1098 = vmul.f32 %v1097, %v937
          %v1099 = vmul.f32 %v1098, %v1097
          %v1100 = vmul.f32 0.5, %v1099
          %v1101 = vsub.f32 1.5, %v1100
          %v1102 = vmul.f32 %v1097, %v1101
          %vm1103 = vweird.f32 %v937
          %vm1104 = vweird.f32 %v1097
          %vm1105 = vmor %vm1103, %vm1104
          %v1106 = vsel %vm1105, %v1097, %v1102
          %v1107 = vrsqrt.pop %v938
          %v1108 = vmul.f32 %v1107, %v938
          %v1109 = vmul.f32 %v1108, %v1107
          %v1110 = vmul.f32 0.5, %v1109
          %v1111 = vsub.f32 1.5, %v1110
          %v1112 = vmul.f32 %v1107, %v1111
          %vm1113 = vweird.f32 %v938
          %vm1114 = vweird.f32 %v1107
          %vm1115 = vmor %vm1113, %vm1114
          %v1116 = vsel %vm1115, %v1107, %v1112
          %v1117 = vrsqrt.pop %v939
          %v1118 = vmul.f32 %v1117, %v939
          %v1119 = vmul.f32 %v1118, %v1117
          %v1120 = vmul.f32 0.5, %v1119
          %v1121 = vsub.f32 1.5, %v1120
          %v1122 = vmul.f32 %v1117, %v1121
          %vm1123 = vweird.f32 %v939
          %vm1124 = vweird.f32 %v1117
          %vm1125 = vmor %vm1123, %vm1124
          %v1126 = vsel %vm1125, %v1117, %v1122
          %v1127 = vrsqrt.pop %v940
          %v1128 = vmul.f32 %v1127, %v940
          %v1129 = vmul.f32 %v1128, %v1127
          %v1130 = vmul.f32 0.5, %v1129
          %v1131 = vsub.f32 1.5, %v1130
          %v1132 = vmul.f32 %v1127, %v1131
          %vm1133 = vweird.f32 %v940
          %vm1134 = vweird.f32 %v1127
          %vm1135 = vmor %vm1133, %vm1134
          %v1136 = vsel %vm1135, %v1127, %v1132
          %v1137 = vrsqrt.pop %v941
          %v1138 = vmul.f32 %v1137, %v941
          %v1139 = vmul.f32 %v1138, %v1137
          %v1140 = vmul.f32 0.5, %v1139
          %v1141 = vsub.f32 1.5, %v1140
          %v1142 = vmul.f32 %v1137, %v1141
          %vm1143 = vweird.f32 %v941
          %vm1144 = vweird.f32 %v1137
          %vm1145 = vmor %vm1143, %vm1144
          %v1146 = vsel %vm1145, %v1137, %v1142
          %v1147 = vrsqrt.pop %v942
          %v1148 = vmul.f32 %v1147, %v942
          %v1149 = vmul.f32 %v1148, %v1147
          %v1150 = vmul.f32 0.5, %v1149
          %v1151 = vsub.f32 1.5, %v1150
          %v1152 = vmul.f32 %v1147, %v1151
          %vm1153 = vweird.f32 %v942
          %vm1154 = vweird.f32 %v1147
          %vm1155 = vmor %vm1153, %vm1154
          %v1156 = vsel %vm1155, %v1147, %v1152
          %v1157 = vrsqrt.pop %v943
          %v1158 = vmul.f32 %v1157, %v943
          %v1159 = vmul.f32 %v1158, %v1157
          %v1160 = vmul.f32 0.5, %v1159
          %v1161 = vsub.f32 1.5, %v1160
          %v1162 = vmul.f32 %v1157, %v1161
          %vm1163 = vweird.f32 %v943
          %vm1164 = vweird.f32 %v1157
          %vm1165 = vmor %vm1163, %vm1164
          %v1166 = vsel %vm1165, %v1157, %v1162
          %v1167 = vrsqrt.pop %v944
          %v1168 = vmul.f32 %v1167, %v944
          %v1169 = vmul.f32 %v1168, %v1167
          %v1170 = vmul.f32 0.5, %v1169
          %v1171 = vsub.f32 1.5, %v1170
          %v1172 = vmul.f32 %v1167, %v1171
          %vm1173 = vweird.f32 %v944
          %vm1174 = vweird.f32 %v1167
          %vm1175 = vmor %vm1173, %vm1174
          %v1176 = vsel %vm1175, %v1167, %v1172
          %v1177 = vrsqrt.pop %v945
          %v1178 = vmul.f32 %v1177, %v945
          %v1179 = vmul.f32 %v1178, %v1177
          %v1180 = vmul.f32 0.5, %v1179
          %v1181 = vsub.f32 1.5, %v1180
          %v1182 = vmul.f32 %v1177, %v1181
          %vm1183 = vweird.f32 %v945
          %vm1184 = vweird.f32 %v1177
          %vm1185 = vmor %vm1183, %vm1184
          %v1186 = vsel %vm1185, %v1177, %v1182
          %v1187 = vrsqrt.pop %v946
          %v1188 = vmul.f32 %v1187, %v946
          %v1189 = vmul.f32 %v1188, %v1187
          %v1190 = vmul.f32 0.5, %v1189
          %v1191 = vsub.f32 1.5, %v1190
          %v1192 = vmul.f32 %v1187, %v1191
          %vm1193 = vweird.f32 %v946
          %vm1194 = vweird.f32 %v1187
          %vm1195 = vmor %vm1193, %vm1194
          %v1196 = vsel %vm1195, %v1187, %v1192
          %v1197 = vmul.f32 %v568, %v956
          %v1198 = vmul.f32 %v569, %v956
          %v1199 = vmul.f32 %v570, %v956
          %v1200 = vmul.f32 %v571, %v956
          %v1201 = vmul.f32 %v572, %v966
          %v1202 = vmul.f32 %v573, %v966
          %v1203 = vmul.f32 %v574, %v966
          %v1204 = vmul.f32 %v575, %v966
          %v1205 = vmul.f32 %v576, %v976
          %v1206 = vmul.f32 %v577, %v976
          %v1207 = vmul.f32 %v578, %v976
          %v1208 = vmul.f32 %v579, %v976
          %v1209 = vmul.f32 %v580, %v986
          %v1210 = vmul.f32 %v581, %v986
          %v1211 = vmul.f32 %v582, %v986
          %v1212 = vmul.f32 %v583, %v986
          %v1213 = vmul.f32 %v584, %v996
          %v1214 = vmul.f32 %v585, %v996
          %v1215 = vmul.f32 %v586, %v996
          %v1216 = vmul.f32 %v587, %v996
          %v1217 = vmul.f32 %v588, %v1006
          %v1218 = vmul.f32 %v589, %v1006
          %v1219 = vmul.f32 %v590, %v1006
          %v1220 = vmul.f32 %v591, %v1006
          %v1221 = vmul.f32 %v592, %v1016
          %v1222 = vmul.f32 %v593, %v1016
          %v1223 = vmul.f32 %v594, %v1016
          %v1224 = vmul.f32 %v595, %v1016
          %v1225 = vmul.f32 %v596, %v1026
          %v1226 = vmul.f32 %v597, %v1026
          %v1227 = vmul.f32 %v598, %v1026
          %v1228 = vmul.f32 %v599, %v1026
          %v1229 = vmul.f32 %v600, %v1036
          %v1230 = vmul.f32 %v601, %v1036
          %v1231 = vmul.f32 %v602, %v1036
          %v1232 = vmul.f32 %v603, %v1036
          %v1233 = vmul.f32 %v604, %v1046
          %v1234 = vmul.f32 %v605, %v1046
          %v1235 = vmul.f32 %v606, %v1046
          %v1236 = vmul.f32 %v607, %v1046
          %v1237 = vmul.f32 %v608, %v1056
          %v1238 = vmul.f32 %v609, %v1056
          %v1239 = vmul.f32 %v610, %v1056
          %v1240 = vmul.f32 %v611, %v1056
          %v1241 = vmul.f32 %v612, %v1066
          %v1242 = vmul.f32 %v613, %v1066
          %v1243 = vmul.f32 %v614, %v1066
          %v1244 = vmul.f32 %v615, %v1066
          %v1245 = vmul.f32 %v616, %v1076
          %v1246 = vmul.f32 %v617, %v1076
          %v1247 = vmul.f32 %v618, %v1076
          %v1248 = vmul.f32 %v619, %v1076
          %v1249 = vmul.f32 %v620, %v1086
          %v1250 = vmul.f32 %v621, %v1086
          %v1251 = vmul.f32 %v622, %v1086
          %v1252 = vmul.f32 %v623, %v1086
          %v1253 = vmul.f32 %v624, %v1096
          %v1254 = vmul.f32 %v625, %v1096
          %v1255 = vmul.f32 %v626, %v1096
          %v1256 = vmul.f32 %v627, %v1096
          %v1257 = vmul.f32 %v628, %v1106
          %v1258 = vmul.f32 %v629, %v1106
          %v1259 = vmul.f32 %v630, %v1106
          %v1260 = vmul.f32 %v631, %v1106
          %v1261 = vmul.f32 %v632, %v1116
          %v1262 = vmul.f32 %v633, %v1116
          %v1263 = vmul.f32 %v634, %v1116
          %v1264 = vmul.f32 %v635, %v1116
          %v1265 = vmul.f32 %v636, %v1126
          %v1266 = vmul.f32 %v637, %v1126
          %v1267 = vmul.f32 %v638, %v1126
          %v1268 = vmul.f32 %v639, %v1126
          %v1269 = vmul.f32 %v640, %v1136
          %v1270 = vmul.f32 %v641, %v1136
          %v1271 = vmul.f32 %v642, %v1136
          %v1272 = vmul.f32 %v643, %v1136
          %v1273 = vmul.f32 %v644, %v1146
          %v1274 = vmul.f32 %v645, %v1146
          %v1275 = vmul.f32 %v646, %v1146
          %v1276 = vmul.f32 %v647, %v1146
          %v1277 = vmul.f32 %v648, %v1156
          %v1278 = vmul.f32 %v649, %v1156
          %v1279 = vmul.f32 %v650, %v1156
          %v1280 = vmul.f32 %v651, %v1156
          %v1281 = vmul.f32 %v652, %v1166
          %v1282 = vmul.f32 %v653, %v1166
          %v1283 = vmul.f32 %v654, %v1166
          %v1284 = vmul.f32 %v655, %v1166
          %v1285 = vmul.f32 %v656, %v1176
          %v1286 = vmul.f32 %v657, %v1176
          %v1287 = vmul.f32 %v658, %v1176
          %v1288 = vmul.f32 %v659, %v1176
          %v1289 = vmul.f32 %v660, %v1186
          %v1290 = vmul.f32 %v661, %v1186
          %v1291 = vmul.f32 %v662, %v1186
          %v1292 = vmul.f32 %v663, %v1186
          %v1293 = vmul.f32 %v664, %v1196
          %v1294 = vmul.f32 %v665, %v1196
          %v1295 = vmul.f32 %v666, %v1196
          %v1296 = vmul.f32 %v667, %v1196
          %v1297 = vld [vmem:[%s1] sm:$0xf]
          %v1299 = vperm.slane %v1297, 0
          %v1300 = vperm.slane %v1297, 1
          %v1301 = vperm.slane %v1297, 2
          %v1302 = vperm.slane %v1297, 3
          %v1307 = vmul.f32 %v1197, %v1299
          %v1308 = vmul.f32 %v1198, %v1300
          %v1309 = vmul.f32 %v1199, %v1301
          %v1310 = vmul.f32 %v1200, %v1302
          %v1311 = vmul.f32 %v1201, %v1299
          %v1312 = vmul.f32 %v1202, %v1300
          %v1313 = vmul.f32 %v1203, %v1301
          %v1314 = vmul.f32 %v1204, %v1302
          %v1315 = vmul.f32 %v1205, %v1299
          %v1316 = vmul.f32 %v1206, %v1300
          %v1317 = vmul.f32 %v1207, %v1301
          %v1318 = vmul.f32 %v1208, %v1302
          %v1319 = vmul.f32 %v1209, %v1299
          %v1320 = vmul.f32 %v1210, %v1300
          %v1321 = vmul.f32 %v1211, %v1301
          %v1322 = vmul.f32 %v1212, %v1302
          %v1323 = vmul.f32 %v1213, %v1299
          %v1324 = vmul.f32 %v1214, %v1300
          %v1325 = vmul.f32 %v1215, %v1301
          %v1326 = vmul.f32 %v1216, %v1302
          %v1327 = vmul.f32 %v1217, %v1299
          %v1328 = vmul.f32 %v1218, %v1300
          %v1329 = vmul.f32 %v1219, %v1301
          %v1330 = vmul.f32 %v1220, %v1302
          %v1331 = vmul.f32 %v1221, %v1299
          %v1332 = vmul.f32 %v1222, %v1300
          %v1333 = vmul.f32 %v1223, %v1301
          %v1334 = vmul.f32 %v1224, %v1302
          %v1335 = vmul.f32 %v1225, %v1299
          %v1336 = vmul.f32 %v1226, %v1300
          %v1337 = vmul.f32 %v1227, %v1301
          %v1338 = vmul.f32 %v1228, %v1302
          %v1339 = vmul.f32 %v1229, %v1299
          %v1340 = vmul.f32 %v1230, %v1300
          %v1341 = vmul.f32 %v1231, %v1301
          %v1342 = vmul.f32 %v1232, %v1302
          %v1343 = vmul.f32 %v1233, %v1299
          %v1344 = vmul.f32 %v1234, %v1300
          %v1345 = vmul.f32 %v1235, %v1301
          %v1346 = vmul.f32 %v1236, %v1302
          %v1347 = vmul.f32 %v1237, %v1299
          %v1348 = vmul.f32 %v1238, %v1300
          %v1349 = vmul.f32 %v1239, %v1301
          %v1350 = vmul.f32 %v1240, %v1302
          %v1351 = vmul.f32 %v1241, %v1299
          %v1352 = vmul.f32 %v1242, %v1300
          %v1353 = vmul.f32 %v1243, %v1301
          %v1354 = vmul.f32 %v1244, %v1302
          %v1355 = vmul.f32 %v1245, %v1299
          %v1356 = vmul.f32 %v1246, %v1300
          %v1357 = vmul.f32 %v1247, %v1301
          %v1358 = vmul.f32 %v1248, %v1302
          %v1359 = vmul.f32 %v1249, %v1299
          %v1360 = vmul.f32 %v1250, %v1300
          %v1361 = vmul.f32 %v1251, %v1301
          %v1362 = vmul.f32 %v1252, %v1302
          %v1363 = vmul.f32 %v1253, %v1299
          %v1364 = vmul.f32 %v1254, %v1300
          %v1365 = vmul.f32 %v1255, %v1301
          %v1366 = vmul.f32 %v1256, %v1302
          %v1367 = vmul.f32 %v1257, %v1299
          %v1368 = vmul.f32 %v1258, %v1300
          %v1369 = vmul.f32 %v1259, %v1301
          %v1370 = vmul.f32 %v1260, %v1302
          %v1371 = vmul.f32 %v1261, %v1299
          %v1372 = vmul.f32 %v1262, %v1300
          %v1373 = vmul.f32 %v1263, %v1301
          %v1374 = vmul.f32 %v1264, %v1302
          %v1375 = vmul.f32 %v1265, %v1299
          %v1376 = vmul.f32 %v1266, %v1300
          %v1377 = vmul.f32 %v1267, %v1301
          %v1378 = vmul.f32 %v1268, %v1302
          %v1379 = vmul.f32 %v1269, %v1299
          %v1380 = vmul.f32 %v1270, %v1300
          %v1381 = vmul.f32 %v1271, %v1301
          %v1382 = vmul.f32 %v1272, %v1302
          %v1383 = vmul.f32 %v1273, %v1299
          %v1384 = vmul.f32 %v1274, %v1300
          %v1385 = vmul.f32 %v1275, %v1301
          %v1386 = vmul.f32 %v1276, %v1302
          %v1387 = vmul.f32 %v1277, %v1299
          %v1388 = vmul.f32 %v1278, %v1300
          %v1389 = vmul.f32 %v1279, %v1301
          %v1390 = vmul.f32 %v1280, %v1302
          %v1391 = vmul.f32 %v1281, %v1299
          %v1392 = vmul.f32 %v1282, %v1300
          %v1393 = vmul.f32 %v1283, %v1301
          %v1394 = vmul.f32 %v1284, %v1302
          %v1395 = vmul.f32 %v1285, %v1299
          %v1396 = vmul.f32 %v1286, %v1300
          %v1397 = vmul.f32 %v1287, %v1301
          %v1398 = vmul.f32 %v1288, %v1302
          %v1399 = vmul.f32 %v1289, %v1299
          %v1400 = vmul.f32 %v1290, %v1300
          %v1401 = vmul.f32 %v1291, %v1301
          %v1402 = vmul.f32 %v1292, %v1302
          %v1403 = vmul.f32 %v1293, %v1299
          %v1404 = vmul.f32 %v1294, %v1300
          %v1405 = vmul.f32 %v1295, %v1301
          %v1406 = vmul.f32 %v1296, %v1302
          %v1407 = vld [vmem:[%s2] sm:$0xf]
          %v1409 = vperm.slane %v1407, 0
          %v1410 = vperm.slane %v1407, 1
          %v1411 = vperm.slane %v1407, 2
          %v1412 = vperm.slane %v1407, 3
          %v1417 = vadd.f32 %v1307, %v1409
          %v1418 = vadd.f32 %v1308, %v1410
          %v1419 = vadd.f32 %v1309, %v1411
          %v1420 = vadd.f32 %v1310, %v1412
          %v1421 = vadd.f32 %v1311, %v1409
          %v1422 = vadd.f32 %v1312, %v1410
          %v1423 = vadd.f32 %v1313, %v1411
          %v1424 = vadd.f32 %v1314, %v1412
          %v1425 = vadd.f32 %v1315, %v1409
          %v1426 = vadd.f32 %v1316, %v1410
          %v1427 = vadd.f32 %v1317, %v1411
          %v1428 = vadd.f32 %v1318, %v1412
          %v1429 = vadd.f32 %v1319, %v1409
          %v1430 = vadd.f32 %v1320, %v1410
          %v1431 = vadd.f32 %v1321, %v1411
          %v1432 = vadd.f32 %v1322, %v1412
          %v1433 = vadd.f32 %v1323, %v1409
          %v1434 = vadd.f32 %v1324, %v1410
          %v1435 = vadd.f32 %v1325, %v1411
          %v1436 = vadd.f32 %v1326, %v1412
          %v1437 = vadd.f32 %v1327, %v1409
          %v1438 = vadd.f32 %v1328, %v1410
          %v1439 = vadd.f32 %v1329, %v1411
          %v1440 = vadd.f32 %v1330, %v1412
          %v1441 = vadd.f32 %v1331, %v1409
          %v1442 = vadd.f32 %v1332, %v1410
          %v1443 = vadd.f32 %v1333, %v1411
          %v1444 = vadd.f32 %v1334, %v1412
          %v1445 = vadd.f32 %v1335, %v1409
          %v1446 = vadd.f32 %v1336, %v1410
          %v1447 = vadd.f32 %v1337, %v1411
          %v1448 = vadd.f32 %v1338, %v1412
          %v1449 = vadd.f32 %v1339, %v1409
          %v1450 = vadd.f32 %v1340, %v1410
          %v1451 = vadd.f32 %v1341, %v1411
          %v1452 = vadd.f32 %v1342, %v1412
          %v1453 = vadd.f32 %v1343, %v1409
          %v1454 = vadd.f32 %v1344, %v1410
          %v1455 = vadd.f32 %v1345, %v1411
          %v1456 = vadd.f32 %v1346, %v1412
          %v1457 = vadd.f32 %v1347, %v1409
          %v1458 = vadd.f32 %v1348, %v1410
          %v1459 = vadd.f32 %v1349, %v1411
          %v1460 = vadd.f32 %v1350, %v1412
          %v1461 = vadd.f32 %v1351, %v1409
          %v1462 = vadd.f32 %v1352, %v1410
          %v1463 = vadd.f32 %v1353, %v1411
          %v1464 = vadd.f32 %v1354, %v1412
          %v1465 = vadd.f32 %v1355, %v1409
          %v1466 = vadd.f32 %v1356, %v1410
          %v1467 = vadd.f32 %v1357, %v1411
          %v1468 = vadd.f32 %v1358, %v1412
          %v1469 = vadd.f32 %v1359, %v1409
          %v1470 = vadd.f32 %v1360, %v1410
          %v1471 = vadd.f32 %v1361, %v1411
          %v1472 = vadd.f32 %v1362, %v1412
          %v1473 = vadd.f32 %v1363, %v1409
          %v1474 = vadd.f32 %v1364, %v1410
          %v1475 = vadd.f32 %v1365, %v1411
          %v1476 = vadd.f32 %v1366, %v1412
          %v1477 = vadd.f32 %v1367, %v1409
          %v1478 = vadd.f32 %v1368, %v1410
          %v1479 = vadd.f32 %v1369, %v1411
          %v1480 = vadd.f32 %v1370, %v1412
          %v1481 = vadd.f32 %v1371, %v1409
          %v1482 = vadd.f32 %v1372, %v1410
          %v1483 = vadd.f32 %v1373, %v1411
          %v1484 = vadd.f32 %v1374, %v1412
          %v1485 = vadd.f32 %v1375, %v1409
          %v1486 = vadd.f32 %v1376, %v1410
          %v1487 = vadd.f32 %v1377, %v1411
          %v1488 = vadd.f32 %v1378, %v1412
          %v1489 = vadd.f32 %v1379, %v1409
          %v1490 = vadd.f32 %v1380, %v1410
          %v1491 = vadd.f32 %v1381, %v1411
          %v1492 = vadd.f32 %v1382, %v1412
          %v1493 = vadd.f32 %v1383, %v1409
          %v1494 = vadd.f32 %v1384, %v1410
          %v1495 = vadd.f32 %v1385, %v1411
          %v1496 = vadd.f32 %v1386, %v1412
          %v1497 = vadd.f32 %v1387, %v1409
          %v1498 = vadd.f32 %v1388, %v1410
          %v1499 = vadd.f32 %v1389, %v1411
          %v1500 = vadd.f32 %v1390, %v1412
          %v1501 = vadd.f32 %v1391, %v1409
          %v1502 = vadd.f32 %v1392, %v1410
          %v1503 = vadd.f32 %v1393, %v1411
          %v1504 = vadd.f32 %v1394, %v1412
          %v1505 = vadd.f32 %v1395, %v1409
          %v1506 = vadd.f32 %v1396, %v1410
          %v1507 = vadd.f32 %v1397, %v1411
          %v1508 = vadd.f32 %v1398, %v1412
          %v1509 = vadd.f32 %v1399, %v1409
          %v1510 = vadd.f32 %v1400, %v1410
          %v1511 = vadd.f32 %v1401, %v1411
          %v1512 = vadd.f32 %v1402, %v1412
          %v1513 = vadd.f32 %v1403, %v1409
          %v1514 = vadd.f32 %v1404, %v1410
          %v1515 = vadd.f32 %v1405, %v1411
          %v1516 = vadd.f32 %v1406, %v1412
          %1517 = vst [vmem:[#allocation2] sm:$0xff] %v1417
          %1518 = vst [vmem:[#allocation2 + $0x8] sm:$0xff] %v1418
          %1519 = vst [vmem:[#allocation2 + $0x10] sm:$0xff] %v1419
          %1520 = vst [vmem:[#allocation2 + $0x18] sm:$0xff] %v1420
          %1521 = vst [vmem:[#allocation2 + $0x20] sm:$0xff] %v1421
          %1522 = vst [vmem:[#allocation2 + $0x28] sm:$0xff] %v1422
          %1523 = vst [vmem:[#allocation2 + $0x30] sm:$0xff] %v1423
          %1524 = vst [vmem:[#allocation2 + $0x38] sm:$0xff] %v1424
          %1525 = vst [vmem:[#allocation2 + $0x40] sm:$0xff] %v1425
          %1526 = vst [vmem:[#allocation2 + $0x48] sm:$0xff] %v1426
          %1527 = vst [vmem:[#allocation2 + $0x50] sm:$0xff] %v1427
          %1528 = vst [vmem:[#allocation2 + $0x58] sm:$0xff] %v1428
          %1529 = vst [vmem:[#allocation2 + $0x60] sm:$0xff] %v1429
          %1530 = vst [vmem:[#allocation2 + $0x68] sm:$0xff] %v1430
          %1531 = vst [vmem:[#allocation2 + $0x70] sm:$0xff] %v1431
          %1532 = vst [vmem:[#allocation2 + $0x78] sm:$0xff] %v1432
          %1533 = vst [vmem:[#allocation2 + $0x80] sm:$0xff] %v1433
          %1534 = vst [vmem:[#allocation2 + $0x88] sm:$0xff] %v1434
          %1535 = vst [vmem:[#allocation2 + $0x90] sm:$0xff] %v1435
          %1536 = vst [vmem:[#allocation2 + $0x98] sm:$0xff] %v1436
          %1537 = vst [vmem:[#allocation2 + $0xa0] sm:$0xff] %v1437
          %1538 = vst [vmem:[#allocation2 + $0xa8] sm:$0xff] %v1438
          %1539 = vst [vmem:[#allocation2 + $0xb0] sm:$0xff] %v1439
          %1540 = vst [vmem:[#allocation2 + $0xb8] sm:$0xff] %v1440
          %1541 = vst [vmem:[#allocation2 + $0xc0] sm:$0xff] %v1441
          %1542 = vst [vmem:[#allocation2 + $0xc8] sm:$0xff] %v1442
          %1543 = vst [vmem:[#allocation2 + $0xd0] sm:$0xff] %v1443
          %1544 = vst [vmem:[#allocation2 + $0xd8] sm:$0xff] %v1444
          %1545 = vst [vmem:[#allocation2 + $0xe0] sm:$0xff] %v1445
          %1546 = vst [vmem:[#allocation2 + $0xe8] sm:$0xff] %v1446
          %1547 = vst [vmem:[#allocation2 + $0xf0] sm:$0xff] %v1447
          %1548 = vst [vmem:[#allocation2 + $0xf8] sm:$0xff] %v1448
          %1549 = vst [vmem:[#allocation2 + $0x100] sm:$0xff] %v1449
          %1550 = vst [vmem:[#allocation2 + $0x108] sm:$0xff] %v1450
          %1551 = vst [vmem:[#allocation2 + $0x110] sm:$0xff] %v1451
          %1552 = vst [vmem:[#allocation2 + $0x118] sm:$0xff] %v1452
          %1553 = vst [vmem:[#allocation2 + $0x120] sm:$0xff] %v1453
          %1554 = vst [vmem:[#allocation2 + $0x128] sm:$0xff] %v1454
          %1555 = vst [vmem:[#allocation2 + $0x130] sm:$0xff] %v1455
          %1556 = vst [vmem:[#allocation2 + $0x138] sm:$0xff] %v1456
          %1557 = vst [vmem:[#allocation2 + $0x140] sm:$0xff] %v1457
          %1558 = vst [vmem:[#allocation2 + $0x148] sm:$0xff] %v1458
          %1559 = vst [vmem:[#allocation2 + $0x150] sm:$0xff] %v1459
          %1560 = vst [vmem:[#allocation2 + $0x158] sm:$0xff] %v1460
          %1561 = vst [vmem:[#allocation2 + $0x160] sm:$0xff] %v1461
          %1562 = vst [vmem:[#allocation2 + $0x168] sm:$0xff] %v1462
          %1563 = vst [vmem:[#allocation2 + $0x170] sm:$0xff] %v1463
          %1564 = vst [vmem:[#allocation2 + $0x178] sm:$0xff] %v1464
          %1565 = vst [vmem:[#allocation2 + $0x180] sm:$0xff] %v1465
          %1566 = vst [vmem:[#allocation2 + $0x188] sm:$0xff] %v1466
          %1567 = vst [vmem:[#allocation2 + $0x190] sm:$0xff] %v1467
          %1568 = vst [vmem:[#allocation2 + $0x198] sm:$0xff] %v1468
          %1569 = vst [vmem:[#allocation2 + $0x1a0] sm:$0xff] %v1469
          %1570 = vst [vmem:[#allocation2 + $0x1a8] sm:$0xff] %v1470
          %1571 = vst [vmem:[#allocation2 + $0x1b0] sm:$0xff] %v1471
          %1572 = vst [vmem:[#allocation2 + $0x1b8] sm:$0xff] %v1472
          %1573 = vst [vmem:[#allocation2 + $0x1c0] sm:$0xff] %v1473
          %1574 = vst [vmem:[#allocation2 + $0x1c8] sm:$0xff] %v1474
          %1575 = vst [vmem:[#allocation2 + $0x1d0] sm:$0xff] %v1475
          %1576 = vst [vmem:[#allocation2 + $0x1d8] sm:$0xff] %v1476
          %1577 = vst [vmem:[#allocation2 + $0x1e0] sm:$0xff] %v1477
          %1578 = vst [vmem:[#allocation2 + $0x1e8] sm:$0xff] %v1478
          %1579 = vst [vmem:[#allocation2 + $0x1f0] sm:$0xff] %v1479
          %1580 = vst [vmem:[#allocation2 + $0x1f8] sm:$0xff] %v1480
          %1581 = vst [vmem:[#allocation2 + $0x200] sm:$0xff] %v1481
          %1582 = vst [vmem:[#allocation2 + $0x208] sm:$0xff] %v1482
          %1583 = vst [vmem:[#allocation2 + $0x210] sm:$0xff] %v1483
          %1584 = vst [vmem:[#allocation2 + $0x218] sm:$0xff] %v1484
          %1585 = vst [vmem:[#allocation2 + $0x220] sm:$0xff] %v1485
          %1586 = vst [vmem:[#allocation2 + $0x228] sm:$0xff] %v1486
          %1587 = vst [vmem:[#allocation2 + $0x230] sm:$0xff] %v1487
          %1588 = vst [vmem:[#allocation2 + $0x238] sm:$0xff] %v1488
          %1589 = vst [vmem:[#allocation2 + $0x240] sm:$0xff] %v1489
          %1590 = vst [vmem:[#allocation2 + $0x248] sm:$0xff] %v1490
          %1591 = vst [vmem:[#allocation2 + $0x250] sm:$0xff] %v1491
          %1592 = vst [vmem:[#allocation2 + $0x258] sm:$0xff] %v1492
          %1593 = vst [vmem:[#allocation2 + $0x260] sm:$0xff] %v1493
          %1594 = vst [vmem:[#allocation2 + $0x268] sm:$0xff] %v1494
          %1595 = vst [vmem:[#allocation2 + $0x270] sm:$0xff] %v1495
          %1596 = vst [vmem:[#allocation2 + $0x278] sm:$0xff] %v1496
          %1597 = vst [vmem:[#allocation2 + $0x280] sm:$0xff] %v1497
          %1598 = vst [vmem:[#allocation2 + $0x288] sm:$0xff] %v1498
          %1599 = vst [vmem:[#allocation2 + $0x290] sm:$0xff] %v1499
          %1600 = vst [vmem:[#allocation2 + $0x298] sm:$0xff] %v1500
          %1601 = vst [vmem:[#allocation2 + $0x2a0] sm:$0xff] %v1501
          %1602 = vst [vmem:[#allocation2 + $0x2a8] sm:$0xff] %v1502
          %1603 = vst [vmem:[#allocation2 + $0x2b0] sm:$0xff] %v1503
          %1604 = vst [vmem:[#allocation2 + $0x2b8] sm:$0xff] %v1504
          %1605 = vst [vmem:[#allocation2 + $0x2c0] sm:$0xff] %v1505
          %1606 = vst [vmem:[#allocation2 + $0x2c8] sm:$0xff] %v1506
          %1607 = vst [vmem:[#allocation2 + $0x2d0] sm:$0xff] %v1507
          %1608 = vst [vmem:[#allocation2 + $0x2d8] sm:$0xff] %v1508
          %1609 = vst [vmem:[#allocation2 + $0x2e0] sm:$0xff] %v1509
          %1610 = vst [vmem:[#allocation2 + $0x2e8] sm:$0xff] %v1510
          %1611 = vst [vmem:[#allocation2 + $0x2f0] sm:$0xff] %v1511
          %1612 = vst [vmem:[#allocation2 + $0x2f8] sm:$0xff] %v1512
          %1613 = vst [vmem:[#allocation2 + $0x300] sm:$0xf] %v1513
          %1614 = vst [vmem:[#allocation2 + $0x308] sm:$0xf] %v1514
          %1615 = vst [vmem:[#allocation2 + $0x310] sm:$0xf] %v1515
          %1616 = vst [vmem:[#allocation2 + $0x318] sm:$0xf] %v1516
        $region48: #{layernorm_linear_gelu.1} parent=39 // pred_fallthru
          _
        %v1617 = vld [vmem:[#allocation2] sm:$0xff]
        %v1618 = vld [vmem:[#allocation2 + $0x8] sm:$0xff]
        %v1619 = vld [vmem:[#allocation2 + $0x10] sm:$0xff]
        %v1620 = vld [vmem:[#allocation2 + $0x18] sm:$0xff]
        %v1621 = vld [vmem:[#allocation2 + $0x20] sm:$0xff]
        %v1622 = vld [vmem:[#allocation2 + $0x28] sm:$0xff]
        %v1623 = vld [vmem:[#allocation2 + $0x30] sm:$0xff]
        %v1624 = vld [vmem:[#allocation2 + $0x38] sm:$0xff]
        %v1625 = vld [vmem:[#allocation2 + $0x40] sm:$0xff]
        %v1626 = vld [vmem:[#allocation2 + $0x48] sm:$0xff]
        %v1627 = vld [vmem:[#allocation2 + $0x50] sm:$0xff]
        %v1628 = vld [vmem:[#allocation2 + $0x58] sm:$0xff]
        %v1629 = vld [vmem:[#allocation2 + $0x60] sm:$0xff]
        %v1630 = vld [vmem:[#allocation2 + $0x68] sm:$0xff]
        %v1631 = vld [vmem:[#allocation2 + $0x70] sm:$0xff]
        %v1632 = vld [vmem:[#allocation2 + $0x78] sm:$0xff]
        %v1633 = vld [vmem:[#allocation2 + $0x80] sm:$0xff]
        %v1634 = vld [vmem:[#allocation2 + $0x88] sm:$0xff]
        %v1635 = vld [vmem:[#allocation2 + $0x90] sm:$0xff]
        %v1636 = vld [vmem:[#allocation2 + $0x98] sm:$0xff]
        %v1637 = vld [vmem:[#allocation2 + $0xa0] sm:$0xff]
        %v1638 = vld [vmem:[#allocation2 + $0xa8] sm:$0xff]
        %v1639 = vld [vmem:[#allocation2 + $0xb0] sm:$0xff]
        %v1640 = vld [vmem:[#allocation2 + $0xb8] sm:$0xff]
        %v1641 = vld [vmem:[#allocation2 + $0xc0] sm:$0xff]
        %v1642 = vld [vmem:[#allocation2 + $0xc8] sm:$0xff]
        %v1643 = vld [vmem:[#allocation2 + $0xd0] sm:$0xff]
        %v1644 = vld [vmem:[#allocation2 + $0xd8] sm:$0xff]
        %v1645 = vld [vmem:[#allocation2 + $0xe0] sm:$0xff]
        %v1646 = vld [vmem:[#allocation2 + $0xe8] sm:$0xff]
        %v1647 = vld [vmem:[#allocation2 + $0xf0] sm:$0xff]
        %v1648 = vld [vmem:[#allocation2 + $0xf8] sm:$0xff]
        %v1649 = vld [vmem:[#allocation2 + $0x100] sm:$0xff]
        %v1650 = vld [vmem:[#allocation2 + $0x108] sm:$0xff]
        %v1651 = vld [vmem:[#allocation2 + $0x110] sm:$0xff]
        %v1652 = vld [vmem:[#allocation2 + $0x118] sm:$0xff]
        %v1653 = vld [vmem:[#allocation2 + $0x120] sm:$0xff]
        %v1654 = vld [vmem:[#allocation2 + $0x128] sm:$0xff]
        %v1655 = vld [vmem:[#allocation2 + $0x130] sm:$0xff]
        %v1656 = vld [vmem:[#allocation2 + $0x138] sm:$0xff]
        %v1657 = vld [vmem:[#allocation2 + $0x140] sm:$0xff]
        %v1658 = vld [vmem:[#allocation2 + $0x148] sm:$0xff]
        %v1659 = vld [vmem:[#allocation2 + $0x150] sm:$0xff]
        %v1660 = vld [vmem:[#allocation2 + $0x158] sm:$0xff]
        %v1661 = vld [vmem:[#allocation2 + $0x160] sm:$0xff]
        %v1662 = vld [vmem:[#allocation2 + $0x168] sm:$0xff]
        %v1663 = vld [vmem:[#allocation2 + $0x170] sm:$0xff]
        %v1664 = vld [vmem:[#allocation2 + $0x178] sm:$0xff]
        %v1665 = vld [vmem:[#allocation2 + $0x180] sm:$0xff]
        %v1666 = vld [vmem:[#allocation2 + $0x188] sm:$0xff]
        %v1667 = vld [vmem:[#allocation2 + $0x190] sm:$0xff]
        %v1668 = vld [vmem:[#allocation2 + $0x198] sm:$0xff]
        %v1669 = vld [vmem:[#allocation2 + $0x1a0] sm:$0xff]
        %v1670 = vld [vmem:[#allocation2 + $0x1a8] sm:$0xff]
        %v1671 = vld [vmem:[#allocation2 + $0x1b0] sm:$0xff]
        %v1672 = vld [vmem:[#allocation2 + $0x1b8] sm:$0xff]
        %v1673 = vld [vmem:[#allocation2 + $0x1c0] sm:$0xff]
        %v1674 = vld [vmem:[#allocation2 + $0x1c8] sm:$0xff]
        %v1675 = vld [vmem:[#allocation2 + $0x1d0] sm:$0xff]
        %v1676 = vld [vmem:[#allocation2 + $0x1d8] sm:$0xff]
        %v1677 = vld [vmem:[#allocation2 + $0x1e0] sm:$0xff]
        %v1678 = vld [vmem:[#allocation2 + $0x1e8] sm:$0xff]
        %v1679 = vld [vmem:[#allocation2 + $0x1f0] sm:$0xff]
        %v1680 = vld [vmem:[#allocation2 + $0x1f8] sm:$0xff]
        %v1681 = vld [vmem:[#allocation2 + $0x200] sm:$0xff]
        %v1682 = vld [vmem:[#allocation2 + $0x208] sm:$0xff]
        %v1683 = vld [vmem:[#allocation2 + $0x210] sm:$0xff]
        %v1684 = vld [vmem:[#allocation2 + $0x218] sm:$0xff]
        %v1685 = vld [vmem:[#allocation2 + $0x220] sm:$0xff]
        %v1686 = vld [vmem:[#allocation2 + $0x228] sm:$0xff]
        %v1687 = vld [vmem:[#allocation2 + $0x230] sm:$0xff]
        %v1688 = vld [vmem:[#allocation2 + $0x238] sm:$0xff]
        %v1689 = vld [vmem:[#allocation2 + $0x240] sm:$0xff]
        %v1690 = vld [vmem:[#allocation2 + $0x248] sm:$0xff]
        %v1691 = vld [vmem:[#allocation2 + $0x250] sm:$0xff]
        %v1692 = vld [vmem:[#allocation2 + $0x258] sm:$0xff]
        %v1693 = vld [vmem:[#allocation2 + $0x260] sm:$0xff]
        %v1694 = vld [vmem:[#allocation2 + $0x268] sm:$0xff]
        %v1695 = vld [vmem:[#allocation2 + $0x270] sm:$0xff]
        %v1696 = vld [vmem:[#allocation2 + $0x278] sm:$0xff]
        %v1697 = vld [vmem:[#allocation2 + $0x280] sm:$0xff]
        %v1698 = vld [vmem:[#allocation2 + $0x288] sm:$0xff]
        %v1699 = vld [vmem:[#allocation2 + $0x290] sm:$0xff]
        %v1700 = vld [vmem:[#allocation2 + $0x298] sm:$0xff]
        %v1701 = vld [vmem:[#allocation2 + $0x2a0] sm:$0xff]
        %v1702 = vld [vmem:[#allocation2 + $0x2a8] sm:$0xff]
        %v1703 = vld [vmem:[#allocation2 + $0x2b0] sm:$0xff]
        %v1704 = vld [vmem:[#allocation2 + $0x2b8] sm:$0xff]
        %v1705 = vld [vmem:[#allocation2 + $0x2c0] sm:$0xff]
        %v1706 = vld [vmem:[#allocation2 + $0x2c8] sm:$0xff]
        %v1707 = vld [vmem:[#allocation2 + $0x2d0] sm:$0xff]
        %v1708 = vld [vmem:[#allocation2 + $0x2d8] sm:$0xff]
        %v1709 = vld [vmem:[#allocation2 + $0x2e0] sm:$0xff]
        %v1710 = vld [vmem:[#allocation2 + $0x2e8] sm:$0xff]
        %v1711 = vld [vmem:[#allocation2 + $0x2f0] sm:$0xff]
        %v1712 = vld [vmem:[#allocation2 + $0x2f8] sm:$0xff]
        %v1713 = vld [vmem:[#allocation2 + $0x300] sm:$0xf]
        %v1714 = vld [vmem:[#allocation2 + $0x308] sm:$0xf]
        %v1715 = vld [vmem:[#allocation2 + $0x310] sm:$0xf]
        %v1716 = vld [vmem:[#allocation2 + $0x318] sm:$0xf]
        %v1717 = vld [vmem:[%s254] sm:$0xff]
        %v1718 = vld [vmem:[%s254 + $0x8] sm:$0xff]
        %v1719 = vld [vmem:[%s254 + $0x10] sm:$0xff]
        %v1720 = vld [vmem:[%s254 + $0x18] sm:$0xff]
        %v1721 = vld [vmem:[%s254 + $0x20] sm:$0xff]
        %v1722 = vld [vmem:[%s254 + $0x28] sm:$0xff]
        %v1723 = vld [vmem:[%s254 + $0x30] sm:$0xff]
        %v1724 = vld [vmem:[%s254 + $0x38] sm:$0xff]
        %v1725 = vld [vmem:[%s254 + $0x40] sm:$0xff]
        %v1726 = vld [vmem:[%s254 + $0x48] sm:$0xff]
        %v1727 = vld [vmem:[%s254 + $0x50] sm:$0xff]
        %v1728 = vld [vmem:[%s254 + $0x58] sm:$0xff]
        %v1729 = vld [vmem:[%s254 + $0x60] sm:$0xff]
        %v1730 = vld [vmem:[%s254 + $0x68] sm:$0xff]
        %v1731 = vld [vmem:[%s254 + $0x70] sm:$0xff]
        %v1732 = vld [vmem:[%s254 + $0x78] sm:$0xff]
        %v1733 = vld [vmem:[%s254 + $0x80] sm:$0xff]
        %v1734 = vld [vmem:[%s254 + $0x88] sm:$0xff]
        %v1735 = vld [vmem:[%s254 + $0x90] sm:$0xff]
        %v1736 = vld [vmem:[%s254 + $0x98] sm:$0xff]
        %v1737 = vld [vmem:[%s254 + $0xa0] sm:$0xff]
        %v1738 = vld [vmem:[%s254 + $0xa8] sm:$0xff]
        %v1739 = vld [vmem:[%s254 + $0xb0] sm:$0xff]
        %v1740 = vld [vmem:[%s254 + $0xb8] sm:$0xff]
        %v1741 = vld [vmem:[%s254 + $0xc0] sm:$0xff]
        %v1742 = vld [vmem:[%s254 + $0xc8] sm:$0xff]
        %v1743 = vld [vmem:[%s254 + $0xd0] sm:$0xff]
        %v1744 = vld [vmem:[%s254 + $0xd8] sm:$0xff]
        %v1745 = vld [vmem:[%s254 + $0xe0] sm:$0xff]
        %v1746 = vld [vmem:[%s254 + $0xe8] sm:$0xff]
        %v1747 = vld [vmem:[%s254 + $0xf0] sm:$0xff]
        %v1748 = vld [vmem:[%s254 + $0xf8] sm:$0xff]
        %v1749 = vld [vmem:[%s254 + $0x100] sm:$0xff]
        %v1750 = vld [vmem:[%s254 + $0x108] sm:$0xff]
        %v1751 = vld [vmem:[%s254 + $0x110] sm:$0xff]
        %v1752 = vld [vmem:[%s254 + $0x118] sm:$0xff]
        %v1753 = vld [vmem:[%s254 + $0x120] sm:$0xff]
        %v1754 = vld [vmem:[%s254 + $0x128] sm:$0xff]
        %v1755 = vld [vmem:[%s254 + $0x130] sm:$0xff]
        %v1756 = vld [vmem:[%s254 + $0x138] sm:$0xff]
        %v1757 = vld [vmem:[%s254 + $0x140] sm:$0xff]
        %v1758 = vld [vmem:[%s254 + $0x148] sm:$0xff]
        %v1759 = vld [vmem:[%s254 + $0x150] sm:$0xff]
        %v1760 = vld [vmem:[%s254 + $0x158] sm:$0xff]
        %v1761 = vld [vmem:[%s254 + $0x160] sm:$0xff]
        %v1762 = vld [vmem:[%s254 + $0x168] sm:$0xff]
        %v1763 = vld [vmem:[%s254 + $0x170] sm:$0xff]
        %v1764 = vld [vmem:[%s254 + $0x178] sm:$0xff]
        %v1765 = vld [vmem:[%s254 + $0x180] sm:$0xff]
        %v1766 = vld [vmem:[%s254 + $0x188] sm:$0xff]
        %v1767 = vld [vmem:[%s254 + $0x190] sm:$0xff]
        %v1768 = vld [vmem:[%s254 + $0x198] sm:$0xff]
        %v1769 = vld [vmem:[%s254 + $0x1a0] sm:$0xff]
        %v1770 = vld [vmem:[%s254 + $0x1a8] sm:$0xff]
        %v1771 = vld [vmem:[%s254 + $0x1b0] sm:$0xff]
        %v1772 = vld [vmem:[%s254 + $0x1b8] sm:$0xff]
        %v1773 = vld [vmem:[%s254 + $0x1c0] sm:$0xff]
        %v1774 = vld [vmem:[%s254 + $0x1c8] sm:$0xff]
        %v1775 = vld [vmem:[%s254 + $0x1d0] sm:$0xff]
        %v1776 = vld [vmem:[%s254 + $0x1d8] sm:$0xff]
        %v1777 = vld [vmem:[%s254 + $0x1e0] sm:$0xff]
        %v1778 = vld [vmem:[%s254 + $0x1e8] sm:$0xff]
        %v1779 = vld [vmem:[%s254 + $0x1f0] sm:$0xff]
        %v1780 = vld [vmem:[%s254 + $0x1f8] sm:$0xff]
        %v1781 = vld [vmem:[%s254 + $0x200] sm:$0xff]
        %v1782 = vld [vmem:[%s254 + $0x208] sm:$0xff]
        %v1783 = vld [vmem:[%s254 + $0x210] sm:$0xff]
        %v1784 = vld [vmem:[%s254 + $0x218] sm:$0xff]
        %v1785 = vld [vmem:[%s254 + $0x220] sm:$0xff]
        %v1786 = vld [vmem:[%s254 + $0x228] sm:$0xff]
        %v1787 = vld [vmem:[%s254 + $0x230] sm:$0xff]
        %v1788 = vld [vmem:[%s254 + $0x238] sm:$0xff]
        %v1789 = vld [vmem:[%s254 + $0x240] sm:$0xff]
        %v1790 = vld [vmem:[%s254 + $0x248] sm:$0xff]
        %v1791 = vld [vmem:[%s254 + $0x250] sm:$0xff]
        %v1792 = vld [vmem:[%s254 + $0x258] sm:$0xff]
        %v1793 = vld [vmem:[%s254 + $0x260] sm:$0xff]
        %v1794 = vld [vmem:[%s254 + $0x268] sm:$0xff]
        %v1795 = vld [vmem:[%s254 + $0x270] sm:$0xff]
        %v1796 = vld [vmem:[%s254 + $0x278] sm:$0xff]
        %v1797 = vld [vmem:[%s254 + $0x280] sm:$0xff]
        %v1798 = vld [vmem:[%s254 + $0x288] sm:$0xff]
        %v1799 = vld [vmem:[%s254 + $0x290] sm:$0xff]
        %v1800 = vld [vmem:[%s254 + $0x298] sm:$0xff]
        %v1801 = vld [vmem:[%s254 + $0x2a0] sm:$0xff]
        %v1802 = vld [vmem:[%s254 + $0x2a8] sm:$0xff]
        %v1803 = vld [vmem:[%s254 + $0x2b0] sm:$0xff]
        %v1804 = vld [vmem:[%s254 + $0x2b8] sm:$0xff]
        %v1805 = vld [vmem:[%s254 + $0x2c0] sm:$0xff]
        %v1806 = vld [vmem:[%s254 + $0x2c8] sm:$0xff]
        %v1807 = vld [vmem:[%s254 + $0x2d0] sm:$0xff]
        %v1808 = vld [vmem:[%s254 + $0x2d8] sm:$0xff]
        %v1809 = vld [vmem:[%s254 + $0x2e0] sm:$0xff]
        %v1810 = vld [vmem:[%s254 + $0x2e8] sm:$0xff]
        %v1811 = vld [vmem:[%s254 + $0x2f0] sm:$0xff]
        %v1812 = vld [vmem:[%s254 + $0x2f8] sm:$0xff]
        %v1813 = vld [vmem:[%s254 + $0x300] sm:$0xff]
        %v1814 = vld [vmem:[%s254 + $0x308] sm:$0xff]
        %v1815 = vld [vmem:[%s254 + $0x310] sm:$0xff]
        %v1816 = vld [vmem:[%s254 + $0x318] sm:$0xff]
        %v1817 = vld [vmem:[%s254 + $0x320] sm:$0xff]
        %v1818 = vld [vmem:[%s254 + $0x328] sm:$0xff]
        %v1819 = vld [vmem:[%s254 + $0x330] sm:$0xff]
        %v1820 = vld [vmem:[%s254 + $0x338] sm:$0xff]
        %v1821 = vld [vmem:[%s254 + $0x340] sm:$0xff]
        %v1822 = vld [vmem:[%s254 + $0x348] sm:$0xff]
        %v1823 = vld [vmem:[%s254 + $0x350] sm:$0xff]
        %v1824 = vld [vmem:[%s254 + $0x358] sm:$0xff]
        %v1825 = vld [vmem:[%s254 + $0x360] sm:$0xff]
        %v1826 = vld [vmem:[%s254 + $0x368] sm:$0xff]
        %v1827 = vld [vmem:[%s254 + $0x370] sm:$0xff]
        %v1828 = vld [vmem:[%s254 + $0x378] sm:$0xff]
        %v1829 = vld [vmem:[%s254 + $0x380] sm:$0xff]
        %v1830 = vld [vmem:[%s254 + $0x388] sm:$0xff]
        %v1831 = vld [vmem:[%s254 + $0x390] sm:$0xff]
        %v1832 = vld [vmem:[%s254 + $0x398] sm:$0xff]
        %v1833 = vld [vmem:[%s254 + $0x3a0] sm:$0xff]
        %v1834 = vld [vmem:[%s254 + $0x3a8] sm:$0xff]
        %v1835 = vld [vmem:[%s254 + $0x3b0] sm:$0xff]
        %v1836 = vld [vmem:[%s254 + $0x3b8] sm:$0xff]
        %v1837 = vld [vmem:[%s254 + $0x3c0] sm:$0xff]
        %v1838 = vld [vmem:[%s254 + $0x3c8] sm:$0xff]
        %v1839 = vld [vmem:[%s254 + $0x3d0] sm:$0xff]
        %v1840 = vld [vmem:[%s254 + $0x3d8] sm:$0xff]
        %v1841 = vld [vmem:[%s254 + $0x3e0] sm:$0xff]
        %v1842 = vld [vmem:[%s254 + $0x3e8] sm:$0xff]
        %v1843 = vld [vmem:[%s254 + $0x3f0] sm:$0xff]
        %v1844 = vld [vmem:[%s254 + $0x3f8] sm:$0xff]
        %v1845 = vld [vmem:[%s254 + $0x400] sm:$0xff]
        %v1846 = vld [vmem:[%s254 + $0x408] sm:$0xff]
        %v1847 = vld [vmem:[%s254 + $0x410] sm:$0xff]
        %v1848 = vld [vmem:[%s254 + $0x418] sm:$0xff]
        %v1849 = vld [vmem:[%s254 + $0x420] sm:$0xff]
        %v1850 = vld [vmem:[%s254 + $0x428] sm:$0xff]
        %v1851 = vld [vmem:[%s254 + $0x430] sm:$0xff]
        %v1852 = vld [vmem:[%s254 + $0x438] sm:$0xff]
        %v1853 = vld [vmem:[%s254 + $0x440] sm:$0xff]
        %v1854 = vld [vmem:[%s254 + $0x448] sm:$0xff]
        %v1855 = vld [vmem:[%s254 + $0x450] sm:$0xff]
        %v1856 = vld [vmem:[%s254 + $0x458] sm:$0xff]
        %v1857 = vld [vmem:[%s254 + $0x460] sm:$0xff]
        %v1858 = vld [vmem:[%s254 + $0x468] sm:$0xff]
        %v1859 = vld [vmem:[%s254 + $0x470] sm:$0xff]
        %v1860 = vld [vmem:[%s254 + $0x478] sm:$0xff]
        %v1861 = vld [vmem:[%s254 + $0x480] sm:$0xff]
        %v1862 = vld [vmem:[%s254 + $0x488] sm:$0xff]
        %v1863 = vld [vmem:[%s254 + $0x490] sm:$0xff]
        %v1864 = vld [vmem:[%s254 + $0x498] sm:$0xff]
        %v1865 = vld [vmem:[%s254 + $0x4a0] sm:$0xff]
        %v1866 = vld [vmem:[%s254 + $0x4a8] sm:$0xff]
        %v1867 = vld [vmem:[%s254 + $0x4b0] sm:$0xff]
        %v1868 = vld [vmem:[%s254 + $0x4b8] sm:$0xff]
        %v1869 = vld [vmem:[%s254 + $0x4c0] sm:$0xff]
        %v1870 = vld [vmem:[%s254 + $0x4c8] sm:$0xff]
        %v1871 = vld [vmem:[%s254 + $0x4d0] sm:$0xff]
        %v1872 = vld [vmem:[%s254 + $0x4d8] sm:$0xff]
        %v1873 = vld [vmem:[%s254 + $0x4e0] sm:$0xff]
        %v1874 = vld [vmem:[%s254 + $0x4e8] sm:$0xff]
        %v1875 = vld [vmem:[%s254 + $0x4f0] sm:$0xff]
        %v1876 = vld [vmem:[%s254 + $0x4f8] sm:$0xff]
        %v1877 = vld [vmem:[%s254 + $0x500] sm:$0xff]
        %v1878 = vld [vmem:[%s254 + $0x508] sm:$0xff]
        %v1879 = vld [vmem:[%s254 + $0x510] sm:$0xff]
        %v1880 = vld [vmem:[%s254 + $0x518] sm:$0xff]
        %v1881 = vld [vmem:[%s254 + $0x520] sm:$0xff]
        %v1882 = vld [vmem:[%s254 + $0x528] sm:$0xff]
        %v1883 = vld [vmem:[%s254 + $0x530] sm:$0xff]
        %v1884 = vld [vmem:[%s254 + $0x538] sm:$0xff]
        %v1885 = vld [vmem:[%s254 + $0x540] sm:$0xff]
        %v1886 = vld [vmem:[%s254 + $0x548] sm:$0xff]
        %v1887 = vld [vmem:[%s254 + $0x550] sm:$0xff]
        %v1888 = vld [vmem:[%s254 + $0x558] sm:$0xff]
        %v1889 = vld [vmem:[%s254 + $0x560] sm:$0xff]
        %v1890 = vld [vmem:[%s254 + $0x568] sm:$0xff]
        %v1891 = vld [vmem:[%s254 + $0x570] sm:$0xff]
        %v1892 = vld [vmem:[%s254 + $0x578] sm:$0xff]
        %v1893 = vld [vmem:[%s254 + $0x580] sm:$0xff]
        %v1894 = vld [vmem:[%s254 + $0x588] sm:$0xff]
        %v1895 = vld [vmem:[%s254 + $0x590] sm:$0xff]
        %v1896 = vld [vmem:[%s254 + $0x598] sm:$0xff]
        %v1897 = vld [vmem:[%s254 + $0x5a0] sm:$0xff]
        %v1898 = vld [vmem:[%s254 + $0x5a8] sm:$0xff]
        %v1899 = vld [vmem:[%s254 + $0x5b0] sm:$0xff]
        %v1900 = vld [vmem:[%s254 + $0x5b8] sm:$0xff]
        %v1901 = vld [vmem:[%s254 + $0x5c0] sm:$0xff]
        %v1902 = vld [vmem:[%s254 + $0x5c8] sm:$0xff]
        %v1903 = vld [vmem:[%s254 + $0x5d0] sm:$0xff]
        %v1904 = vld [vmem:[%s254 + $0x5d8] sm:$0xff]
        %v1905 = vld [vmem:[%s254 + $0x5e0] sm:$0xff]
        %v1906 = vld [vmem:[%s254 + $0x5e8] sm:$0xff]
        %v1907 = vld [vmem:[%s254 + $0x5f0] sm:$0xff]
        %v1908 = vld [vmem:[%s254 + $0x5f8] sm:$0xff]
        %v1909 = vld [vmem:[%s254 + $0x600] sm:$0xff]
        %v1910 = vld [vmem:[%s254 + $0x608] sm:$0xff]
        %v1911 = vld [vmem:[%s254 + $0x610] sm:$0xff]
        %v1912 = vld [vmem:[%s254 + $0x618] sm:$0xff]
        %v1913 = vld [vmem:[%s254 + $0x620] sm:$0xff]
        %v1914 = vld [vmem:[%s254 + $0x628] sm:$0xff]
        %v1915 = vld [vmem:[%s254 + $0x630] sm:$0xff]
        %v1916 = vld [vmem:[%s254 + $0x638] sm:$0xff]
        %v1917 = vld [vmem:[%s254 + $0x640] sm:$0xff]
        %v1918 = vld [vmem:[%s254 + $0x648] sm:$0xff]
        %v1919 = vld [vmem:[%s254 + $0x650] sm:$0xff]
        %v1920 = vld [vmem:[%s254 + $0x658] sm:$0xff]
        %v1921 = vld [vmem:[%s254 + $0x660] sm:$0xff]
        %v1922 = vld [vmem:[%s254 + $0x668] sm:$0xff]
        %v1923 = vld [vmem:[%s254 + $0x670] sm:$0xff]
        %v1924 = vld [vmem:[%s254 + $0x678] sm:$0xff]
        %v1925 = vld [vmem:[%s254 + $0x680] sm:$0xff]
        %v1926 = vld [vmem:[%s254 + $0x688] sm:$0xff]
        %v1927 = vld [vmem:[%s254 + $0x690] sm:$0xff]
        %v1928 = vld [vmem:[%s254 + $0x698] sm:$0xff]
        %v1929 = vld [vmem:[%s254 + $0x6a0] sm:$0xff]
        %v1930 = vld [vmem:[%s254 + $0x6a8] sm:$0xff]
        %v1931 = vld [vmem:[%s254 + $0x6b0] sm:$0xff]
        %v1932 = vld [vmem:[%s254 + $0x6b8] sm:$0xff]
        %v1933 = vld [vmem:[%s254 + $0x6c0] sm:$0xff]
        %v1934 = vld [vmem:[%s254 + $0x6c8] sm:$0xff]
        %v1935 = vld [vmem:[%s254 + $0x6d0] sm:$0xff]
        %v1936 = vld [vmem:[%s254 + $0x6d8] sm:$0xff]
        %v1937 = vld [vmem:[%s254 + $0x6e0] sm:$0xff]
        %v1938 = vld [vmem:[%s254 + $0x6e8] sm:$0xff]
        %v1939 = vld [vmem:[%s254 + $0x6f0] sm:$0xff]
        %v1940 = vld [vmem:[%s254 + $0x6f8] sm:$0xff]
        %v1941 = vld [vmem:[%s254 + $0x700] sm:$0xff]
        %v1942 = vld [vmem:[%s254 + $0x708] sm:$0xff]
        %v1943 = vld [vmem:[%s254 + $0x710] sm:$0xff]
        %v1944 = vld [vmem:[%s254 + $0x718] sm:$0xff]
        %v1945 = vld [vmem:[%s254 + $0x720] sm:$0xff]
        %v1946 = vld [vmem:[%s254 + $0x728] sm:$0xff]
        %v1947 = vld [vmem:[%s254 + $0x730] sm:$0xff]
        %v1948 = vld [vmem:[%s254 + $0x738] sm:$0xff]
        %v1949 = vld [vmem:[%s254 + $0x740] sm:$0xff]
        %v1950 = vld [vmem:[%s254 + $0x748] sm:$0xff]
        %v1951 = vld [vmem:[%s254 + $0x750] sm:$0xff]
        %v1952 = vld [vmem:[%s254 + $0x758] sm:$0xff]
        %v1953 = vld [vmem:[%s254 + $0x760] sm:$0xff]
        %v1954 = vld [vmem:[%s254 + $0x768] sm:$0xff]
        %v1955 = vld [vmem:[%s254 + $0x770] sm:$0xff]
        %v1956 = vld [vmem:[%s254 + $0x778] sm:$0xff]
        %v1957 = vld [vmem:[%s254 + $0x780] sm:$0xff]
        %v1958 = vld [vmem:[%s254 + $0x788] sm:$0xff]
        %v1959 = vld [vmem:[%s254 + $0x790] sm:$0xff]
        %v1960 = vld [vmem:[%s254 + $0x798] sm:$0xff]
        %v1961 = vld [vmem:[%s254 + $0x7a0] sm:$0xff]
        %v1962 = vld [vmem:[%s254 + $0x7a8] sm:$0xff]
        %v1963 = vld [vmem:[%s254 + $0x7b0] sm:$0xff]
        %v1964 = vld [vmem:[%s254 + $0x7b8] sm:$0xff]
        %v1965 = vld [vmem:[%s254 + $0x7c0] sm:$0xff]
        %v1966 = vld [vmem:[%s254 + $0x7c8] sm:$0xff]
        %v1967 = vld [vmem:[%s254 + $0x7d0] sm:$0xff]
        %v1968 = vld [vmem:[%s254 + $0x7d8] sm:$0xff]
        %v1969 = vld [vmem:[%s254 + $0x7e0] sm:$0xff]
        %v1970 = vld [vmem:[%s254 + $0x7e8] sm:$0xff]
        %v1971 = vld [vmem:[%s254 + $0x7f0] sm:$0xff]
        %v1972 = vld [vmem:[%s254 + $0x7f8] sm:$0xff]
        %v1973 = vld [vmem:[%s295] sm:$0xf]
        %v1975 = vperm.slane %v1973, 0
        %v1976 = vperm.slane %v1973, 1
        %v1977 = vperm.slane %v1973, 2
        %v1978 = vperm.slane %v1973, 3
        %1983 = vmatpush.msra.mxu0 %v1777
        %1984 = vmatpush.msra.mxu0 %v1773
        %1985 = vmatpush.msra.mxu0 %v1769
        %1986 = vmatpush.msra.mxu0 %v1765
        %1987 = vmatpush.msra.mxu0 %v1761
        %1988 = vmatpush.msra.mxu0 %v1757
        %1989 = vmatpush.msra.mxu0 %v1753
        %1990 = vmatpush.msra.mxu0 %v1749
        %1991 = vmatpush.msra.mxu0 %v1745
        %1992 = vmatpush.msra.mxu0 %v1741
        %1993 = vmatpush.msra.mxu0 %v1737
        %1994 = vmatpush.msra.mxu0 %v1733
        %1995 = vmatpush.msra.mxu0 %v1729
        %1996 = vmatpush.msra.mxu0 %v1725
        %1997 = vmatpush.msra.mxu0 %v1721
        %1998 = vmatpush.msra.mxu0 %v1717
        %1999 = vmatmul.f32.gmra.mxu0 %v1617
        %v2000 = vpop.f32.mrf.mxu0
        %v2001 = vadd.f32 %v1975, %v2000
        %2002 = vmatmul.f32.gmra.mxu0 %v1621
        %v2003 = vpop.f32.mrf.mxu0
        %v2004 = vadd.f32 %v1975, %v2003
        %2005 = vmatmul.f32.gmra.mxu0 %v1625
        %v2006 = vpop.f32.mrf.mxu0
        %v2007 = vadd.f32 %v1975, %v2006
        %2008 = vmatmul.f32.gmra.mxu0 %v1629
        %v2009 = vpop.f32.mrf.mxu0
        %v2010 = vadd.f32 %v1975, %v2009
        %2011 = vmatmul.f32.gmra.mxu0 %v1633
        %v2012 = vpop.f32.mrf.mxu0
        %v2013 = vadd.f32 %v1975, %v2012
        %2014 = vmatmul.f32.gmra.mxu0 %v1637
        %v2015 = vpop.f32.mrf.mxu0
        %v2016 = vadd.f32 %v1975, %v2015
        %2017 = vmatmul.f32.gmra.mxu0 %v1641
        %v2018 = vpop.f32.mrf.mxu0
        %v2019 = vadd.f32 %v1975, %v2018
        %2020 = vmatmul.f32.gmra.mxu0 %v1645
        %v2021 = vpop.f32.mrf.mxu0
        %v2022 = vadd.f32 %v1975, %v2021
        %2023 = vmatmul.f32.gmra.mxu0 %v1649
        %v2024 = vpop.f32.mrf.mxu0
        %v2025 = vadd.f32 %v1975, %v2024
        %2026 = vmatmul.f32.gmra.mxu0 %v1653
        %v2027 = vpop.f32.mrf.mxu0
        %v2028 = vadd.f32 %v1975, %v2027
        %2029 = vmatmul.f32.gmra.mxu0 %v1657
        %v2030 = vpop.f32.mrf.mxu0
        %v2031 = vadd.f32 %v1975, %v2030
        %2032 = vmatmul.f32.gmra.mxu0 %v1661
        %v2033 = vpop.f32.mrf.mxu0
        %v2034 = vadd.f32 %v1975, %v2033
        %2035 = vmatmul.f32.gmra.mxu0 %v1665
        %v2036 = vpop.f32.mrf.mxu0
        %v2037 = vadd.f32 %v1975, %v2036
        %2038 = vmatmul.f32.gmra.mxu0 %v1669
        %v2039 = vpop.f32.mrf.mxu0
        %v2040 = vadd.f32 %v1975, %v2039
        %2041 = vmatmul.f32.gmra.mxu0 %v1673
        %v2042 = vpop.f32.mrf.mxu0
        %v2043 = vadd.f32 %v1975, %v2042
        %2044 = vmatmul.f32.gmra.mxu0 %v1677
        %v2045 = vpop.f32.mrf.mxu0
        %v2046 = vadd.f32 %v1975, %v2045
        %2047 = vmatmul.f32.gmra.mxu0 %v1681
        %v2048 = vpop.f32.mrf.mxu0
        %v2049 = vadd.f32 %v1975, %v2048
        %2050 = vmatmul.f32.gmra.mxu0 %v1685
        %v2051 = vpop.f32.mrf.mxu0
        %v2052 = vadd.f32 %v1975, %v2051
        %2053 = vmatmul.f32.gmra.mxu0 %v1689
        %v2054 = vpop.f32.mrf.mxu0
        %v2055 = vadd.f32 %v1975, %v2054
        %2056 = vmatmul.f32.gmra.mxu0 %v1693
        %v2057 = vpop.f32.mrf.mxu0
        %v2058 = vadd.f32 %v1975, %v2057
        %2059 = vmatmul.f32.gmra.mxu0 %v1697
        %v2060 = vpop.f32.mrf.mxu0
        %v2061 = vadd.f32 %v1975, %v2060
        %2062 = vmatmul.f32.gmra.mxu0 %v1701
        %v2063 = vpop.f32.mrf.mxu0
        %v2064 = vadd.f32 %v1975, %v2063
        %2065 = vmatmul.f32.gmra.mxu0 %v1705
        %v2066 = vpop.f32.mrf.mxu0
        %v2067 = vadd.f32 %v1975, %v2066
        %2068 = vmatmul.f32.gmra.mxu0 %v1709
        %v2069 = vpop.f32.mrf.mxu0
        %v2070 = vadd.f32 %v1975, %v2069
        %2071 = vmatmul.f32.gmra.mxu0 %v1713
        %v2072 = vpop.f32.mrf.mxu0
        %v2073 = vadd.f32 %v1975, %v2072
        %2074 = vdwg.mxu0
        %2075 = vmatpush.msra.mxu0 %v1841
        %2076 = vmatpush.msra.mxu0 %v1837
        %2077 = vmatpush.msra.mxu0 %v1833
        %2078 = vmatpush.msra.mxu0 %v1829
        %2079 = vmatpush.msra.mxu0 %v1825
        %2080 = vmatpush.msra.mxu0 %v1821
        %2081 = vmatpush.msra.mxu0 %v1817
        %2082 = vmatpush.msra.mxu0 %v1813
        %2083 = vmatpush.msra.mxu0 %v1809
        %2084 = vmatpush.msra.mxu0 %v1805
        %2085 = vmatpush.msra.mxu0 %v1801
        %2086 = vmatpush.msra.mxu0 %v1797
        %2087 = vmatpush.msra.mxu0 %v1793
        %2088 = vmatpush.msra.mxu0 %v1789
        %2089 = vmatpush.msra.mxu0 %v1785
        %2090 = vmatpush.msra.mxu0 %v1781
        %2091 = vmatmul.f32.gmra.mxu0 %v1618
        %v2092 = vpop.f32.mrf.mxu0
        %v2093 = vadd.f32 %v2001, %v2092
        %2094 = vmatmul.f32.gmra.mxu0 %v1622
        %v2095 = vpop.f32.mrf.mxu0
        %v2096 = vadd.f32 %v2004, %v2095
        %2097 = vmatmul.f32.gmra.mxu0 %v1626
        %v2098 = vpop.f32.mrf.mxu0
        %v2099 = vadd.f32 %v2007, %v2098
        %2100 = vmatmul.f32.gmra.mxu0 %v1630
        %v2101 = vpop.f32.mrf.mxu0
        %v2102 = vadd.f32 %v2010, %v2101
        %2103 = vmatmul.f32.gmra.mxu0 %v1634
        %v2104 = vpop.f32.mrf.mxu0
        %v2105 = vadd.f32 %v2013, %v2104
        %2106 = vmatmul.f32.gmra.mxu0 %v1638
        %v2107 = vpop.f32.mrf.mxu0
        %v2108 = vadd.f32 %v2016, %v2107
        %2109 = vmatmul.f32.gmra.mxu0 %v1642
        %v2110 = vpop.f32.mrf.mxu0
        %v2111 = vadd.f32 %v2019, %v2110
        %2112 = vmatmul.f32.gmra.mxu0 %v1646
        %v2113 = vpop.f32.mrf.mxu0
        %v2114 = vadd.f32 %v2022, %v2113
        %2115 = vmatmul.f32.gmra.mxu0 %v1650
        %v2116 = vpop.f32.mrf.mxu0
        %v2117 = vadd.f32 %v2025, %v2116
        %2118 = vmatmul.f32.gmra.mxu0 %v1654
        %v2119 = vpop.f32.mrf.mxu0
        %v2120 = vadd.f32 %v2028, %v2119
        %2121 = vmatmul.f32.gmra.mxu0 %v1658
        %v2122 = vpop.f32.mrf.mxu0
        %v2123 = vadd.f32 %v2031, %v2122
        %2124 = vmatmul.f32.gmra.mxu0 %v1662
        %v2125 = vpop.f32.mrf.mxu0
        %v2126 = vadd.f32 %v2034, %v2125
        %2127 = vmatmul.f32.gmra.mxu0 %v1666
        %v2128 = vpop.f32.mrf.mxu0
        %v2129 = vadd.f32 %v2037, %v2128
        %2130 = vmatmul.f32.gmra.mxu0 %v1670
        %v2131 = vpop.f32.mrf.mxu0
        %v2132 = vadd.f32 %v2040, %v2131
        %2133 = vmatmul.f32.gmra.mxu0 %v1674
        %v2134 = vpop.f32.mrf.mxu0
        %v2135 = vadd.f32 %v2043, %v2134
        %2136 = vmatmul.f32.gmra.mxu0 %v1678
        %v2137 = vpop.f32.mrf.mxu0
        %v2138 = vadd.f32 %v2046, %v2137
        %2139 = vmatmul.f32.gmra.mxu0 %v1682
        %v2140 = vpop.f32.mrf.mxu0
        %v2141 = vadd.f32 %v2049, %v2140
        %2142 = vmatmul.f32.gmra.mxu0 %v1686
        %v2143 = vpop.f32.mrf.mxu0
        %v2144 = vadd.f32 %v2052, %v2143
        %2145 = vmatmul.f32.gmra.mxu0 %v1690
        %v2146 = vpop.f32.mrf.mxu0
        %v2147 = vadd.f32 %v2055, %v2146
        %2148 = vmatmul.f32.gmra.mxu0 %v1694
        %v2149 = vpop.f32.mrf.mxu0
        %v2150 = vadd.f32 %v2058, %v2149
        %2151 = vmatmul.f32.gmra.mxu0 %v1698
        %v2152 = vpop.f32.mrf.mxu0
        %v2153 = vadd.f32 %v2061, %v2152
        %2154 = vmatmul.f32.gmra.mxu0 %v1702
        %v2155 = vpop.f32.mrf.mxu0
        %v2156 = vadd.f32 %v2064, %v2155
        %2157 = vmatmul.f32.gmra.mxu0 %v1706
        %v2158 = vpop.f32.mrf.mxu0
        %v2159 = vadd.f32 %v2067, %v2158
        %2160 = vmatmul.f32.gmra.mxu0 %v1710
        %v2161 = vpop.f32.mrf.mxu0
        %v2162 = vadd.f32 %v2070, %v2161
        %2163 = vmatmul.f32.gmra.mxu0 %v1714
        %v2164 = vpop.f32.mrf.mxu0
        %v2165 = vadd.f32 %v2073, %v2164
        %2166 = vdwg.mxu0
        %2167 = vmatpush.msra.mxu0 %v1905
        %2168 = vmatpush.msra.mxu0 %v1901
        %2169 = vmatpush.msra.mxu0 %v1897
        %2170 = vmatpush.msra.mxu0 %v1893
        %2171 = vmatpush.msra.mxu0 %v1889
        %2172 = vmatpush.msra.mxu0 %v1885
        %2173 = vmatpush.msra.mxu0 %v1881
        %2174 = vmatpush.msra.mxu0 %v1877
        %2175 = vmatpush.msra.mxu0 %v1873
        %2176 = vmatpush.msra.mxu0 %v1869
        %2177 = vmatpush.msra.mxu0 %v1865
        %2178 = vmatpush.msra.mxu0 %v1861
        %2179 = vmatpush.msra.mxu0 %v1857
        %2180 = vmatpush.msra.mxu0 %v1853
        %2181 = vmatpush.msra.mxu0 %v1849
        %2182 = vmatpush.msra.mxu0 %v1845
        %2183 = vmatmul.f32.gmra.mxu0 %v1619
        %v2184 = vpop.f32.mrf.mxu0
        %v2185 = vadd.f32 %v2093, %v2184
        %2186 = vmatmul.f32.gmra.mxu0 %v1623
        %v2187 = vpop.f32.mrf.mxu0
        %v2188 = vadd.f32 %v2096, %v2187
        %2189 = vmatmul.f32.gmra.mxu0 %v1627
        %v2190 = vpop.f32.mrf.mxu0
        %v2191 = vadd.f32 %v2099, %v2190
        %2192 = vmatmul.f32.gmra.mxu0 %v1631
        %v2193 = vpop.f32.mrf.mxu0
        %v2194 = vadd.f32 %v2102, %v2193
        %2195 = vmatmul.f32.gmra.mxu0 %v1635
        %v2196 = vpop.f32.mrf.mxu0
        %v2197 = vadd.f32 %v2105, %v2196
        %2198 = vmatmul.f32.gmra.mxu0 %v1639
        %v2199 = vpop.f32.mrf.mxu0
        %v2200 = vadd.f32 %v2108, %v2199
        %2201 = vmatmul.f32.gmra.mxu0 %v1643
        %v2202 = vpop.f32.mrf.mxu0
        %v2203 = vadd.f32 %v2111, %v2202
        %2204 = vmatmul.f32.gmra.mxu0 %v1647
        %v2205 = vpop.f32.mrf.mxu0
        %v2206 = vadd.f32 %v2114, %v2205
        %2207 = vmatmul.f32.gmra.mxu0 %v1651
        %v2208 = vpop.f32.mrf.mxu0
        %v2209 = vadd.f32 %v2117, %v2208
        %2210 = vmatmul.f32.gmra.mxu0 %v1655
        %v2211 = vpop.f32.mrf.mxu0
        %v2212 = vadd.f32 %v2120, %v2211
        %2213 = vmatmul.f32.gmra.mxu0 %v1659
        %v2214 = vpop.f32.mrf.mxu0
        %v2215 = vadd.f32 %v2123, %v2214
        %2216 = vmatmul.f32.gmra.mxu0 %v1663
        %v2217 = vpop.f32.mrf.mxu0
        %v2218 = vadd.f32 %v2126, %v2217
        %2219 = vmatmul.f32.gmra.mxu0 %v1667
        %v2220 = vpop.f32.mrf.mxu0
        %v2221 = vadd.f32 %v2129, %v2220
        %2222 = vmatmul.f32.gmra.mxu0 %v1671
        %v2223 = vpop.f32.mrf.mxu0
        %v2224 = vadd.f32 %v2132, %v2223
        %2225 = vmatmul.f32.gmra.mxu0 %v1675
        %v2226 = vpop.f32.mrf.mxu0
        %v2227 = vadd.f32 %v2135, %v2226
        %2228 = vmatmul.f32.gmra.mxu0 %v1679
        %v2229 = vpop.f32.mrf.mxu0
        %v2230 = vadd.f32 %v2138, %v2229
        %2231 = vmatmul.f32.gmra.mxu0 %v1683
        %v2232 = vpop.f32.mrf.mxu0
        %v2233 = vadd.f32 %v2141, %v2232
        %2234 = vmatmul.f32.gmra.mxu0 %v1687
        %v2235 = vpop.f32.mrf.mxu0
        %v2236 = vadd.f32 %v2144, %v2235
        %2237 = vmatmul.f32.gmra.mxu0 %v1691
        %v2238 = vpop.f32.mrf.mxu0
        %v2239 = vadd.f32 %v2147, %v2238
        %2240 = vmatmul.f32.gmra.mxu0 %v1695
        %v2241 = vpop.f32.mrf.mxu0
        %v2242 = vadd.f32 %v2150, %v2241
        %2243 = vmatmul.f32.gmra.mxu0 %v1699
        %v2244 = vpop.f32.mrf.mxu0
        %v2245 = vadd.f32 %v2153, %v2244
        %2246 = vmatmul.f32.gmra.mxu0 %v1703
        %v2247 = vpop.f32.mrf.mxu0
        %v2248 = vadd.f32 %v2156, %v2247
        %2249 = vmatmul.f32.gmra.mxu0 %v1707
        %v2250 = vpop.f32.mrf.mxu0
        %v2251 = vadd.f32 %v2159, %v2250
        %2252 = vmatmul.f32.gmra.mxu0 %v1711
        %v2253 = vpop.f32.mrf.mxu0
        %v2254 = vadd.f32 %v2162, %v2253
        %2255 = vmatmul.f32.gmra.mxu0 %v1715
        %v2256 = vpop.f32.mrf.mxu0
        %v2257 = vadd.f32 %v2165, %v2256
        %2258 = vdwg.mxu0
        %2259 = vmatpush.msra.mxu0 %v1969
        %2260 = vmatpush.msra.mxu0 %v1965
        %2261 = vmatpush.msra.mxu0 %v1961
        %2262 = vmatpush.msra.mxu0 %v1957
        %2263 = vmatpush.msra.mxu0 %v1953
        %2264 = vmatpush.msra.mxu0 %v1949
        %2265 = vmatpush.msra.mxu0 %v1945
        %2266 = vmatpush.msra.mxu0 %v1941
        %2267 = vmatpush.msra.mxu0 %v1937
        %2268 = vmatpush.msra.mxu0 %v1933
        %2269 = vmatpush.msra.mxu0 %v1929
        %2270 = vmatpush.msra.mxu0 %v1925
        %2271 = vmatpush.msra.mxu0 %v1921
        %2272 = vmatpush.msra.mxu0 %v1917
        %2273 = vmatpush.msra.mxu0 %v1913
        %2274 = vmatpush.msra.mxu0 %v1909
        %2275 = vmatmul.f32.gmra.mxu0 %v1620
        %v2276 = vpop.f32.mrf.mxu0
        %v2277 = vadd.f32 %v2185, %v2276
        %2278 = vmatmul.f32.gmra.mxu0 %v1624
        %v2279 = vpop.f32.mrf.mxu0
        %v2280 = vadd.f32 %v2188, %v2279
        %2281 = vmatmul.f32.gmra.mxu0 %v1628
        %v2282 = vpop.f32.mrf.mxu0
        %v2283 = vadd.f32 %v2191, %v2282
        %2284 = vmatmul.f32.gmra.mxu0 %v1632
        %v2285 = vpop.f32.mrf.mxu0
        %v2286 = vadd.f32 %v2194, %v2285
        %2287 = vmatmul.f32.gmra.mxu0 %v1636
        %v2288 = vpop.f32.mrf.mxu0
        %v2289 = vadd.f32 %v2197, %v2288
        %2290 = vmatmul.f32.gmra.mxu0 %v1640
        %v2291 = vpop.f32.mrf.mxu0
        %v2292 = vadd.f32 %v2200, %v2291
        %2293 = vmatmul.f32.gmra.mxu0 %v1644
        %v2294 = vpop.f32.mrf.mxu0
        %v2295 = vadd.f32 %v2203, %v2294
        %2296 = vmatmul.f32.gmra.mxu0 %v1648
        %v2297 = vpop.f32.mrf.mxu0
        %v2298 = vadd.f32 %v2206, %v2297
        %2299 = vmatmul.f32.gmra.mxu0 %v1652
        %v2300 = vpop.f32.mrf.mxu0
        %v2301 = vadd.f32 %v2209, %v2300
        %2302 = vmatmul.f32.gmra.mxu0 %v1656
        %v2303 = vpop.f32.mrf.mxu0
        %v2304 = vadd.f32 %v2212, %v2303
        %2305 = vmatmul.f32.gmra.mxu0 %v1660
        %v2306 = vpop.f32.mrf.mxu0
        %v2307 = vadd.f32 %v2215, %v2306
        %2308 = vmatmul.f32.gmra.mxu0 %v1664
        %v2309 = vpop.f32.mrf.mxu0
        %v2310 = vadd.f32 %v2218, %v2309
        %2311 = vmatmul.f32.gmra.mxu0 %v1668
        %v2312 = vpop.f32.mrf.mxu0
        %v2313 = vadd.f32 %v2221, %v2312
        %2314 = vmatmul.f32.gmra.mxu0 %v1672
        %v2315 = vpop.f32.mrf.mxu0
        %v2316 = vadd.f32 %v2224, %v2315
        %2317 = vmatmul.f32.gmra.mxu0 %v1676
        %v2318 = vpop.f32.mrf.mxu0
        %v2319 = vadd.f32 %v2227, %v2318
        %2320 = vmatmul.f32.gmra.mxu0 %v1680
        %v2321 = vpop.f32.mrf.mxu0
        %v2322 = vadd.f32 %v2230, %v2321
        %2323 = vmatmul.f32.gmra.mxu0 %v1684
        %v2324 = vpop.f32.mrf.mxu0
        %v2325 = vadd.f32 %v2233, %v2324
        %2326 = vmatmul.f32.gmra.mxu0 %v1688
        %v2327 = vpop.f32.mrf.mxu0
        %v2328 = vadd.f32 %v2236, %v2327
        %2329 = vmatmul.f32.gmra.mxu0 %v1692
        %v2330 = vpop.f32.mrf.mxu0
        %v2331 = vadd.f32 %v2239, %v2330
        %2332 = vmatmul.f32.gmra.mxu0 %v1696
        %v2333 = vpop.f32.mrf.mxu0
        %v2334 = vadd.f32 %v2242, %v2333
        %2335 = vmatmul.f32.gmra.mxu0 %v1700
        %v2336 = vpop.f32.mrf.mxu0
        %v2337 = vadd.f32 %v2245, %v2336
        %2338 = vmatmul.f32.gmra.mxu0 %v1704
        %v2339 = vpop.f32.mrf.mxu0
        %v2340 = vadd.f32 %v2248, %v2339
        %2341 = vmatmul.f32.gmra.mxu0 %v1708
        %v2342 = vpop.f32.mrf.mxu0
        %v2343 = vadd.f32 %v2251, %v2342
        %2344 = vmatmul.f32.gmra.mxu0 %v1712
        %v2345 = vpop.f32.mrf.mxu0
        %v2346 = vadd.f32 %v2254, %v2345
        %2347 = vmatmul.f32.gmra.mxu0 %v1716
        %v2348 = vpop.f32.mrf.mxu0
        %v2349 = vadd.f32 %v2257, %v2348
        %2350 = vdwg.mxu0
        %2351 = vmatpush.msra.mxu0 %v1778
        %2352 = vmatpush.msra.mxu0 %v1774
        %2353 = vmatpush.msra.mxu0 %v1770
        %2354 = vmatpush.msra.mxu0 %v1766
        %2355 = vmatpush.msra.mxu0 %v1762
        %2356 = vmatpush.msra.mxu0 %v1758
        %2357 = vmatpush.msra.mxu0 %v1754
        %2358 = vmatpush.msra.mxu0 %v1750
        %2359 = vmatpush.msra.mxu0 %v1746
        %2360 = vmatpush.msra.mxu0 %v1742
        %2361 = vmatpush.msra.mxu0 %v1738
        %2362 = vmatpush.msra.mxu0 %v1734
        %2363 = vmatpush.msra.mxu0 %v1730
        %2364 = vmatpush.msra.mxu0 %v1726
        %2365 = vmatpush.msra.mxu0 %v1722
        %2366 = vmatpush.msra.mxu0 %v1718
        %2367 = vmatmul.f32.gmra.mxu0 %v1617
        %v2368 = vpop.f32.mrf.mxu0
        %v2369 = vadd.f32 %v1976, %v2368
        %2370 = vmatmul.f32.gmra.mxu0 %v1621
        %v2371 = vpop.f32.mrf.mxu0
        %v2372 = vadd.f32 %v1976, %v2371
        %2373 = vmatmul.f32.gmra.mxu0 %v1625
        %v2374 = vpop.f32.mrf.mxu0
        %v2375 = vadd.f32 %v1976, %v2374
        %2376 = vmatmul.f32.gmra.mxu0 %v1629
        %v2377 = vpop.f32.mrf.mxu0
        %v2378 = vadd.f32 %v1976, %v2377
        %2379 = vmatmul.f32.gmra.mxu0 %v1633
        %v2380 = vpop.f32.mrf.mxu0
        %v2381 = vadd.f32 %v1976, %v2380
        %2382 = vmatmul.f32.gmra.mxu0 %v1637
        %v2383 = vpop.f32.mrf.mxu0
        %v2384 = vadd.f32 %v1976, %v2383
        %2385 = vmatmul.f32.gmra.mxu0 %v1641
        %v2386 = vpop.f32.mrf.mxu0
        %v2387 = vadd.f32 %v1976, %v2386
        %2388 = vmatmul.f32.gmra.mxu0 %v1645
        %v2389 = vpop.f32.mrf.mxu0
        %v2390 = vadd.f32 %v1976, %v2389
        %2391 = vmatmul.f32.gmra.mxu0 %v1649
        %v2392 = vpop.f32.mrf.mxu0
        %v2393 = vadd.f32 %v1976, %v2392
        %2394 = vmatmul.f32.gmra.mxu0 %v1653
        %v2395 = vpop.f32.mrf.mxu0
        %v2396 = vadd.f32 %v1976, %v2395
        %2397 = vmatmul.f32.gmra.mxu0 %v1657
        %v2398 = vpop.f32.mrf.mxu0
        %v2399 = vadd.f32 %v1976, %v2398
        %2400 = vmatmul.f32.gmra.mxu0 %v1661
        %v2401 = vpop.f32.mrf.mxu0
        %v2402 = vadd.f32 %v1976, %v2401
        %2403 = vmatmul.f32.gmra.mxu0 %v1665
        %v2404 = vpop.f32.mrf.mxu0
        %v2405 = vadd.f32 %v1976, %v2404
        %2406 = vmatmul.f32.gmra.mxu0 %v1669
        %v2407 = vpop.f32.mrf.mxu0
        %v2408 = vadd.f32 %v1976, %v2407
        %2409 = vmatmul.f32.gmra.mxu0 %v1673
        %v2410 = vpop.f32.mrf.mxu0
        %v2411 = vadd.f32 %v1976, %v2410
        %2412 = vmatmul.f32.gmra.mxu0 %v1677
        %v2413 = vpop.f32.mrf.mxu0
        %v2414 = vadd.f32 %v1976, %v2413
        %2415 = vmatmul.f32.gmra.mxu0 %v1681
        %v2416 = vpop.f32.mrf.mxu0
        %v2417 = vadd.f32 %v1976, %v2416
        %2418 = vmatmul.f32.gmra.mxu0 %v1685
        %v2419 = vpop.f32.mrf.mxu0
        %v2420 = vadd.f32 %v1976, %v2419
        %2421 = vmatmul.f32.gmra.mxu0 %v1689
        %v2422 = vpop.f32.mrf.mxu0
        %v2423 = vadd.f32 %v1976, %v2422
        %2424 = vmatmul.f32.gmra.mxu0 %v1693
        %v2425 = vpop.f32.mrf.mxu0
        %v2426 = vadd.f32 %v1976, %v2425
        %2427 = vmatmul.f32.gmra.mxu0 %v1697
        %v2428 = vpop.f32.mrf.mxu0
        %v2429 = vadd.f32 %v1976, %v2428
        %2430 = vmatmul.f32.gmra.mxu0 %v1701
        %v2431 = vpop.f32.mrf.mxu0
        %v2432 = vadd.f32 %v1976, %v2431
        %2433 = vmatmul.f32.gmra.mxu0 %v1705
        %v2434 = vpop.f32.mrf.mxu0
        %v2435 = vadd.f32 %v1976, %v2434
        %2436 = vmatmul.f32.gmra.mxu0 %v1709
        %v2437 = vpop.f32.mrf.mxu0
        %v2438 = vadd.f32 %v1976, %v2437
        %2439 = vmatmul.f32.gmra.mxu0 %v1713
        %v2440 = vpop.f32.mrf.mxu0
        %v2441 = vadd.f32 %v1976, %v2440
        %2442 = vdwg.mxu0
        %2443 = vmatpush.msra.mxu0 %v1842
        %2444 = vmatpush.msra.mxu0 %v1838
        %2445 = vmatpush.msra.mxu0 %v1834
        %2446 = vmatpush.msra.mxu0 %v1830
        %2447 = vmatpush.msra.mxu0 %v1826
        %2448 = vmatpush.msra.mxu0 %v1822
        %2449 = vmatpush.msra.mxu0 %v1818
        %2450 = vmatpush.msra.mxu0 %v1814
        %2451 = vmatpush.msra.mxu0 %v1810
        %2452 = vmatpush.msra.mxu0 %v1806
        %2453 = vmatpush.msra.mxu0 %v1802
        %2454 = vmatpush.msra.mxu0 %v1798
        %2455 = vmatpush.msra.mxu0 %v1794
        %2456 = vmatpush.msra.mxu0 %v1790
        %2457 = vmatpush.msra.mxu0 %v1786
        %2458 = vmatpush.msra.mxu0 %v1782
        %2459 = vmatmul.f32.gmra.mxu0 %v1618
        %v2460 = vpop.f32.mrf.mxu0
        %v2461 = vadd.f32 %v2369, %v2460
        %2462 = vmatmul.f32.gmra.mxu0 %v1622
        %v2463 = vpop.f32.mrf.mxu0
        %v2464 = vadd.f32 %v2372, %v2463
        %2465 = vmatmul.f32.gmra.mxu0 %v1626
        %v2466 = vpop.f32.mrf.mxu0
        %v2467 = vadd.f32 %v2375, %v2466
        %2468 = vmatmul.f32.gmra.mxu0 %v1630
        %v2469 = vpop.f32.mrf.mxu0
        %v2470 = vadd.f32 %v2378, %v2469
        %2471 = vmatmul.f32.gmra.mxu0 %v1634
        %v2472 = vpop.f32.mrf.mxu0
        %v2473 = vadd.f32 %v2381, %v2472
        %2474 = vmatmul.f32.gmra.mxu0 %v1638
        %v2475 = vpop.f32.mrf.mxu0
        %v2476 = vadd.f32 %v2384, %v2475
        %2477 = vmatmul.f32.gmra.mxu0 %v1642
        %v2478 = vpop.f32.mrf.mxu0
        %v2479 = vadd.f32 %v2387, %v2478
        %2480 = vmatmul.f32.gmra.mxu0 %v1646
        %v2481 = vpop.f32.mrf.mxu0
        %v2482 = vadd.f32 %v2390, %v2481
        %2483 = vmatmul.f32.gmra.mxu0 %v1650
        %v2484 = vpop.f32.mrf.mxu0
        %v2485 = vadd.f32 %v2393, %v2484
        %2486 = vmatmul.f32.gmra.mxu0 %v1654
        %v2487 = vpop.f32.mrf.mxu0
        %v2488 = vadd.f32 %v2396, %v2487
        %2489 = vmatmul.f32.gmra.mxu0 %v1658
        %v2490 = vpop.f32.mrf.mxu0
        %v2491 = vadd.f32 %v2399, %v2490
        %2492 = vmatmul.f32.gmra.mxu0 %v1662
        %v2493 = vpop.f32.mrf.mxu0
        %v2494 = vadd.f32 %v2402, %v2493
        %2495 = vmatmul.f32.gmra.mxu0 %v1666
        %v2496 = vpop.f32.mrf.mxu0
        %v2497 = vadd.f32 %v2405, %v2496
        %2498 = vmatmul.f32.gmra.mxu0 %v1670
        %v2499 = vpop.f32.mrf.mxu0
        %v2500 = vadd.f32 %v2408, %v2499
        %2501 = vmatmul.f32.gmra.mxu0 %v1674
        %v2502 = vpop.f32.mrf.mxu0
        %v2503 = vadd.f32 %v2411, %v2502
        %2504 = vmatmul.f32.gmra.mxu0 %v1678
        %v2505 = vpop.f32.mrf.mxu0
        %v2506 = vadd.f32 %v2414, %v2505
        %2507 = vmatmul.f32.gmra.mxu0 %v1682
        %v2508 = vpop.f32.mrf.mxu0
        %v2509 = vadd.f32 %v2417, %v2508
        %2510 = vmatmul.f32.gmra.mxu0 %v1686
        %v2511 = vpop.f32.mrf.mxu0
        %v2512 = vadd.f32 %v2420, %v2511
        %2513 = vmatmul.f32.gmra.mxu0 %v1690
        %v2514 = vpop.f32.mrf.mxu0
        %v2515 = vadd.f32 %v2423, %v2514
        %2516 = vmatmul.f32.gmra.mxu0 %v1694
        %v2517 = vpop.f32.mrf.mxu0
        %v2518 = vadd.f32 %v2426, %v2517
        %2519 = vmatmul.f32.gmra.mxu0 %v1698
        %v2520 = vpop.f32.mrf.mxu0
        %v2521 = vadd.f32 %v2429, %v2520
        %2522 = vmatmul.f32.gmra.mxu0 %v1702
        %v2523 = vpop.f32.mrf.mxu0
        %v2524 = vadd.f32 %v2432, %v2523
        %2525 = vmatmul.f32.gmra.mxu0 %v1706
        %v2526 = vpop.f32.mrf.mxu0
        %v2527 = vadd.f32 %v2435, %v2526
        %2528 = vmatmul.f32.gmra.mxu0 %v1710
        %v2529 = vpop.f32.mrf.mxu0
        %v2530 = vadd.f32 %v2438, %v2529
        %2531 = vmatmul.f32.gmra.mxu0 %v1714
        %v2532 = vpop.f32.mrf.mxu0
        %v2533 = vadd.f32 %v2441, %v2532
        %2534 = vdwg.mxu0
        %2535 = vmatpush.msra.mxu0 %v1906
        %2536 = vmatpush.msra.mxu0 %v1902
        %2537 = vmatpush.msra.mxu0 %v1898
        %2538 = vmatpush.msra.mxu0 %v1894
        %2539 = vmatpush.msra.mxu0 %v1890
        %2540 = vmatpush.msra.mxu0 %v1886
        %2541 = vmatpush.msra.mxu0 %v1882
        %2542 = vmatpush.msra.mxu0 %v1878
        %2543 = vmatpush.msra.mxu0 %v1874
        %2544 = vmatpush.msra.mxu0 %v1870
        %2545 = vmatpush.msra.mxu0 %v1866
        %2546 = vmatpush.msra.mxu0 %v1862
        %2547 = vmatpush.msra.mxu0 %v1858
        %2548 = vmatpush.msra.mxu0 %v1854
        %2549 = vmatpush.msra.mxu0 %v1850
        %2550 = vmatpush.msra.mxu0 %v1846
        %2551 = vmatmul.f32.gmra.mxu0 %v1619
        %v2552 = vpop.f32.mrf.mxu0
        %v2553 = vadd.f32 %v2461, %v2552
        %2554 = vmatmul.f32.gmra.mxu0 %v1623
        %v2555 = vpop.f32.mrf.mxu0
        %v2556 = vadd.f32 %v2464, %v2555
        %2557 = vmatmul.f32.gmra.mxu0 %v1627
        %v2558 = vpop.f32.mrf.mxu0
        %v2559 = vadd.f32 %v2467, %v2558
        %2560 = vmatmul.f32.gmra.mxu0 %v1631
        %v2561 = vpop.f32.mrf.mxu0
        %v2562 = vadd.f32 %v2470, %v2561
        %2563 = vmatmul.f32.gmra.mxu0 %v1635
        %v2564 = vpop.f32.mrf.mxu0
        %v2565 = vadd.f32 %v2473, %v2564
        %2566 = vmatmul.f32.gmra.mxu0 %v1639
        %v2567 = vpop.f32.mrf.mxu0
        %v2568 = vadd.f32 %v2476, %v2567
        %2569 = vmatmul.f32.gmra.mxu0 %v1643
        %v2570 = vpop.f32.mrf.mxu0
        %v2571 = vadd.f32 %v2479, %v2570
        %2572 = vmatmul.f32.gmra.mxu0 %v1647
        %v2573 = vpop.f32.mrf.mxu0
        %v2574 = vadd.f32 %v2482, %v2573
        %2575 = vmatmul.f32.gmra.mxu0 %v1651
        %v2576 = vpop.f32.mrf.mxu0
        %v2577 = vadd.f32 %v2485, %v2576
        %2578 = vmatmul.f32.gmra.mxu0 %v1655
        %v2579 = vpop.f32.mrf.mxu0
        %v2580 = vadd.f32 %v2488, %v2579
        %2581 = vmatmul.f32.gmra.mxu0 %v1659
        %v2582 = vpop.f32.mrf.mxu0
        %v2583 = vadd.f32 %v2491, %v2582
        %2584 = vmatmul.f32.gmra.mxu0 %v1663
        %v2585 = vpop.f32.mrf.mxu0
        %v2586 = vadd.f32 %v2494, %v2585
        %2587 = vmatmul.f32.gmra.mxu0 %v1667
        %v2588 = vpop.f32.mrf.mxu0
        %v2589 = vadd.f32 %v2497, %v2588
        %2590 = vmatmul.f32.gmra.mxu0 %v1671
        %v2591 = vpop.f32.mrf.mxu0
        %v2592 = vadd.f32 %v2500, %v2591
        %2593 = vmatmul.f32.gmra.mxu0 %v1675
        %v2594 = vpop.f32.mrf.mxu0
        %v2595 = vadd.f32 %v2503, %v2594
        %2596 = vmatmul.f32.gmra.mxu0 %v1679
        %v2597 = vpop.f32.mrf.mxu0
        %v2598 = vadd.f32 %v2506, %v2597
        %2599 = vmatmul.f32.gmra.mxu0 %v1683
        %v2600 = vpop.f32.mrf.mxu0
        %v2601 = vadd.f32 %v2509, %v2600
        %2602 = vmatmul.f32.gmra.mxu0 %v1687
        %v2603 = vpop.f32.mrf.mxu0
        %v2604 = vadd.f32 %v2512, %v2603
        %2605 = vmatmul.f32.gmra.mxu0 %v1691
        %v2606 = vpop.f32.mrf.mxu0
        %v2607 = vadd.f32 %v2515, %v2606
        %2608 = vmatmul.f32.gmra.mxu0 %v1695
        %v2609 = vpop.f32.mrf.mxu0
        %v2610 = vadd.f32 %v2518, %v2609
        %2611 = vmatmul.f32.gmra.mxu0 %v1699
        %v2612 = vpop.f32.mrf.mxu0
        %v2613 = vadd.f32 %v2521, %v2612
        %2614 = vmatmul.f32.gmra.mxu0 %v1703
        %v2615 = vpop.f32.mrf.mxu0
        %v2616 = vadd.f32 %v2524, %v2615
        %2617 = vmatmul.f32.gmra.mxu0 %v1707
        %v2618 = vpop.f32.mrf.mxu0
        %v2619 = vadd.f32 %v2527, %v2618
        %2620 = vmatmul.f32.gmra.mxu0 %v1711
        %v2621 = vpop.f32.mrf.mxu0
        %v2622 = vadd.f32 %v2530, %v2621
        %2623 = vmatmul.f32.gmra.mxu0 %v1715
        %v2624 = vpop.f32.mrf.mxu0
        %v2625 = vadd.f32 %v2533, %v2624
        %2626 = vdwg.mxu0
        %2627 = vmatpush.msra.mxu0 %v1970
        %2628 = vmatpush.msra.mxu0 %v1966
        %2629 = vmatpush.msra.mxu0 %v1962
        %2630 = vmatpush.msra.mxu0 %v1958
        %2631 = vmatpush.msra.mxu0 %v1954
        %2632 = vmatpush.msra.mxu0 %v1950
        %2633 = vmatpush.msra.mxu0 %v1946
        %2634 = vmatpush.msra.mxu0 %v1942
        %2635 = vmatpush.msra.mxu0 %v1938
        %2636 = vmatpush.msra.mxu0 %v1934
        %2637 = vmatpush.msra.mxu0 %v1930
        %2638 = vmatpush.msra.mxu0 %v1926
        %2639 = vmatpush.msra.mxu0 %v1922
        %2640 = vmatpush.msra.mxu0 %v1918
        %2641 = vmatpush.msra.mxu0 %v1914
        %2642 = vmatpush.msra.mxu0 %v1910
        %2643 = vmatmul.f32.gmra.mxu0 %v1620
        %v2644 = vpop.f32.mrf.mxu0
        %v2645 = vadd.f32 %v2553, %v2644
        %2646 = vmatmul.f32.gmra.mxu0 %v1624
        %v2647 = vpop.f32.mrf.mxu0
        %v2648 = vadd.f32 %v2556, %v2647
        %2649 = vmatmul.f32.gmra.mxu0 %v1628
        %v2650 = vpop.f32.mrf.mxu0
        %v2651 = vadd.f32 %v2559, %v2650
        %2652 = vmatmul.f32.gmra.mxu0 %v1632
        %v2653 = vpop.f32.mrf.mxu0
        %v2654 = vadd.f32 %v2562, %v2653
        %2655 = vmatmul.f32.gmra.mxu0 %v1636
        %v2656 = vpop.f32.mrf.mxu0
        %v2657 = vadd.f32 %v2565, %v2656
        %2658 = vmatmul.f32.gmra.mxu0 %v1640
        %v2659 = vpop.f32.mrf.mxu0
        %v2660 = vadd.f32 %v2568, %v2659
        %2661 = vmatmul.f32.gmra.mxu0 %v1644
        %v2662 = vpop.f32.mrf.mxu0
        %v2663 = vadd.f32 %v2571, %v2662
        %2664 = vmatmul.f32.gmra.mxu0 %v1648
        %v2665 = vpop.f32.mrf.mxu0
        %v2666 = vadd.f32 %v2574, %v2665
        %2667 = vmatmul.f32.gmra.mxu0 %v1652
        %v2668 = vpop.f32.mrf.mxu0
        %v2669 = vadd.f32 %v2577, %v2668
        %2670 = vmatmul.f32.gmra.mxu0 %v1656
        %v2671 = vpop.f32.mrf.mxu0
        %v2672 = vadd.f32 %v2580, %v2671
        %2673 = vmatmul.f32.gmra.mxu0 %v1660
        %v2674 = vpop.f32.mrf.mxu0
        %v2675 = vadd.f32 %v2583, %v2674
        %2676 = vmatmul.f32.gmra.mxu0 %v1664
        %v2677 = vpop.f32.mrf.mxu0
        %v2678 = vadd.f32 %v2586, %v2677
        %2679 = vmatmul.f32.gmra.mxu0 %v1668
        %v2680 = vpop.f32.mrf.mxu0
        %v2681 = vadd.f32 %v2589, %v2680
        %2682 = vmatmul.f32.gmra.mxu0 %v1672
        %v2683 = vpop.f32.mrf.mxu0
        %v2684 = vadd.f32 %v2592, %v2683
        %2685 = vmatmul.f32.gmra.mxu0 %v1676
        %v2686 = vpop.f32.mrf.mxu0
        %v2687 = vadd.f32 %v2595, %v2686
        %2688 = vmatmul.f32.gmra.mxu0 %v1680
        %v2689 = vpop.f32.mrf.mxu0
        %v2690 = vadd.f32 %v2598, %v2689
        %2691 = vmatmul.f32.gmra.mxu0 %v1684
        %v2692 = vpop.f32.mrf.mxu0
        %v2693 = vadd.f32 %v2601, %v2692
        %2694 = vmatmul.f32.gmra.mxu0 %v1688
        %v2695 = vpop.f32.mrf.mxu0
        %v2696 = vadd.f32 %v2604, %v2695
        %2697 = vmatmul.f32.gmra.mxu0 %v1692
        %v2698 = vpop.f32.mrf.mxu0
        %v2699 = vadd.f32 %v2607, %v2698
        %2700 = vmatmul.f32.gmra.mxu0 %v1696
        %v2701 = vpop.f32.mrf.mxu0
        %v2702 = vadd.f32 %v2610, %v2701
        %2703 = vmatmul.f32.gmra.mxu0 %v1700
        %v2704 = vpop.f32.mrf.mxu0
        %v2705 = vadd.f32 %v2613, %v2704
        %2706 = vmatmul.f32.gmra.mxu0 %v1704
        %v2707 = vpop.f32.mrf.mxu0
        %v2708 = vadd.f32 %v2616, %v2707
        %2709 = vmatmul.f32.gmra.mxu0 %v1708
        %v2710 = vpop.f32.mrf.mxu0
        %v2711 = vadd.f32 %v2619, %v2710
        %2712 = vmatmul.f32.gmra.mxu0 %v1712
        %v2713 = vpop.f32.mrf.mxu0
        %v2714 = vadd.f32 %v2622, %v2713
        %2715 = vmatmul.f32.gmra.mxu0 %v1716
        %v2716 = vpop.f32.mrf.mxu0
        %v2717 = vadd.f32 %v2625, %v2716
        %2718 = vdwg.mxu0
        %2719 = vmatpush.msra.mxu0 %v1779
        %2720 = vmatpush.msra.mxu0 %v1775
        %2721 = vmatpush.msra.mxu0 %v1771
        %2722 = vmatpush.msra.mxu0 %v1767
        %2723 = vmatpush.msra.mxu0 %v1763
        %2724 = vmatpush.msra.mxu0 %v1759
        %2725 = vmatpush.msra.mxu0 %v1755
        %2726 = vmatpush.msra.mxu0 %v1751
        %2727 = vmatpush.msra.mxu0 %v1747
        %2728 = vmatpush.msra.mxu0 %v1743
        %2729 = vmatpush.msra.mxu0 %v1739
        %2730 = vmatpush.msra.mxu0 %v1735
        %2731 = vmatpush.msra.mxu0 %v1731
        %2732 = vmatpush.msra.mxu0 %v1727
        %2733 = vmatpush.msra.mxu0 %v1723
        %2734 = vmatpush.msra.mxu0 %v1719
        %2735 = vmatmul.f32.gmra.mxu0 %v1617
        %v2736 = vpop.f32.mrf.mxu0
        %v2737 = vadd.f32 %v1977, %v2736
        %2738 = vmatmul.f32.gmra.mxu0 %v1621
        %v2739 = vpop.f32.mrf.mxu0
        %v2740 = vadd.f32 %v1977, %v2739
        %2741 = vmatmul.f32.gmra.mxu0 %v1625
        %v2742 = vpop.f32.mrf.mxu0
        %v2743 = vadd.f32 %v1977, %v2742
        %2744 = vmatmul.f32.gmra.mxu0 %v1629
        %v2745 = vpop.f32.mrf.mxu0
        %v2746 = vadd.f32 %v1977, %v2745
        %2747 = vmatmul.f32.gmra.mxu0 %v1633
        %v2748 = vpop.f32.mrf.mxu0
        %v2749 = vadd.f32 %v1977, %v2748
        %2750 = vmatmul.f32.gmra.mxu0 %v1637
        %v2751 = vpop.f32.mrf.mxu0
        %v2752 = vadd.f32 %v1977, %v2751
        %2753 = vmatmul.f32.gmra.mxu0 %v1641
        %v2754 = vpop.f32.mrf.mxu0
        %v2755 = vadd.f32 %v1977, %v2754
        %2756 = vmatmul.f32.gmra.mxu0 %v1645
        %v2757 = vpop.f32.mrf.mxu0
        %v2758 = vadd.f32 %v1977, %v2757
        %2759 = vmatmul.f32.gmra.mxu0 %v1649
        %v2760 = vpop.f32.mrf.mxu0
        %v2761 = vadd.f32 %v1977, %v2760
        %2762 = vmatmul.f32.gmra.mxu0 %v1653
        %v2763 = vpop.f32.mrf.mxu0
        %v2764 = vadd.f32 %v1977, %v2763
        %2765 = vmatmul.f32.gmra.mxu0 %v1657
        %v2766 = vpop.f32.mrf.mxu0
        %v2767 = vadd.f32 %v1977, %v2766
        %2768 = vmatmul.f32.gmra.mxu0 %v1661
        %v2769 = vpop.f32.mrf.mxu0
        %v2770 = vadd.f32 %v1977, %v2769
        %2771 = vmatmul.f32.gmra.mxu0 %v1665
        %v2772 = vpop.f32.mrf.mxu0
        %v2773 = vadd.f32 %v1977, %v2772
        %2774 = vmatmul.f32.gmra.mxu0 %v1669
        %v2775 = vpop.f32.mrf.mxu0
        %v2776 = vadd.f32 %v1977, %v2775
        %2777 = vmatmul.f32.gmra.mxu0 %v1673
        %v2778 = vpop.f32.mrf.mxu0
        %v2779 = vadd.f32 %v1977, %v2778
        %2780 = vmatmul.f32.gmra.mxu0 %v1677
        %v2781 = vpop.f32.mrf.mxu0
        %v2782 = vadd.f32 %v1977, %v2781
        %2783 = vmatmul.f32.gmra.mxu0 %v1681
        %v2784 = vpop.f32.mrf.mxu0
        %v2785 = vadd.f32 %v1977, %v2784
        %2786 = vmatmul.f32.gmra.mxu0 %v1685
        %v2787 = vpop.f32.mrf.mxu0
        %v2788 = vadd.f32 %v1977, %v2787
        %2789 = vmatmul.f32.gmra.mxu0 %v1689
        %v2790 = vpop.f32.mrf.mxu0
        %v2791 = vadd.f32 %v1977, %v2790
        %2792 = vmatmul.f32.gmra.mxu0 %v1693
        %v2793 = vpop.f32.mrf.mxu0
        %v2794 = vadd.f32 %v1977, %v2793
        %2795 = vmatmul.f32.gmra.mxu0 %v1697
        %v2796 = vpop.f32.mrf.mxu0
        %v2797 = vadd.f32 %v1977, %v2796
        %2798 = vmatmul.f32.gmra.mxu0 %v1701
        %v2799 = vpop.f32.mrf.mxu0
        %v2800 = vadd.f32 %v1977, %v2799
        %2801 = vmatmul.f32.gmra.mxu0 %v1705
        %v2802 = vpop.f32.mrf.mxu0
        %v2803 = vadd.f32 %v1977, %v2802
        %2804 = vmatmul.f32.gmra.mxu0 %v1709
        %v2805 = vpop.f32.mrf.mxu0
        %v2806 = vadd.f32 %v1977, %v2805
        %2807 = vmatmul.f32.gmra.mxu0 %v1713
        %v2808 = vpop.f32.mrf.mxu0
        %v2809 = vadd.f32 %v1977, %v2808
        %2810 = vdwg.mxu0
        %2811 = vmatpush.msra.mxu0 %v1843
        %2812 = vmatpush.msra.mxu0 %v1839
        %2813 = vmatpush.msra.mxu0 %v1835
        %2814 = vmatpush.msra.mxu0 %v1831
        %2815 = vmatpush.msra.mxu0 %v1827
        %2816 = vmatpush.msra.mxu0 %v1823
        %2817 = vmatpush.msra.mxu0 %v1819
        %2818 = vmatpush.msra.mxu0 %v1815
        %2819 = vmatpush.msra.mxu0 %v1811
        %2820 = vmatpush.msra.mxu0 %v1807
        %2821 = vmatpush.msra.mxu0 %v1803
        %2822 = vmatpush.msra.mxu0 %v1799
        %2823 = vmatpush.msra.mxu0 %v1795
        %2824 = vmatpush.msra.mxu0 %v1791
        %2825 = vmatpush.msra.mxu0 %v1787
        %2826 = vmatpush.msra.mxu0 %v1783
        %2827 = vmatmul.f32.gmra.mxu0 %v1618
        %v2828 = vpop.f32.mrf.mxu0
        %v2829 = vadd.f32 %v2737, %v2828
        %2830 = vmatmul.f32.gmra.mxu0 %v1622
        %v2831 = vpop.f32.mrf.mxu0
        %v2832 = vadd.f32 %v2740, %v2831
        %2833 = vmatmul.f32.gmra.mxu0 %v1626
        %v2834 = vpop.f32.mrf.mxu0
        %v2835 = vadd.f32 %v2743, %v2834
        %2836 = vmatmul.f32.gmra.mxu0 %v1630
        %v2837 = vpop.f32.mrf.mxu0
        %v2838 = vadd.f32 %v2746, %v2837
        %2839 = vmatmul.f32.gmra.mxu0 %v1634
        %v2840 = vpop.f32.mrf.mxu0
        %v2841 = vadd.f32 %v2749, %v2840
        %2842 = vmatmul.f32.gmra.mxu0 %v1638
        %v2843 = vpop.f32.mrf.mxu0
        %v2844 = vadd.f32 %v2752, %v2843
        %2845 = vmatmul.f32.gmra.mxu0 %v1642
        %v2846 = vpop.f32.mrf.mxu0
        %v2847 = vadd.f32 %v2755, %v2846
        %2848 = vmatmul.f32.gmra.mxu0 %v1646
        %v2849 = vpop.f32.mrf.mxu0
        %v2850 = vadd.f32 %v2758, %v2849
        %2851 = vmatmul.f32.gmra.mxu0 %v1650
        %v2852 = vpop.f32.mrf.mxu0
        %v2853 = vadd.f32 %v2761, %v2852
        %2854 = vmatmul.f32.gmra.mxu0 %v1654
        %v2855 = vpop.f32.mrf.mxu0
        %v2856 = vadd.f32 %v2764, %v2855
        %2857 = vmatmul.f32.gmra.mxu0 %v1658
        %v2858 = vpop.f32.mrf.mxu0
        %v2859 = vadd.f32 %v2767, %v2858
        %2860 = vmatmul.f32.gmra.mxu0 %v1662
        %v2861 = vpop.f32.mrf.mxu0
        %v2862 = vadd.f32 %v2770, %v2861
        %2863 = vmatmul.f32.gmra.mxu0 %v1666
        %v2864 = vpop.f32.mrf.mxu0
        %v2865 = vadd.f32 %v2773, %v2864
        %2866 = vmatmul.f32.gmra.mxu0 %v1670
        %v2867 = vpop.f32.mrf.mxu0
        %v2868 = vadd.f32 %v2776, %v2867
        %2869 = vmatmul.f32.gmra.mxu0 %v1674
        %v2870 = vpop.f32.mrf.mxu0
        %v2871 = vadd.f32 %v2779, %v2870
        %2872 = vmatmul.f32.gmra.mxu0 %v1678
        %v2873 = vpop.f32.mrf.mxu0
        %v2874 = vadd.f32 %v2782, %v2873
        %2875 = vmatmul.f32.gmra.mxu0 %v1682
        %v2876 = vpop.f32.mrf.mxu0
        %v2877 = vadd.f32 %v2785, %v2876
        %2878 = vmatmul.f32.gmra.mxu0 %v1686
        %v2879 = vpop.f32.mrf.mxu0
        %v2880 = vadd.f32 %v2788, %v2879
        %2881 = vmatmul.f32.gmra.mxu0 %v1690
        %v2882 = vpop.f32.mrf.mxu0
        %v2883 = vadd.f32 %v2791, %v2882
        %2884 = vmatmul.f32.gmra.mxu0 %v1694
        %v2885 = vpop.f32.mrf.mxu0
        %v2886 = vadd.f32 %v2794, %v2885
        %2887 = vmatmul.f32.gmra.mxu0 %v1698
        %v2888 = vpop.f32.mrf.mxu0
        %v2889 = vadd.f32 %v2797, %v2888
        %2890 = vmatmul.f32.gmra.mxu0 %v1702
        %v2891 = vpop.f32.mrf.mxu0
        %v2892 = vadd.f32 %v2800, %v2891
        %2893 = vmatmul.f32.gmra.mxu0 %v1706
        %v2894 = vpop.f32.mrf.mxu0
        %v2895 = vadd.f32 %v2803, %v2894
        %2896 = vmatmul.f32.gmra.mxu0 %v1710
        %v2897 = vpop.f32.mrf.mxu0
        %v2898 = vadd.f32 %v2806, %v2897
        %2899 = vmatmul.f32.gmra.mxu0 %v1714
        %v2900 = vpop.f32.mrf.mxu0
        %v2901 = vadd.f32 %v2809, %v2900
        %2902 = vdwg.mxu0
        %2903 = vmatpush.msra.mxu0 %v1907
        %2904 = vmatpush.msra.mxu0 %v1903
        %2905 = vmatpush.msra.mxu0 %v1899
        %2906 = vmatpush.msra.mxu0 %v1895
        %2907 = vmatpush.msra.mxu0 %v1891
        %2908 = vmatpush.msra.mxu0 %v1887
        %2909 = vmatpush.msra.mxu0 %v1883
        %2910 = vmatpush.msra.mxu0 %v1879
        %2911 = vmatpush.msra.mxu0 %v1875
        %2912 = vmatpush.msra.mxu0 %v1871
        %2913 = vmatpush.msra.mxu0 %v1867
        %2914 = vmatpush.msra.mxu0 %v1863
        %2915 = vmatpush.msra.mxu0 %v1859
        %2916 = vmatpush.msra.mxu0 %v1855
        %2917 = vmatpush.msra.mxu0 %v1851
        %2918 = vmatpush.msra.mxu0 %v1847
        %2919 = vmatmul.f32.gmra.mxu0 %v1619
        %v2920 = vpop.f32.mrf.mxu0
        %v2921 = vadd.f32 %v2829, %v2920
        %2922 = vmatmul.f32.gmra.mxu0 %v1623
        %v2923 = vpop.f32.mrf.mxu0
        %v2924 = vadd.f32 %v2832, %v2923
        %2925 = vmatmul.f32.gmra.mxu0 %v1627
        %v2926 = vpop.f32.mrf.mxu0
        %v2927 = vadd.f32 %v2835, %v2926
        %2928 = vmatmul.f32.gmra.mxu0 %v1631
        %v2929 = vpop.f32.mrf.mxu0
        %v2930 = vadd.f32 %v2838, %v2929
        %2931 = vmatmul.f32.gmra.mxu0 %v1635
        %v2932 = vpop.f32.mrf.mxu0
        %v2933 = vadd.f32 %v2841, %v2932
        %2934 = vmatmul.f32.gmra.mxu0 %v1639
        %v2935 = vpop.f32.mrf.mxu0
        %v2936 = vadd.f32 %v2844, %v2935
        %2937 = vmatmul.f32.gmra.mxu0 %v1643
        %v2938 = vpop.f32.mrf.mxu0
        %v2939 = vadd.f32 %v2847, %v2938
        %2940 = vmatmul.f32.gmra.mxu0 %v1647
        %v2941 = vpop.f32.mrf.mxu0
        %v2942 = vadd.f32 %v2850, %v2941
        %2943 = vmatmul.f32.gmra.mxu0 %v1651
        %v2944 = vpop.f32.mrf.mxu0
        %v2945 = vadd.f32 %v2853, %v2944
        %2946 = vmatmul.f32.gmra.mxu0 %v1655
        %v2947 = vpop.f32.mrf.mxu0
        %v2948 = vadd.f32 %v2856, %v2947
        %2949 = vmatmul.f32.gmra.mxu0 %v1659
        %v2950 = vpop.f32.mrf.mxu0
        %v2951 = vadd.f32 %v2859, %v2950
        %2952 = vmatmul.f32.gmra.mxu0 %v1663
        %v2953 = vpop.f32.mrf.mxu0
        %v2954 = vadd.f32 %v2862, %v2953
        %2955 = vmatmul.f32.gmra.mxu0 %v1667
        %v2956 = vpop.f32.mrf.mxu0
        %v2957 = vadd.f32 %v2865, %v2956
        %2958 = vmatmul.f32.gmra.mxu0 %v1671
        %v2959 = vpop.f32.mrf.mxu0
        %v2960 = vadd.f32 %v2868, %v2959
        %2961 = vmatmul.f32.gmra.mxu0 %v1675
        %v2962 = vpop.f32.mrf.mxu0
        %v2963 = vadd.f32 %v2871, %v2962
        %2964 = vmatmul.f32.gmra.mxu0 %v1679
        %v2965 = vpop.f32.mrf.mxu0
        %v2966 = vadd.f32 %v2874, %v2965
        %2967 = vmatmul.f32.gmra.mxu0 %v1683
        %v2968 = vpop.f32.mrf.mxu0
        %v2969 = vadd.f32 %v2877, %v2968
        %2970 = vmatmul.f32.gmra.mxu0 %v1687
        %v2971 = vpop.f32.mrf.mxu0
        %v2972 = vadd.f32 %v2880, %v2971
        %2973 = vmatmul.f32.gmra.mxu0 %v1691
        %v2974 = vpop.f32.mrf.mxu0
        %v2975 = vadd.f32 %v2883, %v2974
        %2976 = vmatmul.f32.gmra.mxu0 %v1695
        %v2977 = vpop.f32.mrf.mxu0
        %v2978 = vadd.f32 %v2886, %v2977
        %2979 = vmatmul.f32.gmra.mxu0 %v1699
        %v2980 = vpop.f32.mrf.mxu0
        %v2981 = vadd.f32 %v2889, %v2980
        %2982 = vmatmul.f32.gmra.mxu0 %v1703
        %v2983 = vpop.f32.mrf.mxu0
        %v2984 = vadd.f32 %v2892, %v2983
        %2985 = vmatmul.f32.gmra.mxu0 %v1707
        %v2986 = vpop.f32.mrf.mxu0
        %v2987 = vadd.f32 %v2895, %v2986
        %2988 = vmatmul.f32.gmra.mxu0 %v1711
        %v2989 = vpop.f32.mrf.mxu0
        %v2990 = vadd.f32 %v2898, %v2989
        %2991 = vmatmul.f32.gmra.mxu0 %v1715
        %v2992 = vpop.f32.mrf.mxu0
        %v2993 = vadd.f32 %v2901, %v2992
        %2994 = vdwg.mxu0
        %2995 = vmatpush.msra.mxu0 %v1971
        %2996 = vmatpush.msra.mxu0 %v1967
        %2997 = vmatpush.msra.mxu0 %v1963
        %2998 = vmatpush.msra.mxu0 %v1959
        %2999 = vmatpush.msra.mxu0 %v1955
        %3000 = vmatpush.msra.mxu0 %v1951
        %3001 = vmatpush.msra.mxu0 %v1947
        %3002 = vmatpush.msra.mxu0 %v1943
        %3003 = vmatpush.msra.mxu0 %v1939
        %3004 = vmatpush.msra.mxu0 %v1935
        %3005 = vmatpush.msra.mxu0 %v1931
        %3006 = vmatpush.msra.mxu0 %v1927
        %3007 = vmatpush.msra.mxu0 %v1923
        %3008 = vmatpush.msra.mxu0 %v1919
        %3009 = vmatpush.msra.mxu0 %v1915
        %3010 = vmatpush.msra.mxu0 %v1911
        %3011 = vmatmul.f32.gmra.mxu0 %v1620
        %v3012 = vpop.f32.mrf.mxu0
        %v3013 = vadd.f32 %v2921, %v3012
        %3014 = vmatmul.f32.gmra.mxu0 %v1624
        %v3015 = vpop.f32.mrf.mxu0
        %v3016 = vadd.f32 %v2924, %v3015
        %3017 = vmatmul.f32.gmra.mxu0 %v1628
        %v3018 = vpop.f32.mrf.mxu0
        %v3019 = vadd.f32 %v2927, %v3018
        %3020 = vmatmul.f32.gmra.mxu0 %v1632
        %v3021 = vpop.f32.mrf.mxu0
        %v3022 = vadd.f32 %v2930, %v3021
        %3023 = vmatmul.f32.gmra.mxu0 %v1636
        %v3024 = vpop.f32.mrf.mxu0
        %v3025 = vadd.f32 %v2933, %v3024
        %3026 = vmatmul.f32.gmra.mxu0 %v1640
        %v3027 = vpop.f32.mrf.mxu0
        %v3028 = vadd.f32 %v2936, %v3027
        %3029 = vmatmul.f32.gmra.mxu0 %v1644
        %v3030 = vpop.f32.mrf.mxu0
        %v3031 = vadd.f32 %v2939, %v3030
        %3032 = vmatmul.f32.gmra.mxu0 %v1648
        %v3033 = vpop.f32.mrf.mxu0
        %v3034 = vadd.f32 %v2942, %v3033
        %3035 = vmatmul.f32.gmra.mxu0 %v1652
        %v3036 = vpop.f32.mrf.mxu0
        %v3037 = vadd.f32 %v2945, %v3036
        %3038 = vmatmul.f32.gmra.mxu0 %v1656
        %v3039 = vpop.f32.mrf.mxu0
        %v3040 = vadd.f32 %v2948, %v3039
        %3041 = vmatmul.f32.gmra.mxu0 %v1660
        %v3042 = vpop.f32.mrf.mxu0
        %v3043 = vadd.f32 %v2951, %v3042
        %3044 = vmatmul.f32.gmra.mxu0 %v1664
        %v3045 = vpop.f32.mrf.mxu0
        %v3046 = vadd.f32 %v2954, %v3045
        %3047 = vmatmul.f32.gmra.mxu0 %v1668
        %v3048 = vpop.f32.mrf.mxu0
        %v3049 = vadd.f32 %v2957, %v3048
        %3050 = vmatmul.f32.gmra.mxu0 %v1672
        %v3051 = vpop.f32.mrf.mxu0
        %v3052 = vadd.f32 %v2960, %v3051
        %3053 = vmatmul.f32.gmra.mxu0 %v1676
        %v3054 = vpop.f32.mrf.mxu0
        %v3055 = vadd.f32 %v2963, %v3054
        %3056 = vmatmul.f32.gmra.mxu0 %v1680
        %v3057 = vpop.f32.mrf.mxu0
        %v3058 = vadd.f32 %v2966, %v3057
        %3059 = vmatmul.f32.gmra.mxu0 %v1684
        %v3060 = vpop.f32.mrf.mxu0
        %v3061 = vadd.f32 %v2969, %v3060
        %3062 = vmatmul.f32.gmra.mxu0 %v1688
        %v3063 = vpop.f32.mrf.mxu0
        %v3064 = vadd.f32 %v2972, %v3063
        %3065 = vmatmul.f32.gmra.mxu0 %v1692
        %v3066 = vpop.f32.mrf.mxu0
        %v3067 = vadd.f32 %v2975, %v3066
        %3068 = vmatmul.f32.gmra.mxu0 %v1696
        %v3069 = vpop.f32.mrf.mxu0
        %v3070 = vadd.f32 %v2978, %v3069
        %3071 = vmatmul.f32.gmra.mxu0 %v1700
        %v3072 = vpop.f32.mrf.mxu0
        %v3073 = vadd.f32 %v2981, %v3072
        %3074 = vmatmul.f32.gmra.mxu0 %v1704
        %v3075 = vpop.f32.mrf.mxu0
        %v3076 = vadd.f32 %v2984, %v3075
        %3077 = vmatmul.f32.gmra.mxu0 %v1708
        %v3078 = vpop.f32.mrf.mxu0
        %v3079 = vadd.f32 %v2987, %v3078
        %3080 = vmatmul.f32.gmra.mxu0 %v1712
        %v3081 = vpop.f32.mrf.mxu0
        %v3082 = vadd.f32 %v2990, %v3081
        %3083 = vmatmul.f32.gmra.mxu0 %v1716
        %v3084 = vpop.f32.mrf.mxu0
        %v3085 = vadd.f32 %v2993, %v3084
        %3086 = vdwg.mxu0
        %3087 = vmatpush.msra.mxu0 %v1780
        %3088 = vmatpush.msra.mxu0 %v1776
        %3089 = vmatpush.msra.mxu0 %v1772
        %3090 = vmatpush.msra.mxu0 %v1768
        %3091 = vmatpush.msra.mxu0 %v1764
        %3092 = vmatpush.msra.mxu0 %v1760
        %3093 = vmatpush.msra.mxu0 %v1756
        %3094 = vmatpush.msra.mxu0 %v1752
        %3095 = vmatpush.msra.mxu0 %v1748
        %3096 = vmatpush.msra.mxu0 %v1744
        %3097 = vmatpush.msra.mxu0 %v1740
        %3098 = vmatpush.msra.mxu0 %v1736
        %3099 = vmatpush.msra.mxu0 %v1732
        %3100 = vmatpush.msra.mxu0 %v1728
        %3101 = vmatpush.msra.mxu0 %v1724
        %3102 = vmatpush.msra.mxu0 %v1720
        %3103 = vmatmul.f32.gmra.mxu0 %v1617
        %v3104 = vpop.f32.mrf.mxu0
        %v3105 = vadd.f32 %v1978, %v3104
        %3106 = vmatmul.f32.gmra.mxu0 %v1621
        %v3107 = vpop.f32.mrf.mxu0
        %v3108 = vadd.f32 %v1978, %v3107
        %3109 = vmatmul.f32.gmra.mxu0 %v1625
        %v3110 = vpop.f32.mrf.mxu0
        %v3111 = vadd.f32 %v1978, %v3110
        %3112 = vmatmul.f32.gmra.mxu0 %v1629
        %v3113 = vpop.f32.mrf.mxu0
        %v3114 = vadd.f32 %v1978, %v3113
        %3115 = vmatmul.f32.gmra.mxu0 %v1633
        %v3116 = vpop.f32.mrf.mxu0
        %v3117 = vadd.f32 %v1978, %v3116
        %3118 = vmatmul.f32.gmra.mxu0 %v1637
        %v3119 = vpop.f32.mrf.mxu0
        %v3120 = vadd.f32 %v1978, %v3119
        %3121 = vmatmul.f32.gmra.mxu0 %v1641
        %v3122 = vpop.f32.mrf.mxu0
        %v3123 = vadd.f32 %v1978, %v3122
        %3124 = vmatmul.f32.gmra.mxu0 %v1645
        %v3125 = vpop.f32.mrf.mxu0
        %v3126 = vadd.f32 %v1978, %v3125
        %3127 = vmatmul.f32.gmra.mxu0 %v1649
        %v3128 = vpop.f32.mrf.mxu0
        %v3129 = vadd.f32 %v1978, %v3128
        %3130 = vmatmul.f32.gmra.mxu0 %v1653
        %v3131 = vpop.f32.mrf.mxu0
        %v3132 = vadd.f32 %v1978, %v3131
        %3133 = vmatmul.f32.gmra.mxu0 %v1657
        %v3134 = vpop.f32.mrf.mxu0
        %v3135 = vadd.f32 %v1978, %v3134
        %3136 = vmatmul.f32.gmra.mxu0 %v1661
        %v3137 = vpop.f32.mrf.mxu0
        %v3138 = vadd.f32 %v1978, %v3137
        %3139 = vmatmul.f32.gmra.mxu0 %v1665
        %v3140 = vpop.f32.mrf.mxu0
        %v3141 = vadd.f32 %v1978, %v3140
        %3142 = vmatmul.f32.gmra.mxu0 %v1669
        %v3143 = vpop.f32.mrf.mxu0
        %v3144 = vadd.f32 %v1978, %v3143
        %3145 = vmatmul.f32.gmra.mxu0 %v1673
        %v3146 = vpop.f32.mrf.mxu0
        %v3147 = vadd.f32 %v1978, %v3146
        %3148 = vmatmul.f32.gmra.mxu0 %v1677
        %v3149 = vpop.f32.mrf.mxu0
        %v3150 = vadd.f32 %v1978, %v3149
        %3151 = vmatmul.f32.gmra.mxu0 %v1681
        %v3152 = vpop.f32.mrf.mxu0
        %v3153 = vadd.f32 %v1978, %v3152
        %3154 = vmatmul.f32.gmra.mxu0 %v1685
        %v3155 = vpop.f32.mrf.mxu0
        %v3156 = vadd.f32 %v1978, %v3155
        %3157 = vmatmul.f32.gmra.mxu0 %v1689
        %v3158 = vpop.f32.mrf.mxu0
        %v3159 = vadd.f32 %v1978, %v3158
        %3160 = vmatmul.f32.gmra.mxu0 %v1693
        %v3161 = vpop.f32.mrf.mxu0
        %v3162 = vadd.f32 %v1978, %v3161
        %3163 = vmatmul.f32.gmra.mxu0 %v1697
        %v3164 = vpop.f32.mrf.mxu0
        %v3165 = vadd.f32 %v1978, %v3164
        %3166 = vmatmul.f32.gmra.mxu0 %v1701
        %v3167 = vpop.f32.mrf.mxu0
        %v3168 = vadd.f32 %v1978, %v3167
        %3169 = vmatmul.f32.gmra.mxu0 %v1705
        %v3170 = vpop.f32.mrf.mxu0
        %v3171 = vadd.f32 %v1978, %v3170
        %3172 = vmatmul.f32.gmra.mxu0 %v1709
        %v3173 = vpop.f32.mrf.mxu0
        %v3174 = vadd.f32 %v1978, %v3173
        %3175 = vmatmul.f32.gmra.mxu0 %v1713
        %v3176 = vpop.f32.mrf.mxu0
        %v3177 = vadd.f32 %v1978, %v3176
        %3178 = vdwg.mxu0
        %3179 = vmatpush.msra.mxu0 %v1844
        %3180 = vmatpush.msra.mxu0 %v1840
        %3181 = vmatpush.msra.mxu0 %v1836
        %3182 = vmatpush.msra.mxu0 %v1832
        %3183 = vmatpush.msra.mxu0 %v1828
        %3184 = vmatpush.msra.mxu0 %v1824
        %3185 = vmatpush.msra.mxu0 %v1820
        %3186 = vmatpush.msra.mxu0 %v1816
        %3187 = vmatpush.msra.mxu0 %v1812
        %3188 = vmatpush.msra.mxu0 %v1808
        %3189 = vmatpush.msra.mxu0 %v1804
        %3190 = vmatpush.msra.mxu0 %v1800
        %3191 = vmatpush.msra.mxu0 %v1796
        %3192 = vmatpush.msra.mxu0 %v1792
        %3193 = vmatpush.msra.mxu0 %v1788
        %3194 = vmatpush.msra.mxu0 %v1784
        %3195 = vmatmul.f32.gmra.mxu0 %v1618
        %v3196 = vpop.f32.mrf.mxu0
        %v3197 = vadd.f32 %v3105, %v3196
        %3198 = vmatmul.f32.gmra.mxu0 %v1622
        %v3199 = vpop.f32.mrf.mxu0
        %v3200 = vadd.f32 %v3108, %v3199
        %3201 = vmatmul.f32.gmra.mxu0 %v1626
        %v3202 = vpop.f32.mrf.mxu0
        %v3203 = vadd.f32 %v3111, %v3202
        %3204 = vmatmul.f32.gmra.mxu0 %v1630
        %v3205 = vpop.f32.mrf.mxu0
        %v3206 = vadd.f32 %v3114, %v3205
        %3207 = vmatmul.f32.gmra.mxu0 %v1634
        %v3208 = vpop.f32.mrf.mxu0
        %v3209 = vadd.f32 %v3117, %v3208
        %3210 = vmatmul.f32.gmra.mxu0 %v1638
        %v3211 = vpop.f32.mrf.mxu0
        %v3212 = vadd.f32 %v3120, %v3211
        %3213 = vmatmul.f32.gmra.mxu0 %v1642
        %v3214 = vpop.f32.mrf.mxu0
        %v3215 = vadd.f32 %v3123, %v3214
        %3216 = vmatmul.f32.gmra.mxu0 %v1646
        %v3217 = vpop.f32.mrf.mxu0
        %v3218 = vadd.f32 %v3126, %v3217
        %3219 = vmatmul.f32.gmra.mxu0 %v1650
        %v3220 = vpop.f32.mrf.mxu0
        %v3221 = vadd.f32 %v3129, %v3220
        %3222 = vmatmul.f32.gmra.mxu0 %v1654
        %v3223 = vpop.f32.mrf.mxu0
        %v3224 = vadd.f32 %v3132, %v3223
        %3225 = vmatmul.f32.gmra.mxu0 %v1658
        %v3226 = vpop.f32.mrf.mxu0
        %v3227 = vadd.f32 %v3135, %v3226
        %3228 = vmatmul.f32.gmra.mxu0 %v1662
        %v3229 = vpop.f32.mrf.mxu0
        %v3230 = vadd.f32 %v3138, %v3229
        %3231 = vmatmul.f32.gmra.mxu0 %v1666
        %v3232 = vpop.f32.mrf.mxu0
        %v3233 = vadd.f32 %v3141, %v3232
        %3234 = vmatmul.f32.gmra.mxu0 %v1670
        %v3235 = vpop.f32.mrf.mxu0
        %v3236 = vadd.f32 %v3144, %v3235
        %3237 = vmatmul.f32.gmra.mxu0 %v1674
        %v3238 = vpop.f32.mrf.mxu0
        %v3239 = vadd.f32 %v3147, %v3238
        %3240 = vmatmul.f32.gmra.mxu0 %v1678
        %v3241 = vpop.f32.mrf.mxu0
        %v3242 = vadd.f32 %v3150, %v3241
        %3243 = vmatmul.f32.gmra.mxu0 %v1682
        %v3244 = vpop.f32.mrf.mxu0
        %v3245 = vadd.f32 %v3153, %v3244
        %3246 = vmatmul.f32.gmra.mxu0 %v1686
        %v3247 = vpop.f32.mrf.mxu0
        %v3248 = vadd.f32 %v3156, %v3247
        %3249 = vmatmul.f32.gmra.mxu0 %v1690
        %v3250 = vpop.f32.mrf.mxu0
        %v3251 = vadd.f32 %v3159, %v3250
        %3252 = vmatmul.f32.gmra.mxu0 %v1694
        %v3253 = vpop.f32.mrf.mxu0
        %v3254 = vadd.f32 %v3162, %v3253
        %3255 = vmatmul.f32.gmra.mxu0 %v1698
        %v3256 = vpop.f32.mrf.mxu0
        %v3257 = vadd.f32 %v3165, %v3256
        %3258 = vmatmul.f32.gmra.mxu0 %v1702
        %v3259 = vpop.f32.mrf.mxu0
        %v3260 = vadd.f32 %v3168, %v3259
        %3261 = vmatmul.f32.gmra.mxu0 %v1706
        %v3262 = vpop.f32.mrf.mxu0
        %v3263 = vadd.f32 %v3171, %v3262
        %3264 = vmatmul.f32.gmra.mxu0 %v1710
        %v3265 = vpop.f32.mrf.mxu0
        %v3266 = vadd.f32 %v3174, %v3265
        %3267 = vmatmul.f32.gmra.mxu0 %v1714
        %v3268 = vpop.f32.mrf.mxu0
        %v3269 = vadd.f32 %v3177, %v3268
        %3270 = vdwg.mxu0
        %3271 = vmatpush.msra.mxu0 %v1908
        %3272 = vmatpush.msra.mxu0 %v1904
        %3273 = vmatpush.msra.mxu0 %v1900
        %3274 = vmatpush.msra.mxu0 %v1896
        %3275 = vmatpush.msra.mxu0 %v1892
        %3276 = vmatpush.msra.mxu0 %v1888
        %3277 = vmatpush.msra.mxu0 %v1884
        %3278 = vmatpush.msra.mxu0 %v1880
        %3279 = vmatpush.msra.mxu0 %v1876
        %3280 = vmatpush.msra.mxu0 %v1872
        %3281 = vmatpush.msra.mxu0 %v1868
        %3282 = vmatpush.msra.mxu0 %v1864
        %3283 = vmatpush.msra.mxu0 %v1860
        %3284 = vmatpush.msra.mxu0 %v1856
        %3285 = vmatpush.msra.mxu0 %v1852
        %3286 = vmatpush.msra.mxu0 %v1848
        %3287 = vmatmul.f32.gmra.mxu0 %v1619
        %v3288 = vpop.f32.mrf.mxu0
        %v3289 = vadd.f32 %v3197, %v3288
        %3290 = vmatmul.f32.gmra.mxu0 %v1623
        %v3291 = vpop.f32.mrf.mxu0
        %v3292 = vadd.f32 %v3200, %v3291
        %3293 = vmatmul.f32.gmra.mxu0 %v1627
        %v3294 = vpop.f32.mrf.mxu0
        %v3295 = vadd.f32 %v3203, %v3294
        %3296 = vmatmul.f32.gmra.mxu0 %v1631
        %v3297 = vpop.f32.mrf.mxu0
        %v3298 = vadd.f32 %v3206, %v3297
        %3299 = vmatmul.f32.gmra.mxu0 %v1635
        %v3300 = vpop.f32.mrf.mxu0
        %v3301 = vadd.f32 %v3209, %v3300
        %3302 = vmatmul.f32.gmra.mxu0 %v1639
        %v3303 = vpop.f32.mrf.mxu0
        %v3304 = vadd.f32 %v3212, %v3303
        %3305 = vmatmul.f32.gmra.mxu0 %v1643
        %v3306 = vpop.f32.mrf.mxu0
        %v3307 = vadd.f32 %v3215, %v3306
        %3308 = vmatmul.f32.gmra.mxu0 %v1647
        %v3309 = vpop.f32.mrf.mxu0
        %v3310 = vadd.f32 %v3218, %v3309
        %3311 = vmatmul.f32.gmra.mxu0 %v1651
        %v3312 = vpop.f32.mrf.mxu0
        %v3313 = vadd.f32 %v3221, %v3312
        %3314 = vmatmul.f32.gmra.mxu0 %v1655
        %v3315 = vpop.f32.mrf.mxu0
        %v3316 = vadd.f32 %v3224, %v3315
        %3317 = vmatmul.f32.gmra.mxu0 %v1659
        %v3318 = vpop.f32.mrf.mxu0
        %v3319 = vadd.f32 %v3227, %v3318
        %3320 = vmatmul.f32.gmra.mxu0 %v1663
        %v3321 = vpop.f32.mrf.mxu0
        %v3322 = vadd.f32 %v3230, %v3321
        %3323 = vmatmul.f32.gmra.mxu0 %v1667
        %v3324 = vpop.f32.mrf.mxu0
        %v3325 = vadd.f32 %v3233, %v3324
        %3326 = vmatmul.f32.gmra.mxu0 %v1671
        %v3327 = vpop.f32.mrf.mxu0
        %v3328 = vadd.f32 %v3236, %v3327
        %3329 = vmatmul.f32.gmra.mxu0 %v1675
        %v3330 = vpop.f32.mrf.mxu0
        %v3331 = vadd.f32 %v3239, %v3330
        %3332 = vmatmul.f32.gmra.mxu0 %v1679
        %v3333 = vpop.f32.mrf.mxu0
        %v3334 = vadd.f32 %v3242, %v3333
        %3335 = vmatmul.f32.gmra.mxu0 %v1683
        %v3336 = vpop.f32.mrf.mxu0
        %v3337 = vadd.f32 %v3245, %v3336
        %3338 = vmatmul.f32.gmra.mxu0 %v1687
        %v3339 = vpop.f32.mrf.mxu0
        %v3340 = vadd.f32 %v3248, %v3339
        %3341 = vmatmul.f32.gmra.mxu0 %v1691
        %v3342 = vpop.f32.mrf.mxu0
        %v3343 = vadd.f32 %v3251, %v3342
        %3344 = vmatmul.f32.gmra.mxu0 %v1695
        %v3345 = vpop.f32.mrf.mxu0
        %v3346 = vadd.f32 %v3254, %v3345
        %3347 = vmatmul.f32.gmra.mxu0 %v1699
        %v3348 = vpop.f32.mrf.mxu0
        %v3349 = vadd.f32 %v3257, %v3348
        %3350 = vmatmul.f32.gmra.mxu0 %v1703
        %v3351 = vpop.f32.mrf.mxu0
        %v3352 = vadd.f32 %v3260, %v3351
        %3353 = vmatmul.f32.gmra.mxu0 %v1707
        %v3354 = vpop.f32.mrf.mxu0
        %v3355 = vadd.f32 %v3263, %v3354
        %3356 = vmatmul.f32.gmra.mxu0 %v1711
        %v3357 = vpop.f32.mrf.mxu0
        %v3358 = vadd.f32 %v3266, %v3357
        %3359 = vmatmul.f32.gmra.mxu0 %v1715
        %v3360 = vpop.f32.mrf.mxu0
        %v3361 = vadd.f32 %v3269, %v3360
        %3362 = vdwg.mxu0
        %3363 = vmatpush.msra.mxu0 %v1972
        %3364 = vmatpush.msra.mxu0 %v1968
        %3365 = vmatpush.msra.mxu0 %v1964
        %3366 = vmatpush.msra.mxu0 %v1960
        %3367 = vmatpush.msra.mxu0 %v1956
        %3368 = vmatpush.msra.mxu0 %v1952
        %3369 = vmatpush.msra.mxu0 %v1948
        %3370 = vmatpush.msra.mxu0 %v1944
        %3371 = vmatpush.msra.mxu0 %v1940
        %3372 = vmatpush.msra.mxu0 %v1936
        %3373 = vmatpush.msra.mxu0 %v1932
        %3374 = vmatpush.msra.mxu0 %v1928
        %3375 = vmatpush.msra.mxu0 %v1924
        %3376 = vmatpush.msra.mxu0 %v1920
        %3377 = vmatpush.msra.mxu0 %v1916
        %3378 = vmatpush.msra.mxu0 %v1912
        %3379 = vmatmul.f32.gmra.mxu0 %v1620
        %v3380 = vpop.f32.mrf.mxu0
        %v3381 = vadd.f32 %v3289, %v3380
        %3382 = vmatmul.f32.gmra.mxu0 %v1624
        %v3383 = vpop.f32.mrf.mxu0
        %v3384 = vadd.f32 %v3292, %v3383
        %3385 = vmatmul.f32.gmra.mxu0 %v1628
        %v3386 = vpop.f32.mrf.mxu0
        %v3387 = vadd.f32 %v3295, %v3386
        %3388 = vmatmul.f32.gmra.mxu0 %v1632
        %v3389 = vpop.f32.mrf.mxu0
        %v3390 = vadd.f32 %v3298, %v3389
        %3391 = vmatmul.f32.gmra.mxu0 %v1636
        %v3392 = vpop.f32.mrf.mxu0
        %v3393 = vadd.f32 %v3301, %v3392
        %3394 = vmatmul.f32.gmra.mxu0 %v1640
        %v3395 = vpop.f32.mrf.mxu0
        %v3396 = vadd.f32 %v3304, %v3395
        %3397 = vmatmul.f32.gmra.mxu0 %v1644
        %v3398 = vpop.f32.mrf.mxu0
        %v3399 = vadd.f32 %v3307, %v3398
        %3400 = vmatmul.f32.gmra.mxu0 %v1648
        %v3401 = vpop.f32.mrf.mxu0
        %v3402 = vadd.f32 %v3310, %v3401
        %3403 = vmatmul.f32.gmra.mxu0 %v1652
        %v3404 = vpop.f32.mrf.mxu0
        %v3405 = vadd.f32 %v3313, %v3404
        %3406 = vmatmul.f32.gmra.mxu0 %v1656
        %v3407 = vpop.f32.mrf.mxu0
        %v3408 = vadd.f32 %v3316, %v3407
        %3409 = vmatmul.f32.gmra.mxu0 %v1660
        %v3410 = vpop.f32.mrf.mxu0
        %v3411 = vadd.f32 %v3319, %v3410
        %3412 = vmatmul.f32.gmra.mxu0 %v1664
        %v3413 = vpop.f32.mrf.mxu0
        %v3414 = vadd.f32 %v3322, %v3413
        %3415 = vmatmul.f32.gmra.mxu0 %v1668
        %v3416 = vpop.f32.mrf.mxu0
        %v3417 = vadd.f32 %v3325, %v3416
        %3418 = vmatmul.f32.gmra.mxu0 %v1672
        %v3419 = vpop.f32.mrf.mxu0
        %v3420 = vadd.f32 %v3328, %v3419
        %3421 = vmatmul.f32.gmra.mxu0 %v1676
        %v3422 = vpop.f32.mrf.mxu0
        %v3423 = vadd.f32 %v3331, %v3422
        %3424 = vmatmul.f32.gmra.mxu0 %v1680
        %v3425 = vpop.f32.mrf.mxu0
        %v3426 = vadd.f32 %v3334, %v3425
        %3427 = vmatmul.f32.gmra.mxu0 %v1684
        %v3428 = vpop.f32.mrf.mxu0
        %v3429 = vadd.f32 %v3337, %v3428
        %3430 = vmatmul.f32.gmra.mxu0 %v1688
        %v3431 = vpop.f32.mrf.mxu0
        %v3432 = vadd.f32 %v3340, %v3431
        %3433 = vmatmul.f32.gmra.mxu0 %v1692
        %v3434 = vpop.f32.mrf.mxu0
        %v3435 = vadd.f32 %v3343, %v3434
        %3436 = vmatmul.f32.gmra.mxu0 %v1696
        %v3437 = vpop.f32.mrf.mxu0
        %v3438 = vadd.f32 %v3346, %v3437
        %3439 = vmatmul.f32.gmra.mxu0 %v1700
        %v3440 = vpop.f32.mrf.mxu0
        %v3441 = vadd.f32 %v3349, %v3440
        %3442 = vmatmul.f32.gmra.mxu0 %v1704
        %v3443 = vpop.f32.mrf.mxu0
        %v3444 = vadd.f32 %v3352, %v3443
        %3445 = vmatmul.f32.gmra.mxu0 %v1708
        %v3446 = vpop.f32.mrf.mxu0
        %v3447 = vadd.f32 %v3355, %v3446
        %3448 = vmatmul.f32.gmra.mxu0 %v1712
        %v3449 = vpop.f32.mrf.mxu0
        %v3450 = vadd.f32 %v3358, %v3449
        %3451 = vmatmul.f32.gmra.mxu0 %v1716
        %v3452 = vpop.f32.mrf.mxu0
        %v3453 = vadd.f32 %v3361, %v3452
        %3454 = vdwg.mxu0
        %v3455 = vmul.f32 %v2277, 0.5
        %v3456 = vmul.f32 %v2645, 0.5
        %v3457 = vmul.f32 %v3013, 0.5
        %v3458 = vmul.f32 %v3381, 0.5
        %v3459 = vmul.f32 %v2280, 0.5
        %v3460 = vmul.f32 %v2648, 0.5
        %v3461 = vmul.f32 %v3016, 0.5
        %v3462 = vmul.f32 %v3384, 0.5
        %v3463 = vmul.f32 %v2283, 0.5
        %v3464 = vmul.f32 %v2651, 0.5
        %v3465 = vmul.f32 %v3019, 0.5
        %v3466 = vmul.f32 %v3387, 0.5
        %v3467 = vmul.f32 %v2286, 0.5
        %v3468 = vmul.f32 %v2654, 0.5
        %v3469 = vmul.f32 %v3022, 0.5
        %v3470 = vmul.f32 %v3390, 0.5
        %v3471 = vmul.f32 %v2289, 0.5
        %v3472 = vmul.f32 %v2657, 0.5
        %v3473 = vmul.f32 %v3025, 0.5
        %v3474 = vmul.f32 %v3393, 0.5
        %v3475 = vmul.f32 %v2292, 0.5
        %v3476 = vmul.f32 %v2660, 0.5
        %v3477 = vmul.f32 %v3028, 0.5
        %v3478 = vmul.f32 %v3396, 0.5
        %v3479 = vmul.f32 %v2295, 0.5
        %v3480 = vmul.f32 %v2663, 0.5
        %v3481 = vmul.f32 %v3031, 0.5
        %v3482 = vmul.f32 %v3399, 0.5
        %v3483 = vmul.f32 %v2298, 0.5
        %v3484 = vmul.f32 %v2666, 0.5
        %v3485 = vmul.f32 %v3034, 0.5
        %v3486 = vmul.f32 %v3402, 0.5
        %v3487 = vmul.f32 %v2301, 0.5
        %v3488 = vmul.f32 %v2669, 0.5
        %v3489 = vmul.f32 %v3037, 0.5
        %v3490 = vmul.f32 %v3405, 0.5
        %v3491 = vmul.f32 %v2304, 0.5
        %v3492 = vmul.f32 %v2672, 0.5
        %v3493 = vmul.f32 %v3040, 0.5
        %v3494 = vmul.f32 %v3408, 0.5
        %v3495 = vmul.f32 %v2307, 0.5
        %v3496 = vmul.f32 %v2675, 0.5
        %v3497 = vmul.f32 %v3043, 0.5
        %v3498 = vmul.f32 %v3411, 0.5
        %v3499 = vmul.f32 %v2310, 0.5
        %v3500 = vmul.f32 %v2678, 0.5
        %v3501 = vmul.f32 %v3046, 0.5
        %v3502 = vmul.f32 %v3414, 0.5
        %v3503 = vmul.f32 %v2313, 0.5
        %v3504 = vmul.f32 %v2681, 0.5
        %v3505 = vmul.f32 %v3049, 0.5
        %v3506 = vmul.f32 %v3417, 0.5
        %v3507 = vmul.f32 %v2316, 0.5
        %v3508 = vmul.f32 %v2684, 0.5
        %v3509 = vmul.f32 %v3052, 0.5
        %v3510 = vmul.f32 %v3420, 0.5
        %v3511 = vmul.f32 %v2319, 0.5
        %v3512 = vmul.f32 %v2687, 0.5
        %v3513 = vmul.f32 %v3055, 0.5
        %v3514 = vmul.f32 %v3423, 0.5
        %v3515 = vmul.f32 %v2322, 0.5
        %v3516 = vmul.f32 %v2690, 0.5
        %v3517 = vmul.f32 %v3058, 0.5
        %v3518 = vmul.f32 %v3426, 0.5
        %v3519 = vmul.f32 %v2325, 0.5
        %v3520 = vmul.f32 %v2693, 0.5
        %v3521 = vmul.f32 %v3061, 0.5
        %v3522 = vmul.f32 %v3429, 0.5
        %v3523 = vmul.f32 %v2328, 0.5
        %v3524 = vmul.f32 %v2696, 0.5
        %v3525 = vmul.f32 %v3064, 0.5
        %v3526 = vmul.f32 %v3432, 0.5
        %v3527 = vmul.f32 %v2331, 0.5
        %v3528 = vmul.f32 %v2699, 0.5
        %v3529 = vmul.f32 %v3067, 0.5
        %v3530 = vmul.f32 %v3435, 0.5
        %v3531 = vmul.f32 %v2334, 0.5
        %v3532 = vmul.f32 %v2702, 0.5
        %v3533 = vmul.f32 %v3070, 0.5
        %v3534 = vmul.f32 %v3438, 0.5
        %v3535 = vmul.f32 %v2337, 0.5
        %v3536 = vmul.f32 %v2705, 0.5
        %v3537 = vmul.f32 %v3073, 0.5
        %v3538 = vmul.f32 %v3441, 0.5
        %v3539 = vmul.f32 %v2340, 0.5
        %v3540 = vmul.f32 %v2708, 0.5
        %v3541 = vmul.f32 %v3076, 0.5
        %v3542 = vmul.f32 %v3444, 0.5
        %v3543 = vmul.f32 %v2343, 0.5
        %v3544 = vmul.f32 %v2711, 0.5
        %v3545 = vmul.f32 %v3079, 0.5
        %v3546 = vmul.f32 %v3447, 0.5
        %v3547 = vmul.f32 %v2346, 0.5
        %v3548 = vmul.f32 %v2714, 0.5
        %v3549 = vmul.f32 %v3082, 0.5
        %v3550 = vmul.f32 %v3450, 0.5
        %v3551 = vmul.f32 %v2349, 0.5
        %v3552 = vmul.f32 %v2717, 0.5
        %v3553 = vmul.f32 %v3085, 0.5
        %v3554 = vmul.f32 %v3453, 0.5
        %v3555 = vmul.f32 %v2277, 0.70710677
        %v3556 = vmul.f32 %v2645, 0.70710677
        %v3557 = vmul.f32 %v3013, 0.70710677
        %v3558 = vmul.f32 %v3381, 0.70710677
        %v3559 = vmul.f32 %v2280, 0.70710677
        %v3560 = vmul.f32 %v2648, 0.70710677
        %v3561 = vmul.f32 %v3016, 0.70710677
        %v3562 = vmul.f32 %v3384, 0.70710677
        %v3563 = vmul.f32 %v2283, 0.70710677
        %v3564 = vmul.f32 %v2651, 0.70710677
        %v3565 = vmul.f32 %v3019, 0.70710677
        %v3566 = vmul.f32 %v3387, 0.70710677
        %v3567 = vmul.f32 %v2286, 0.70710677
        %v3568 = vmul.f32 %v2654, 0.70710677
        %v3569 = vmul.f32 %v3022, 0.70710677
        %v3570 = vmul.f32 %v3390, 0.70710677
        %v3571 = vmul.f32 %v2289, 0.70710677
        %v3572 = vmul.f32 %v2657, 0.70710677
        %v3573 = vmul.f32 %v3025, 0.70710677
        %v3574 = vmul.f32 %v3393, 0.70710677
        %v3575 = vmul.f32 %v2292, 0.70710677
        %v3576 = vmul.f32 %v2660, 0.70710677
        %v3577 = vmul.f32 %v3028, 0.70710677
        %v3578 = vmul.f32 %v3396, 0.70710677
        %v3579 = vmul.f32 %v2295, 0.70710677
        %v3580 = vmul.f32 %v2663, 0.70710677
        %v3581 = vmul.f32 %v3031, 0.70710677
        %v3582 = vmul.f32 %v3399, 0.70710677
        %v3583 = vmul.f32 %v2298, 0.70710677
        %v3584 = vmul.f32 %v2666, 0.70710677
        %v3585 = vmul.f32 %v3034, 0.70710677
        %v3586 = vmul.f32 %v3402, 0.70710677
        %v3587 = vmul.f32 %v2301, 0.70710677
        %v3588 = vmul.f32 %v2669, 0.70710677
        %v3589 = vmul.f32 %v3037, 0.70710677
        %v3590 = vmul.f32 %v3405, 0.70710677
        %v3591 = vmul.f32 %v2304, 0.70710677
        %v3592 = vmul.f32 %v2672, 0.70710677
        %v3593 = vmul.f32 %v3040, 0.70710677
        %v3594 = vmul.f32 %v3408, 0.70710677
        %v3595 = vmul.f32 %v2307, 0.70710677
        %v3596 = vmul.f32 %v2675, 0.70710677
        %v3597 = vmul.f32 %v3043, 0.70710677
        %v3598 = vmul.f32 %v3411, 0.70710677
        %v3599 = vmul.f32 %v2310, 0.70710677
        %v3600 = vmul.f32 %v2678, 0.70710677
        %v3601 = vmul.f32 %v3046, 0.70710677
        %v3602 = vmul.f32 %v3414, 0.70710677
        %v3603 = vmul.f32 %v2313, 0.70710677
        %v3604 = vmul.f32 %v2681, 0.70710677
        %v3605 = vmul.f32 %v3049, 0.70710677
        %v3606 = vmul.f32 %v3417, 0.70710677
        %v3607 = vmul.f32 %v2316, 0.70710677
        %v3608 = vmul.f32 %v2684, 0.70710677
        %v3609 = vmul.f32 %v3052, 0.70710677
        %v3610 = vmul.f32 %v3420, 0.70710677
        %v3611 = vmul.f32 %v2319, 0.70710677
        %v3612 = vmul.f32 %v2687, 0.70710677
        %v3613 = vmul.f32 %v3055, 0.70710677
        %v3614 = vmul.f32 %v3423, 0.70710677
        %v3615 = vmul.f32 %v2322, 0.70710677
        %v3616 = vmul.f32 %v2690, 0.70710677
        %v3617 = vmul.f32 %v3058, 0.70710677
        %v3618 = vmul.f32 %v3426, 0.70710677
        %v3619 = vmul.f32 %v2325, 0.70710677
        %v3620 = vmul.f32 %v2693, 0.70710677
        %v3621 = vmul.f32 %v3061, 0.70710677
        %v3622 = vmul.f32 %v3429, 0.70710677
        %v3623 = vmul.f32 %v2328, 0.70710677
        %v3624 = vmul.f32 %v2696, 0.70710677
        %v3625 = vmul.f32 %v3064, 0.70710677
        %v3626 = vmul.f32 %v3432, 0.70710677
        %v3627 = vmul.f32 %v2331, 0.70710677
        %v3628 = vmul.f32 %v2699, 0.70710677
        %v3629 = vmul.f32 %v3067, 0.70710677
        %v3630 = vmul.f32 %v3435, 0.70710677
        %v3631 = vmul.f32 %v2334, 0.70710677
        %v3632 = vmul.f32 %v2702, 0.70710677
        %v3633 = vmul.f32 %v3070, 0.70710677
        %v3634 = vmul.f32 %v3438, 0.70710677
        %v3635 = vmul.f32 %v2337, 0.70710677
        %v3636 = vmul.f32 %v2705, 0.70710677
        %v3637 = vmul.f32 %v3073, 0.70710677
        %v3638 = vmul.f32 %v3441, 0.70710677
        %v3639 = vmul.f32 %v2340, 0.70710677
        %v3640 = vmul.f32 %v2708, 0.70710677
        %v3641 = vmul.f32 %v3076, 0.70710677
        %v3642 = vmul.f32 %v3444, 0.70710677
        %v3643 = vmul.f32 %v2343, 0.70710677
        %v3644 = vmul.f32 %v2711, 0.70710677
        %v3645 = vmul.f32 %v3079, 0.70710677
        %v3646 = vmul.f32 %v3447, 0.70710677
        %v3647 = vmul.f32 %v2346, 0.70710677
        %v3648 = vmul.f32 %v2714, 0.70710677
        %v3649 = vmul.f32 %v3082, 0.70710677
        %v3650 = vmul.f32 %v3450, 0.70710677
        %v3651 = vmul.f32 %v2349, 0.70710677
        %v3652 = vmul.f32 %v2717, 0.70710677
        %v3653 = vmul.f32 %v3085, 0.70710677
        %v3654 = vmul.f32 %v3453, 0.70710677
        %v3655 = vmul.f32 %v3555, %v3555
        %v3656 = vmin.f32 16.0, %v3655
        %v3657 = vmul.f32 %v3656, 2.1237322e-06
        %v3658 = vadd.f32 %v3657, 0.00028619796
        %v3659 = vmul.f32 %v3656, %v3658
        %v3660 = vadd.f32 %v3659, 0.0036580483
        %v3661 = vmul.f32 %v3656, %v3660
        %v3662 = vadd.f32 %v3661, 0.05243302
        %v3663 = vmul.f32 %v3656, %v3662
        %v3664 = vadd.f32 %v3663, 0.18741608
        %v3665 = vmul.f32 %v3656, %v3664
        %v3666 = vadd.f32 %v3665, 1.1283791
        %v3667 = vmul.f32 %v3555, %v3666
        %v3668 = vmul.f32 %v3656, 3.8918573e-05
        %v3669 = vadd.f32 %v3668, 0.001143296
        %v3670 = vmul.f32 %v3656, %v3669
        %v3671 = vadd.f32 %v3670, 0.014752088
        %v3672 = vmul.f32 %v3656, %v3671
        %v3673 = vadd.f32 %v3672, 0.112945676
        %v3674 = vmul.f32 %v3656, %v3673
        %v3675 = vadd.f32 %v3674, 0.4994258
        %v3676 = vmul.f32 %v3656, %v3675
        %v3677 = vadd.f32 %v3676, 1.0
        %v3678 = vrcp.pop %v3677
        %v3679 = vmul.f32 %v3677, %v3678
        %v3680 = vsub.f32 1.0, %v3679
        %v3681 = vmul.f32 %v3678, %v3680
        %v3682 = vadd.f32 %v3678, %v3681
        %vm3683 = vweird.f32 %v3677
        %vm3684 = vweird.f32 %v3678
        %vm3685 = vmor %vm3683, %vm3684
        %v3686 = vsel %vm3685, %v3678, %v3682
        %v3687 = vand.u32 2147483647, %v3677
        %vm3688 = vcmp.eq.f32.partialorder %v3687, 8.507059e+37
        %v3689 = vand.u32 %v3677, 2147483648
        %v3690 = vor.u32 1.1754944e-38, %v3689
        %v3691 = vsel %vm3688, %v3690, %v3686
        %v3692 = vmul.f32 %v3667, %v3691
        %v3693 = vmin.f32 %v3692, 1.0
        %v3694 = vmax.f32 %v3693, -1.0
        %v3695 = vmul.f32 %v3556, %v3556
        %v3696 = vmin.f32 16.0, %v3695
        %v3697 = vmul.f32 %v3696, 2.1237322e-06
        %v3698 = vadd.f32 %v3697, 0.00028619796
        %v3699 = vmul.f32 %v3696, %v3698
        %v3700 = vadd.f32 %v3699, 0.0036580483
        %v3701 = vmul.f32 %v3696, %v3700
        %v3702 = vadd.f32 %v3701, 0.05243302
        %v3703 = vmul.f32 %v3696, %v3702
        %v3704 = vadd.f32 %v3703, 0.18741608
        %v3705 = vmul.f32 %v3696, %v3704
        %v3706 = vadd.f32 %v3705, 1.1283791
        %v3707 = vmul.f32 %v3556, %v3706
        %v3708 = vmul.f32 %v3696, 3.8918573e-05
        %v3709 = vadd.f32 %v3708, 0.001143296
        %v3710 = vmul.f32 %v3696, %v3709
        %v3711 = vadd.f32 %v3710, 0.014752088
        %v3712 = vmul.f32 %v3696, %v3711
        %v3713 = vadd.f32 %v3712, 0.112945676
        %v3714 = vmul.f32 %v3696, %v3713
        %v3715 = vadd.f32 %v3714, 0.4994258
        %v3716 = vmul.f32 %v3696, %v3715
        %v3717 = vadd.f32 %v3716, 1.0
        %v3718 = vrcp.pop %v3717
        %v3719 = vmul.f32 %v3717, %v3718
        %v3720 = vsub.f32 1.0, %v3719
        %v3721 = vmul.f32 %v3718, %v3720
        %v3722 = vadd.f32 %v3718, %v3721
        %vm3723 = vweird.f32 %v3717
        %vm3724 = vweird.f32 %v3718
        %vm3725 = vmor %vm3723, %vm3724
        %v3726 = vsel %vm3725, %v3718, %v3722
        %v3727 = vand.u32 2147483647, %v3717
        %vm3728 = vcmp.eq.f32.partialorder %v3727, 8.507059e+37
        %v3729 = vand.u32 %v3717, 2147483648
        %v3730 = vor.u32 1.1754944e-38, %v3729
        %v3731 = vsel %vm3728, %v3730, %v3726
        %v3732 = vmul.f32 %v3707, %v3731
        %v3733 = vmin.f32 %v3732, 1.0
        %v3734 = vmax.f32 %v3733, -1.0
        %v3735 = vmul.f32 %v3557, %v3557
        %v3736 = vmin.f32 16.0, %v3735
        %v3737 = vmul.f32 %v3736, 2.1237322e-06
        %v3738 = vadd.f32 %v3737, 0.00028619796
        %v3739 = vmul.f32 %v3736, %v3738
        %v3740 = vadd.f32 %v3739, 0.0036580483
        %v3741 = vmul.f32 %v3736, %v3740
        %v3742 = vadd.f32 %v3741, 0.05243302
        %v3743 = vmul.f32 %v3736, %v3742
        %v3744 = vadd.f32 %v3743, 0.18741608
        %v3745 = vmul.f32 %v3736, %v3744
        %v3746 = vadd.f32 %v3745, 1.1283791
        %v3747 = vmul.f32 %v3557, %v3746
        %v3748 = vmul.f32 %v3736, 3.8918573e-05
        %v3749 = vadd.f32 %v3748, 0.001143296
        %v3750 = vmul.f32 %v3736, %v3749
        %v3751 = vadd.f32 %v3750, 0.014752088
        %v3752 = vmul.f32 %v3736, %v3751
        %v3753 = vadd.f32 %v3752, 0.112945676
        %v3754 = vmul.f32 %v3736, %v3753
        %v3755 = vadd.f32 %v3754, 0.4994258
        %v3756 = vmul.f32 %v3736, %v3755
        %v3757 = vadd.f32 %v3756, 1.0
        %v3758 = vrcp.pop %v3757
        %v3759 = vmul.f32 %v3757, %v3758
        %v3760 = vsub.f32 1.0, %v3759
        %v3761 = vmul.f32 %v3758, %v3760
        %v3762 = vadd.f32 %v3758, %v3761
        %vm3763 = vweird.f32 %v3757
        %vm3764 = vweird.f32 %v3758
        %vm3765 = vmor %vm3763, %vm3764
        %v3766 = vsel %vm3765, %v3758, %v3762
        %v3767 = vand.u32 2147483647, %v3757
        %vm3768 = vcmp.eq.f32.partialorder %v3767, 8.507059e+37
        %v3769 = vand.u32 %v3757, 2147483648
        %v3770 = vor.u32 1.1754944e-38, %v3769
        %v3771 = vsel %vm3768, %v3770, %v3766
        %v3772 = vmul.f32 %v3747, %v3771
        %v3773 = vmin.f32 %v3772, 1.0
        %v3774 = vmax.f32 %v3773, -1.0
        %v3775 = vmul.f32 %v3558, %v3558
        %v3776 = vmin.f32 16.0, %v3775
        %v3777 = vmul.f32 %v3776, 2.1237322e-06
        %v3778 = vadd.f32 %v3777, 0.00028619796
        %v3779 = vmul.f32 %v3776, %v3778
        %v3780 = vadd.f32 %v3779, 0.0036580483
        %v3781 = vmul.f32 %v3776, %v3780
        %v3782 = vadd.f32 %v3781, 0.05243302
        %v3783 = vmul.f32 %v3776, %v3782
        %v3784 = vadd.f32 %v3783, 0.18741608
        %v3785 = vmul.f32 %v3776, %v3784
        %v3786 = vadd.f32 %v3785, 1.1283791
        %v3787 = vmul.f32 %v3558, %v3786
        %v3788 = vmul.f32 %v3776, 3.8918573e-05
        %v3789 = vadd.f32 %v3788, 0.001143296
        %v3790 = vmul.f32 %v3776, %v3789
        %v3791 = vadd.f32 %v3790, 0.014752088
        %v3792 = vmul.f32 %v3776, %v3791
        %v3793 = vadd.f32 %v3792, 0.112945676
        %v3794 = vmul.f32 %v3776, %v3793
        %v3795 = vadd.f32 %v3794, 0.4994258
        %v3796 = vmul.f32 %v3776, %v3795
        %v3797 = vadd.f32 %v3796, 1.0
        %v3798 = vrcp.pop %v3797
        %v3799 = vmul.f32 %v3797, %v3798
        %v3800 = vsub.f32 1.0, %v3799
        %v3801 = vmul.f32 %v3798, %v3800
        %v3802 = vadd.f32 %v3798, %v3801
        %vm3803 = vweird.f32 %v3797
        %vm3804 = vweird.f32 %v3798
        %vm3805 = vmor %vm3803, %vm3804
        %v3806 = vsel %vm3805, %v3798, %v3802
        %v3807 = vand.u32 2147483647, %v3797
        %vm3808 = vcmp.eq.f32.partialorder %v3807, 8.507059e+37
        %v3809 = vand.u32 %v3797, 2147483648
        %v3810 = vor.u32 1.1754944e-38, %v3809
        %v3811 = vsel %vm3808, %v3810, %v3806
        %v3812 = vmul.f32 %v3787, %v3811
        %v3813 = vmin.f32 %v3812, 1.0
        %v3814 = vmax.f32 %v3813, -1.0
        %v3815 = vmul.f32 %v3559, %v3559
        %v3816 = vmin.f32 16.0, %v3815
        %v3817 = vmul.f32 %v3816, 2.1237322e-06
        %v3818 = vadd.f32 %v3817, 0.00028619796
        %v3819 = vmul.f32 %v3816, %v3818
        %v3820 = vadd.f32 %v3819, 0.0036580483
        %v3821 = vmul.f32 %v3816, %v3820
        %v3822 = vadd.f32 %v3821, 0.05243302
        %v3823 = vmul.f32 %v3816, %v3822
        %v3824 = vadd.f32 %v3823, 0.18741608
        %v3825 = vmul.f32 %v3816, %v3824
        %v3826 = vadd.f32 %v3825, 1.1283791
        %v3827 = vmul.f32 %v3559, %v3826
        %v3828 = vmul.f32 %v3816, 3.8918573e-05
        %v3829 = vadd.f32 %v3828, 0.001143296
        %v3830 = vmul.f32 %v3816, %v3829
        %v3831 = vadd.f32 %v3830, 0.014752088
        %v3832 = vmul.f32 %v3816, %v3831
        %v3833 = vadd.f32 %v3832, 0.112945676
        %v3834 = vmul.f32 %v3816, %v3833
        %v3835 = vadd.f32 %v3834, 0.4994258
        %v3836 = vmul.f32 %v3816, %v3835
        %v3837 = vadd.f32 %v3836, 1.0
        %v3838 = vrcp.pop %v3837
        %v3839 = vmul.f32 %v3837, %v3838
        %v3840 = vsub.f32 1.0, %v3839
        %v3841 = vmul.f32 %v3838, %v3840
        %v3842 = vadd.f32 %v3838, %v3841
        %vm3843 = vweird.f32 %v3837
        %vm3844 = vweird.f32 %v3838
        %vm3845 = vmor %vm3843, %vm3844
        %v3846 = vsel %vm3845, %v3838, %v3842
        %v3847 = vand.u32 2147483647, %v3837
        %vm3848 = vcmp.eq.f32.partialorder %v3847, 8.507059e+37
        %v3849 = vand.u32 %v3837, 2147483648
        %v3850 = vor.u32 1.1754944e-38, %v3849
        %v3851 = vsel %vm3848, %v3850, %v3846
        %v3852 = vmul.f32 %v3827, %v3851
        %v3853 = vmin.f32 %v3852, 1.0
        %v3854 = vmax.f32 %v3853, -1.0
        %v3855 = vmul.f32 %v3560, %v3560
        %v3856 = vmin.f32 16.0, %v3855
        %v3857 = vmul.f32 %v3856, 2.1237322e-06
        %v3858 = vadd.f32 %v3857, 0.00028619796
        %v3859 = vmul.f32 %v3856, %v3858
        %v3860 = vadd.f32 %v3859, 0.0036580483
        %v3861 = vmul.f32 %v3856, %v3860
        %v3862 = vadd.f32 %v3861, 0.05243302
        %v3863 = vmul.f32 %v3856, %v3862
        %v3864 = vadd.f32 %v3863, 0.18741608
        %v3865 = vmul.f32 %v3856, %v3864
        %v3866 = vadd.f32 %v3865, 1.1283791
        %v3867 = vmul.f32 %v3560, %v3866
        %v3868 = vmul.f32 %v3856, 3.8918573e-05
        %v3869 = vadd.f32 %v3868, 0.001143296
        %v3870 = vmul.f32 %v3856, %v3869
        %v3871 = vadd.f32 %v3870, 0.014752088
        %v3872 = vmul.f32 %v3856, %v3871
        %v3873 = vadd.f32 %v3872, 0.112945676
        %v3874 = vmul.f32 %v3856, %v3873
        %v3875 = vadd.f32 %v3874, 0.4994258
        %v3876 = vmul.f32 %v3856, %v3875
        %v3877 = vadd.f32 %v3876, 1.0
        %v3878 = vrcp.pop %v3877
        %v3879 = vmul.f32 %v3877, %v3878
        %v3880 = vsub.f32 1.0, %v3879
        %v3881 = vmul.f32 %v3878, %v3880
        %v3882 = vadd.f32 %v3878, %v3881
        %vm3883 = vweird.f32 %v3877
        %vm3884 = vweird.f32 %v3878
        %vm3885 = vmor %vm3883, %vm3884
        %v3886 = vsel %vm3885, %v3878, %v3882
        %v3887 = vand.u32 2147483647, %v3877
        %vm3888 = vcmp.eq.f32.partialorder %v3887, 8.507059e+37
        %v3889 = vand.u32 %v3877, 2147483648
        %v3890 = vor.u32 1.1754944e-38, %v3889
        %v3891 = vsel %vm3888, %v3890, %v3886
        %v3892 = vmul.f32 %v3867, %v3891
        %v3893 = vmin.f32 %v3892, 1.0
        %v3894 = vmax.f32 %v3893, -1.0
        %v3895 = vmul.f32 %v3561, %v3561
        %v3896 = vmin.f32 16.0, %v3895
        %v3897 = vmul.f32 %v3896, 2.1237322e-06
        %v3898 = vadd.f32 %v3897, 0.00028619796
        %v3899 = vmul.f32 %v3896, %v3898
        %v3900 = vadd.f32 %v3899, 0.0036580483
        %v3901 = vmul.f32 %v3896, %v3900
        %v3902 = vadd.f32 %v3901, 0.05243302
        %v3903 = vmul.f32 %v3896, %v3902
        %v3904 = vadd.f32 %v3903, 0.18741608
        %v3905 = vmul.f32 %v3896, %v3904
        %v3906 = vadd.f32 %v3905, 1.1283791
        %v3907 = vmul.f32 %v3561, %v3906
        %v3908 = vmul.f32 %v3896, 3.8918573e-05
        %v3909 = vadd.f32 %v3908, 0.001143296
        %v3910 = vmul.f32 %v3896, %v3909
        %v3911 = vadd.f32 %v3910, 0.014752088
        %v3912 = vmul.f32 %v3896, %v3911
        %v3913 = vadd.f32 %v3912, 0.112945676
        %v3914 = vmul.f32 %v3896, %v3913
        %v3915 = vadd.f32 %v3914, 0.4994258
        %v3916 = vmul.f32 %v3896, %v3915
        %v3917 = vadd.f32 %v3916, 1.0
        %v3918 = vrcp.pop %v3917
        %v3919 = vmul.f32 %v3917, %v3918
        %v3920 = vsub.f32 1.0, %v3919
        %v3921 = vmul.f32 %v3918, %v3920
        %v3922 = vadd.f32 %v3918, %v3921
        %vm3923 = vweird.f32 %v3917
        %vm3924 = vweird.f32 %v3918
        %vm3925 = vmor %vm3923, %vm3924
        %v3926 = vsel %vm3925, %v3918, %v3922
        %v3927 = vand.u32 2147483647, %v3917
        %vm3928 = vcmp.eq.f32.partialorder %v3927, 8.507059e+37
        %v3929 = vand.u32 %v3917, 2147483648
        %v3930 = vor.u32 1.1754944e-38, %v3929
        %v3931 = vsel %vm3928, %v3930, %v3926
        %v3932 = vmul.f32 %v3907, %v3931
        %v3933 = vmin.f32 %v3932, 1.0
        %v3934 = vmax.f32 %v3933, -1.0
        %v3935 = vmul.f32 %v3562, %v3562
        %v3936 = vmin.f32 16.0, %v3935
        %v3937 = vmul.f32 %v3936, 2.1237322e-06
        %v3938 = vadd.f32 %v3937, 0.00028619796
        %v3939 = vmul.f32 %v3936, %v3938
        %v3940 = vadd.f32 %v3939, 0.0036580483
        %v3941 = vmul.f32 %v3936, %v3940
        %v3942 = vadd.f32 %v3941, 0.05243302
        %v3943 = vmul.f32 %v3936, %v3942
        %v3944 = vadd.f32 %v3943, 0.18741608
        %v3945 = vmul.f32 %v3936, %v3944
        %v3946 = vadd.f32 %v3945, 1.1283791
        %v3947 = vmul.f32 %v3562, %v3946
        %v3948 = vmul.f32 %v3936, 3.8918573e-05
        %v3949 = vadd.f32 %v3948, 0.001143296
        %v3950 = vmul.f32 %v3936, %v3949
        %v3951 = vadd.f32 %v3950, 0.014752088
        %v3952 = vmul.f32 %v3936, %v3951
        %v3953 = vadd.f32 %v3952, 0.112945676
        %v3954 = vmul.f32 %v3936, %v3953
        %v3955 = vadd.f32 %v3954, 0.4994258
        %v3956 = vmul.f32 %v3936, %v3955
        %v3957 = vadd.f32 %v3956, 1.0
        %v3958 = vrcp.pop %v3957
        %v3959 = vmul.f32 %v3957, %v3958
        %v3960 = vsub.f32 1.0, %v3959
        %v3961 = vmul.f32 %v3958, %v3960
        %v3962 = vadd.f32 %v3958, %v3961
        %vm3963 = vweird.f32 %v3957
        %vm3964 = vweird.f32 %v3958
        %vm3965 = vmor %vm3963, %vm3964
        %v3966 = vsel %vm3965, %v3958, %v3962
        %v3967 = vand.u32 2147483647, %v3957
        %vm3968 = vcmp.eq.f32.partialorder %v3967, 8.507059e+37
        %v3969 = vand.u32 %v3957, 2147483648
        %v3970 = vor.u32 1.1754944e-38, %v3969
        %v3971 = vsel %vm3968, %v3970, %v3966
        %v3972 = vmul.f32 %v3947, %v3971
        %v3973 = vmin.f32 %v3972, 1.0
        %v3974 = vmax.f32 %v3973, -1.0
        %v3975 = vmul.f32 %v3563, %v3563
        %v3976 = vmin.f32 16.0, %v3975
        %v3977 = vmul.f32 %v3976, 2.1237322e-06
        %v3978 = vadd.f32 %v3977, 0.00028619796
        %v3979 = vmul.f32 %v3976, %v3978
        %v3980 = vadd.f32 %v3979, 0.0036580483
        %v3981 = vmul.f32 %v3976, %v3980
        %v3982 = vadd.f32 %v3981, 0.05243302
        %v3983 = vmul.f32 %v3976, %v3982
        %v3984 = vadd.f32 %v3983, 0.18741608
        %v3985 = vmul.f32 %v3976, %v3984
        %v3986 = vadd.f32 %v3985, 1.1283791
        %v3987 = vmul.f32 %v3563, %v3986
        %v3988 = vmul.f32 %v3976, 3.8918573e-05
        %v3989 = vadd.f32 %v3988, 0.001143296
        %v3990 = vmul.f32 %v3976, %v3989
        %v3991 = vadd.f32 %v3990, 0.014752088
        %v3992 = vmul.f32 %v3976, %v3991
        %v3993 = vadd.f32 %v3992, 0.112945676
        %v3994 = vmul.f32 %v3976, %v3993
        %v3995 = vadd.f32 %v3994, 0.4994258
        %v3996 = vmul.f32 %v3976, %v3995
        %v3997 = vadd.f32 %v3996, 1.0
        %v3998 = vrcp.pop %v3997
        %v3999 = vmul.f32 %v3997, %v3998
        %v4000 = vsub.f32 1.0, %v3999
        %v4001 = vmul.f32 %v3998, %v4000
        %v4002 = vadd.f32 %v3998, %v4001
        %vm4003 = vweird.f32 %v3997
        %vm4004 = vweird.f32 %v3998
        %vm4005 = vmor %vm4003, %vm4004
        %v4006 = vsel %vm4005, %v3998, %v4002
        %v4007 = vand.u32 2147483647, %v3997
        %vm4008 = vcmp.eq.f32.partialorder %v4007, 8.507059e+37
        %v4009 = vand.u32 %v3997, 2147483648
        %v4010 = vor.u32 1.1754944e-38, %v4009
        %v4011 = vsel %vm4008, %v4010, %v4006
        %v4012 = vmul.f32 %v3987, %v4011
        %v4013 = vmin.f32 %v4012, 1.0
        %v4014 = vmax.f32 %v4013, -1.0
        %v4015 = vmul.f32 %v3564, %v3564
        %v4016 = vmin.f32 16.0, %v4015
        %v4017 = vmul.f32 %v4016, 2.1237322e-06
        %v4018 = vadd.f32 %v4017, 0.00028619796
        %v4019 = vmul.f32 %v4016, %v4018
        %v4020 = vadd.f32 %v4019, 0.0036580483
        %v4021 = vmul.f32 %v4016, %v4020
        %v4022 = vadd.f32 %v4021, 0.05243302
        %v4023 = vmul.f32 %v4016, %v4022
        %v4024 = vadd.f32 %v4023, 0.18741608
        %v4025 = vmul.f32 %v4016, %v4024
        %v4026 = vadd.f32 %v4025, 1.1283791
        %v4027 = vmul.f32 %v3564, %v4026
        %v4028 = vmul.f32 %v4016, 3.8918573e-05
        %v4029 = vadd.f32 %v4028, 0.001143296
        %v4030 = vmul.f32 %v4016, %v4029
        %v4031 = vadd.f32 %v4030, 0.014752088
        %v4032 = vmul.f32 %v4016, %v4031
        %v4033 = vadd.f32 %v4032, 0.112945676
        %v4034 = vmul.f32 %v4016, %v4033
        %v4035 = vadd.f32 %v4034, 0.4994258
        %v4036 = vmul.f32 %v4016, %v4035
        %v4037 = vadd.f32 %v4036, 1.0
        %v4038 = vrcp.pop %v4037
        %v4039 = vmul.f32 %v4037, %v4038
        %v4040 = vsub.f32 1.0, %v4039
        %v4041 = vmul.f32 %v4038, %v4040
        %v4042 = vadd.f32 %v4038, %v4041
        %vm4043 = vweird.f32 %v4037
        %vm4044 = vweird.f32 %v4038
        %vm4045 = vmor %vm4043, %vm4044
        %v4046 = vsel %vm4045, %v4038, %v4042
        %v4047 = vand.u32 2147483647, %v4037
        %vm4048 = vcmp.eq.f32.partialorder %v4047, 8.507059e+37
        %v4049 = vand.u32 %v4037, 2147483648
        %v4050 = vor.u32 1.1754944e-38, %v4049
        %v4051 = vsel %vm4048, %v4050, %v4046
        %v4052 = vmul.f32 %v4027, %v4051
        %v4053 = vmin.f32 %v4052, 1.0
        %v4054 = vmax.f32 %v4053, -1.0
        %v4055 = vmul.f32 %v3565, %v3565
        %v4056 = vmin.f32 16.0, %v4055
        %v4057 = vmul.f32 %v4056, 2.1237322e-06
        %v4058 = vadd.f32 %v4057, 0.00028619796
        %v4059 = vmul.f32 %v4056, %v4058
        %v4060 = vadd.f32 %v4059, 0.0036580483
        %v4061 = vmul.f32 %v4056, %v4060
        %v4062 = vadd.f32 %v4061, 0.05243302
        %v4063 = vmul.f32 %v4056, %v4062
        %v4064 = vadd.f32 %v4063, 0.18741608
        %v4065 = vmul.f32 %v4056, %v4064
        %v4066 = vadd.f32 %v4065, 1.1283791
        %v4067 = vmul.f32 %v3565, %v4066
        %v4068 = vmul.f32 %v4056, 3.8918573e-05
        %v4069 = vadd.f32 %v4068, 0.001143296
        %v4070 = vmul.f32 %v4056, %v4069
        %v4071 = vadd.f32 %v4070, 0.014752088
        %v4072 = vmul.f32 %v4056, %v4071
        %v4073 = vadd.f32 %v4072, 0.112945676
        %v4074 = vmul.f32 %v4056, %v4073
        %v4075 = vadd.f32 %v4074, 0.4994258
        %v4076 = vmul.f32 %v4056, %v4075
        %v4077 = vadd.f32 %v4076, 1.0
        %v4078 = vrcp.pop %v4077
        %v4079 = vmul.f32 %v4077, %v4078
        %v4080 = vsub.f32 1.0, %v4079
        %v4081 = vmul.f32 %v4078, %v4080
        %v4082 = vadd.f32 %v4078, %v4081
        %vm4083 = vweird.f32 %v4077
        %vm4084 = vweird.f32 %v4078
        %vm4085 = vmor %vm4083, %vm4084
        %v4086 = vsel %vm4085, %v4078, %v4082
        %v4087 = vand.u32 2147483647, %v4077
        %vm4088 = vcmp.eq.f32.partialorder %v4087, 8.507059e+37
        %v4089 = vand.u32 %v4077, 2147483648
        %v4090 = vor.u32 1.1754944e-38, %v4089
        %v4091 = vsel %vm4088, %v4090, %v4086
        %v4092 = vmul.f32 %v4067, %v4091
        %v4093 = vmin.f32 %v4092, 1.0
        %v4094 = vmax.f32 %v4093, -1.0
        %v4095 = vmul.f32 %v3566, %v3566
        %v4096 = vmin.f32 16.0, %v4095
        %v4097 = vmul.f32 %v4096, 2.1237322e-06
        %v4098 = vadd.f32 %v4097, 0.00028619796
        %v4099 = vmul.f32 %v4096, %v4098
        %v4100 = vadd.f32 %v4099, 0.0036580483
        %v4101 = vmul.f32 %v4096, %v4100
        %v4102 = vadd.f32 %v4101, 0.05243302
        %v4103 = vmul.f32 %v4096, %v4102
        %v4104 = vadd.f32 %v4103, 0.18741608
        %v4105 = vmul.f32 %v4096, %v4104
        %v4106 = vadd.f32 %v4105, 1.1283791
        %v4107 = vmul.f32 %v3566, %v4106
        %v4108 = vmul.f32 %v4096, 3.8918573e-05
        %v4109 = vadd.f32 %v4108, 0.001143296
        %v4110 = vmul.f32 %v4096, %v4109
        %v4111 = vadd.f32 %v4110, 0.014752088
        %v4112 = vmul.f32 %v4096, %v4111
        %v4113 = vadd.f32 %v4112, 0.112945676
        %v4114 = vmul.f32 %v4096, %v4113
        %v4115 = vadd.f32 %v4114, 0.4994258
        %v4116 = vmul.f32 %v4096, %v4115
        %v4117 = vadd.f32 %v4116, 1.0
        %v4118 = vrcp.pop %v4117
        %v4119 = vmul.f32 %v4117, %v4118
        %v4120 = vsub.f32 1.0, %v4119
        %v4121 = vmul.f32 %v4118, %v4120
        %v4122 = vadd.f32 %v4118, %v4121
        %vm4123 = vweird.f32 %v4117
        %vm4124 = vweird.f32 %v4118
        %vm4125 = vmor %vm4123, %vm4124
        %v4126 = vsel %vm4125, %v4118, %v4122
        %v4127 = vand.u32 2147483647, %v4117
        %vm4128 = vcmp.eq.f32.partialorder %v4127, 8.507059e+37
        %v4129 = vand.u32 %v4117, 2147483648
        %v4130 = vor.u32 1.1754944e-38, %v4129
        %v4131 = vsel %vm4128, %v4130, %v4126
        %v4132 = vmul.f32 %v4107, %v4131
        %v4133 = vmin.f32 %v4132, 1.0
        %v4134 = vmax.f32 %v4133, -1.0
        %v4135 = vmul.f32 %v3567, %v3567
        %v4136 = vmin.f32 16.0, %v4135
        %v4137 = vmul.f32 %v4136, 2.1237322e-06
        %v4138 = vadd.f32 %v4137, 0.00028619796
        %v4139 = vmul.f32 %v4136, %v4138
        %v4140 = vadd.f32 %v4139, 0.0036580483
        %v4141 = vmul.f32 %v4136, %v4140
        %v4142 = vadd.f32 %v4141, 0.05243302
        %v4143 = vmul.f32 %v4136, %v4142
        %v4144 = vadd.f32 %v4143, 0.18741608
        %v4145 = vmul.f32 %v4136, %v4144
        %v4146 = vadd.f32 %v4145, 1.1283791
        %v4147 = vmul.f32 %v3567, %v4146
        %v4148 = vmul.f32 %v4136, 3.8918573e-05
        %v4149 = vadd.f32 %v4148, 0.001143296
        %v4150 = vmul.f32 %v4136, %v4149
        %v4151 = vadd.f32 %v4150, 0.014752088
        %v4152 = vmul.f32 %v4136, %v4151
        %v4153 = vadd.f32 %v4152, 0.112945676
        %v4154 = vmul.f32 %v4136, %v4153
        %v4155 = vadd.f32 %v4154, 0.4994258
        %v4156 = vmul.f32 %v4136, %v4155
        %v4157 = vadd.f32 %v4156, 1.0
        %v4158 = vrcp.pop %v4157
        %v4159 = vmul.f32 %v4157, %v4158
        %v4160 = vsub.f32 1.0, %v4159
        %v4161 = vmul.f32 %v4158, %v4160
        %v4162 = vadd.f32 %v4158, %v4161
        %vm4163 = vweird.f32 %v4157
        %vm4164 = vweird.f32 %v4158
        %vm4165 = vmor %vm4163, %vm4164
        %v4166 = vsel %vm4165, %v4158, %v4162
        %v4167 = vand.u32 2147483647, %v4157
        %vm4168 = vcmp.eq.f32.partialorder %v4167, 8.507059e+37
        %v4169 = vand.u32 %v4157, 2147483648
        %v4170 = vor.u32 1.1754944e-38, %v4169
        %v4171 = vsel %vm4168, %v4170, %v4166
        %v4172 = vmul.f32 %v4147, %v4171
        %v4173 = vmin.f32 %v4172, 1.0
        %v4174 = vmax.f32 %v4173, -1.0
        %v4175 = vmul.f32 %v3568, %v3568
        %v4176 = vmin.f32 16.0, %v4175
        %v4177 = vmul.f32 %v4176, 2.1237322e-06
        %v4178 = vadd.f32 %v4177, 0.00028619796
        %v4179 = vmul.f32 %v4176, %v4178
        %v4180 = vadd.f32 %v4179, 0.0036580483
        %v4181 = vmul.f32 %v4176, %v4180
        %v4182 = vadd.f32 %v4181, 0.05243302
        %v4183 = vmul.f32 %v4176, %v4182
        %v4184 = vadd.f32 %v4183, 0.18741608
        %v4185 = vmul.f32 %v4176, %v4184
        %v4186 = vadd.f32 %v4185, 1.1283791
        %v4187 = vmul.f32 %v3568, %v4186
        %v4188 = vmul.f32 %v4176, 3.8918573e-05
        %v4189 = vadd.f32 %v4188, 0.001143296
        %v4190 = vmul.f32 %v4176, %v4189
        %v4191 = vadd.f32 %v4190, 0.014752088
        %v4192 = vmul.f32 %v4176, %v4191
        %v4193 = vadd.f32 %v4192, 0.112945676
        %v4194 = vmul.f32 %v4176, %v4193
        %v4195 = vadd.f32 %v4194, 0.4994258
        %v4196 = vmul.f32 %v4176, %v4195
        %v4197 = vadd.f32 %v4196, 1.0
        %v4198 = vrcp.pop %v4197
        %v4199 = vmul.f32 %v4197, %v4198
        %v4200 = vsub.f32 1.0, %v4199
        %v4201 = vmul.f32 %v4198, %v4200
        %v4202 = vadd.f32 %v4198, %v4201
        %vm4203 = vweird.f32 %v4197
        %vm4204 = vweird.f32 %v4198
        %vm4205 = vmor %vm4203, %vm4204
        %v4206 = vsel %vm4205, %v4198, %v4202
        %v4207 = vand.u32 2147483647, %v4197
        %vm4208 = vcmp.eq.f32.partialorder %v4207, 8.507059e+37
        %v4209 = vand.u32 %v4197, 2147483648
        %v4210 = vor.u32 1.1754944e-38, %v4209
        %v4211 = vsel %vm4208, %v4210, %v4206
        %v4212 = vmul.f32 %v4187, %v4211
        %v4213 = vmin.f32 %v4212, 1.0
        %v4214 = vmax.f32 %v4213, -1.0
        %v4215 = vmul.f32 %v3569, %v3569
        %v4216 = vmin.f32 16.0, %v4215
        %v4217 = vmul.f32 %v4216, 2.1237322e-06
        %v4218 = vadd.f32 %v4217, 0.00028619796
        %v4219 = vmul.f32 %v4216, %v4218
        %v4220 = vadd.f32 %v4219, 0.0036580483
        %v4221 = vmul.f32 %v4216, %v4220
        %v4222 = vadd.f32 %v4221, 0.05243302
        %v4223 = vmul.f32 %v4216, %v4222
        %v4224 = vadd.f32 %v4223, 0.18741608
        %v4225 = vmul.f32 %v4216, %v4224
        %v4226 = vadd.f32 %v4225, 1.1283791
        %v4227 = vmul.f32 %v3569, %v4226
        %v4228 = vmul.f32 %v4216, 3.8918573e-05
        %v4229 = vadd.f32 %v4228, 0.001143296
        %v4230 = vmul.f32 %v4216, %v4229
        %v4231 = vadd.f32 %v4230, 0.014752088
        %v4232 = vmul.f32 %v4216, %v4231
        %v4233 = vadd.f32 %v4232, 0.112945676
        %v4234 = vmul.f32 %v4216, %v4233
        %v4235 = vadd.f32 %v4234, 0.4994258
        %v4236 = vmul.f32 %v4216, %v4235
        %v4237 = vadd.f32 %v4236, 1.0
        %v4238 = vrcp.pop %v4237
        %v4239 = vmul.f32 %v4237, %v4238
        %v4240 = vsub.f32 1.0, %v4239
        %v4241 = vmul.f32 %v4238, %v4240
        %v4242 = vadd.f32 %v4238, %v4241
        %vm4243 = vweird.f32 %v4237
        %vm4244 = vweird.f32 %v4238
        %vm4245 = vmor %vm4243, %vm4244
        %v4246 = vsel %vm4245, %v4238, %v4242
        %v4247 = vand.u32 2147483647, %v4237
        %vm4248 = vcmp.eq.f32.partialorder %v4247, 8.507059e+37
        %v4249 = vand.u32 %v4237, 2147483648
        %v4250 = vor.u32 1.1754944e-38, %v4249
        %v4251 = vsel %vm4248, %v4250, %v4246
        %v4252 = vmul.f32 %v4227, %v4251
        %v4253 = vmin.f32 %v4252, 1.0
        %v4254 = vmax.f32 %v4253, -1.0
        %v4255 = vmul.f32 %v3570, %v3570
        %v4256 = vmin.f32 16.0, %v4255
        %v4257 = vmul.f32 %v4256, 2.1237322e-06
        %v4258 = vadd.f32 %v4257, 0.00028619796
        %v4259 = vmul.f32 %v4256, %v4258
        %v4260 = vadd.f32 %v4259, 0.0036580483
        %v4261 = vmul.f32 %v4256, %v4260
        %v4262 = vadd.f32 %v4261, 0.05243302
        %v4263 = vmul.f32 %v4256, %v4262
        %v4264 = vadd.f32 %v4263, 0.18741608
        %v4265 = vmul.f32 %v4256, %v4264
        %v4266 = vadd.f32 %v4265, 1.1283791
        %v4267 = vmul.f32 %v3570, %v4266
        %v4268 = vmul.f32 %v4256, 3.8918573e-05
        %v4269 = vadd.f32 %v4268, 0.001143296
        %v4270 = vmul.f32 %v4256, %v4269
        %v4271 = vadd.f32 %v4270, 0.014752088
        %v4272 = vmul.f32 %v4256, %v4271
        %v4273 = vadd.f32 %v4272, 0.112945676
        %v4274 = vmul.f32 %v4256, %v4273
        %v4275 = vadd.f32 %v4274, 0.4994258
        %v4276 = vmul.f32 %v4256, %v4275
        %v4277 = vadd.f32 %v4276, 1.0
        %v4278 = vrcp.pop %v4277
        %v4279 = vmul.f32 %v4277, %v4278
        %v4280 = vsub.f32 1.0, %v4279
        %v4281 = vmul.f32 %v4278, %v4280
        %v4282 = vadd.f32 %v4278, %v4281
        %vm4283 = vweird.f32 %v4277
        %vm4284 = vweird.f32 %v4278
        %vm4285 = vmor %vm4283, %vm4284
        %v4286 = vsel %vm4285, %v4278, %v4282
        %v4287 = vand.u32 2147483647, %v4277
        %vm4288 = vcmp.eq.f32.partialorder %v4287, 8.507059e+37
        %v4289 = vand.u32 %v4277, 2147483648
        %v4290 = vor.u32 1.1754944e-38, %v4289
        %v4291 = vsel %vm4288, %v4290, %v4286
        %v4292 = vmul.f32 %v4267, %v4291
        %v4293 = vmin.f32 %v4292, 1.0
        %v4294 = vmax.f32 %v4293, -1.0
        %v4295 = vmul.f32 %v3571, %v3571
        %v4296 = vmin.f32 16.0, %v4295
        %v4297 = vmul.f32 %v4296, 2.1237322e-06
        %v4298 = vadd.f32 %v4297, 0.00028619796
        %v4299 = vmul.f32 %v4296, %v4298
        %v4300 = vadd.f32 %v4299, 0.0036580483
        %v4301 = vmul.f32 %v4296, %v4300
        %v4302 = vadd.f32 %v4301, 0.05243302
        %v4303 = vmul.f32 %v4296, %v4302
        %v4304 = vadd.f32 %v4303, 0.18741608
        %v4305 = vmul.f32 %v4296, %v4304
        %v4306 = vadd.f32 %v4305, 1.1283791
        %v4307 = vmul.f32 %v3571, %v4306
        %v4308 = vmul.f32 %v4296, 3.8918573e-05
        %v4309 = vadd.f32 %v4308, 0.001143296
        %v4310 = vmul.f32 %v4296, %v4309
        %v4311 = vadd.f32 %v4310, 0.014752088
        %v4312 = vmul.f32 %v4296, %v4311
        %v4313 = vadd.f32 %v4312, 0.112945676
        %v4314 = vmul.f32 %v4296, %v4313
        %v4315 = vadd.f32 %v4314, 0.4994258
        %v4316 = vmul.f32 %v4296, %v4315
        %v4317 = vadd.f32 %v4316, 1.0
        %v4318 = vrcp.pop %v4317
        %v4319 = vmul.f32 %v4317, %v4318
        %v4320 = vsub.f32 1.0, %v4319
        %v4321 = vmul.f32 %v4318, %v4320
        %v4322 = vadd.f32 %v4318, %v4321
        %vm4323 = vweird.f32 %v4317
        %vm4324 = vweird.f32 %v4318
        %vm4325 = vmor %vm4323, %vm4324
        %v4326 = vsel %vm4325, %v4318, %v4322
        %v4327 = vand.u32 2147483647, %v4317
        %vm4328 = vcmp.eq.f32.partialorder %v4327, 8.507059e+37
        %v4329 = vand.u32 %v4317, 2147483648
        %v4330 = vor.u32 1.1754944e-38, %v4329
        %v4331 = vsel %vm4328, %v4330, %v4326
        %v4332 = vmul.f32 %v4307, %v4331
        %v4333 = vmin.f32 %v4332, 1.0
        %v4334 = vmax.f32 %v4333, -1.0
        %v4335 = vmul.f32 %v3572, %v3572
        %v4336 = vmin.f32 16.0, %v4335
        %v4337 = vmul.f32 %v4336, 2.1237322e-06
        %v4338 = vadd.f32 %v4337, 0.00028619796
        %v4339 = vmul.f32 %v4336, %v4338
        %v4340 = vadd.f32 %v4339, 0.0036580483
        %v4341 = vmul.f32 %v4336, %v4340
        %v4342 = vadd.f32 %v4341, 0.05243302
        %v4343 = vmul.f32 %v4336, %v4342
        %v4344 = vadd.f32 %v4343, 0.18741608
        %v4345 = vmul.f32 %v4336, %v4344
        %v4346 = vadd.f32 %v4345, 1.1283791
        %v4347 = vmul.f32 %v3572, %v4346
        %v4348 = vmul.f32 %v4336, 3.8918573e-05
        %v4349 = vadd.f32 %v4348, 0.001143296
        %v4350 = vmul.f32 %v4336, %v4349
        %v4351 = vadd.f32 %v4350, 0.014752088
        %v4352 = vmul.f32 %v4336, %v4351
        %v4353 = vadd.f32 %v4352, 0.112945676
        %v4354 = vmul.f32 %v4336, %v4353
        %v4355 = vadd.f32 %v4354, 0.4994258
        %v4356 = vmul.f32 %v4336, %v4355
        %v4357 = vadd.f32 %v4356, 1.0
        %v4358 = vrcp.pop %v4357
        %v4359 = vmul.f32 %v4357, %v4358
        %v4360 = vsub.f32 1.0, %v4359
        %v4361 = vmul.f32 %v4358, %v4360
        %v4362 = vadd.f32 %v4358, %v4361
        %vm4363 = vweird.f32 %v4357
        %vm4364 = vweird.f32 %v4358
        %vm4365 = vmor %vm4363, %vm4364
        %v4366 = vsel %vm4365, %v4358, %v4362
        %v4367 = vand.u32 2147483647, %v4357
        %vm4368 = vcmp.eq.f32.partialorder %v4367, 8.507059e+37
        %v4369 = vand.u32 %v4357, 2147483648
        %v4370 = vor.u32 1.1754944e-38, %v4369
        %v4371 = vsel %vm4368, %v4370, %v4366
        %v4372 = vmul.f32 %v4347, %v4371
        %v4373 = vmin.f32 %v4372, 1.0
        %v4374 = vmax.f32 %v4373, -1.0
        %v4375 = vmul.f32 %v3573, %v3573
        %v4376 = vmin.f32 16.0, %v4375
        %v4377 = vmul.f32 %v4376, 2.1237322e-06
        %v4378 = vadd.f32 %v4377, 0.00028619796
        %v4379 = vmul.f32 %v4376, %v4378
        %v4380 = vadd.f32 %v4379, 0.0036580483
        %v4381 = vmul.f32 %v4376, %v4380
        %v4382 = vadd.f32 %v4381, 0.05243302
        %v4383 = vmul.f32 %v4376, %v4382
        %v4384 = vadd.f32 %v4383, 0.18741608
        %v4385 = vmul.f32 %v4376, %v4384
        %v4386 = vadd.f32 %v4385, 1.1283791
        %v4387 = vmul.f32 %v3573, %v4386
        %v4388 = vmul.f32 %v4376, 3.8918573e-05
        %v4389 = vadd.f32 %v4388, 0.001143296
        %v4390 = vmul.f32 %v4376, %v4389
        %v4391 = vadd.f32 %v4390, 0.014752088
        %v4392 = vmul.f32 %v4376, %v4391
        %v4393 = vadd.f32 %v4392, 0.112945676
        %v4394 = vmul.f32 %v4376, %v4393
        %v4395 = vadd.f32 %v4394, 0.4994258
        %v4396 = vmul.f32 %v4376, %v4395
        %v4397 = vadd.f32 %v4396, 1.0
        %v4398 = vrcp.pop %v4397
        %v4399 = vmul.f32 %v4397, %v4398
        %v4400 = vsub.f32 1.0, %v4399
        %v4401 = vmul.f32 %v4398, %v4400
        %v4402 = vadd.f32 %v4398, %v4401
        %vm4403 = vweird.f32 %v4397
        %vm4404 = vweird.f32 %v4398
        %vm4405 = vmor %vm4403, %vm4404
        %v4406 = vsel %vm4405, %v4398, %v4402
        %v4407 = vand.u32 2147483647, %v4397
        %vm4408 = vcmp.eq.f32.partialorder %v4407, 8.507059e+37
        %v4409 = vand.u32 %v4397, 2147483648
        %v4410 = vor.u32 1.1754944e-38, %v4409
        %v4411 = vsel %vm4408, %v4410, %v4406
        %v4412 = vmul.f32 %v4387, %v4411
        %v4413 = vmin.f32 %v4412, 1.0
        %v4414 = vmax.f32 %v4413, -1.0
        %v4415 = vmul.f32 %v3574, %v3574
        %v4416 = vmin.f32 16.0, %v4415
        %v4417 = vmul.f32 %v4416, 2.1237322e-06
        %v4418 = vadd.f32 %v4417, 0.00028619796
        %v4419 = vmul.f32 %v4416, %v4418
        %v4420 = vadd.f32 %v4419, 0.0036580483
        %v4421 = vmul.f32 %v4416, %v4420
        %v4422 = vadd.f32 %v4421, 0.05243302
        %v4423 = vmul.f32 %v4416, %v4422
        %v4424 = vadd.f32 %v4423, 0.18741608
        %v4425 = vmul.f32 %v4416, %v4424
        %v4426 = vadd.f32 %v4425, 1.1283791
        %v4427 = vmul.f32 %v3574, %v4426
        %v4428 = vmul.f32 %v4416, 3.8918573e-05
        %v4429 = vadd.f32 %v4428, 0.001143296
        %v4430 = vmul.f32 %v4416, %v4429
        %v4431 = vadd.f32 %v4430, 0.014752088
        %v4432 = vmul.f32 %v4416, %v4431
        %v4433 = vadd.f32 %v4432, 0.112945676
        %v4434 = vmul.f32 %v4416, %v4433
        %v4435 = vadd.f32 %v4434, 0.4994258
        %v4436 = vmul.f32 %v4416, %v4435
        %v4437 = vadd.f32 %v4436, 1.0
        %v4438 = vrcp.pop %v4437
        %v4439 = vmul.f32 %v4437, %v4438
        %v4440 = vsub.f32 1.0, %v4439
        %v4441 = vmul.f32 %v4438, %v4440
        %v4442 = vadd.f32 %v4438, %v4441
        %vm4443 = vweird.f32 %v4437
        %vm4444 = vweird.f32 %v4438
        %vm4445 = vmor %vm4443, %vm4444
        %v4446 = vsel %vm4445, %v4438, %v4442
        %v4447 = vand.u32 2147483647, %v4437
        %vm4448 = vcmp.eq.f32.partialorder %v4447, 8.507059e+37
        %v4449 = vand.u32 %v4437, 2147483648
        %v4450 = vor.u32 1.1754944e-38, %v4449
        %v4451 = vsel %vm4448, %v4450, %v4446
        %v4452 = vmul.f32 %v4427, %v4451
        %v4453 = vmin.f32 %v4452, 1.0
        %v4454 = vmax.f32 %v4453, -1.0
        %v4455 = vmul.f32 %v3575, %v3575
        %v4456 = vmin.f32 16.0, %v4455
        %v4457 = vmul.f32 %v4456, 2.1237322e-06
        %v4458 = vadd.f32 %v4457, 0.00028619796
        %v4459 = vmul.f32 %v4456, %v4458
        %v4460 = vadd.f32 %v4459, 0.0036580483
        %v4461 = vmul.f32 %v4456, %v4460
        %v4462 = vadd.f32 %v4461, 0.05243302
        %v4463 = vmul.f32 %v4456, %v4462
        %v4464 = vadd.f32 %v4463, 0.18741608
        %v4465 = vmul.f32 %v4456, %v4464
        %v4466 = vadd.f32 %v4465, 1.1283791
        %v4467 = vmul.f32 %v3575, %v4466
        %v4468 = vmul.f32 %v4456, 3.8918573e-05
        %v4469 = vadd.f32 %v4468, 0.001143296
        %v4470 = vmul.f32 %v4456, %v4469
        %v4471 = vadd.f32 %v4470, 0.014752088
        %v4472 = vmul.f32 %v4456, %v4471
        %v4473 = vadd.f32 %v4472, 0.112945676
        %v4474 = vmul.f32 %v4456, %v4473
        %v4475 = vadd.f32 %v4474, 0.4994258
        %v4476 = vmul.f32 %v4456, %v4475
        %v4477 = vadd.f32 %v4476, 1.0
        %v4478 = vrcp.pop %v4477
        %v4479 = vmul.f32 %v4477, %v4478
        %v4480 = vsub.f32 1.0, %v4479
        %v4481 = vmul.f32 %v4478, %v4480
        %v4482 = vadd.f32 %v4478, %v4481
        %vm4483 = vweird.f32 %v4477
        %vm4484 = vweird.f32 %v4478
        %vm4485 = vmor %vm4483, %vm4484
        %v4486 = vsel %vm4485, %v4478, %v4482
        %v4487 = vand.u32 2147483647, %v4477
        %vm4488 = vcmp.eq.f32.partialorder %v4487, 8.507059e+37
        %v4489 = vand.u32 %v4477, 2147483648
        %v4490 = vor.u32 1.1754944e-38, %v4489
        %v4491 = vsel %vm4488, %v4490, %v4486
        %v4492 = vmul.f32 %v4467, %v4491
        %v4493 = vmin.f32 %v4492, 1.0
        %v4494 = vmax.f32 %v4493, -1.0
        %v4495 = vmul.f32 %v3576, %v3576
        %v4496 = vmin.f32 16.0, %v4495
        %v4497 = vmul.f32 %v4496, 2.1237322e-06
        %v4498 = vadd.f32 %v4497, 0.00028619796
        %v4499 = vmul.f32 %v4496, %v4498
        %v4500 = vadd.f32 %v4499, 0.0036580483
        %v4501 = vmul.f32 %v4496, %v4500
        %v4502 = vadd.f32 %v4501, 0.05243302
        %v4503 = vmul.f32 %v4496, %v4502
        %v4504 = vadd.f32 %v4503, 0.18741608
        %v4505 = vmul.f32 %v4496, %v4504
        %v4506 = vadd.f32 %v4505, 1.1283791
        %v4507 = vmul.f32 %v3576, %v4506
        %v4508 = vmul.f32 %v4496, 3.8918573e-05
        %v4509 = vadd.f32 %v4508, 0.001143296
        %v4510 = vmul.f32 %v4496, %v4509
        %v4511 = vadd.f32 %v4510, 0.014752088
        %v4512 = vmul.f32 %v4496, %v4511
        %v4513 = vadd.f32 %v4512, 0.112945676
        %v4514 = vmul.f32 %v4496, %v4513
        %v4515 = vadd.f32 %v4514, 0.4994258
        %v4516 = vmul.f32 %v4496, %v4515
        %v4517 = vadd.f32 %v4516, 1.0
        %v4518 = vrcp.pop %v4517
        %v4519 = vmul.f32 %v4517, %v4518
        %v4520 = vsub.f32 1.0, %v4519
        %v4521 = vmul.f32 %v4518, %v4520
        %v4522 = vadd.f32 %v4518, %v4521
        %vm4523 = vweird.f32 %v4517
        %vm4524 = vweird.f32 %v4518
        %vm4525 = vmor %vm4523, %vm4524
        %v4526 = vsel %vm4525, %v4518, %v4522
        %v4527 = vand.u32 2147483647, %v4517
        %vm4528 = vcmp.eq.f32.partialorder %v4527, 8.507059e+37
        %v4529 = vand.u32 %v4517, 2147483648
        %v4530 = vor.u32 1.1754944e-38, %v4529
        %v4531 = vsel %vm4528, %v4530, %v4526
        %v4532 = vmul.f32 %v4507, %v4531
        %v4533 = vmin.f32 %v4532, 1.0
        %v4534 = vmax.f32 %v4533, -1.0
        %v4535 = vmul.f32 %v3577, %v3577
        %v4536 = vmin.f32 16.0, %v4535
        %v4537 = vmul.f32 %v4536, 2.1237322e-06
        %v4538 = vadd.f32 %v4537, 0.00028619796
        %v4539 = vmul.f32 %v4536, %v4538
        %v4540 = vadd.f32 %v4539, 0.0036580483
        %v4541 = vmul.f32 %v4536, %v4540
        %v4542 = vadd.f32 %v4541, 0.05243302
        %v4543 = vmul.f32 %v4536, %v4542
        %v4544 = vadd.f32 %v4543, 0.18741608
        %v4545 = vmul.f32 %v4536, %v4544
        %v4546 = vadd.f32 %v4545, 1.1283791
        %v4547 = vmul.f32 %v3577, %v4546
        %v4548 = vmul.f32 %v4536, 3.8918573e-05
        %v4549 = vadd.f32 %v4548, 0.001143296
        %v4550 = vmul.f32 %v4536, %v4549
        %v4551 = vadd.f32 %v4550, 0.014752088
        %v4552 = vmul.f32 %v4536, %v4551
        %v4553 = vadd.f32 %v4552, 0.112945676
        %v4554 = vmul.f32 %v4536, %v4553
        %v4555 = vadd.f32 %v4554, 0.4994258
        %v4556 = vmul.f32 %v4536, %v4555
        %v4557 = vadd.f32 %v4556, 1.0
        %v4558 = vrcp.pop %v4557
        %v4559 = vmul.f32 %v4557, %v4558
        %v4560 = vsub.f32 1.0, %v4559
        %v4561 = vmul.f32 %v4558, %v4560
        %v4562 = vadd.f32 %v4558, %v4561
        %vm4563 = vweird.f32 %v4557
        %vm4564 = vweird.f32 %v4558
        %vm4565 = vmor %vm4563, %vm4564
        %v4566 = vsel %vm4565, %v4558, %v4562
        %v4567 = vand.u32 2147483647, %v4557
        %vm4568 = vcmp.eq.f32.partialorder %v4567, 8.507059e+37
        %v4569 = vand.u32 %v4557, 2147483648
        %v4570 = vor.u32 1.1754944e-38, %v4569
        %v4571 = vsel %vm4568, %v4570, %v4566
        %v4572 = vmul.f32 %v4547, %v4571
        %v4573 = vmin.f32 %v4572, 1.0
        %v4574 = vmax.f32 %v4573, -1.0
        %v4575 = vmul.f32 %v3578, %v3578
        %v4576 = vmin.f32 16.0, %v4575
        %v4577 = vmul.f32 %v4576, 2.1237322e-06
        %v4578 = vadd.f32 %v4577, 0.00028619796
        %v4579 = vmul.f32 %v4576, %v4578
        %v4580 = vadd.f32 %v4579, 0.0036580483
        %v4581 = vmul.f32 %v4576, %v4580
        %v4582 = vadd.f32 %v4581, 0.05243302
        %v4583 = vmul.f32 %v4576, %v4582
        %v4584 = vadd.f32 %v4583, 0.18741608
        %v4585 = vmul.f32 %v4576, %v4584
        %v4586 = vadd.f32 %v4585, 1.1283791
        %v4587 = vmul.f32 %v3578, %v4586
        %v4588 = vmul.f32 %v4576, 3.8918573e-05
        %v4589 = vadd.f32 %v4588, 0.001143296
        %v4590 = vmul.f32 %v4576, %v4589
        %v4591 = vadd.f32 %v4590, 0.014752088
        %v4592 = vmul.f32 %v4576, %v4591
        %v4593 = vadd.f32 %v4592, 0.112945676
        %v4594 = vmul.f32 %v4576, %v4593
        %v4595 = vadd.f32 %v4594, 0.4994258
        %v4596 = vmul.f32 %v4576, %v4595
        %v4597 = vadd.f32 %v4596, 1.0
        %v4598 = vrcp.pop %v4597
        %v4599 = vmul.f32 %v4597, %v4598
        %v4600 = vsub.f32 1.0, %v4599
        %v4601 = vmul.f32 %v4598, %v4600
        %v4602 = vadd.f32 %v4598, %v4601
        %vm4603 = vweird.f32 %v4597
        %vm4604 = vweird.f32 %v4598
        %vm4605 = vmor %vm4603, %vm4604
        %v4606 = vsel %vm4605, %v4598, %v4602
        %v4607 = vand.u32 2147483647, %v4597
        %vm4608 = vcmp.eq.f32.partialorder %v4607, 8.507059e+37
        %v4609 = vand.u32 %v4597, 2147483648
        %v4610 = vor.u32 1.1754944e-38, %v4609
        %v4611 = vsel %vm4608, %v4610, %v4606
        %v4612 = vmul.f32 %v4587, %v4611
        %v4613 = vmin.f32 %v4612, 1.0
        %v4614 = vmax.f32 %v4613, -1.0
        %v4615 = vmul.f32 %v3579, %v3579
        %v4616 = vmin.f32 16.0, %v4615
        %v4617 = vmul.f32 %v4616, 2.1237322e-06
        %v4618 = vadd.f32 %v4617, 0.00028619796
        %v4619 = vmul.f32 %v4616, %v4618
        %v4620 = vadd.f32 %v4619, 0.0036580483
        %v4621 = vmul.f32 %v4616, %v4620
        %v4622 = vadd.f32 %v4621, 0.05243302
        %v4623 = vmul.f32 %v4616, %v4622
        %v4624 = vadd.f32 %v4623, 0.18741608
        %v4625 = vmul.f32 %v4616, %v4624
        %v4626 = vadd.f32 %v4625, 1.1283791
        %v4627 = vmul.f32 %v3579, %v4626
        %v4628 = vmul.f32 %v4616, 3.8918573e-05
        %v4629 = vadd.f32 %v4628, 0.001143296
        %v4630 = vmul.f32 %v4616, %v4629
        %v4631 = vadd.f32 %v4630, 0.014752088
        %v4632 = vmul.f32 %v4616, %v4631
        %v4633 = vadd.f32 %v4632, 0.112945676
        %v4634 = vmul.f32 %v4616, %v4633
        %v4635 = vadd.f32 %v4634, 0.4994258
        %v4636 = vmul.f32 %v4616, %v4635
        %v4637 = vadd.f32 %v4636, 1.0
        %v4638 = vrcp.pop %v4637
        %v4639 = vmul.f32 %v4637, %v4638
        %v4640 = vsub.f32 1.0, %v4639
        %v4641 = vmul.f32 %v4638, %v4640
        %v4642 = vadd.f32 %v4638, %v4641
        %vm4643 = vweird.f32 %v4637
        %vm4644 = vweird.f32 %v4638
        %vm4645 = vmor %vm4643, %vm4644
        %v4646 = vsel %vm4645, %v4638, %v4642
        %v4647 = vand.u32 2147483647, %v4637
        %vm4648 = vcmp.eq.f32.partialorder %v4647, 8.507059e+37
        %v4649 = vand.u32 %v4637, 2147483648
        %v4650 = vor.u32 1.1754944e-38, %v4649
        %v4651 = vsel %vm4648, %v4650, %v4646
        %v4652 = vmul.f32 %v4627, %v4651
        %v4653 = vmin.f32 %v4652, 1.0
        %v4654 = vmax.f32 %v4653, -1.0
        %v4655 = vmul.f32 %v3580, %v3580
        %v4656 = vmin.f32 16.0, %v4655
        %v4657 = vmul.f32 %v4656, 2.1237322e-06
        %v4658 = vadd.f32 %v4657, 0.00028619796
        %v4659 = vmul.f32 %v4656, %v4658
        %v4660 = vadd.f32 %v4659, 0.0036580483
        %v4661 = vmul.f32 %v4656, %v4660
        %v4662 = vadd.f32 %v4661, 0.05243302
        %v4663 = vmul.f32 %v4656, %v4662
        %v4664 = vadd.f32 %v4663, 0.18741608
        %v4665 = vmul.f32 %v4656, %v4664
        %v4666 = vadd.f32 %v4665, 1.1283791
        %v4667 = vmul.f32 %v3580, %v4666
        %v4668 = vmul.f32 %v4656, 3.8918573e-05
        %v4669 = vadd.f32 %v4668, 0.001143296
        %v4670 = vmul.f32 %v4656, %v4669
        %v4671 = vadd.f32 %v4670, 0.014752088
        %v4672 = vmul.f32 %v4656, %v4671
        %v4673 = vadd.f32 %v4672, 0.112945676
        %v4674 = vmul.f32 %v4656, %v4673
        %v4675 = vadd.f32 %v4674, 0.4994258
        %v4676 = vmul.f32 %v4656, %v4675
        %v4677 = vadd.f32 %v4676, 1.0
        %v4678 = vrcp.pop %v4677
        %v4679 = vmul.f32 %v4677, %v4678
        %v4680 = vsub.f32 1.0, %v4679
        %v4681 = vmul.f32 %v4678, %v4680
        %v4682 = vadd.f32 %v4678, %v4681
        %vm4683 = vweird.f32 %v4677
        %vm4684 = vweird.f32 %v4678
        %vm4685 = vmor %vm4683, %vm4684
        %v4686 = vsel %vm4685, %v4678, %v4682
        %v4687 = vand.u32 2147483647, %v4677
        %vm4688 = vcmp.eq.f32.partialorder %v4687, 8.507059e+37
        %v4689 = vand.u32 %v4677, 2147483648
        %v4690 = vor.u32 1.1754944e-38, %v4689
        %v4691 = vsel %vm4688, %v4690, %v4686
        %v4692 = vmul.f32 %v4667, %v4691
        %v4693 = vmin.f32 %v4692, 1.0
        %v4694 = vmax.f32 %v4693, -1.0
        %v4695 = vmul.f32 %v3581, %v3581
        %v4696 = vmin.f32 16.0, %v4695
        %v4697 = vmul.f32 %v4696, 2.1237322e-06
        %v4698 = vadd.f32 %v4697, 0.00028619796
        %v4699 = vmul.f32 %v4696, %v4698
        %v4700 = vadd.f32 %v4699, 0.0036580483
        %v4701 = vmul.f32 %v4696, %v4700
        %v4702 = vadd.f32 %v4701, 0.05243302
        %v4703 = vmul.f32 %v4696, %v4702
        %v4704 = vadd.f32 %v4703, 0.18741608
        %v4705 = vmul.f32 %v4696, %v4704
        %v4706 = vadd.f32 %v4705, 1.1283791
        %v4707 = vmul.f32 %v3581, %v4706
        %v4708 = vmul.f32 %v4696, 3.8918573e-05
        %v4709 = vadd.f32 %v4708, 0.001143296
        %v4710 = vmul.f32 %v4696, %v4709
        %v4711 = vadd.f32 %v4710, 0.014752088
        %v4712 = vmul.f32 %v4696, %v4711
        %v4713 = vadd.f32 %v4712, 0.112945676
        %v4714 = vmul.f32 %v4696, %v4713
        %v4715 = vadd.f32 %v4714, 0.4994258
        %v4716 = vmul.f32 %v4696, %v4715
        %v4717 = vadd.f32 %v4716, 1.0
        %v4718 = vrcp.pop %v4717
        %v4719 = vmul.f32 %v4717, %v4718
        %v4720 = vsub.f32 1.0, %v4719
        %v4721 = vmul.f32 %v4718, %v4720
        %v4722 = vadd.f32 %v4718, %v4721
        %vm4723 = vweird.f32 %v4717
        %vm4724 = vweird.f32 %v4718
        %vm4725 = vmor %vm4723, %vm4724
        %v4726 = vsel %vm4725, %v4718, %v4722
        %v4727 = vand.u32 2147483647, %v4717
        %vm4728 = vcmp.eq.f32.partialorder %v4727, 8.507059e+37
        %v4729 = vand.u32 %v4717, 2147483648
        %v4730 = vor.u32 1.1754944e-38, %v4729
        %v4731 = vsel %vm4728, %v4730, %v4726
        %v4732 = vmul.f32 %v4707, %v4731
        %v4733 = vmin.f32 %v4732, 1.0
        %v4734 = vmax.f32 %v4733, -1.0
        %v4735 = vmul.f32 %v3582, %v3582
        %v4736 = vmin.f32 16.0, %v4735
        %v4737 = vmul.f32 %v4736, 2.1237322e-06
        %v4738 = vadd.f32 %v4737, 0.00028619796
        %v4739 = vmul.f32 %v4736, %v4738
        %v4740 = vadd.f32 %v4739, 0.0036580483
        %v4741 = vmul.f32 %v4736, %v4740
        %v4742 = vadd.f32 %v4741, 0.05243302
        %v4743 = vmul.f32 %v4736, %v4742
        %v4744 = vadd.f32 %v4743, 0.18741608
        %v4745 = vmul.f32 %v4736, %v4744
        %v4746 = vadd.f32 %v4745, 1.1283791
        %v4747 = vmul.f32 %v3582, %v4746
        %v4748 = vmul.f32 %v4736, 3.8918573e-05
        %v4749 = vadd.f32 %v4748, 0.001143296
        %v4750 = vmul.f32 %v4736, %v4749
        %v4751 = vadd.f32 %v4750, 0.014752088
        %v4752 = vmul.f32 %v4736, %v4751
        %v4753 = vadd.f32 %v4752, 0.112945676
        %v4754 = vmul.f32 %v4736, %v4753
        %v4755 = vadd.f32 %v4754, 0.4994258
        %v4756 = vmul.f32 %v4736, %v4755
        %v4757 = vadd.f32 %v4756, 1.0
        %v4758 = vrcp.pop %v4757
        %v4759 = vmul.f32 %v4757, %v4758
        %v4760 = vsub.f32 1.0, %v4759
        %v4761 = vmul.f32 %v4758, %v4760
        %v4762 = vadd.f32 %v4758, %v4761
        %vm4763 = vweird.f32 %v4757
        %vm4764 = vweird.f32 %v4758
        %vm4765 = vmor %vm4763, %vm4764
        %v4766 = vsel %vm4765, %v4758, %v4762
        %v4767 = vand.u32 2147483647, %v4757
        %vm4768 = vcmp.eq.f32.partialorder %v4767, 8.507059e+37
        %v4769 = vand.u32 %v4757, 2147483648
        %v4770 = vor.u32 1.1754944e-38, %v4769
        %v4771 = vsel %vm4768, %v4770, %v4766
        %v4772 = vmul.f32 %v4747, %v4771
        %v4773 = vmin.f32 %v4772, 1.0
        %v4774 = vmax.f32 %v4773, -1.0
        %v4775 = vmul.f32 %v3583, %v3583
        %v4776 = vmin.f32 16.0, %v4775
        %v4777 = vmul.f32 %v4776, 2.1237322e-06
        %v4778 = vadd.f32 %v4777, 0.00028619796
        %v4779 = vmul.f32 %v4776, %v4778
        %v4780 = vadd.f32 %v4779, 0.0036580483
        %v4781 = vmul.f32 %v4776, %v4780
        %v4782 = vadd.f32 %v4781, 0.05243302
        %v4783 = vmul.f32 %v4776, %v4782
        %v4784 = vadd.f32 %v4783, 0.18741608
        %v4785 = vmul.f32 %v4776, %v4784
        %v4786 = vadd.f32 %v4785, 1.1283791
        %v4787 = vmul.f32 %v3583, %v4786
        %v4788 = vmul.f32 %v4776, 3.8918573e-05
        %v4789 = vadd.f32 %v4788, 0.001143296
        %v4790 = vmul.f32 %v4776, %v4789
        %v4791 = vadd.f32 %v4790, 0.014752088
        %v4792 = vmul.f32 %v4776, %v4791
        %v4793 = vadd.f32 %v4792, 0.112945676
        %v4794 = vmul.f32 %v4776, %v4793
        %v4795 = vadd.f32 %v4794, 0.4994258
        %v4796 = vmul.f32 %v4776, %v4795
        %v4797 = vadd.f32 %v4796, 1.0
        %v4798 = vrcp.pop %v4797
        %v4799 = vmul.f32 %v4797, %v4798
        %v4800 = vsub.f32 1.0, %v4799
        %v4801 = vmul.f32 %v4798, %v4800
        %v4802 = vadd.f32 %v4798, %v4801
        %vm4803 = vweird.f32 %v4797
        %vm4804 = vweird.f32 %v4798
        %vm4805 = vmor %vm4803, %vm4804
        %v4806 = vsel %vm4805, %v4798, %v4802
        %v4807 = vand.u32 2147483647, %v4797
        %vm4808 = vcmp.eq.f32.partialorder %v4807, 8.507059e+37
        %v4809 = vand.u32 %v4797, 2147483648
        %v4810 = vor.u32 1.1754944e-38, %v4809
        %v4811 = vsel %vm4808, %v4810, %v4806
        %v4812 = vmul.f32 %v4787, %v4811
        %v4813 = vmin.f32 %v4812, 1.0
        %v4814 = vmax.f32 %v4813, -1.0
        %v4815 = vmul.f32 %v3584, %v3584
        %v4816 = vmin.f32 16.0, %v4815
        %v4817 = vmul.f32 %v4816, 2.1237322e-06
        %v4818 = vadd.f32 %v4817, 0.00028619796
        %v4819 = vmul.f32 %v4816, %v4818
        %v4820 = vadd.f32 %v4819, 0.0036580483
        %v4821 = vmul.f32 %v4816, %v4820
        %v4822 = vadd.f32 %v4821, 0.05243302
        %v4823 = vmul.f32 %v4816, %v4822
        %v4824 = vadd.f32 %v4823, 0.18741608
        %v4825 = vmul.f32 %v4816, %v4824
        %v4826 = vadd.f32 %v4825, 1.1283791
        %v4827 = vmul.f32 %v3584, %v4826
        %v4828 = vmul.f32 %v4816, 3.8918573e-05
        %v4829 = vadd.f32 %v4828, 0.001143296
        %v4830 = vmul.f32 %v4816, %v4829
        %v4831 = vadd.f32 %v4830, 0.014752088
        %v4832 = vmul.f32 %v4816, %v4831
        %v4833 = vadd.f32 %v4832, 0.112945676
        %v4834 = vmul.f32 %v4816, %v4833
        %v4835 = vadd.f32 %v4834, 0.4994258
        %v4836 = vmul.f32 %v4816, %v4835
        %v4837 = vadd.f32 %v4836, 1.0
        %v4838 = vrcp.pop %v4837
        %v4839 = vmul.f32 %v4837, %v4838
        %v4840 = vsub.f32 1.0, %v4839
        %v4841 = vmul.f32 %v4838, %v4840
        %v4842 = vadd.f32 %v4838, %v4841
        %vm4843 = vweird.f32 %v4837
        %vm4844 = vweird.f32 %v4838
        %vm4845 = vmor %vm4843, %vm4844
        %v4846 = vsel %vm4845, %v4838, %v4842
        %v4847 = vand.u32 2147483647, %v4837
        %vm4848 = vcmp.eq.f32.partialorder %v4847, 8.507059e+37
        %v4849 = vand.u32 %v4837, 2147483648
        %v4850 = vor.u32 1.1754944e-38, %v4849
        %v4851 = vsel %vm4848, %v4850, %v4846
        %v4852 = vmul.f32 %v4827, %v4851
        %v4853 = vmin.f32 %v4852, 1.0
        %v4854 = vmax.f32 %v4853, -1.0
        %v4855 = vmul.f32 %v3585, %v3585
        %v4856 = vmin.f32 16.0, %v4855
        %v4857 = vmul.f32 %v4856, 2.1237322e-06
        %v4858 = vadd.f32 %v4857, 0.00028619796
        %v4859 = vmul.f32 %v4856, %v4858
        %v4860 = vadd.f32 %v4859, 0.0036580483
        %v4861 = vmul.f32 %v4856, %v4860
        %v4862 = vadd.f32 %v4861, 0.05243302
        %v4863 = vmul.f32 %v4856, %v4862
        %v4864 = vadd.f32 %v4863, 0.18741608
        %v4865 = vmul.f32 %v4856, %v4864
        %v4866 = vadd.f32 %v4865, 1.1283791
        %v4867 = vmul.f32 %v3585, %v4866
        %v4868 = vmul.f32 %v4856, 3.8918573e-05
        %v4869 = vadd.f32 %v4868, 0.001143296
        %v4870 = vmul.f32 %v4856, %v4869
        %v4871 = vadd.f32 %v4870, 0.014752088
        %v4872 = vmul.f32 %v4856, %v4871
        %v4873 = vadd.f32 %v4872, 0.112945676
        %v4874 = vmul.f32 %v4856, %v4873
        %v4875 = vadd.f32 %v4874, 0.4994258
        %v4876 = vmul.f32 %v4856, %v4875
        %v4877 = vadd.f32 %v4876, 1.0
        %v4878 = vrcp.pop %v4877
        %v4879 = vmul.f32 %v4877, %v4878
        %v4880 = vsub.f32 1.0, %v4879
        %v4881 = vmul.f32 %v4878, %v4880
        %v4882 = vadd.f32 %v4878, %v4881
        %vm4883 = vweird.f32 %v4877
        %vm4884 = vweird.f32 %v4878
        %vm4885 = vmor %vm4883, %vm4884
        %v4886 = vsel %vm4885, %v4878, %v4882
        %v4887 = vand.u32 2147483647, %v4877
        %vm4888 = vcmp.eq.f32.partialorder %v4887, 8.507059e+37
        %v4889 = vand.u32 %v4877, 2147483648
        %v4890 = vor.u32 1.1754944e-38, %v4889
        %v4891 = vsel %vm4888, %v4890, %v4886
        %v4892 = vmul.f32 %v4867, %v4891
        %v4893 = vmin.f32 %v4892, 1.0
        %v4894 = vmax.f32 %v4893, -1.0
        %v4895 = vmul.f32 %v3586, %v3586
        %v4896 = vmin.f32 16.0, %v4895
        %v4897 = vmul.f32 %v4896, 2.1237322e-06
        %v4898 = vadd.f32 %v4897, 0.00028619796
        %v4899 = vmul.f32 %v4896, %v4898
        %v4900 = vadd.f32 %v4899, 0.0036580483
        %v4901 = vmul.f32 %v4896, %v4900
        %v4902 = vadd.f32 %v4901, 0.05243302
        %v4903 = vmul.f32 %v4896, %v4902
        %v4904 = vadd.f32 %v4903, 0.18741608
        %v4905 = vmul.f32 %v4896, %v4904
        %v4906 = vadd.f32 %v4905, 1.1283791
        %v4907 = vmul.f32 %v3586, %v4906
        %v4908 = vmul.f32 %v4896, 3.8918573e-05
        %v4909 = vadd.f32 %v4908, 0.001143296
        %v4910 = vmul.f32 %v4896, %v4909
        %v4911 = vadd.f32 %v4910, 0.014752088
        %v4912 = vmul.f32 %v4896, %v4911
        %v4913 = vadd.f32 %v4912, 0.112945676
        %v4914 = vmul.f32 %v4896, %v4913
        %v4915 = vadd.f32 %v4914, 0.4994258
        %v4916 = vmul.f32 %v4896, %v4915
        %v4917 = vadd.f32 %v4916, 1.0
        %v4918 = vrcp.pop %v4917
        %v4919 = vmul.f32 %v4917, %v4918
        %v4920 = vsub.f32 1.0, %v4919
        %v4921 = vmul.f32 %v4918, %v4920
        %v4922 = vadd.f32 %v4918, %v4921
        %vm4923 = vweird.f32 %v4917
        %vm4924 = vweird.f32 %v4918
        %vm4925 = vmor %vm4923, %vm4924
        %v4926 = vsel %vm4925, %v4918, %v4922
        %v4927 = vand.u32 2147483647, %v4917
        %vm4928 = vcmp.eq.f32.partialorder %v4927, 8.507059e+37
        %v4929 = vand.u32 %v4917, 2147483648
        %v4930 = vor.u32 1.1754944e-38, %v4929
        %v4931 = vsel %vm4928, %v4930, %v4926
        %v4932 = vmul.f32 %v4907, %v4931
        %v4933 = vmin.f32 %v4932, 1.0
        %v4934 = vmax.f32 %v4933, -1.0
        %v4935 = vmul.f32 %v3587, %v3587
        %v4936 = vmin.f32 16.0, %v4935
        %v4937 = vmul.f32 %v4936, 2.1237322e-06
        %v4938 = vadd.f32 %v4937, 0.00028619796
        %v4939 = vmul.f32 %v4936, %v4938
        %v4940 = vadd.f32 %v4939, 0.0036580483
        %v4941 = vmul.f32 %v4936, %v4940
        %v4942 = vadd.f32 %v4941, 0.05243302
        %v4943 = vmul.f32 %v4936, %v4942
        %v4944 = vadd.f32 %v4943, 0.18741608
        %v4945 = vmul.f32 %v4936, %v4944
        %v4946 = vadd.f32 %v4945, 1.1283791
        %v4947 = vmul.f32 %v3587, %v4946
        %v4948 = vmul.f32 %v4936, 3.8918573e-05
        %v4949 = vadd.f32 %v4948, 0.001143296
        %v4950 = vmul.f32 %v4936, %v4949
        %v4951 = vadd.f32 %v4950, 0.014752088
        %v4952 = vmul.f32 %v4936, %v4951
        %v4953 = vadd.f32 %v4952, 0.112945676
        %v4954 = vmul.f32 %v4936, %v4953
        %v4955 = vadd.f32 %v4954, 0.4994258
        %v4956 = vmul.f32 %v4936, %v4955
        %v4957 = vadd.f32 %v4956, 1.0
        %v4958 = vrcp.pop %v4957
        %v4959 = vmul.f32 %v4957, %v4958
        %v4960 = vsub.f32 1.0, %v4959
        %v4961 = vmul.f32 %v4958, %v4960
        %v4962 = vadd.f32 %v4958, %v4961
        %vm4963 = vweird.f32 %v4957
        %vm4964 = vweird.f32 %v4958
        %vm4965 = vmor %vm4963, %vm4964
        %v4966 = vsel %vm4965, %v4958, %v4962
        %v4967 = vand.u32 2147483647, %v4957
        %vm4968 = vcmp.eq.f32.partialorder %v4967, 8.507059e+37
        %v4969 = vand.u32 %v4957, 2147483648
        %v4970 = vor.u32 1.1754944e-38, %v4969
        %v4971 = vsel %vm4968, %v4970, %v4966
        %v4972 = vmul.f32 %v4947, %v4971
        %v4973 = vmin.f32 %v4972, 1.0
        %v4974 = vmax.f32 %v4973, -1.0
        %v4975 = vmul.f32 %v3588, %v3588
        %v4976 = vmin.f32 16.0, %v4975
        %v4977 = vmul.f32 %v4976, 2.1237322e-06
        %v4978 = vadd.f32 %v4977, 0.00028619796
        %v4979 = vmul.f32 %v4976, %v4978
        %v4980 = vadd.f32 %v4979, 0.0036580483
        %v4981 = vmul.f32 %v4976, %v4980
        %v4982 = vadd.f32 %v4981, 0.05243302
        %v4983 = vmul.f32 %v4976, %v4982
        %v4984 = vadd.f32 %v4983, 0.18741608
        %v4985 = vmul.f32 %v4976, %v4984
        %v4986 = vadd.f32 %v4985, 1.1283791
        %v4987 = vmul.f32 %v3588, %v4986
        %v4988 = vmul.f32 %v4976, 3.8918573e-05
        %v4989 = vadd.f32 %v4988, 0.001143296
        %v4990 = vmul.f32 %v4976, %v4989
        %v4991 = vadd.f32 %v4990, 0.014752088
        %v4992 = vmul.f32 %v4976, %v4991
        %v4993 = vadd.f32 %v4992, 0.112945676
        %v4994 = vmul.f32 %v4976, %v4993
        %v4995 = vadd.f32 %v4994, 0.4994258
        %v4996 = vmul.f32 %v4976, %v4995
        %v4997 = vadd.f32 %v4996, 1.0
        %v4998 = vrcp.pop %v4997
        %v4999 = vmul.f32 %v4997, %v4998
        %v5000 = vsub.f32 1.0, %v4999
        %v5001 = vmul.f32 %v4998, %v5000
        %v5002 = vadd.f32 %v4998, %v5001
        %vm5003 = vweird.f32 %v4997
        %vm5004 = vweird.f32 %v4998
        %vm5005 = vmor %vm5003, %vm5004
        %v5006 = vsel %vm5005, %v4998, %v5002
        %v5007 = vand.u32 2147483647, %v4997
        %vm5008 = vcmp.eq.f32.partialorder %v5007, 8.507059e+37
        %v5009 = vand.u32 %v4997, 2147483648
        %v5010 = vor.u32 1.1754944e-38, %v5009
        %v5011 = vsel %vm5008, %v5010, %v5006
        %v5012 = vmul.f32 %v4987, %v5011
        %v5013 = vmin.f32 %v5012, 1.0
        %v5014 = vmax.f32 %v5013, -1.0
        %v5015 = vmul.f32 %v3589, %v3589
        %v5016 = vmin.f32 16.0, %v5015
        %v5017 = vmul.f32 %v5016, 2.1237322e-06
        %v5018 = vadd.f32 %v5017, 0.00028619796
        %v5019 = vmul.f32 %v5016, %v5018
        %v5020 = vadd.f32 %v5019, 0.0036580483
        %v5021 = vmul.f32 %v5016, %v5020
        %v5022 = vadd.f32 %v5021, 0.05243302
        %v5023 = vmul.f32 %v5016, %v5022
        %v5024 = vadd.f32 %v5023, 0.18741608
        %v5025 = vmul.f32 %v5016, %v5024
        %v5026 = vadd.f32 %v5025, 1.1283791
        %v5027 = vmul.f32 %v3589, %v5026
        %v5028 = vmul.f32 %v5016, 3.8918573e-05
        %v5029 = vadd.f32 %v5028, 0.001143296
        %v5030 = vmul.f32 %v5016, %v5029
        %v5031 = vadd.f32 %v5030, 0.014752088
        %v5032 = vmul.f32 %v5016, %v5031
        %v5033 = vadd.f32 %v5032, 0.112945676
        %v5034 = vmul.f32 %v5016, %v5033
        %v5035 = vadd.f32 %v5034, 0.4994258
        %v5036 = vmul.f32 %v5016, %v5035
        %v5037 = vadd.f32 %v5036, 1.0
        %v5038 = vrcp.pop %v5037
        %v5039 = vmul.f32 %v5037, %v5038
        %v5040 = vsub.f32 1.0, %v5039
        %v5041 = vmul.f32 %v5038, %v5040
        %v5042 = vadd.f32 %v5038, %v5041
        %vm5043 = vweird.f32 %v5037
        %vm5044 = vweird.f32 %v5038
        %vm5045 = vmor %vm5043, %vm5044
        %v5046 = vsel %vm5045, %v5038, %v5042
        %v5047 = vand.u32 2147483647, %v5037
        %vm5048 = vcmp.eq.f32.partialorder %v5047, 8.507059e+37
        %v5049 = vand.u32 %v5037, 2147483648
        %v5050 = vor.u32 1.1754944e-38, %v5049
        %v5051 = vsel %vm5048, %v5050, %v5046
        %v5052 = vmul.f32 %v5027, %v5051
        %v5053 = vmin.f32 %v5052, 1.0
        %v5054 = vmax.f32 %v5053, -1.0
        %v5055 = vmul.f32 %v3590, %v3590
        %v5056 = vmin.f32 16.0, %v5055
        %v5057 = vmul.f32 %v5056, 2.1237322e-06
        %v5058 = vadd.f32 %v5057, 0.00028619796
        %v5059 = vmul.f32 %v5056, %v5058
        %v5060 = vadd.f32 %v5059, 0.0036580483
        %v5061 = vmul.f32 %v5056, %v5060
        %v5062 = vadd.f32 %v5061, 0.05243302
        %v5063 = vmul.f32 %v5056, %v5062
        %v5064 = vadd.f32 %v5063, 0.18741608
        %v5065 = vmul.f32 %v5056, %v5064
        %v5066 = vadd.f32 %v5065, 1.1283791
        %v5067 = vmul.f32 %v3590, %v5066
        %v5068 = vmul.f32 %v5056, 3.8918573e-05
        %v5069 = vadd.f32 %v5068, 0.001143296
        %v5070 = vmul.f32 %v5056, %v5069
        %v5071 = vadd.f32 %v5070, 0.014752088
        %v5072 = vmul.f32 %v5056, %v5071
        %v5073 = vadd.f32 %v5072, 0.112945676
        %v5074 = vmul.f32 %v5056, %v5073
        %v5075 = vadd.f32 %v5074, 0.4994258
        %v5076 = vmul.f32 %v5056, %v5075
        %v5077 = vadd.f32 %v5076, 1.0
        %v5078 = vrcp.pop %v5077
        %v5079 = vmul.f32 %v5077, %v5078
        %v5080 = vsub.f32 1.0, %v5079
        %v5081 = vmul.f32 %v5078, %v5080
        %v5082 = vadd.f32 %v5078, %v5081
        %vm5083 = vweird.f32 %v5077
        %vm5084 = vweird.f32 %v5078
        %vm5085 = vmor %vm5083, %vm5084
        %v5086 = vsel %vm5085, %v5078, %v5082
        %v5087 = vand.u32 2147483647, %v5077
        %vm5088 = vcmp.eq.f32.partialorder %v5087, 8.507059e+37
        %v5089 = vand.u32 %v5077, 2147483648
        %v5090 = vor.u32 1.1754944e-38, %v5089
        %v5091 = vsel %vm5088, %v5090, %v5086
        %v5092 = vmul.f32 %v5067, %v5091
        %v5093 = vmin.f32 %v5092, 1.0
        %v5094 = vmax.f32 %v5093, -1.0
        %v5095 = vmul.f32 %v3591, %v3591
        %v5096 = vmin.f32 16.0, %v5095
        %v5097 = vmul.f32 %v5096, 2.1237322e-06
        %v5098 = vadd.f32 %v5097, 0.00028619796
        %v5099 = vmul.f32 %v5096, %v5098
        %v5100 = vadd.f32 %v5099, 0.0036580483
        %v5101 = vmul.f32 %v5096, %v5100
        %v5102 = vadd.f32 %v5101, 0.05243302
        %v5103 = vmul.f32 %v5096, %v5102
        %v5104 = vadd.f32 %v5103, 0.18741608
        %v5105 = vmul.f32 %v5096, %v5104
        %v5106 = vadd.f32 %v5105, 1.1283791
        %v5107 = vmul.f32 %v3591, %v5106
        %v5108 = vmul.f32 %v5096, 3.8918573e-05
        %v5109 = vadd.f32 %v5108, 0.001143296
        %v5110 = vmul.f32 %v5096, %v5109
        %v5111 = vadd.f32 %v5110, 0.014752088
        %v5112 = vmul.f32 %v5096, %v5111
        %v5113 = vadd.f32 %v5112, 0.112945676
        %v5114 = vmul.f32 %v5096, %v5113
        %v5115 = vadd.f32 %v5114, 0.4994258
        %v5116 = vmul.f32 %v5096, %v5115
        %v5117 = vadd.f32 %v5116, 1.0
        %v5118 = vrcp.pop %v5117
        %v5119 = vmul.f32 %v5117, %v5118
        %v5120 = vsub.f32 1.0, %v5119
        %v5121 = vmul.f32 %v5118, %v5120
        %v5122 = vadd.f32 %v5118, %v5121
        %vm5123 = vweird.f32 %v5117
        %vm5124 = vweird.f32 %v5118
        %vm5125 = vmor %vm5123, %vm5124
        %v5126 = vsel %vm5125, %v5118, %v5122
        %v5127 = vand.u32 2147483647, %v5117
        %vm5128 = vcmp.eq.f32.partialorder %v5127, 8.507059e+37
        %v5129 = vand.u32 %v5117, 2147483648
        %v5130 = vor.u32 1.1754944e-38, %v5129
        %v5131 = vsel %vm5128, %v5130, %v5126
        %v5132 = vmul.f32 %v5107, %v5131
        %v5133 = vmin.f32 %v5132, 1.0
        %v5134 = vmax.f32 %v5133, -1.0
        %v5135 = vmul.f32 %v3592, %v3592
        %v5136 = vmin.f32 16.0, %v5135
        %v5137 = vmul.f32 %v5136, 2.1237322e-06
        %v5138 = vadd.f32 %v5137, 0.00028619796
        %v5139 = vmul.f32 %v5136, %v5138
        %v5140 = vadd.f32 %v5139, 0.0036580483
        %v5141 = vmul.f32 %v5136, %v5140
        %v5142 = vadd.f32 %v5141, 0.05243302
        %v5143 = vmul.f32 %v5136, %v5142
        %v5144 = vadd.f32 %v5143, 0.18741608
        %v5145 = vmul.f32 %v5136, %v5144
        %v5146 = vadd.f32 %v5145, 1.1283791
        %v5147 = vmul.f32 %v3592, %v5146
        %v5148 = vmul.f32 %v5136, 3.8918573e-05
        %v5149 = vadd.f32 %v5148, 0.001143296
        %v5150 = vmul.f32 %v5136, %v5149
        %v5151 = vadd.f32 %v5150, 0.014752088
        %v5152 = vmul.f32 %v5136, %v5151
        %v5153 = vadd.f32 %v5152, 0.112945676
        %v5154 = vmul.f32 %v5136, %v5153
        %v5155 = vadd.f32 %v5154, 0.4994258
        %v5156 = vmul.f32 %v5136, %v5155
        %v5157 = vadd.f32 %v5156, 1.0
        %v5158 = vrcp.pop %v5157
        %v5159 = vmul.f32 %v5157, %v5158
        %v5160 = vsub.f32 1.0, %v5159
        %v5161 = vmul.f32 %v5158, %v5160
        %v5162 = vadd.f32 %v5158, %v5161
        %vm5163 = vweird.f32 %v5157
        %vm5164 = vweird.f32 %v5158
        %vm5165 = vmor %vm5163, %vm5164
        %v5166 = vsel %vm5165, %v5158, %v5162
        %v5167 = vand.u32 2147483647, %v5157
        %vm5168 = vcmp.eq.f32.partialorder %v5167, 8.507059e+37
        %v5169 = vand.u32 %v5157, 2147483648
        %v5170 = vor.u32 1.1754944e-38, %v5169
        %v5171 = vsel %vm5168, %v5170, %v5166
        %v5172 = vmul.f32 %v5147, %v5171
        %v5173 = vmin.f32 %v5172, 1.0
        %v5174 = vmax.f32 %v5173, -1.0
        %v5175 = vmul.f32 %v3593, %v3593
        %v5176 = vmin.f32 16.0, %v5175
        %v5177 = vmul.f32 %v5176, 2.1237322e-06
        %v5178 = vadd.f32 %v5177, 0.00028619796
        %v5179 = vmul.f32 %v5176, %v5178
        %v5180 = vadd.f32 %v5179, 0.0036580483
        %v5181 = vmul.f32 %v5176, %v5180
        %v5182 = vadd.f32 %v5181, 0.05243302
        %v5183 = vmul.f32 %v5176, %v5182
        %v5184 = vadd.f32 %v5183, 0.18741608
        %v5185 = vmul.f32 %v5176, %v5184
        %v5186 = vadd.f32 %v5185, 1.1283791
        %v5187 = vmul.f32 %v3593, %v5186
        %v5188 = vmul.f32 %v5176, 3.8918573e-05
        %v5189 = vadd.f32 %v5188, 0.001143296
        %v5190 = vmul.f32 %v5176, %v5189
        %v5191 = vadd.f32 %v5190, 0.014752088
        %v5192 = vmul.f32 %v5176, %v5191
        %v5193 = vadd.f32 %v5192, 0.112945676
        %v5194 = vmul.f32 %v5176, %v5193
        %v5195 = vadd.f32 %v5194, 0.4994258
        %v5196 = vmul.f32 %v5176, %v5195
        %v5197 = vadd.f32 %v5196, 1.0
        %v5198 = vrcp.pop %v5197
        %v5199 = vmul.f32 %v5197, %v5198
        %v5200 = vsub.f32 1.0, %v5199
        %v5201 = vmul.f32 %v5198, %v5200
        %v5202 = vadd.f32 %v5198, %v5201
        %vm5203 = vweird.f32 %v5197
        %vm5204 = vweird.f32 %v5198
        %vm5205 = vmor %vm5203, %vm5204
        %v5206 = vsel %vm5205, %v5198, %v5202
        %v5207 = vand.u32 2147483647, %v5197
        %vm5208 = vcmp.eq.f32.partialorder %v5207, 8.507059e+37
        %v5209 = vand.u32 %v5197, 2147483648
        %v5210 = vor.u32 1.1754944e-38, %v5209
        %v5211 = vsel %vm5208, %v5210, %v5206
        %v5212 = vmul.f32 %v5187, %v5211
        %v5213 = vmin.f32 %v5212, 1.0
        %v5214 = vmax.f32 %v5213, -1.0
        %v5215 = vmul.f32 %v3594, %v3594
        %v5216 = vmin.f32 16.0, %v5215
        %v5217 = vmul.f32 %v5216, 2.1237322e-06
        %v5218 = vadd.f32 %v5217, 0.00028619796
        %v5219 = vmul.f32 %v5216, %v5218
        %v5220 = vadd.f32 %v5219, 0.0036580483
        %v5221 = vmul.f32 %v5216, %v5220
        %v5222 = vadd.f32 %v5221, 0.05243302
        %v5223 = vmul.f32 %v5216, %v5222
        %v5224 = vadd.f32 %v5223, 0.18741608
        %v5225 = vmul.f32 %v5216, %v5224
        %v5226 = vadd.f32 %v5225, 1.1283791
        %v5227 = vmul.f32 %v3594, %v5226
        %v5228 = vmul.f32 %v5216, 3.8918573e-05
        %v5229 = vadd.f32 %v5228, 0.001143296
        %v5230 = vmul.f32 %v5216, %v5229
        %v5231 = vadd.f32 %v5230, 0.014752088
        %v5232 = vmul.f32 %v5216, %v5231
        %v5233 = vadd.f32 %v5232, 0.112945676
        %v5234 = vmul.f32 %v5216, %v5233
        %v5235 = vadd.f32 %v5234, 0.4994258
        %v5236 = vmul.f32 %v5216, %v5235
        %v5237 = vadd.f32 %v5236, 1.0
        %v5238 = vrcp.pop %v5237
        %v5239 = vmul.f32 %v5237, %v5238
        %v5240 = vsub.f32 1.0, %v5239
        %v5241 = vmul.f32 %v5238, %v5240
        %v5242 = vadd.f32 %v5238, %v5241
        %vm5243 = vweird.f32 %v5237
        %vm5244 = vweird.f32 %v5238
        %vm5245 = vmor %vm5243, %vm5244
        %v5246 = vsel %vm5245, %v5238, %v5242
        %v5247 = vand.u32 2147483647, %v5237
        %vm5248 = vcmp.eq.f32.partialorder %v5247, 8.507059e+37
        %v5249 = vand.u32 %v5237, 2147483648
        %v5250 = vor.u32 1.1754944e-38, %v5249
        %v5251 = vsel %vm5248, %v5250, %v5246
        %v5252 = vmul.f32 %v5227, %v5251
        %v5253 = vmin.f32 %v5252, 1.0
        %v5254 = vmax.f32 %v5253, -1.0
        %v5255 = vmul.f32 %v3595, %v3595
        %v5256 = vmin.f32 16.0, %v5255
        %v5257 = vmul.f32 %v5256, 2.1237322e-06
        %v5258 = vadd.f32 %v5257, 0.00028619796
        %v5259 = vmul.f32 %v5256, %v5258
        %v5260 = vadd.f32 %v5259, 0.0036580483
        %v5261 = vmul.f32 %v5256, %v5260
        %v5262 = vadd.f32 %v5261, 0.05243302
        %v5263 = vmul.f32 %v5256, %v5262
        %v5264 = vadd.f32 %v5263, 0.18741608
        %v5265 = vmul.f32 %v5256, %v5264
        %v5266 = vadd.f32 %v5265, 1.1283791
        %v5267 = vmul.f32 %v3595, %v5266
        %v5268 = vmul.f32 %v5256, 3.8918573e-05
        %v5269 = vadd.f32 %v5268, 0.001143296
        %v5270 = vmul.f32 %v5256, %v5269
        %v5271 = vadd.f32 %v5270, 0.014752088
        %v5272 = vmul.f32 %v5256, %v5271
        %v5273 = vadd.f32 %v5272, 0.112945676
        %v5274 = vmul.f32 %v5256, %v5273
        %v5275 = vadd.f32 %v5274, 0.4994258
        %v5276 = vmul.f32 %v5256, %v5275
        %v5277 = vadd.f32 %v5276, 1.0
        %v5278 = vrcp.pop %v5277
        %v5279 = vmul.f32 %v5277, %v5278
        %v5280 = vsub.f32 1.0, %v5279
        %v5281 = vmul.f32 %v5278, %v5280
        %v5282 = vadd.f32 %v5278, %v5281
        %vm5283 = vweird.f32 %v5277
        %vm5284 = vweird.f32 %v5278
        %vm5285 = vmor %vm5283, %vm5284
        %v5286 = vsel %vm5285, %v5278, %v5282
        %v5287 = vand.u32 2147483647, %v5277
        %vm5288 = vcmp.eq.f32.partialorder %v5287, 8.507059e+37
        %v5289 = vand.u32 %v5277, 2147483648
        %v5290 = vor.u32 1.1754944e-38, %v5289
        %v5291 = vsel %vm5288, %v5290, %v5286
        %v5292 = vmul.f32 %v5267, %v5291
        %v5293 = vmin.f32 %v5292, 1.0
        %v5294 = vmax.f32 %v5293, -1.0
        %v5295 = vmul.f32 %v3596, %v3596
        %v5296 = vmin.f32 16.0, %v5295
        %v5297 = vmul.f32 %v5296, 2.1237322e-06
        %v5298 = vadd.f32 %v5297, 0.00028619796
        %v5299 = vmul.f32 %v5296, %v5298
        %v5300 = vadd.f32 %v5299, 0.0036580483
        %v5301 = vmul.f32 %v5296, %v5300
        %v5302 = vadd.f32 %v5301, 0.05243302
        %v5303 = vmul.f32 %v5296, %v5302
        %v5304 = vadd.f32 %v5303, 0.18741608
        %v5305 = vmul.f32 %v5296, %v5304
        %v5306 = vadd.f32 %v5305, 1.1283791
        %v5307 = vmul.f32 %v3596, %v5306
        %v5308 = vmul.f32 %v5296, 3.8918573e-05
        %v5309 = vadd.f32 %v5308, 0.001143296
        %v5310 = vmul.f32 %v5296, %v5309
        %v5311 = vadd.f32 %v5310, 0.014752088
        %v5312 = vmul.f32 %v5296, %v5311
        %v5313 = vadd.f32 %v5312, 0.112945676
        %v5314 = vmul.f32 %v5296, %v5313
        %v5315 = vadd.f32 %v5314, 0.4994258
        %v5316 = vmul.f32 %v5296, %v5315
        %v5317 = vadd.f32 %v5316, 1.0
        %v5318 = vrcp.pop %v5317
        %v5319 = vmul.f32 %v5317, %v5318
        %v5320 = vsub.f32 1.0, %v5319
        %v5321 = vmul.f32 %v5318, %v5320
        %v5322 = vadd.f32 %v5318, %v5321
        %vm5323 = vweird.f32 %v5317
        %vm5324 = vweird.f32 %v5318
        %vm5325 = vmor %vm5323, %vm5324
        %v5326 = vsel %vm5325, %v5318, %v5322
        %v5327 = vand.u32 2147483647, %v5317
        %vm5328 = vcmp.eq.f32.partialorder %v5327, 8.507059e+37
        %v5329 = vand.u32 %v5317, 2147483648
        %v5330 = vor.u32 1.1754944e-38, %v5329
        %v5331 = vsel %vm5328, %v5330, %v5326
        %v5332 = vmul.f32 %v5307, %v5331
        %v5333 = vmin.f32 %v5332, 1.0
        %v5334 = vmax.f32 %v5333, -1.0
        %v5335 = vmul.f32 %v3597, %v3597
        %v5336 = vmin.f32 16.0, %v5335
        %v5337 = vmul.f32 %v5336, 2.1237322e-06
        %v5338 = vadd.f32 %v5337, 0.00028619796
        %v5339 = vmul.f32 %v5336, %v5338
        %v5340 = vadd.f32 %v5339, 0.0036580483
        %v5341 = vmul.f32 %v5336, %v5340
        %v5342 = vadd.f32 %v5341, 0.05243302
        %v5343 = vmul.f32 %v5336, %v5342
        %v5344 = vadd.f32 %v5343, 0.18741608
        %v5345 = vmul.f32 %v5336, %v5344
        %v5346 = vadd.f32 %v5345, 1.1283791
        %v5347 = vmul.f32 %v3597, %v5346
        %v5348 = vmul.f32 %v5336, 3.8918573e-05
        %v5349 = vadd.f32 %v5348, 0.001143296
        %v5350 = vmul.f32 %v5336, %v5349
        %v5351 = vadd.f32 %v5350, 0.014752088
        %v5352 = vmul.f32 %v5336, %v5351
        %v5353 = vadd.f32 %v5352, 0.112945676
        %v5354 = vmul.f32 %v5336, %v5353
        %v5355 = vadd.f32 %v5354, 0.4994258
        %v5356 = vmul.f32 %v5336, %v5355
        %v5357 = vadd.f32 %v5356, 1.0
        %v5358 = vrcp.pop %v5357
        %v5359 = vmul.f32 %v5357, %v5358
        %v5360 = vsub.f32 1.0, %v5359
        %v5361 = vmul.f32 %v5358, %v5360
        %v5362 = vadd.f32 %v5358, %v5361
        %vm5363 = vweird.f32 %v5357
        %vm5364 = vweird.f32 %v5358
        %vm5365 = vmor %vm5363, %vm5364
        %v5366 = vsel %vm5365, %v5358, %v5362
        %v5367 = vand.u32 2147483647, %v5357
        %vm5368 = vcmp.eq.f32.partialorder %v5367, 8.507059e+37
        %v5369 = vand.u32 %v5357, 2147483648
        %v5370 = vor.u32 1.1754944e-38, %v5369
        %v5371 = vsel %vm5368, %v5370, %v5366
        %v5372 = vmul.f32 %v5347, %v5371
        %v5373 = vmin.f32 %v5372, 1.0
        %v5374 = vmax.f32 %v5373, -1.0
        %v5375 = vmul.f32 %v3598, %v3598
        %v5376 = vmin.f32 16.0, %v5375
        %v5377 = vmul.f32 %v5376, 2.1237322e-06
        %v5378 = vadd.f32 %v5377, 0.00028619796
        %v5379 = vmul.f32 %v5376, %v5378
        %v5380 = vadd.f32 %v5379, 0.0036580483
        %v5381 = vmul.f32 %v5376, %v5380
        %v5382 = vadd.f32 %v5381, 0.05243302
        %v5383 = vmul.f32 %v5376, %v5382
        %v5384 = vadd.f32 %v5383, 0.18741608
        %v5385 = vmul.f32 %v5376, %v5384
        %v5386 = vadd.f32 %v5385, 1.1283791
        %v5387 = vmul.f32 %v3598, %v5386
        %v5388 = vmul.f32 %v5376, 3.8918573e-05
        %v5389 = vadd.f32 %v5388, 0.001143296
        %v5390 = vmul.f32 %v5376, %v5389
        %v5391 = vadd.f32 %v5390, 0.014752088
        %v5392 = vmul.f32 %v5376, %v5391
        %v5393 = vadd.f32 %v5392, 0.112945676
        %v5394 = vmul.f32 %v5376, %v5393
        %v5395 = vadd.f32 %v5394, 0.4994258
        %v5396 = vmul.f32 %v5376, %v5395
        %v5397 = vadd.f32 %v5396, 1.0
        %v5398 = vrcp.pop %v5397
        %v5399 = vmul.f32 %v5397, %v5398
        %v5400 = vsub.f32 1.0, %v5399
        %v5401 = vmul.f32 %v5398, %v5400
        %v5402 = vadd.f32 %v5398, %v5401
        %vm5403 = vweird.f32 %v5397
        %vm5404 = vweird.f32 %v5398
        %vm5405 = vmor %vm5403, %vm5404
        %v5406 = vsel %vm5405, %v5398, %v5402
        %v5407 = vand.u32 2147483647, %v5397
        %vm5408 = vcmp.eq.f32.partialorder %v5407, 8.507059e+37
        %v5409 = vand.u32 %v5397, 2147483648
        %v5410 = vor.u32 1.1754944e-38, %v5409
        %v5411 = vsel %vm5408, %v5410, %v5406
        %v5412 = vmul.f32 %v5387, %v5411
        %v5413 = vmin.f32 %v5412, 1.0
        %v5414 = vmax.f32 %v5413, -1.0
        %v5415 = vmul.f32 %v3599, %v3599
        %v5416 = vmin.f32 16.0, %v5415
        %v5417 = vmul.f32 %v5416, 2.1237322e-06
        %v5418 = vadd.f32 %v5417, 0.00028619796
        %v5419 = vmul.f32 %v5416, %v5418
        %v5420 = vadd.f32 %v5419, 0.0036580483
        %v5421 = vmul.f32 %v5416, %v5420
        %v5422 = vadd.f32 %v5421, 0.05243302
        %v5423 = vmul.f32 %v5416, %v5422
        %v5424 = vadd.f32 %v5423, 0.18741608
        %v5425 = vmul.f32 %v5416, %v5424
        %v5426 = vadd.f32 %v5425, 1.1283791
        %v5427 = vmul.f32 %v3599, %v5426
        %v5428 = vmul.f32 %v5416, 3.8918573e-05
        %v5429 = vadd.f32 %v5428, 0.001143296
        %v5430 = vmul.f32 %v5416, %v5429
        %v5431 = vadd.f32 %v5430, 0.014752088
        %v5432 = vmul.f32 %v5416, %v5431
        %v5433 = vadd.f32 %v5432, 0.112945676
        %v5434 = vmul.f32 %v5416, %v5433
        %v5435 = vadd.f32 %v5434, 0.4994258
        %v5436 = vmul.f32 %v5416, %v5435
        %v5437 = vadd.f32 %v5436, 1.0
        %v5438 = vrcp.pop %v5437
        %v5439 = vmul.f32 %v5437, %v5438
        %v5440 = vsub.f32 1.0, %v5439
        %v5441 = vmul.f32 %v5438, %v5440
        %v5442 = vadd.f32 %v5438, %v5441
        %vm5443 = vweird.f32 %v5437
        %vm5444 = vweird.f32 %v5438
        %vm5445 = vmor %vm5443, %vm5444
        %v5446 = vsel %vm5445, %v5438, %v5442
        %v5447 = vand.u32 2147483647, %v5437
        %vm5448 = vcmp.eq.f32.partialorder %v5447, 8.507059e+37
        %v5449 = vand.u32 %v5437, 2147483648
        %v5450 = vor.u32 1.1754944e-38, %v5449
        %v5451 = vsel %vm5448, %v5450, %v5446
        %v5452 = vmul.f32 %v5427, %v5451
        %v5453 = vmin.f32 %v5452, 1.0
        %v5454 = vmax.f32 %v5453, -1.0
        %v5455 = vmul.f32 %v3600, %v3600
        %v5456 = vmin.f32 16.0, %v5455
        %v5457 = vmul.f32 %v5456, 2.1237322e-06
        %v5458 = vadd.f32 %v5457, 0.00028619796
        %v5459 = vmul.f32 %v5456, %v5458
        %v5460 = vadd.f32 %v5459, 0.0036580483
        %v5461 = vmul.f32 %v5456, %v5460
        %v5462 = vadd.f32 %v5461, 0.05243302
        %v5463 = vmul.f32 %v5456, %v5462
        %v5464 = vadd.f32 %v5463, 0.18741608
        %v5465 = vmul.f32 %v5456, %v5464
        %v5466 = vadd.f32 %v5465, 1.1283791
        %v5467 = vmul.f32 %v3600, %v5466
        %v5468 = vmul.f32 %v5456, 3.8918573e-05
        %v5469 = vadd.f32 %v5468, 0.001143296
        %v5470 = vmul.f32 %v5456, %v5469
        %v5471 = vadd.f32 %v5470, 0.014752088
        %v5472 = vmul.f32 %v5456, %v5471
        %v5473 = vadd.f32 %v5472, 0.112945676
        %v5474 = vmul.f32 %v5456, %v5473
        %v5475 = vadd.f32 %v5474, 0.4994258
        %v5476 = vmul.f32 %v5456, %v5475
        %v5477 = vadd.f32 %v5476, 1.0
        %v5478 = vrcp.pop %v5477
        %v5479 = vmul.f32 %v5477, %v5478
        %v5480 = vsub.f32 1.0, %v5479
        %v5481 = vmul.f32 %v5478, %v5480
        %v5482 = vadd.f32 %v5478, %v5481
        %vm5483 = vweird.f32 %v5477
        %vm5484 = vweird.f32 %v5478
        %vm5485 = vmor %vm5483, %vm5484
        %v5486 = vsel %vm5485, %v5478, %v5482
        %v5487 = vand.u32 2147483647, %v5477
        %vm5488 = vcmp.eq.f32.partialorder %v5487, 8.507059e+37
        %v5489 = vand.u32 %v5477, 2147483648
        %v5490 = vor.u32 1.1754944e-38, %v5489
        %v5491 = vsel %vm5488, %v5490, %v5486
        %v5492 = vmul.f32 %v5467, %v5491
        %v5493 = vmin.f32 %v5492, 1.0
        %v5494 = vmax.f32 %v5493, -1.0
        %v5495 = vmul.f32 %v3601, %v3601
        %v5496 = vmin.f32 16.0, %v5495
        %v5497 = vmul.f32 %v5496, 2.1237322e-06
        %v5498 = vadd.f32 %v5497, 0.00028619796
        %v5499 = vmul.f32 %v5496, %v5498
        %v5500 = vadd.f32 %v5499, 0.0036580483
        %v5501 = vmul.f32 %v5496, %v5500
        %v5502 = vadd.f32 %v5501, 0.05243302
        %v5503 = vmul.f32 %v5496, %v5502
        %v5504 = vadd.f32 %v5503, 0.18741608
        %v5505 = vmul.f32 %v5496, %v5504
        %v5506 = vadd.f32 %v5505, 1.1283791
        %v5507 = vmul.f32 %v3601, %v5506
        %v5508 = vmul.f32 %v5496, 3.8918573e-05
        %v5509 = vadd.f32 %v5508, 0.001143296
        %v5510 = vmul.f32 %v5496, %v5509
        %v5511 = vadd.f32 %v5510, 0.014752088
        %v5512 = vmul.f32 %v5496, %v5511
        %v5513 = vadd.f32 %v5512, 0.112945676
        %v5514 = vmul.f32 %v5496, %v5513
        %v5515 = vadd.f32 %v5514, 0.4994258
        %v5516 = vmul.f32 %v5496, %v5515
        %v5517 = vadd.f32 %v5516, 1.0
        %v5518 = vrcp.pop %v5517
        %v5519 = vmul.f32 %v5517, %v5518
        %v5520 = vsub.f32 1.0, %v5519
        %v5521 = vmul.f32 %v5518, %v5520
        %v5522 = vadd.f32 %v5518, %v5521
        %vm5523 = vweird.f32 %v5517
        %vm5524 = vweird.f32 %v5518
        %vm5525 = vmor %vm5523, %vm5524
        %v5526 = vsel %vm5525, %v5518, %v5522
        %v5527 = vand.u32 2147483647, %v5517
        %vm5528 = vcmp.eq.f32.partialorder %v5527, 8.507059e+37
        %v5529 = vand.u32 %v5517, 2147483648
        %v5530 = vor.u32 1.1754944e-38, %v5529
        %v5531 = vsel %vm5528, %v5530, %v5526
        %v5532 = vmul.f32 %v5507, %v5531
        %v5533 = vmin.f32 %v5532, 1.0
        %v5534 = vmax.f32 %v5533, -1.0
        %v5535 = vmul.f32 %v3602, %v3602
        %v5536 = vmin.f32 16.0, %v5535
        %v5537 = vmul.f32 %v5536, 2.1237322e-06
        %v5538 = vadd.f32 %v5537, 0.00028619796
        %v5539 = vmul.f32 %v5536, %v5538
        %v5540 = vadd.f32 %v5539, 0.0036580483
        %v5541 = vmul.f32 %v5536, %v5540
        %v5542 = vadd.f32 %v5541, 0.05243302
        %v5543 = vmul.f32 %v5536, %v5542
        %v5544 = vadd.f32 %v5543, 0.18741608
        %v5545 = vmul.f32 %v5536, %v5544
        %v5546 = vadd.f32 %v5545, 1.1283791
        %v5547 = vmul.f32 %v3602, %v5546
        %v5548 = vmul.f32 %v5536, 3.8918573e-05
        %v5549 = vadd.f32 %v5548, 0.001143296
        %v5550 = vmul.f32 %v5536, %v5549
        %v5551 = vadd.f32 %v5550, 0.014752088
        %v5552 = vmul.f32 %v5536, %v5551
        %v5553 = vadd.f32 %v5552, 0.112945676
        %v5554 = vmul.f32 %v5536, %v5553
        %v5555 = vadd.f32 %v5554, 0.4994258
        %v5556 = vmul.f32 %v5536, %v5555
        %v5557 = vadd.f32 %v5556, 1.0
        %v5558 = vrcp.pop %v5557
        %v5559 = vmul.f32 %v5557, %v5558
        %v5560 = vsub.f32 1.0, %v5559
        %v5561 = vmul.f32 %v5558, %v5560
        %v5562 = vadd.f32 %v5558, %v5561
        %vm5563 = vweird.f32 %v5557
        %vm5564 = vweird.f32 %v5558
        %vm5565 = vmor %vm5563, %vm5564
        %v5566 = vsel %vm5565, %v5558, %v5562
        %v5567 = vand.u32 2147483647, %v5557
        %vm5568 = vcmp.eq.f32.partialorder %v5567, 8.507059e+37
        %v5569 = vand.u32 %v5557, 2147483648
        %v5570 = vor.u32 1.1754944e-38, %v5569
        %v5571 = vsel %vm5568, %v5570, %v5566
        %v5572 = vmul.f32 %v5547, %v5571
        %v5573 = vmin.f32 %v5572, 1.0
        %v5574 = vmax.f32 %v5573, -1.0
        %v5575 = vmul.f32 %v3603, %v3603
        %v5576 = vmin.f32 16.0, %v5575
        %v5577 = vmul.f32 %v5576, 2.1237322e-06
        %v5578 = vadd.f32 %v5577, 0.00028619796
        %v5579 = vmul.f32 %v5576, %v5578
        %v5580 = vadd.f32 %v5579, 0.0036580483
        %v5581 = vmul.f32 %v5576, %v5580
        %v5582 = vadd.f32 %v5581, 0.05243302
        %v5583 = vmul.f32 %v5576, %v5582
        %v5584 = vadd.f32 %v5583, 0.18741608
        %v5585 = vmul.f32 %v5576, %v5584
        %v5586 = vadd.f32 %v5585, 1.1283791
        %v5587 = vmul.f32 %v3603, %v5586
        %v5588 = vmul.f32 %v5576, 3.8918573e-05
        %v5589 = vadd.f32 %v5588, 0.001143296
        %v5590 = vmul.f32 %v5576, %v5589
        %v5591 = vadd.f32 %v5590, 0.014752088
        %v5592 = vmul.f32 %v5576, %v5591
        %v5593 = vadd.f32 %v5592, 0.112945676
        %v5594 = vmul.f32 %v5576, %v5593
        %v5595 = vadd.f32 %v5594, 0.4994258
        %v5596 = vmul.f32 %v5576, %v5595
        %v5597 = vadd.f32 %v5596, 1.0
        %v5598 = vrcp.pop %v5597
        %v5599 = vmul.f32 %v5597, %v5598
        %v5600 = vsub.f32 1.0, %v5599
        %v5601 = vmul.f32 %v5598, %v5600
        %v5602 = vadd.f32 %v5598, %v5601
        %vm5603 = vweird.f32 %v5597
        %vm5604 = vweird.f32 %v5598
        %vm5605 = vmor %vm5603, %vm5604
        %v5606 = vsel %vm5605, %v5598, %v5602
        %v5607 = vand.u32 2147483647, %v5597
        %vm5608 = vcmp.eq.f32.partialorder %v5607, 8.507059e+37
        %v5609 = vand.u32 %v5597, 2147483648
        %v5610 = vor.u32 1.1754944e-38, %v5609
        %v5611 = vsel %vm5608, %v5610, %v5606
        %v5612 = vmul.f32 %v5587, %v5611
        %v5613 = vmin.f32 %v5612, 1.0
        %v5614 = vmax.f32 %v5613, -1.0
        %v5615 = vmul.f32 %v3604, %v3604
        %v5616 = vmin.f32 16.0, %v5615
        %v5617 = vmul.f32 %v5616, 2.1237322e-06
        %v5618 = vadd.f32 %v5617, 0.00028619796
        %v5619 = vmul.f32 %v5616, %v5618
        %v5620 = vadd.f32 %v5619, 0.0036580483
        %v5621 = vmul.f32 %v5616, %v5620
        %v5622 = vadd.f32 %v5621, 0.05243302
        %v5623 = vmul.f32 %v5616, %v5622
        %v5624 = vadd.f32 %v5623, 0.18741608
        %v5625 = vmul.f32 %v5616, %v5624
        %v5626 = vadd.f32 %v5625, 1.1283791
        %v5627 = vmul.f32 %v3604, %v5626
        %v5628 = vmul.f32 %v5616, 3.8918573e-05
        %v5629 = vadd.f32 %v5628, 0.001143296
        %v5630 = vmul.f32 %v5616, %v5629
        %v5631 = vadd.f32 %v5630, 0.014752088
        %v5632 = vmul.f32 %v5616, %v5631
        %v5633 = vadd.f32 %v5632, 0.112945676
        %v5634 = vmul.f32 %v5616, %v5633
        %v5635 = vadd.f32 %v5634, 0.4994258
        %v5636 = vmul.f32 %v5616, %v5635
        %v5637 = vadd.f32 %v5636, 1.0
        %v5638 = vrcp.pop %v5637
        %v5639 = vmul.f32 %v5637, %v5638
        %v5640 = vsub.f32 1.0, %v5639
        %v5641 = vmul.f32 %v5638, %v5640
        %v5642 = vadd.f32 %v5638, %v5641
        %vm5643 = vweird.f32 %v5637
        %vm5644 = vweird.f32 %v5638
        %vm5645 = vmor %vm5643, %vm5644
        %v5646 = vsel %vm5645, %v5638, %v5642
        %v5647 = vand.u32 2147483647, %v5637
        %vm5648 = vcmp.eq.f32.partialorder %v5647, 8.507059e+37
        %v5649 = vand.u32 %v5637, 2147483648
        %v5650 = vor.u32 1.1754944e-38, %v5649
        %v5651 = vsel %vm5648, %v5650, %v5646
        %v5652 = vmul.f32 %v5627, %v5651
        %v5653 = vmin.f32 %v5652, 1.0
        %v5654 = vmax.f32 %v5653, -1.0
        %v5655 = vmul.f32 %v3605, %v3605
        %v5656 = vmin.f32 16.0, %v5655
        %v5657 = vmul.f32 %v5656, 2.1237322e-06
        %v5658 = vadd.f32 %v5657, 0.00028619796
        %v5659 = vmul.f32 %v5656, %v5658
        %v5660 = vadd.f32 %v5659, 0.0036580483
        %v5661 = vmul.f32 %v5656, %v5660
        %v5662 = vadd.f32 %v5661, 0.05243302
        %v5663 = vmul.f32 %v5656, %v5662
        %v5664 = vadd.f32 %v5663, 0.18741608
        %v5665 = vmul.f32 %v5656, %v5664
        %v5666 = vadd.f32 %v5665, 1.1283791
        %v5667 = vmul.f32 %v3605, %v5666
        %v5668 = vmul.f32 %v5656, 3.8918573e-05
        %v5669 = vadd.f32 %v5668, 0.001143296
        %v5670 = vmul.f32 %v5656, %v5669
        %v5671 = vadd.f32 %v5670, 0.014752088
        %v5672 = vmul.f32 %v5656, %v5671
        %v5673 = vadd.f32 %v5672, 0.112945676
        %v5674 = vmul.f32 %v5656, %v5673
        %v5675 = vadd.f32 %v5674, 0.4994258
        %v5676 = vmul.f32 %v5656, %v5675
        %v5677 = vadd.f32 %v5676, 1.0
        %v5678 = vrcp.pop %v5677
        %v5679 = vmul.f32 %v5677, %v5678
        %v5680 = vsub.f32 1.0, %v5679
        %v5681 = vmul.f32 %v5678, %v5680
        %v5682 = vadd.f32 %v5678, %v5681
        %vm5683 = vweird.f32 %v5677
        %vm5684 = vweird.f32 %v5678
        %vm5685 = vmor %vm5683, %vm5684
        %v5686 = vsel %vm5685, %v5678, %v5682
        %v5687 = vand.u32 2147483647, %v5677
        %vm5688 = vcmp.eq.f32.partialorder %v5687, 8.507059e+37
        %v5689 = vand.u32 %v5677, 2147483648
        %v5690 = vor.u32 1.1754944e-38, %v5689
        %v5691 = vsel %vm5688, %v5690, %v5686
        %v5692 = vmul.f32 %v5667, %v5691
        %v5693 = vmin.f32 %v5692, 1.0
        %v5694 = vmax.f32 %v5693, -1.0
        %v5695 = vmul.f32 %v3606, %v3606
        %v5696 = vmin.f32 16.0, %v5695
        %v5697 = vmul.f32 %v5696, 2.1237322e-06
        %v5698 = vadd.f32 %v5697, 0.00028619796
        %v5699 = vmul.f32 %v5696, %v5698
        %v5700 = vadd.f32 %v5699, 0.0036580483
        %v5701 = vmul.f32 %v5696, %v5700
        %v5702 = vadd.f32 %v5701, 0.05243302
        %v5703 = vmul.f32 %v5696, %v5702
        %v5704 = vadd.f32 %v5703, 0.18741608
        %v5705 = vmul.f32 %v5696, %v5704
        %v5706 = vadd.f32 %v5705, 1.1283791
        %v5707 = vmul.f32 %v3606, %v5706
        %v5708 = vmul.f32 %v5696, 3.8918573e-05
        %v5709 = vadd.f32 %v5708, 0.001143296
        %v5710 = vmul.f32 %v5696, %v5709
        %v5711 = vadd.f32 %v5710, 0.014752088
        %v5712 = vmul.f32 %v5696, %v5711
        %v5713 = vadd.f32 %v5712, 0.112945676
        %v5714 = vmul.f32 %v5696, %v5713
        %v5715 = vadd.f32 %v5714, 0.4994258
        %v5716 = vmul.f32 %v5696, %v5715
        %v5717 = vadd.f32 %v5716, 1.0
        %v5718 = vrcp.pop %v5717
        %v5719 = vmul.f32 %v5717, %v5718
        %v5720 = vsub.f32 1.0, %v5719
        %v5721 = vmul.f32 %v5718, %v5720
        %v5722 = vadd.f32 %v5718, %v5721
        %vm5723 = vweird.f32 %v5717
        %vm5724 = vweird.f32 %v5718
        %vm5725 = vmor %vm5723, %vm5724
        %v5726 = vsel %vm5725, %v5718, %v5722
        %v5727 = vand.u32 2147483647, %v5717
        %vm5728 = vcmp.eq.f32.partialorder %v5727, 8.507059e+37
        %v5729 = vand.u32 %v5717, 2147483648
        %v5730 = vor.u32 1.1754944e-38, %v5729
        %v5731 = vsel %vm5728, %v5730, %v5726
        %v5732 = vmul.f32 %v5707, %v5731
        %v5733 = vmin.f32 %v5732, 1.0
        %v5734 = vmax.f32 %v5733, -1.0
        %v5735 = vmul.f32 %v3607, %v3607
        %v5736 = vmin.f32 16.0, %v5735
        %v5737 = vmul.f32 %v5736, 2.1237322e-06
        %v5738 = vadd.f32 %v5737, 0.00028619796
        %v5739 = vmul.f32 %v5736, %v5738
        %v5740 = vadd.f32 %v5739, 0.0036580483
        %v5741 = vmul.f32 %v5736, %v5740
        %v5742 = vadd.f32 %v5741, 0.05243302
        %v5743 = vmul.f32 %v5736, %v5742
        %v5744 = vadd.f32 %v5743, 0.18741608
        %v5745 = vmul.f32 %v5736, %v5744
        %v5746 = vadd.f32 %v5745, 1.1283791
        %v5747 = vmul.f32 %v3607, %v5746
        %v5748 = vmul.f32 %v5736, 3.8918573e-05
        %v5749 = vadd.f32 %v5748, 0.001143296
        %v5750 = vmul.f32 %v5736, %v5749
        %v5751 = vadd.f32 %v5750, 0.014752088
        %v5752 = vmul.f32 %v5736, %v5751
        %v5753 = vadd.f32 %v5752, 0.112945676
        %v5754 = vmul.f32 %v5736, %v5753
        %v5755 = vadd.f32 %v5754, 0.4994258
        %v5756 = vmul.f32 %v5736, %v5755
        %v5757 = vadd.f32 %v5756, 1.0
        %v5758 = vrcp.pop %v5757
        %v5759 = vmul.f32 %v5757, %v5758
        %v5760 = vsub.f32 1.0, %v5759
        %v5761 = vmul.f32 %v5758, %v5760
        %v5762 = vadd.f32 %v5758, %v5761
        %vm5763 = vweird.f32 %v5757
        %vm5764 = vweird.f32 %v5758
        %vm5765 = vmor %vm5763, %vm5764
        %v5766 = vsel %vm5765, %v5758, %v5762
        %v5767 = vand.u32 2147483647, %v5757
        %vm5768 = vcmp.eq.f32.partialorder %v5767, 8.507059e+37
        %v5769 = vand.u32 %v5757, 2147483648
        %v5770 = vor.u32 1.1754944e-38, %v5769
        %v5771 = vsel %vm5768, %v5770, %v5766
        %v5772 = vmul.f32 %v5747, %v5771
        %v5773 = vmin.f32 %v5772, 1.0
        %v5774 = vmax.f32 %v5773, -1.0
        %v5775 = vmul.f32 %v3608, %v3608
        %v5776 = vmin.f32 16.0, %v5775
        %v5777 = vmul.f32 %v5776, 2.1237322e-06
        %v5778 = vadd.f32 %v5777, 0.00028619796
        %v5779 = vmul.f32 %v5776, %v5778
        %v5780 = vadd.f32 %v5779, 0.0036580483
        %v5781 = vmul.f32 %v5776, %v5780
        %v5782 = vadd.f32 %v5781, 0.05243302
        %v5783 = vmul.f32 %v5776, %v5782
        %v5784 = vadd.f32 %v5783, 0.18741608
        %v5785 = vmul.f32 %v5776, %v5784
        %v5786 = vadd.f32 %v5785, 1.1283791
        %v5787 = vmul.f32 %v3608, %v5786
        %v5788 = vmul.f32 %v5776, 3.8918573e-05
        %v5789 = vadd.f32 %v5788, 0.001143296
        %v5790 = vmul.f32 %v5776, %v5789
        %v5791 = vadd.f32 %v5790, 0.014752088
        %v5792 = vmul.f32 %v5776, %v5791
        %v5793 = vadd.f32 %v5792, 0.112945676
        %v5794 = vmul.f32 %v5776, %v5793
        %v5795 = vadd.f32 %v5794, 0.4994258
        %v5796 = vmul.f32 %v5776, %v5795
        %v5797 = vadd.f32 %v5796, 1.0
        %v5798 = vrcp.pop %v5797
        %v5799 = vmul.f32 %v5797, %v5798
        %v5800 = vsub.f32 1.0, %v5799
        %v5801 = vmul.f32 %v5798, %v5800
        %v5802 = vadd.f32 %v5798, %v5801
        %vm5803 = vweird.f32 %v5797
        %vm5804 = vweird.f32 %v5798
        %vm5805 = vmor %vm5803, %vm5804
        %v5806 = vsel %vm5805, %v5798, %v5802
        %v5807 = vand.u32 2147483647, %v5797
        %vm5808 = vcmp.eq.f32.partialorder %v5807, 8.507059e+37
        %v5809 = vand.u32 %v5797, 2147483648
        %v5810 = vor.u32 1.1754944e-38, %v5809
        %v5811 = vsel %vm5808, %v5810, %v5806
        %v5812 = vmul.f32 %v5787, %v5811
        %v5813 = vmin.f32 %v5812, 1.0
        %v5814 = vmax.f32 %v5813, -1.0
        %v5815 = vmul.f32 %v3609, %v3609
        %v5816 = vmin.f32 16.0, %v5815
        %v5817 = vmul.f32 %v5816, 2.1237322e-06
        %v5818 = vadd.f32 %v5817, 0.00028619796
        %v5819 = vmul.f32 %v5816, %v5818
        %v5820 = vadd.f32 %v5819, 0.0036580483
        %v5821 = vmul.f32 %v5816, %v5820
        %v5822 = vadd.f32 %v5821, 0.05243302
        %v5823 = vmul.f32 %v5816, %v5822
        %v5824 = vadd.f32 %v5823, 0.18741608
        %v5825 = vmul.f32 %v5816, %v5824
        %v5826 = vadd.f32 %v5825, 1.1283791
        %v5827 = vmul.f32 %v3609, %v5826
        %v5828 = vmul.f32 %v5816, 3.8918573e-05
        %v5829 = vadd.f32 %v5828, 0.001143296
        %v5830 = vmul.f32 %v5816, %v5829
        %v5831 = vadd.f32 %v5830, 0.014752088
        %v5832 = vmul.f32 %v5816, %v5831
        %v5833 = vadd.f32 %v5832, 0.112945676
        %v5834 = vmul.f32 %v5816, %v5833
        %v5835 = vadd.f32 %v5834, 0.4994258
        %v5836 = vmul.f32 %v5816, %v5835
        %v5837 = vadd.f32 %v5836, 1.0
        %v5838 = vrcp.pop %v5837
        %v5839 = vmul.f32 %v5837, %v5838
        %v5840 = vsub.f32 1.0, %v5839
        %v5841 = vmul.f32 %v5838, %v5840
        %v5842 = vadd.f32 %v5838, %v5841
        %vm5843 = vweird.f32 %v5837
        %vm5844 = vweird.f32 %v5838
        %vm5845 = vmor %vm5843, %vm5844
        %v5846 = vsel %vm5845, %v5838, %v5842
        %v5847 = vand.u32 2147483647, %v5837
        %vm5848 = vcmp.eq.f32.partialorder %v5847, 8.507059e+37
        %v5849 = vand.u32 %v5837, 2147483648
        %v5850 = vor.u32 1.1754944e-38, %v5849
        %v5851 = vsel %vm5848, %v5850, %v5846
        %v5852 = vmul.f32 %v5827, %v5851
        %v5853 = vmin.f32 %v5852, 1.0
        %v5854 = vmax.f32 %v5853, -1.0
        %v5855 = vmul.f32 %v3610, %v3610
        %v5856 = vmin.f32 16.0, %v5855
        %v5857 = vmul.f32 %v5856, 2.1237322e-06
        %v5858 = vadd.f32 %v5857, 0.00028619796
        %v5859 = vmul.f32 %v5856, %v5858
        %v5860 = vadd.f32 %v5859, 0.0036580483
        %v5861 = vmul.f32 %v5856, %v5860
        %v5862 = vadd.f32 %v5861, 0.05243302
        %v5863 = vmul.f32 %v5856, %v5862
        %v5864 = vadd.f32 %v5863, 0.18741608
        %v5865 = vmul.f32 %v5856, %v5864
        %v5866 = vadd.f32 %v5865, 1.1283791
        %v5867 = vmul.f32 %v3610, %v5866
        %v5868 = vmul.f32 %v5856, 3.8918573e-05
        %v5869 = vadd.f32 %v5868, 0.001143296
        %v5870 = vmul.f32 %v5856, %v5869
        %v5871 = vadd.f32 %v5870, 0.014752088
        %v5872 = vmul.f32 %v5856, %v5871
        %v5873 = vadd.f32 %v5872, 0.112945676
        %v5874 = vmul.f32 %v5856, %v5873
        %v5875 = vadd.f32 %v5874, 0.4994258
        %v5876 = vmul.f32 %v5856, %v5875
        %v5877 = vadd.f32 %v5876, 1.0
        %v5878 = vrcp.pop %v5877
        %v5879 = vmul.f32 %v5877, %v5878
        %v5880 = vsub.f32 1.0, %v5879
        %v5881 = vmul.f32 %v5878, %v5880
        %v5882 = vadd.f32 %v5878, %v5881
        %vm5883 = vweird.f32 %v5877
        %vm5884 = vweird.f32 %v5878
        %vm5885 = vmor %vm5883, %vm5884
        %v5886 = vsel %vm5885, %v5878, %v5882
        %v5887 = vand.u32 2147483647, %v5877
        %vm5888 = vcmp.eq.f32.partialorder %v5887, 8.507059e+37
        %v5889 = vand.u32 %v5877, 2147483648
        %v5890 = vor.u32 1.1754944e-38, %v5889
        %v5891 = vsel %vm5888, %v5890, %v5886
        %v5892 = vmul.f32 %v5867, %v5891
        %v5893 = vmin.f32 %v5892, 1.0
        %v5894 = vmax.f32 %v5893, -1.0
        %v5895 = vmul.f32 %v3611, %v3611
        %v5896 = vmin.f32 16.0, %v5895
        %v5897 = vmul.f32 %v5896, 2.1237322e-06
        %v5898 = vadd.f32 %v5897, 0.00028619796
        %v5899 = vmul.f32 %v5896, %v5898
        %v5900 = vadd.f32 %v5899, 0.0036580483
        %v5901 = vmul.f32 %v5896, %v5900
        %v5902 = vadd.f32 %v5901, 0.05243302
        %v5903 = vmul.f32 %v5896, %v5902
        %v5904 = vadd.f32 %v5903, 0.18741608
        %v5905 = vmul.f32 %v5896, %v5904
        %v5906 = vadd.f32 %v5905, 1.1283791
        %v5907 = vmul.f32 %v3611, %v5906
        %v5908 = vmul.f32 %v5896, 3.8918573e-05
        %v5909 = vadd.f32 %v5908, 0.001143296
        %v5910 = vmul.f32 %v5896, %v5909
        %v5911 = vadd.f32 %v5910, 0.014752088
        %v5912 = vmul.f32 %v5896, %v5911
        %v5913 = vadd.f32 %v5912, 0.112945676
        %v5914 = vmul.f32 %v5896, %v5913
        %v5915 = vadd.f32 %v5914, 0.4994258
        %v5916 = vmul.f32 %v5896, %v5915
        %v5917 = vadd.f32 %v5916, 1.0
        %v5918 = vrcp.pop %v5917
        %v5919 = vmul.f32 %v5917, %v5918
        %v5920 = vsub.f32 1.0, %v5919
        %v5921 = vmul.f32 %v5918, %v5920
        %v5922 = vadd.f32 %v5918, %v5921
        %vm5923 = vweird.f32 %v5917
        %vm5924 = vweird.f32 %v5918
        %vm5925 = vmor %vm5923, %vm5924
        %v5926 = vsel %vm5925, %v5918, %v5922
        %v5927 = vand.u32 2147483647, %v5917
        %vm5928 = vcmp.eq.f32.partialorder %v5927, 8.507059e+37
        %v5929 = vand.u32 %v5917, 2147483648
        %v5930 = vor.u32 1.1754944e-38, %v5929
        %v5931 = vsel %vm5928, %v5930, %v5926
        %v5932 = vmul.f32 %v5907, %v5931
        %v5933 = vmin.f32 %v5932, 1.0
        %v5934 = vmax.f32 %v5933, -1.0
        %v5935 = vmul.f32 %v3612, %v3612
        %v5936 = vmin.f32 16.0, %v5935
        %v5937 = vmul.f32 %v5936, 2.1237322e-06
        %v5938 = vadd.f32 %v5937, 0.00028619796
        %v5939 = vmul.f32 %v5936, %v5938
        %v5940 = vadd.f32 %v5939, 0.0036580483
        %v5941 = vmul.f32 %v5936, %v5940
        %v5942 = vadd.f32 %v5941, 0.05243302
        %v5943 = vmul.f32 %v5936, %v5942
        %v5944 = vadd.f32 %v5943, 0.18741608
        %v5945 = vmul.f32 %v5936, %v5944
        %v5946 = vadd.f32 %v5945, 1.1283791
        %v5947 = vmul.f32 %v3612, %v5946
        %v5948 = vmul.f32 %v5936, 3.8918573e-05
        %v5949 = vadd.f32 %v5948, 0.001143296
        %v5950 = vmul.f32 %v5936, %v5949
        %v5951 = vadd.f32 %v5950, 0.014752088
        %v5952 = vmul.f32 %v5936, %v5951
        %v5953 = vadd.f32 %v5952, 0.112945676
        %v5954 = vmul.f32 %v5936, %v5953
        %v5955 = vadd.f32 %v5954, 0.4994258
        %v5956 = vmul.f32 %v5936, %v5955
        %v5957 = vadd.f32 %v5956, 1.0
        %v5958 = vrcp.pop %v5957
        %v5959 = vmul.f32 %v5957, %v5958
        %v5960 = vsub.f32 1.0, %v5959
        %v5961 = vmul.f32 %v5958, %v5960
        %v5962 = vadd.f32 %v5958, %v5961
        %vm5963 = vweird.f32 %v5957
        %vm5964 = vweird.f32 %v5958
        %vm5965 = vmor %vm5963, %vm5964
        %v5966 = vsel %vm5965, %v5958, %v5962
        %v5967 = vand.u32 2147483647, %v5957
        %vm5968 = vcmp.eq.f32.partialorder %v5967, 8.507059e+37
        %v5969 = vand.u32 %v5957, 2147483648
        %v5970 = vor.u32 1.1754944e-38, %v5969
        %v5971 = vsel %vm5968, %v5970, %v5966
        %v5972 = vmul.f32 %v5947, %v5971
        %v5973 = vmin.f32 %v5972, 1.0
        %v5974 = vmax.f32 %v5973, -1.0
        %v5975 = vmul.f32 %v3613, %v3613
        %v5976 = vmin.f32 16.0, %v5975
        %v5977 = vmul.f32 %v5976, 2.1237322e-06
        %v5978 = vadd.f32 %v5977, 0.00028619796
        %v5979 = vmul.f32 %v5976, %v5978
        %v5980 = vadd.f32 %v5979, 0.0036580483
        %v5981 = vmul.f32 %v5976, %v5980
        %v5982 = vadd.f32 %v5981, 0.05243302
        %v5983 = vmul.f32 %v5976, %v5982
        %v5984 = vadd.f32 %v5983, 0.18741608
        %v5985 = vmul.f32 %v5976, %v5984
        %v5986 = vadd.f32 %v5985, 1.1283791
        %v5987 = vmul.f32 %v3613, %v5986
        %v5988 = vmul.f32 %v5976, 3.8918573e-05
        %v5989 = vadd.f32 %v5988, 0.001143296
        %v5990 = vmul.f32 %v5976, %v5989
        %v5991 = vadd.f32 %v5990, 0.014752088
        %v5992 = vmul.f32 %v5976, %v5991
        %v5993 = vadd.f32 %v5992, 0.112945676
        %v5994 = vmul.f32 %v5976, %v5993
        %v5995 = vadd.f32 %v5994, 0.4994258
        %v5996 = vmul.f32 %v5976, %v5995
        %v5997 = vadd.f32 %v5996, 1.0
        %v5998 = vrcp.pop %v5997
        %v5999 = vmul.f32 %v5997, %v5998
        %v6000 = vsub.f32 1.0, %v5999
        %v6001 = vmul.f32 %v5998, %v6000
        %v6002 = vadd.f32 %v5998, %v6001
        %vm6003 = vweird.f32 %v5997
        %vm6004 = vweird.f32 %v5998
        %vm6005 = vmor %vm6003, %vm6004
        %v6006 = vsel %vm6005, %v5998, %v6002
        %v6007 = vand.u32 2147483647, %v5997
        %vm6008 = vcmp.eq.f32.partialorder %v6007, 8.507059e+37
        %v6009 = vand.u32 %v5997, 2147483648
        %v6010 = vor.u32 1.1754944e-38, %v6009
        %v6011 = vsel %vm6008, %v6010, %v6006
        %v6012 = vmul.f32 %v5987, %v6011
        %v6013 = vmin.f32 %v6012, 1.0
        %v6014 = vmax.f32 %v6013, -1.0
        %v6015 = vmul.f32 %v3614, %v3614
        %v6016 = vmin.f32 16.0, %v6015
        %v6017 = vmul.f32 %v6016, 2.1237322e-06
        %v6018 = vadd.f32 %v6017, 0.00028619796
        %v6019 = vmul.f32 %v6016, %v6018
        %v6020 = vadd.f32 %v6019, 0.0036580483
        %v6021 = vmul.f32 %v6016, %v6020
        %v6022 = vadd.f32 %v6021, 0.05243302
        %v6023 = vmul.f32 %v6016, %v6022
        %v6024 = vadd.f32 %v6023, 0.18741608
        %v6025 = vmul.f32 %v6016, %v6024
        %v6026 = vadd.f32 %v6025, 1.1283791
        %v6027 = vmul.f32 %v3614, %v6026
        %v6028 = vmul.f32 %v6016, 3.8918573e-05
        %v6029 = vadd.f32 %v6028, 0.001143296
        %v6030 = vmul.f32 %v6016, %v6029
        %v6031 = vadd.f32 %v6030, 0.014752088
        %v6032 = vmul.f32 %v6016, %v6031
        %v6033 = vadd.f32 %v6032, 0.112945676
        %v6034 = vmul.f32 %v6016, %v6033
        %v6035 = vadd.f32 %v6034, 0.4994258
        %v6036 = vmul.f32 %v6016, %v6035
        %v6037 = vadd.f32 %v6036, 1.0
        %v6038 = vrcp.pop %v6037
        %v6039 = vmul.f32 %v6037, %v6038
        %v6040 = vsub.f32 1.0, %v6039
        %v6041 = vmul.f32 %v6038, %v6040
        %v6042 = vadd.f32 %v6038, %v6041
        %vm6043 = vweird.f32 %v6037
        %vm6044 = vweird.f32 %v6038
        %vm6045 = vmor %vm6043, %vm6044
        %v6046 = vsel %vm6045, %v6038, %v6042
        %v6047 = vand.u32 2147483647, %v6037
        %vm6048 = vcmp.eq.f32.partialorder %v6047, 8.507059e+37
        %v6049 = vand.u32 %v6037, 2147483648
        %v6050 = vor.u32 1.1754944e-38, %v6049
        %v6051 = vsel %vm6048, %v6050, %v6046
        %v6052 = vmul.f32 %v6027, %v6051
        %v6053 = vmin.f32 %v6052, 1.0
        %v6054 = vmax.f32 %v6053, -1.0
        %v6055 = vmul.f32 %v3615, %v3615
        %v6056 = vmin.f32 16.0, %v6055
        %v6057 = vmul.f32 %v6056, 2.1237322e-06
        %v6058 = vadd.f32 %v6057, 0.00028619796
        %v6059 = vmul.f32 %v6056, %v6058
        %v6060 = vadd.f32 %v6059, 0.0036580483
        %v6061 = vmul.f32 %v6056, %v6060
        %v6062 = vadd.f32 %v6061, 0.05243302
        %v6063 = vmul.f32 %v6056, %v6062
        %v6064 = vadd.f32 %v6063, 0.18741608
        %v6065 = vmul.f32 %v6056, %v6064
        %v6066 = vadd.f32 %v6065, 1.1283791
        %v6067 = vmul.f32 %v3615, %v6066
        %v6068 = vmul.f32 %v6056, 3.8918573e-05
        %v6069 = vadd.f32 %v6068, 0.001143296
        %v6070 = vmul.f32 %v6056, %v6069
        %v6071 = vadd.f32 %v6070, 0.014752088
        %v6072 = vmul.f32 %v6056, %v6071
        %v6073 = vadd.f32 %v6072, 0.112945676
        %v6074 = vmul.f32 %v6056, %v6073
        %v6075 = vadd.f32 %v6074, 0.4994258
        %v6076 = vmul.f32 %v6056, %v6075
        %v6077 = vadd.f32 %v6076, 1.0
        %v6078 = vrcp.pop %v6077
        %v6079 = vmul.f32 %v6077, %v6078
        %v6080 = vsub.f32 1.0, %v6079
        %v6081 = vmul.f32 %v6078, %v6080
        %v6082 = vadd.f32 %v6078, %v6081
        %vm6083 = vweird.f32 %v6077
        %vm6084 = vweird.f32 %v6078
        %vm6085 = vmor %vm6083, %vm6084
        %v6086 = vsel %vm6085, %v6078, %v6082
        %v6087 = vand.u32 2147483647, %v6077
        %vm6088 = vcmp.eq.f32.partialorder %v6087, 8.507059e+37
        %v6089 = vand.u32 %v6077, 2147483648
        %v6090 = vor.u32 1.1754944e-38, %v6089
        %v6091 = vsel %vm6088, %v6090, %v6086
        %v6092 = vmul.f32 %v6067, %v6091
        %v6093 = vmin.f32 %v6092, 1.0
        %v6094 = vmax.f32 %v6093, -1.0
        %v6095 = vmul.f32 %v3616, %v3616
        %v6096 = vmin.f32 16.0, %v6095
        %v6097 = vmul.f32 %v6096, 2.1237322e-06
        %v6098 = vadd.f32 %v6097, 0.00028619796
        %v6099 = vmul.f32 %v6096, %v6098
        %v6100 = vadd.f32 %v6099, 0.0036580483
        %v6101 = vmul.f32 %v6096, %v6100
        %v6102 = vadd.f32 %v6101, 0.05243302
        %v6103 = vmul.f32 %v6096, %v6102
        %v6104 = vadd.f32 %v6103, 0.18741608
        %v6105 = vmul.f32 %v6096, %v6104
        %v6106 = vadd.f32 %v6105, 1.1283791
        %v6107 = vmul.f32 %v3616, %v6106
        %v6108 = vmul.f32 %v6096, 3.8918573e-05
        %v6109 = vadd.f32 %v6108, 0.001143296
        %v6110 = vmul.f32 %v6096, %v6109
        %v6111 = vadd.f32 %v6110, 0.014752088
        %v6112 = vmul.f32 %v6096, %v6111
        %v6113 = vadd.f32 %v6112, 0.112945676
        %v6114 = vmul.f32 %v6096, %v6113
        %v6115 = vadd.f32 %v6114, 0.4994258
        %v6116 = vmul.f32 %v6096, %v6115
        %v6117 = vadd.f32 %v6116, 1.0
        %v6118 = vrcp.pop %v6117
        %v6119 = vmul.f32 %v6117, %v6118
        %v6120 = vsub.f32 1.0, %v6119
        %v6121 = vmul.f32 %v6118, %v6120
        %v6122 = vadd.f32 %v6118, %v6121
        %vm6123 = vweird.f32 %v6117
        %vm6124 = vweird.f32 %v6118
        %vm6125 = vmor %vm6123, %vm6124
        %v6126 = vsel %vm6125, %v6118, %v6122
        %v6127 = vand.u32 2147483647, %v6117
        %vm6128 = vcmp.eq.f32.partialorder %v6127, 8.507059e+37
        %v6129 = vand.u32 %v6117, 2147483648
        %v6130 = vor.u32 1.1754944e-38, %v6129
        %v6131 = vsel %vm6128, %v6130, %v6126
        %v6132 = vmul.f32 %v6107, %v6131
        %v6133 = vmin.f32 %v6132, 1.0
        %v6134 = vmax.f32 %v6133, -1.0
        %v6135 = vmul.f32 %v3617, %v3617
        %v6136 = vmin.f32 16.0, %v6135
        %v6137 = vmul.f32 %v6136, 2.1237322e-06
        %v6138 = vadd.f32 %v6137, 0.00028619796
        %v6139 = vmul.f32 %v6136, %v6138
        %v6140 = vadd.f32 %v6139, 0.0036580483
        %v6141 = vmul.f32 %v6136, %v6140
        %v6142 = vadd.f32 %v6141, 0.05243302
        %v6143 = vmul.f32 %v6136, %v6142
        %v6144 = vadd.f32 %v6143, 0.18741608
        %v6145 = vmul.f32 %v6136, %v6144
        %v6146 = vadd.f32 %v6145, 1.1283791
        %v6147 = vmul.f32 %v3617, %v6146
        %v6148 = vmul.f32 %v6136, 3.8918573e-05
        %v6149 = vadd.f32 %v6148, 0.001143296
        %v6150 = vmul.f32 %v6136, %v6149
        %v6151 = vadd.f32 %v6150, 0.014752088
        %v6152 = vmul.f32 %v6136, %v6151
        %v6153 = vadd.f32 %v6152, 0.112945676
        %v6154 = vmul.f32 %v6136, %v6153
        %v6155 = vadd.f32 %v6154, 0.4994258
        %v6156 = vmul.f32 %v6136, %v6155
        %v6157 = vadd.f32 %v6156, 1.0
        %v6158 = vrcp.pop %v6157
        %v6159 = vmul.f32 %v6157, %v6158
        %v6160 = vsub.f32 1.0, %v6159
        %v6161 = vmul.f32 %v6158, %v6160
        %v6162 = vadd.f32 %v6158, %v6161
        %vm6163 = vweird.f32 %v6157
        %vm6164 = vweird.f32 %v6158
        %vm6165 = vmor %vm6163, %vm6164
        %v6166 = vsel %vm6165, %v6158, %v6162
        %v6167 = vand.u32 2147483647, %v6157
        %vm6168 = vcmp.eq.f32.partialorder %v6167, 8.507059e+37
        %v6169 = vand.u32 %v6157, 2147483648
        %v6170 = vor.u32 1.1754944e-38, %v6169
        %v6171 = vsel %vm6168, %v6170, %v6166
        %v6172 = vmul.f32 %v6147, %v6171
        %v6173 = vmin.f32 %v6172, 1.0
        %v6174 = vmax.f32 %v6173, -1.0
        %v6175 = vmul.f32 %v3618, %v3618
        %v6176 = vmin.f32 16.0, %v6175
        %v6177 = vmul.f32 %v6176, 2.1237322e-06
        %v6178 = vadd.f32 %v6177, 0.00028619796
        %v6179 = vmul.f32 %v6176, %v6178
        %v6180 = vadd.f32 %v6179, 0.0036580483
        %v6181 = vmul.f32 %v6176, %v6180
        %v6182 = vadd.f32 %v6181, 0.05243302
        %v6183 = vmul.f32 %v6176, %v6182
        %v6184 = vadd.f32 %v6183, 0.18741608
        %v6185 = vmul.f32 %v6176, %v6184
        %v6186 = vadd.f32 %v6185, 1.1283791
        %v6187 = vmul.f32 %v3618, %v6186
        %v6188 = vmul.f32 %v6176, 3.8918573e-05
        %v6189 = vadd.f32 %v6188, 0.001143296
        %v6190 = vmul.f32 %v6176, %v6189
        %v6191 = vadd.f32 %v6190, 0.014752088
        %v6192 = vmul.f32 %v6176, %v6191
        %v6193 = vadd.f32 %v6192, 0.112945676
        %v6194 = vmul.f32 %v6176, %v6193
        %v6195 = vadd.f32 %v6194, 0.4994258
        %v6196 = vmul.f32 %v6176, %v6195
        %v6197 = vadd.f32 %v6196, 1.0
        %v6198 = vrcp.pop %v6197
        %v6199 = vmul.f32 %v6197, %v6198
        %v6200 = vsub.f32 1.0, %v6199
        %v6201 = vmul.f32 %v6198, %v6200
        %v6202 = vadd.f32 %v6198, %v6201
        %vm6203 = vweird.f32 %v6197
        %vm6204 = vweird.f32 %v6198
        %vm6205 = vmor %vm6203, %vm6204
        %v6206 = vsel %vm6205, %v6198, %v6202
        %v6207 = vand.u32 2147483647, %v6197
        %vm6208 = vcmp.eq.f32.partialorder %v6207, 8.507059e+37
        %v6209 = vand.u32 %v6197, 2147483648
        %v6210 = vor.u32 1.1754944e-38, %v6209
        %v6211 = vsel %vm6208, %v6210, %v6206
        %v6212 = vmul.f32 %v6187, %v6211
        %v6213 = vmin.f32 %v6212, 1.0
        %v6214 = vmax.f32 %v6213, -1.0
        %v6215 = vmul.f32 %v3619, %v3619
        %v6216 = vmin.f32 16.0, %v6215
        %v6217 = vmul.f32 %v6216, 2.1237322e-06
        %v6218 = vadd.f32 %v6217, 0.00028619796
        %v6219 = vmul.f32 %v6216, %v6218
        %v6220 = vadd.f32 %v6219, 0.0036580483
        %v6221 = vmul.f32 %v6216, %v6220
        %v6222 = vadd.f32 %v6221, 0.05243302
        %v6223 = vmul.f32 %v6216, %v6222
        %v6224 = vadd.f32 %v6223, 0.18741608
        %v6225 = vmul.f32 %v6216, %v6224
        %v6226 = vadd.f32 %v6225, 1.1283791
        %v6227 = vmul.f32 %v3619, %v6226
        %v6228 = vmul.f32 %v6216, 3.8918573e-05
        %v6229 = vadd.f32 %v6228, 0.001143296
        %v6230 = vmul.f32 %v6216, %v6229
        %v6231 = vadd.f32 %v6230, 0.014752088
        %v6232 = vmul.f32 %v6216, %v6231
        %v6233 = vadd.f32 %v6232, 0.112945676
        %v6234 = vmul.f32 %v6216, %v6233
        %v6235 = vadd.f32 %v6234, 0.4994258
        %v6236 = vmul.f32 %v6216, %v6235
        %v6237 = vadd.f32 %v6236, 1.0
        %v6238 = vrcp.pop %v6237
        %v6239 = vmul.f32 %v6237, %v6238
        %v6240 = vsub.f32 1.0, %v6239
        %v6241 = vmul.f32 %v6238, %v6240
        %v6242 = vadd.f32 %v6238, %v6241
        %vm6243 = vweird.f32 %v6237
        %vm6244 = vweird.f32 %v6238
        %vm6245 = vmor %vm6243, %vm6244
        %v6246 = vsel %vm6245, %v6238, %v6242
        %v6247 = vand.u32 2147483647, %v6237
        %vm6248 = vcmp.eq.f32.partialorder %v6247, 8.507059e+37
        %v6249 = vand.u32 %v6237, 2147483648
        %v6250 = vor.u32 1.1754944e-38, %v6249
        %v6251 = vsel %vm6248, %v6250, %v6246
        %v6252 = vmul.f32 %v6227, %v6251
        %v6253 = vmin.f32 %v6252, 1.0
        %v6254 = vmax.f32 %v6253, -1.0
        %v6255 = vmul.f32 %v3620, %v3620
        %v6256 = vmin.f32 16.0, %v6255
        %v6257 = vmul.f32 %v6256, 2.1237322e-06
        %v6258 = vadd.f32 %v6257, 0.00028619796
        %v6259 = vmul.f32 %v6256, %v6258
        %v6260 = vadd.f32 %v6259, 0.0036580483
        %v6261 = vmul.f32 %v6256, %v6260
        %v6262 = vadd.f32 %v6261, 0.05243302
        %v6263 = vmul.f32 %v6256, %v6262
        %v6264 = vadd.f32 %v6263, 0.18741608
        %v6265 = vmul.f32 %v6256, %v6264
        %v6266 = vadd.f32 %v6265, 1.1283791
        %v6267 = vmul.f32 %v3620, %v6266
        %v6268 = vmul.f32 %v6256, 3.8918573e-05
        %v6269 = vadd.f32 %v6268, 0.001143296
        %v6270 = vmul.f32 %v6256, %v6269
        %v6271 = vadd.f32 %v6270, 0.014752088
        %v6272 = vmul.f32 %v6256, %v6271
        %v6273 = vadd.f32 %v6272, 0.112945676
        %v6274 = vmul.f32 %v6256, %v6273
        %v6275 = vadd.f32 %v6274, 0.4994258
        %v6276 = vmul.f32 %v6256, %v6275
        %v6277 = vadd.f32 %v6276, 1.0
        %v6278 = vrcp.pop %v6277
        %v6279 = vmul.f32 %v6277, %v6278
        %v6280 = vsub.f32 1.0, %v6279
        %v6281 = vmul.f32 %v6278, %v6280
        %v6282 = vadd.f32 %v6278, %v6281
        %vm6283 = vweird.f32 %v6277
        %vm6284 = vweird.f32 %v6278
        %vm6285 = vmor %vm6283, %vm6284
        %v6286 = vsel %vm6285, %v6278, %v6282
        %v6287 = vand.u32 2147483647, %v6277
        %vm6288 = vcmp.eq.f32.partialorder %v6287, 8.507059e+37
        %v6289 = vand.u32 %v6277, 2147483648
        %v6290 = vor.u32 1.1754944e-38, %v6289
        %v6291 = vsel %vm6288, %v6290, %v6286
        %v6292 = vmul.f32 %v6267, %v6291
        %v6293 = vmin.f32 %v6292, 1.0
        %v6294 = vmax.f32 %v6293, -1.0
        %v6295 = vmul.f32 %v3621, %v3621
        %v6296 = vmin.f32 16.0, %v6295
        %v6297 = vmul.f32 %v6296, 2.1237322e-06
        %v6298 = vadd.f32 %v6297, 0.00028619796
        %v6299 = vmul.f32 %v6296, %v6298
        %v6300 = vadd.f32 %v6299, 0.0036580483
        %v6301 = vmul.f32 %v6296, %v6300
        %v6302 = vadd.f32 %v6301, 0.05243302
        %v6303 = vmul.f32 %v6296, %v6302
        %v6304 = vadd.f32 %v6303, 0.18741608
        %v6305 = vmul.f32 %v6296, %v6304
        %v6306 = vadd.f32 %v6305, 1.1283791
        %v6307 = vmul.f32 %v3621, %v6306
        %v6308 = vmul.f32 %v6296, 3.8918573e-05
        %v6309 = vadd.f32 %v6308, 0.001143296
        %v6310 = vmul.f32 %v6296, %v6309
        %v6311 = vadd.f32 %v6310, 0.014752088
        %v6312 = vmul.f32 %v6296, %v6311
        %v6313 = vadd.f32 %v6312, 0.112945676
        %v6314 = vmul.f32 %v6296, %v6313
        %v6315 = vadd.f32 %v6314, 0.4994258
        %v6316 = vmul.f32 %v6296, %v6315
        %v6317 = vadd.f32 %v6316, 1.0
        %v6318 = vrcp.pop %v6317
        %v6319 = vmul.f32 %v6317, %v6318
        %v6320 = vsub.f32 1.0, %v6319
        %v6321 = vmul.f32 %v6318, %v6320
        %v6322 = vadd.f32 %v6318, %v6321
        %vm6323 = vweird.f32 %v6317
        %vm6324 = vweird.f32 %v6318
        %vm6325 = vmor %vm6323, %vm6324
        %v6326 = vsel %vm6325, %v6318, %v6322
        %v6327 = vand.u32 2147483647, %v6317
        %vm6328 = vcmp.eq.f32.partialorder %v6327, 8.507059e+37
        %v6329 = vand.u32 %v6317, 2147483648
        %v6330 = vor.u32 1.1754944e-38, %v6329
        %v6331 = vsel %vm6328, %v6330, %v6326
        %v6332 = vmul.f32 %v6307, %v6331
        %v6333 = vmin.f32 %v6332, 1.0
        %v6334 = vmax.f32 %v6333, -1.0
        %v6335 = vmul.f32 %v3622, %v3622
        %v6336 = vmin.f32 16.0, %v6335
        %v6337 = vmul.f32 %v6336, 2.1237322e-06
        %v6338 = vadd.f32 %v6337, 0.00028619796
        %v6339 = vmul.f32 %v6336, %v6338
        %v6340 = vadd.f32 %v6339, 0.0036580483
        %v6341 = vmul.f32 %v6336, %v6340
        %v6342 = vadd.f32 %v6341, 0.05243302
        %v6343 = vmul.f32 %v6336, %v6342
        %v6344 = vadd.f32 %v6343, 0.18741608
        %v6345 = vmul.f32 %v6336, %v6344
        %v6346 = vadd.f32 %v6345, 1.1283791
        %v6347 = vmul.f32 %v3622, %v6346
        %v6348 = vmul.f32 %v6336, 3.8918573e-05
        %v6349 = vadd.f32 %v6348, 0.001143296
        %v6350 = vmul.f32 %v6336, %v6349
        %v6351 = vadd.f32 %v6350, 0.014752088
        %v6352 = vmul.f32 %v6336, %v6351
        %v6353 = vadd.f32 %v6352, 0.112945676
        %v6354 = vmul.f32 %v6336, %v6353
        %v6355 = vadd.f32 %v6354, 0.4994258
        %v6356 = vmul.f32 %v6336, %v6355
        %v6357 = vadd.f32 %v6356, 1.0
        %v6358 = vrcp.pop %v6357
        %v6359 = vmul.f32 %v6357, %v6358
        %v6360 = vsub.f32 1.0, %v6359
        %v6361 = vmul.f32 %v6358, %v6360
        %v6362 = vadd.f32 %v6358, %v6361
        %vm6363 = vweird.f32 %v6357
        %vm6364 = vweird.f32 %v6358
        %vm6365 = vmor %vm6363, %vm6364
        %v6366 = vsel %vm6365, %v6358, %v6362
        %v6367 = vand.u32 2147483647, %v6357
        %vm6368 = vcmp.eq.f32.partialorder %v6367, 8.507059e+37
        %v6369 = vand.u32 %v6357, 2147483648
        %v6370 = vor.u32 1.1754944e-38, %v6369
        %v6371 = vsel %vm6368, %v6370, %v6366
        %v6372 = vmul.f32 %v6347, %v6371
        %v6373 = vmin.f32 %v6372, 1.0
        %v6374 = vmax.f32 %v6373, -1.0
        %v6375 = vmul.f32 %v3623, %v3623
        %v6376 = vmin.f32 16.0, %v6375
        %v6377 = vmul.f32 %v6376, 2.1237322e-06
        %v6378 = vadd.f32 %v6377, 0.00028619796
        %v6379 = vmul.f32 %v6376, %v6378
        %v6380 = vadd.f32 %v6379, 0.0036580483
        %v6381 = vmul.f32 %v6376, %v6380
        %v6382 = vadd.f32 %v6381, 0.05243302
        %v6383 = vmul.f32 %v6376, %v6382
        %v6384 = vadd.f32 %v6383, 0.18741608
        %v6385 = vmul.f32 %v6376, %v6384
        %v6386 = vadd.f32 %v6385, 1.1283791
        %v6387 = vmul.f32 %v3623, %v6386
        %v6388 = vmul.f32 %v6376, 3.8918573e-05
        %v6389 = vadd.f32 %v6388, 0.001143296
        %v6390 = vmul.f32 %v6376, %v6389
        %v6391 = vadd.f32 %v6390, 0.014752088
        %v6392 = vmul.f32 %v6376, %v6391
        %v6393 = vadd.f32 %v6392, 0.112945676
        %v6394 = vmul.f32 %v6376, %v6393
        %v6395 = vadd.f32 %v6394, 0.4994258
        %v6396 = vmul.f32 %v6376, %v6395
        %v6397 = vadd.f32 %v6396, 1.0
        %v6398 = vrcp.pop %v6397
        %v6399 = vmul.f32 %v6397, %v6398
        %v6400 = vsub.f32 1.0, %v6399
        %v6401 = vmul.f32 %v6398, %v6400
        %v6402 = vadd.f32 %v6398, %v6401
        %vm6403 = vweird.f32 %v6397
        %vm6404 = vweird.f32 %v6398
        %vm6405 = vmor %vm6403, %vm6404
        %v6406 = vsel %vm6405, %v6398, %v6402
        %v6407 = vand.u32 2147483647, %v6397
        %vm6408 = vcmp.eq.f32.partialorder %v6407, 8.507059e+37
        %v6409 = vand.u32 %v6397, 2147483648
        %v6410 = vor.u32 1.1754944e-38, %v6409
        %v6411 = vsel %vm6408, %v6410, %v6406
        %v6412 = vmul.f32 %v6387, %v6411
        %v6413 = vmin.f32 %v6412, 1.0
        %v6414 = vmax.f32 %v6413, -1.0
        %v6415 = vmul.f32 %v3624, %v3624
        %v6416 = vmin.f32 16.0, %v6415
        %v6417 = vmul.f32 %v6416, 2.1237322e-06
        %v6418 = vadd.f32 %v6417, 0.00028619796
        %v6419 = vmul.f32 %v6416, %v6418
        %v6420 = vadd.f32 %v6419, 0.0036580483
        %v6421 = vmul.f32 %v6416, %v6420
        %v6422 = vadd.f32 %v6421, 0.05243302
        %v6423 = vmul.f32 %v6416, %v6422
        %v6424 = vadd.f32 %v6423, 0.18741608
        %v6425 = vmul.f32 %v6416, %v6424
        %v6426 = vadd.f32 %v6425, 1.1283791
        %v6427 = vmul.f32 %v3624, %v6426
        %v6428 = vmul.f32 %v6416, 3.8918573e-05
        %v6429 = vadd.f32 %v6428, 0.001143296
        %v6430 = vmul.f32 %v6416, %v6429
        %v6431 = vadd.f32 %v6430, 0.014752088
        %v6432 = vmul.f32 %v6416, %v6431
        %v6433 = vadd.f32 %v6432, 0.112945676
        %v6434 = vmul.f32 %v6416, %v6433
        %v6435 = vadd.f32 %v6434, 0.4994258
        %v6436 = vmul.f32 %v6416, %v6435
        %v6437 = vadd.f32 %v6436, 1.0
        %v6438 = vrcp.pop %v6437
        %v6439 = vmul.f32 %v6437, %v6438
        %v6440 = vsub.f32 1.0, %v6439
        %v6441 = vmul.f32 %v6438, %v6440
        %v6442 = vadd.f32 %v6438, %v6441
        %vm6443 = vweird.f32 %v6437
        %vm6444 = vweird.f32 %v6438
        %vm6445 = vmor %vm6443, %vm6444
        %v6446 = vsel %vm6445, %v6438, %v6442
        %v6447 = vand.u32 2147483647, %v6437
        %vm6448 = vcmp.eq.f32.partialorder %v6447, 8.507059e+37
        %v6449 = vand.u32 %v6437, 2147483648
        %v6450 = vor.u32 1.1754944e-38, %v6449
        %v6451 = vsel %vm6448, %v6450, %v6446
        %v6452 = vmul.f32 %v6427, %v6451
        %v6453 = vmin.f32 %v6452, 1.0
        %v6454 = vmax.f32 %v6453, -1.0
        %v6455 = vmul.f32 %v3625, %v3625
        %v6456 = vmin.f32 16.0, %v6455
        %v6457 = vmul.f32 %v6456, 2.1237322e-06
        %v6458 = vadd.f32 %v6457, 0.00028619796
        %v6459 = vmul.f32 %v6456, %v6458
        %v6460 = vadd.f32 %v6459, 0.0036580483
        %v6461 = vmul.f32 %v6456, %v6460
        %v6462 = vadd.f32 %v6461, 0.05243302
        %v6463 = vmul.f32 %v6456, %v6462
        %v6464 = vadd.f32 %v6463, 0.18741608
        %v6465 = vmul.f32 %v6456, %v6464
        %v6466 = vadd.f32 %v6465, 1.1283791
        %v6467 = vmul.f32 %v3625, %v6466
        %v6468 = vmul.f32 %v6456, 3.8918573e-05
        %v6469 = vadd.f32 %v6468, 0.001143296
        %v6470 = vmul.f32 %v6456, %v6469
        %v6471 = vadd.f32 %v6470, 0.014752088
        %v6472 = vmul.f32 %v6456, %v6471
        %v6473 = vadd.f32 %v6472, 0.112945676
        %v6474 = vmul.f32 %v6456, %v6473
        %v6475 = vadd.f32 %v6474, 0.4994258
        %v6476 = vmul.f32 %v6456, %v6475
        %v6477 = vadd.f32 %v6476, 1.0
        %v6478 = vrcp.pop %v6477
        %v6479 = vmul.f32 %v6477, %v6478
        %v6480 = vsub.f32 1.0, %v6479
        %v6481 = vmul.f32 %v6478, %v6480
        %v6482 = vadd.f32 %v6478, %v6481
        %vm6483 = vweird.f32 %v6477
        %vm6484 = vweird.f32 %v6478
        %vm6485 = vmor %vm6483, %vm6484
        %v6486 = vsel %vm6485, %v6478, %v6482
        %v6487 = vand.u32 2147483647, %v6477
        %vm6488 = vcmp.eq.f32.partialorder %v6487, 8.507059e+37
        %v6489 = vand.u32 %v6477, 2147483648
        %v6490 = vor.u32 1.1754944e-38, %v6489
        %v6491 = vsel %vm6488, %v6490, %v6486
        %v6492 = vmul.f32 %v6467, %v6491
        %v6493 = vmin.f32 %v6492, 1.0
        %v6494 = vmax.f32 %v6493, -1.0
        %v6495 = vmul.f32 %v3626, %v3626
        %v6496 = vmin.f32 16.0, %v6495
        %v6497 = vmul.f32 %v6496, 2.1237322e-06
        %v6498 = vadd.f32 %v6497, 0.00028619796
        %v6499 = vmul.f32 %v6496, %v6498
        %v6500 = vadd.f32 %v6499, 0.0036580483
        %v6501 = vmul.f32 %v6496, %v6500
        %v6502 = vadd.f32 %v6501, 0.05243302
        %v6503 = vmul.f32 %v6496, %v6502
        %v6504 = vadd.f32 %v6503, 0.18741608
        %v6505 = vmul.f32 %v6496, %v6504
        %v6506 = vadd.f32 %v6505, 1.1283791
        %v6507 = vmul.f32 %v3626, %v6506
        %v6508 = vmul.f32 %v6496, 3.8918573e-05
        %v6509 = vadd.f32 %v6508, 0.001143296
        %v6510 = vmul.f32 %v6496, %v6509
        %v6511 = vadd.f32 %v6510, 0.014752088
        %v6512 = vmul.f32 %v6496, %v6511
        %v6513 = vadd.f32 %v6512, 0.112945676
        %v6514 = vmul.f32 %v6496, %v6513
        %v6515 = vadd.f32 %v6514, 0.4994258
        %v6516 = vmul.f32 %v6496, %v6515
        %v6517 = vadd.f32 %v6516, 1.0
        %v6518 = vrcp.pop %v6517
        %v6519 = vmul.f32 %v6517, %v6518
        %v6520 = vsub.f32 1.0, %v6519
        %v6521 = vmul.f32 %v6518, %v6520
        %v6522 = vadd.f32 %v6518, %v6521
        %vm6523 = vweird.f32 %v6517
        %vm6524 = vweird.f32 %v6518
        %vm6525 = vmor %vm6523, %vm6524
        %v6526 = vsel %vm6525, %v6518, %v6522
        %v6527 = vand.u32 2147483647, %v6517
        %vm6528 = vcmp.eq.f32.partialorder %v6527, 8.507059e+37
        %v6529 = vand.u32 %v6517, 2147483648
        %v6530 = vor.u32 1.1754944e-38, %v6529
        %v6531 = vsel %vm6528, %v6530, %v6526
        %v6532 = vmul.f32 %v6507, %v6531
        %v6533 = vmin.f32 %v6532, 1.0
        %v6534 = vmax.f32 %v6533, -1.0
        %v6535 = vmul.f32 %v3627, %v3627
        %v6536 = vmin.f32 16.0, %v6535
        %v6537 = vmul.f32 %v6536, 2.1237322e-06
        %v6538 = vadd.f32 %v6537, 0.00028619796
        %v6539 = vmul.f32 %v6536, %v6538
        %v6540 = vadd.f32 %v6539, 0.0036580483
        %v6541 = vmul.f32 %v6536, %v6540
        %v6542 = vadd.f32 %v6541, 0.05243302
        %v6543 = vmul.f32 %v6536, %v6542
        %v6544 = vadd.f32 %v6543, 0.18741608
        %v6545 = vmul.f32 %v6536, %v6544
        %v6546 = vadd.f32 %v6545, 1.1283791
        %v6547 = vmul.f32 %v3627, %v6546
        %v6548 = vmul.f32 %v6536, 3.8918573e-05
        %v6549 = vadd.f32 %v6548, 0.001143296
        %v6550 = vmul.f32 %v6536, %v6549
        %v6551 = vadd.f32 %v6550, 0.014752088
        %v6552 = vmul.f32 %v6536, %v6551
        %v6553 = vadd.f32 %v6552, 0.112945676
        %v6554 = vmul.f32 %v6536, %v6553
        %v6555 = vadd.f32 %v6554, 0.4994258
        %v6556 = vmul.f32 %v6536, %v6555
        %v6557 = vadd.f32 %v6556, 1.0
        %v6558 = vrcp.pop %v6557
        %v6559 = vmul.f32 %v6557, %v6558
        %v6560 = vsub.f32 1.0, %v6559
        %v6561 = vmul.f32 %v6558, %v6560
        %v6562 = vadd.f32 %v6558, %v6561
        %vm6563 = vweird.f32 %v6557
        %vm6564 = vweird.f32 %v6558
        %vm6565 = vmor %vm6563, %vm6564
        %v6566 = vsel %vm6565, %v6558, %v6562
        %v6567 = vand.u32 2147483647, %v6557
        %vm6568 = vcmp.eq.f32.partialorder %v6567, 8.507059e+37
        %v6569 = vand.u32 %v6557, 2147483648
        %v6570 = vor.u32 1.1754944e-38, %v6569
        %v6571 = vsel %vm6568, %v6570, %v6566
        %v6572 = vmul.f32 %v6547, %v6571
        %v6573 = vmin.f32 %v6572, 1.0
        %v6574 = vmax.f32 %v6573, -1.0
        %v6575 = vmul.f32 %v3628, %v3628
        %v6576 = vmin.f32 16.0, %v6575
        %v6577 = vmul.f32 %v6576, 2.1237322e-06
        %v6578 = vadd.f32 %v6577, 0.00028619796
        %v6579 = vmul.f32 %v6576, %v6578
        %v6580 = vadd.f32 %v6579, 0.0036580483
        %v6581 = vmul.f32 %v6576, %v6580
        %v6582 = vadd.f32 %v6581, 0.05243302
        %v6583 = vmul.f32 %v6576, %v6582
        %v6584 = vadd.f32 %v6583, 0.18741608
        %v6585 = vmul.f32 %v6576, %v6584
        %v6586 = vadd.f32 %v6585, 1.1283791
        %v6587 = vmul.f32 %v3628, %v6586
        %v6588 = vmul.f32 %v6576, 3.8918573e-05
        %v6589 = vadd.f32 %v6588, 0.001143296
        %v6590 = vmul.f32 %v6576, %v6589
        %v6591 = vadd.f32 %v6590, 0.014752088
        %v6592 = vmul.f32 %v6576, %v6591
        %v6593 = vadd.f32 %v6592, 0.112945676
        %v6594 = vmul.f32 %v6576, %v6593
        %v6595 = vadd.f32 %v6594, 0.4994258
        %v6596 = vmul.f32 %v6576, %v6595
        %v6597 = vadd.f32 %v6596, 1.0
        %v6598 = vrcp.pop %v6597
        %v6599 = vmul.f32 %v6597, %v6598
        %v6600 = vsub.f32 1.0, %v6599
        %v6601 = vmul.f32 %v6598, %v6600
        %v6602 = vadd.f32 %v6598, %v6601
        %vm6603 = vweird.f32 %v6597
        %vm6604 = vweird.f32 %v6598
        %vm6605 = vmor %vm6603, %vm6604
        %v6606 = vsel %vm6605, %v6598, %v6602
        %v6607 = vand.u32 2147483647, %v6597
        %vm6608 = vcmp.eq.f32.partialorder %v6607, 8.507059e+37
        %v6609 = vand.u32 %v6597, 2147483648
        %v6610 = vor.u32 1.1754944e-38, %v6609
        %v6611 = vsel %vm6608, %v6610, %v6606
        %v6612 = vmul.f32 %v6587, %v6611
        %v6613 = vmin.f32 %v6612, 1.0
        %v6614 = vmax.f32 %v6613, -1.0
        %v6615 = vmul.f32 %v3629, %v3629
        %v6616 = vmin.f32 16.0, %v6615
        %v6617 = vmul.f32 %v6616, 2.1237322e-06
        %v6618 = vadd.f32 %v6617, 0.00028619796
        %v6619 = vmul.f32 %v6616, %v6618
        %v6620 = vadd.f32 %v6619, 0.0036580483
        %v6621 = vmul.f32 %v6616, %v6620
        %v6622 = vadd.f32 %v6621, 0.05243302
        %v6623 = vmul.f32 %v6616, %v6622
        %v6624 = vadd.f32 %v6623, 0.18741608
        %v6625 = vmul.f32 %v6616, %v6624
        %v6626 = vadd.f32 %v6625, 1.1283791
        %v6627 = vmul.f32 %v3629, %v6626
        %v6628 = vmul.f32 %v6616, 3.8918573e-05
        %v6629 = vadd.f32 %v6628, 0.001143296
        %v6630 = vmul.f32 %v6616, %v6629
        %v6631 = vadd.f32 %v6630, 0.014752088
        %v6632 = vmul.f32 %v6616, %v6631
        %v6633 = vadd.f32 %v6632, 0.112945676
        %v6634 = vmul.f32 %v6616, %v6633
        %v6635 = vadd.f32 %v6634, 0.4994258
        %v6636 = vmul.f32 %v6616, %v6635
        %v6637 = vadd.f32 %v6636, 1.0
        %v6638 = vrcp.pop %v6637
        %v6639 = vmul.f32 %v6637, %v6638
        %v6640 = vsub.f32 1.0, %v6639
        %v6641 = vmul.f32 %v6638, %v6640
        %v6642 = vadd.f32 %v6638, %v6641
        %vm6643 = vweird.f32 %v6637
        %vm6644 = vweird.f32 %v6638
        %vm6645 = vmor %vm6643, %vm6644
        %v6646 = vsel %vm6645, %v6638, %v6642
        %v6647 = vand.u32 2147483647, %v6637
        %vm6648 = vcmp.eq.f32.partialorder %v6647, 8.507059e+37
        %v6649 = vand.u32 %v6637, 2147483648
        %v6650 = vor.u32 1.1754944e-38, %v6649
        %v6651 = vsel %vm6648, %v6650, %v6646
        %v6652 = vmul.f32 %v6627, %v6651
        %v6653 = vmin.f32 %v6652, 1.0
        %v6654 = vmax.f32 %v6653, -1.0
        %v6655 = vmul.f32 %v3630, %v3630
        %v6656 = vmin.f32 16.0, %v6655
        %v6657 = vmul.f32 %v6656, 2.1237322e-06
        %v6658 = vadd.f32 %v6657, 0.00028619796
        %v6659 = vmul.f32 %v6656, %v6658
        %v6660 = vadd.f32 %v6659, 0.0036580483
        %v6661 = vmul.f32 %v6656, %v6660
        %v6662 = vadd.f32 %v6661, 0.05243302
        %v6663 = vmul.f32 %v6656, %v6662
        %v6664 = vadd.f32 %v6663, 0.18741608
        %v6665 = vmul.f32 %v6656, %v6664
        %v6666 = vadd.f32 %v6665, 1.1283791
        %v6667 = vmul.f32 %v3630, %v6666
        %v6668 = vmul.f32 %v6656, 3.8918573e-05
        %v6669 = vadd.f32 %v6668, 0.001143296
        %v6670 = vmul.f32 %v6656, %v6669
        %v6671 = vadd.f32 %v6670, 0.014752088
        %v6672 = vmul.f32 %v6656, %v6671
        %v6673 = vadd.f32 %v6672, 0.112945676
        %v6674 = vmul.f32 %v6656, %v6673
        %v6675 = vadd.f32 %v6674, 0.4994258
        %v6676 = vmul.f32 %v6656, %v6675
        %v6677 = vadd.f32 %v6676, 1.0
        %v6678 = vrcp.pop %v6677
        %v6679 = vmul.f32 %v6677, %v6678
        %v6680 = vsub.f32 1.0, %v6679
        %v6681 = vmul.f32 %v6678, %v6680
        %v6682 = vadd.f32 %v6678, %v6681
        %vm6683 = vweird.f32 %v6677
        %vm6684 = vweird.f32 %v6678
        %vm6685 = vmor %vm6683, %vm6684
        %v6686 = vsel %vm6685, %v6678, %v6682
        %v6687 = vand.u32 2147483647, %v6677
        %vm6688 = vcmp.eq.f32.partialorder %v6687, 8.507059e+37
        %v6689 = vand.u32 %v6677, 2147483648
        %v6690 = vor.u32 1.1754944e-38, %v6689
        %v6691 = vsel %vm6688, %v6690, %v6686
        %v6692 = vmul.f32 %v6667, %v6691
        %v6693 = vmin.f32 %v6692, 1.0
        %v6694 = vmax.f32 %v6693, -1.0
        %v6695 = vmul.f32 %v3631, %v3631
        %v6696 = vmin.f32 16.0, %v6695
        %v6697 = vmul.f32 %v6696, 2.1237322e-06
        %v6698 = vadd.f32 %v6697, 0.00028619796
        %v6699 = vmul.f32 %v6696, %v6698
        %v6700 = vadd.f32 %v6699, 0.0036580483
        %v6701 = vmul.f32 %v6696, %v6700
        %v6702 = vadd.f32 %v6701, 0.05243302
        %v6703 = vmul.f32 %v6696, %v6702
        %v6704 = vadd.f32 %v6703, 0.18741608
        %v6705 = vmul.f32 %v6696, %v6704
        %v6706 = vadd.f32 %v6705, 1.1283791
        %v6707 = vmul.f32 %v3631, %v6706
        %v6708 = vmul.f32 %v6696, 3.8918573e-05
        %v6709 = vadd.f32 %v6708, 0.001143296
        %v6710 = vmul.f32 %v6696, %v6709
        %v6711 = vadd.f32 %v6710, 0.014752088
        %v6712 = vmul.f32 %v6696, %v6711
        %v6713 = vadd.f32 %v6712, 0.112945676
        %v6714 = vmul.f32 %v6696, %v6713
        %v6715 = vadd.f32 %v6714, 0.4994258
        %v6716 = vmul.f32 %v6696, %v6715
        %v6717 = vadd.f32 %v6716, 1.0
        %v6718 = vrcp.pop %v6717
        %v6719 = vmul.f32 %v6717, %v6718
        %v6720 = vsub.f32 1.0, %v6719
        %v6721 = vmul.f32 %v6718, %v6720
        %v6722 = vadd.f32 %v6718, %v6721
        %vm6723 = vweird.f32 %v6717
        %vm6724 = vweird.f32 %v6718
        %vm6725 = vmor %vm6723, %vm6724
        %v6726 = vsel %vm6725, %v6718, %v6722
        %v6727 = vand.u32 2147483647, %v6717
        %vm6728 = vcmp.eq.f32.partialorder %v6727, 8.507059e+37
        %v6729 = vand.u32 %v6717, 2147483648
        %v6730 = vor.u32 1.1754944e-38, %v6729
        %v6731 = vsel %vm6728, %v6730, %v6726
        %v6732 = vmul.f32 %v6707, %v6731
        %v6733 = vmin.f32 %v6732, 1.0
        %v6734 = vmax.f32 %v6733, -1.0
        %v6735 = vmul.f32 %v3632, %v3632
        %v6736 = vmin.f32 16.0, %v6735
        %v6737 = vmul.f32 %v6736, 2.1237322e-06
        %v6738 = vadd.f32 %v6737, 0.00028619796
        %v6739 = vmul.f32 %v6736, %v6738
        %v6740 = vadd.f32 %v6739, 0.0036580483
        %v6741 = vmul.f32 %v6736, %v6740
        %v6742 = vadd.f32 %v6741, 0.05243302
        %v6743 = vmul.f32 %v6736, %v6742
        %v6744 = vadd.f32 %v6743, 0.18741608
        %v6745 = vmul.f32 %v6736, %v6744
        %v6746 = vadd.f32 %v6745, 1.1283791
        %v6747 = vmul.f32 %v3632, %v6746
        %v6748 = vmul.f32 %v6736, 3.8918573e-05
        %v6749 = vadd.f32 %v6748, 0.001143296
        %v6750 = vmul.f32 %v6736, %v6749
        %v6751 = vadd.f32 %v6750, 0.014752088
        %v6752 = vmul.f32 %v6736, %v6751
        %v6753 = vadd.f32 %v6752, 0.112945676
        %v6754 = vmul.f32 %v6736, %v6753
        %v6755 = vadd.f32 %v6754, 0.4994258
        %v6756 = vmul.f32 %v6736, %v6755
        %v6757 = vadd.f32 %v6756, 1.0
        %v6758 = vrcp.pop %v6757
        %v6759 = vmul.f32 %v6757, %v6758
        %v6760 = vsub.f32 1.0, %v6759
        %v6761 = vmul.f32 %v6758, %v6760
        %v6762 = vadd.f32 %v6758, %v6761
        %vm6763 = vweird.f32 %v6757
        %vm6764 = vweird.f32 %v6758
        %vm6765 = vmor %vm6763, %vm6764
        %v6766 = vsel %vm6765, %v6758, %v6762
        %v6767 = vand.u32 2147483647, %v6757
        %vm6768 = vcmp.eq.f32.partialorder %v6767, 8.507059e+37
        %v6769 = vand.u32 %v6757, 2147483648
        %v6770 = vor.u32 1.1754944e-38, %v6769
        %v6771 = vsel %vm6768, %v6770, %v6766
        %v6772 = vmul.f32 %v6747, %v6771
        %v6773 = vmin.f32 %v6772, 1.0
        %v6774 = vmax.f32 %v6773, -1.0
        %v6775 = vmul.f32 %v3633, %v3633
        %v6776 = vmin.f32 16.0, %v6775
        %v6777 = vmul.f32 %v6776, 2.1237322e-06
        %v6778 = vadd.f32 %v6777, 0.00028619796
        %v6779 = vmul.f32 %v6776, %v6778
        %v6780 = vadd.f32 %v6779, 0.0036580483
        %v6781 = vmul.f32 %v6776, %v6780
        %v6782 = vadd.f32 %v6781, 0.05243302
        %v6783 = vmul.f32 %v6776, %v6782
        %v6784 = vadd.f32 %v6783, 0.18741608
        %v6785 = vmul.f32 %v6776, %v6784
        %v6786 = vadd.f32 %v6785, 1.1283791
        %v6787 = vmul.f32 %v3633, %v6786
        %v6788 = vmul.f32 %v6776, 3.8918573e-05
        %v6789 = vadd.f32 %v6788, 0.001143296
        %v6790 = vmul.f32 %v6776, %v6789
        %v6791 = vadd.f32 %v6790, 0.014752088
        %v6792 = vmul.f32 %v6776, %v6791
        %v6793 = vadd.f32 %v6792, 0.112945676
        %v6794 = vmul.f32 %v6776, %v6793
        %v6795 = vadd.f32 %v6794, 0.4994258
        %v6796 = vmul.f32 %v6776, %v6795
        %v6797 = vadd.f32 %v6796, 1.0
        %v6798 = vrcp.pop %v6797
        %v6799 = vmul.f32 %v6797, %v6798
        %v6800 = vsub.f32 1.0, %v6799
        %v6801 = vmul.f32 %v6798, %v6800
        %v6802 = vadd.f32 %v6798, %v6801
        %vm6803 = vweird.f32 %v6797
        %vm6804 = vweird.f32 %v6798
        %vm6805 = vmor %vm6803, %vm6804
        %v6806 = vsel %vm6805, %v6798, %v6802
        %v6807 = vand.u32 2147483647, %v6797
        %vm6808 = vcmp.eq.f32.partialorder %v6807, 8.507059e+37
        %v6809 = vand.u32 %v6797, 2147483648
        %v6810 = vor.u32 1.1754944e-38, %v6809
        %v6811 = vsel %vm6808, %v6810, %v6806
        %v6812 = vmul.f32 %v6787, %v6811
        %v6813 = vmin.f32 %v6812, 1.0
        %v6814 = vmax.f32 %v6813, -1.0
        %v6815 = vmul.f32 %v3634, %v3634
        %v6816 = vmin.f32 16.0, %v6815
        %v6817 = vmul.f32 %v6816, 2.1237322e-06
        %v6818 = vadd.f32 %v6817, 0.00028619796
        %v6819 = vmul.f32 %v6816, %v6818
        %v6820 = vadd.f32 %v6819, 0.0036580483
        %v6821 = vmul.f32 %v6816, %v6820
        %v6822 = vadd.f32 %v6821, 0.05243302
        %v6823 = vmul.f32 %v6816, %v6822
        %v6824 = vadd.f32 %v6823, 0.18741608
        %v6825 = vmul.f32 %v6816, %v6824
        %v6826 = vadd.f32 %v6825, 1.1283791
        %v6827 = vmul.f32 %v3634, %v6826
        %v6828 = vmul.f32 %v6816, 3.8918573e-05
        %v6829 = vadd.f32 %v6828, 0.001143296
        %v6830 = vmul.f32 %v6816, %v6829
        %v6831 = vadd.f32 %v6830, 0.014752088
        %v6832 = vmul.f32 %v6816, %v6831
        %v6833 = vadd.f32 %v6832, 0.112945676
        %v6834 = vmul.f32 %v6816, %v6833
        %v6835 = vadd.f32 %v6834, 0.4994258
        %v6836 = vmul.f32 %v6816, %v6835
        %v6837 = vadd.f32 %v6836, 1.0
        %v6838 = vrcp.pop %v6837
        %v6839 = vmul.f32 %v6837, %v6838
        %v6840 = vsub.f32 1.0, %v6839
        %v6841 = vmul.f32 %v6838, %v6840
        %v6842 = vadd.f32 %v6838, %v6841
        %vm6843 = vweird.f32 %v6837
        %vm6844 = vweird.f32 %v6838
        %vm6845 = vmor %vm6843, %vm6844
        %v6846 = vsel %vm6845, %v6838, %v6842
        %v6847 = vand.u32 2147483647, %v6837
        %vm6848 = vcmp.eq.f32.partialorder %v6847, 8.507059e+37
        %v6849 = vand.u32 %v6837, 2147483648
        %v6850 = vor.u32 1.1754944e-38, %v6849
        %v6851 = vsel %vm6848, %v6850, %v6846
        %v6852 = vmul.f32 %v6827, %v6851
        %v6853 = vmin.f32 %v6852, 1.0
        %v6854 = vmax.f32 %v6853, -1.0
        %v6855 = vmul.f32 %v3635, %v3635
        %v6856 = vmin.f32 16.0, %v6855
        %v6857 = vmul.f32 %v6856, 2.1237322e-06
        %v6858 = vadd.f32 %v6857, 0.00028619796
        %v6859 = vmul.f32 %v6856, %v6858
        %v6860 = vadd.f32 %v6859, 0.0036580483
        %v6861 = vmul.f32 %v6856, %v6860
        %v6862 = vadd.f32 %v6861, 0.05243302
        %v6863 = vmul.f32 %v6856, %v6862
        %v6864 = vadd.f32 %v6863, 0.18741608
        %v6865 = vmul.f32 %v6856, %v6864
        %v6866 = vadd.f32 %v6865, 1.1283791
        %v6867 = vmul.f32 %v3635, %v6866
        %v6868 = vmul.f32 %v6856, 3.8918573e-05
        %v6869 = vadd.f32 %v6868, 0.001143296
        %v6870 = vmul.f32 %v6856, %v6869
        %v6871 = vadd.f32 %v6870, 0.014752088
        %v6872 = vmul.f32 %v6856, %v6871
        %v6873 = vadd.f32 %v6872, 0.112945676
        %v6874 = vmul.f32 %v6856, %v6873
        %v6875 = vadd.f32 %v6874, 0.4994258
        %v6876 = vmul.f32 %v6856, %v6875
        %v6877 = vadd.f32 %v6876, 1.0
        %v6878 = vrcp.pop %v6877
        %v6879 = vmul.f32 %v6877, %v6878
        %v6880 = vsub.f32 1.0, %v6879
        %v6881 = vmul.f32 %v6878, %v6880
        %v6882 = vadd.f32 %v6878, %v6881
        %vm6883 = vweird.f32 %v6877
        %vm6884 = vweird.f32 %v6878
        %vm6885 = vmor %vm6883, %vm6884
        %v6886 = vsel %vm6885, %v6878, %v6882
        %v6887 = vand.u32 2147483647, %v6877
        %vm6888 = vcmp.eq.f32.partialorder %v6887, 8.507059e+37
        %v6889 = vand.u32 %v6877, 2147483648
        %v6890 = vor.u32 1.1754944e-38, %v6889
        %v6891 = vsel %vm6888, %v6890, %v6886
        %v6892 = vmul.f32 %v6867, %v6891
        %v6893 = vmin.f32 %v6892, 1.0
        %v6894 = vmax.f32 %v6893, -1.0
        %v6895 = vmul.f32 %v3636, %v3636
        %v6896 = vmin.f32 16.0, %v6895
        %v6897 = vmul.f32 %v6896, 2.1237322e-06
        %v6898 = vadd.f32 %v6897, 0.00028619796
        %v6899 = vmul.f32 %v6896, %v6898
        %v6900 = vadd.f32 %v6899, 0.0036580483
        %v6901 = vmul.f32 %v6896, %v6900
        %v6902 = vadd.f32 %v6901, 0.05243302
        %v6903 = vmul.f32 %v6896, %v6902
        %v6904 = vadd.f32 %v6903, 0.18741608
        %v6905 = vmul.f32 %v6896, %v6904
        %v6906 = vadd.f32 %v6905, 1.1283791
        %v6907 = vmul.f32 %v3636, %v6906
        %v6908 = vmul.f32 %v6896, 3.8918573e-05
        %v6909 = vadd.f32 %v6908, 0.001143296
        %v6910 = vmul.f32 %v6896, %v6909
        %v6911 = vadd.f32 %v6910, 0.014752088
        %v6912 = vmul.f32 %v6896, %v6911
        %v6913 = vadd.f32 %v6912, 0.112945676
        %v6914 = vmul.f32 %v6896, %v6913
        %v6915 = vadd.f32 %v6914, 0.4994258
        %v6916 = vmul.f32 %v6896, %v6915
        %v6917 = vadd.f32 %v6916, 1.0
        %v6918 = vrcp.pop %v6917
        %v6919 = vmul.f32 %v6917, %v6918
        %v6920 = vsub.f32 1.0, %v6919
        %v6921 = vmul.f32 %v6918, %v6920
        %v6922 = vadd.f32 %v6918, %v6921
        %vm6923 = vweird.f32 %v6917
        %vm6924 = vweird.f32 %v6918
        %vm6925 = vmor %vm6923, %vm6924
        %v6926 = vsel %vm6925, %v6918, %v6922
        %v6927 = vand.u32 2147483647, %v6917
        %vm6928 = vcmp.eq.f32.partialorder %v6927, 8.507059e+37
        %v6929 = vand.u32 %v6917, 2147483648
        %v6930 = vor.u32 1.1754944e-38, %v6929
        %v6931 = vsel %vm6928, %v6930, %v6926
        %v6932 = vmul.f32 %v6907, %v6931
        %v6933 = vmin.f32 %v6932, 1.0
        %v6934 = vmax.f32 %v6933, -1.0
        %v6935 = vmul.f32 %v3637, %v3637
        %v6936 = vmin.f32 16.0, %v6935
        %v6937 = vmul.f32 %v6936, 2.1237322e-06
        %v6938 = vadd.f32 %v6937, 0.00028619796
        %v6939 = vmul.f32 %v6936, %v6938
        %v6940 = vadd.f32 %v6939, 0.0036580483
        %v6941 = vmul.f32 %v6936, %v6940
        %v6942 = vadd.f32 %v6941, 0.05243302
        %v6943 = vmul.f32 %v6936, %v6942
        %v6944 = vadd.f32 %v6943, 0.18741608
        %v6945 = vmul.f32 %v6936, %v6944
        %v6946 = vadd.f32 %v6945, 1.1283791
        %v6947 = vmul.f32 %v3637, %v6946
        %v6948 = vmul.f32 %v6936, 3.8918573e-05
        %v6949 = vadd.f32 %v6948, 0.001143296
        %v6950 = vmul.f32 %v6936, %v6949
        %v6951 = vadd.f32 %v6950, 0.014752088
        %v6952 = vmul.f32 %v6936, %v6951
        %v6953 = vadd.f32 %v6952, 0.112945676
        %v6954 = vmul.f32 %v6936, %v6953
        %v6955 = vadd.f32 %v6954, 0.4994258
        %v6956 = vmul.f32 %v6936, %v6955
        %v6957 = vadd.f32 %v6956, 1.0
        %v6958 = vrcp.pop %v6957
        %v6959 = vmul.f32 %v6957, %v6958
        %v6960 = vsub.f32 1.0, %v6959
        %v6961 = vmul.f32 %v6958, %v6960
        %v6962 = vadd.f32 %v6958, %v6961
        %vm6963 = vweird.f32 %v6957
        %vm6964 = vweird.f32 %v6958
        %vm6965 = vmor %vm6963, %vm6964
        %v6966 = vsel %vm6965, %v6958, %v6962
        %v6967 = vand.u32 2147483647, %v6957
        %vm6968 = vcmp.eq.f32.partialorder %v6967, 8.507059e+37
        %v6969 = vand.u32 %v6957, 2147483648
        %v6970 = vor.u32 1.1754944e-38, %v6969
        %v6971 = vsel %vm6968, %v6970, %v6966
        %v6972 = vmul.f32 %v6947, %v6971
        %v6973 = vmin.f32 %v6972, 1.0
        %v6974 = vmax.f32 %v6973, -1.0
        %v6975 = vmul.f32 %v3638, %v3638
        %v6976 = vmin.f32 16.0, %v6975
        %v6977 = vmul.f32 %v6976, 2.1237322e-06
        %v6978 = vadd.f32 %v6977, 0.00028619796
        %v6979 = vmul.f32 %v6976, %v6978
        %v6980 = vadd.f32 %v6979, 0.0036580483
        %v6981 = vmul.f32 %v6976, %v6980
        %v6982 = vadd.f32 %v6981, 0.05243302
        %v6983 = vmul.f32 %v6976, %v6982
        %v6984 = vadd.f32 %v6983, 0.18741608
        %v6985 = vmul.f32 %v6976, %v6984
        %v6986 = vadd.f32 %v6985, 1.1283791
        %v6987 = vmul.f32 %v3638, %v6986
        %v6988 = vmul.f32 %v6976, 3.8918573e-05
        %v6989 = vadd.f32 %v6988, 0.001143296
        %v6990 = vmul.f32 %v6976, %v6989
        %v6991 = vadd.f32 %v6990, 0.014752088
        %v6992 = vmul.f32 %v6976, %v6991
        %v6993 = vadd.f32 %v6992, 0.112945676
        %v6994 = vmul.f32 %v6976, %v6993
        %v6995 = vadd.f32 %v6994, 0.4994258
        %v6996 = vmul.f32 %v6976, %v6995
        %v6997 = vadd.f32 %v6996, 1.0
        %v6998 = vrcp.pop %v6997
        %v6999 = vmul.f32 %v6997, %v6998
        %v7000 = vsub.f32 1.0, %v6999
        %v7001 = vmul.f32 %v6998, %v7000
        %v7002 = vadd.f32 %v6998, %v7001
        %vm7003 = vweird.f32 %v6997
        %vm7004 = vweird.f32 %v6998
        %vm7005 = vmor %vm7003, %vm7004
        %v7006 = vsel %vm7005, %v6998, %v7002
        %v7007 = vand.u32 2147483647, %v6997
        %vm7008 = vcmp.eq.f32.partialorder %v7007, 8.507059e+37
        %v7009 = vand.u32 %v6997, 2147483648
        %v7010 = vor.u32 1.1754944e-38, %v7009
        %v7011 = vsel %vm7008, %v7010, %v7006
        %v7012 = vmul.f32 %v6987, %v7011
        %v7013 = vmin.f32 %v7012, 1.0
        %v7014 = vmax.f32 %v7013, -1.0
        %v7015 = vmul.f32 %v3639, %v3639
        %v7016 = vmin.f32 16.0, %v7015
        %v7017 = vmul.f32 %v7016, 2.1237322e-06
        %v7018 = vadd.f32 %v7017, 0.00028619796
        %v7019 = vmul.f32 %v7016, %v7018
        %v7020 = vadd.f32 %v7019, 0.0036580483
        %v7021 = vmul.f32 %v7016, %v7020
        %v7022 = vadd.f32 %v7021, 0.05243302
        %v7023 = vmul.f32 %v7016, %v7022
        %v7024 = vadd.f32 %v7023, 0.18741608
        %v7025 = vmul.f32 %v7016, %v7024
        %v7026 = vadd.f32 %v7025, 1.1283791
        %v7027 = vmul.f32 %v3639, %v7026
        %v7028 = vmul.f32 %v7016, 3.8918573e-05
        %v7029 = vadd.f32 %v7028, 0.001143296
        %v7030 = vmul.f32 %v7016, %v7029
        %v7031 = vadd.f32 %v7030, 0.014752088
        %v7032 = vmul.f32 %v7016, %v7031
        %v7033 = vadd.f32 %v7032, 0.112945676
        %v7034 = vmul.f32 %v7016, %v7033
        %v7035 = vadd.f32 %v7034, 0.4994258
        %v7036 = vmul.f32 %v7016, %v7035
        %v7037 = vadd.f32 %v7036, 1.0
        %v7038 = vrcp.pop %v7037
        %v7039 = vmul.f32 %v7037, %v7038
        %v7040 = vsub.f32 1.0, %v7039
        %v7041 = vmul.f32 %v7038, %v7040
        %v7042 = vadd.f32 %v7038, %v7041
        %vm7043 = vweird.f32 %v7037
        %vm7044 = vweird.f32 %v7038
        %vm7045 = vmor %vm7043, %vm7044
        %v7046 = vsel %vm7045, %v7038, %v7042
        %v7047 = vand.u32 2147483647, %v7037
        %vm7048 = vcmp.eq.f32.partialorder %v7047, 8.507059e+37
        %v7049 = vand.u32 %v7037, 2147483648
        %v7050 = vor.u32 1.1754944e-38, %v7049
        %v7051 = vsel %vm7048, %v7050, %v7046
        %v7052 = vmul.f32 %v7027, %v7051
        %v7053 = vmin.f32 %v7052, 1.0
        %v7054 = vmax.f32 %v7053, -1.0
        %v7055 = vmul.f32 %v3640, %v3640
        %v7056 = vmin.f32 16.0, %v7055
        %v7057 = vmul.f32 %v7056, 2.1237322e-06
        %v7058 = vadd.f32 %v7057, 0.00028619796
        %v7059 = vmul.f32 %v7056, %v7058
        %v7060 = vadd.f32 %v7059, 0.0036580483
        %v7061 = vmul.f32 %v7056, %v7060
        %v7062 = vadd.f32 %v7061, 0.05243302
        %v7063 = vmul.f32 %v7056, %v7062
        %v7064 = vadd.f32 %v7063, 0.18741608
        %v7065 = vmul.f32 %v7056, %v7064
        %v7066 = vadd.f32 %v7065, 1.1283791
        %v7067 = vmul.f32 %v3640, %v7066
        %v7068 = vmul.f32 %v7056, 3.8918573e-05
        %v7069 = vadd.f32 %v7068, 0.001143296
        %v7070 = vmul.f32 %v7056, %v7069
        %v7071 = vadd.f32 %v7070, 0.014752088
        %v7072 = vmul.f32 %v7056, %v7071
        %v7073 = vadd.f32 %v7072, 0.112945676
        %v7074 = vmul.f32 %v7056, %v7073
        %v7075 = vadd.f32 %v7074, 0.4994258
        %v7076 = vmul.f32 %v7056, %v7075
        %v7077 = vadd.f32 %v7076, 1.0
        %v7078 = vrcp.pop %v7077
        %v7079 = vmul.f32 %v7077, %v7078
        %v7080 = vsub.f32 1.0, %v7079
        %v7081 = vmul.f32 %v7078, %v7080
        %v7082 = vadd.f32 %v7078, %v7081
        %vm7083 = vweird.f32 %v7077
        %vm7084 = vweird.f32 %v7078
        %vm7085 = vmor %vm7083, %vm7084
        %v7086 = vsel %vm7085, %v7078, %v7082
        %v7087 = vand.u32 2147483647, %v7077
        %vm7088 = vcmp.eq.f32.partialorder %v7087, 8.507059e+37
        %v7089 = vand.u32 %v7077, 2147483648
        %v7090 = vor.u32 1.1754944e-38, %v7089
        %v7091 = vsel %vm7088, %v7090, %v7086
        %v7092 = vmul.f32 %v7067, %v7091
        %v7093 = vmin.f32 %v7092, 1.0
        %v7094 = vmax.f32 %v7093, -1.0
        %v7095 = vmul.f32 %v3641, %v3641
        %v7096 = vmin.f32 16.0, %v7095
        %v7097 = vmul.f32 %v7096, 2.1237322e-06
        %v7098 = vadd.f32 %v7097, 0.00028619796
        %v7099 = vmul.f32 %v7096, %v7098
        %v7100 = vadd.f32 %v7099, 0.0036580483
        %v7101 = vmul.f32 %v7096, %v7100
        %v7102 = vadd.f32 %v7101, 0.05243302
        %v7103 = vmul.f32 %v7096, %v7102
        %v7104 = vadd.f32 %v7103, 0.18741608
        %v7105 = vmul.f32 %v7096, %v7104
        %v7106 = vadd.f32 %v7105, 1.1283791
        %v7107 = vmul.f32 %v3641, %v7106
        %v7108 = vmul.f32 %v7096, 3.8918573e-05
        %v7109 = vadd.f32 %v7108, 0.001143296
        %v7110 = vmul.f32 %v7096, %v7109
        %v7111 = vadd.f32 %v7110, 0.014752088
        %v7112 = vmul.f32 %v7096, %v7111
        %v7113 = vadd.f32 %v7112, 0.112945676
        %v7114 = vmul.f32 %v7096, %v7113
        %v7115 = vadd.f32 %v7114, 0.4994258
        %v7116 = vmul.f32 %v7096, %v7115
        %v7117 = vadd.f32 %v7116, 1.0
        %v7118 = vrcp.pop %v7117
        %v7119 = vmul.f32 %v7117, %v7118
        %v7120 = vsub.f32 1.0, %v7119
        %v7121 = vmul.f32 %v7118, %v7120
        %v7122 = vadd.f32 %v7118, %v7121
        %vm7123 = vweird.f32 %v7117
        %vm7124 = vweird.f32 %v7118
        %vm7125 = vmor %vm7123, %vm7124
        %v7126 = vsel %vm7125, %v7118, %v7122
        %v7127 = vand.u32 2147483647, %v7117
        %vm7128 = vcmp.eq.f32.partialorder %v7127, 8.507059e+37
        %v7129 = vand.u32 %v7117, 2147483648
        %v7130 = vor.u32 1.1754944e-38, %v7129
        %v7131 = vsel %vm7128, %v7130, %v7126
        %v7132 = vmul.f32 %v7107, %v7131
        %v7133 = vmin.f32 %v7132, 1.0
        %v7134 = vmax.f32 %v7133, -1.0
        %v7135 = vmul.f32 %v3642, %v3642
        %v7136 = vmin.f32 16.0, %v7135
        %v7137 = vmul.f32 %v7136, 2.1237322e-06
        %v7138 = vadd.f32 %v7137, 0.00028619796
        %v7139 = vmul.f32 %v7136, %v7138
        %v7140 = vadd.f32 %v7139, 0.0036580483
        %v7141 = vmul.f32 %v7136, %v7140
        %v7142 = vadd.f32 %v7141, 0.05243302
        %v7143 = vmul.f32 %v7136, %v7142
        %v7144 = vadd.f32 %v7143, 0.18741608
        %v7145 = vmul.f32 %v7136, %v7144
        %v7146 = vadd.f32 %v7145, 1.1283791
        %v7147 = vmul.f32 %v3642, %v7146
        %v7148 = vmul.f32 %v7136, 3.8918573e-05
        %v7149 = vadd.f32 %v7148, 0.001143296
        %v7150 = vmul.f32 %v7136, %v7149
        %v7151 = vadd.f32 %v7150, 0.014752088
        %v7152 = vmul.f32 %v7136, %v7151
        %v7153 = vadd.f32 %v7152, 0.112945676
        %v7154 = vmul.f32 %v7136, %v7153
        %v7155 = vadd.f32 %v7154, 0.4994258
        %v7156 = vmul.f32 %v7136, %v7155
        %v7157 = vadd.f32 %v7156, 1.0
        %v7158 = vrcp.pop %v7157
        %v7159 = vmul.f32 %v7157, %v7158
        %v7160 = vsub.f32 1.0, %v7159
        %v7161 = vmul.f32 %v7158, %v7160
        %v7162 = vadd.f32 %v7158, %v7161
        %vm7163 = vweird.f32 %v7157
        %vm7164 = vweird.f32 %v7158
        %vm7165 = vmor %vm7163, %vm7164
        %v7166 = vsel %vm7165, %v7158, %v7162
        %v7167 = vand.u32 2147483647, %v7157
        %vm7168 = vcmp.eq.f32.partialorder %v7167, 8.507059e+37
        %v7169 = vand.u32 %v7157, 2147483648
        %v7170 = vor.u32 1.1754944e-38, %v7169
        %v7171 = vsel %vm7168, %v7170, %v7166
        %v7172 = vmul.f32 %v7147, %v7171
        %v7173 = vmin.f32 %v7172, 1.0
        %v7174 = vmax.f32 %v7173, -1.0
        %v7175 = vmul.f32 %v3643, %v3643
        %v7176 = vmin.f32 16.0, %v7175
        %v7177 = vmul.f32 %v7176, 2.1237322e-06
        %v7178 = vadd.f32 %v7177, 0.00028619796
        %v7179 = vmul.f32 %v7176, %v7178
        %v7180 = vadd.f32 %v7179, 0.0036580483
        %v7181 = vmul.f32 %v7176, %v7180
        %v7182 = vadd.f32 %v7181, 0.05243302
        %v7183 = vmul.f32 %v7176, %v7182
        %v7184 = vadd.f32 %v7183, 0.18741608
        %v7185 = vmul.f32 %v7176, %v7184
        %v7186 = vadd.f32 %v7185, 1.1283791
        %v7187 = vmul.f32 %v3643, %v7186
        %v7188 = vmul.f32 %v7176, 3.8918573e-05
        %v7189 = vadd.f32 %v7188, 0.001143296
        %v7190 = vmul.f32 %v7176, %v7189
        %v7191 = vadd.f32 %v7190, 0.014752088
        %v7192 = vmul.f32 %v7176, %v7191
        %v7193 = vadd.f32 %v7192, 0.112945676
        %v7194 = vmul.f32 %v7176, %v7193
        %v7195 = vadd.f32 %v7194, 0.4994258
        %v7196 = vmul.f32 %v7176, %v7195
        %v7197 = vadd.f32 %v7196, 1.0
        %v7198 = vrcp.pop %v7197
        %v7199 = vmul.f32 %v7197, %v7198
        %v7200 = vsub.f32 1.0, %v7199
        %v7201 = vmul.f32 %v7198, %v7200
        %v7202 = vadd.f32 %v7198, %v7201
        %vm7203 = vweird.f32 %v7197
        %vm7204 = vweird.f32 %v7198
        %vm7205 = vmor %vm7203, %vm7204
        %v7206 = vsel %vm7205, %v7198, %v7202
        %v7207 = vand.u32 2147483647, %v7197
        %vm7208 = vcmp.eq.f32.partialorder %v7207, 8.507059e+37
        %v7209 = vand.u32 %v7197, 2147483648
        %v7210 = vor.u32 1.1754944e-38, %v7209
        %v7211 = vsel %vm7208, %v7210, %v7206
        %v7212 = vmul.f32 %v7187, %v7211
        %v7213 = vmin.f32 %v7212, 1.0
        %v7214 = vmax.f32 %v7213, -1.0
        %v7215 = vmul.f32 %v3644, %v3644
        %v7216 = vmin.f32 16.0, %v7215
        %v7217 = vmul.f32 %v7216, 2.1237322e-06
        %v7218 = vadd.f32 %v7217, 0.00028619796
        %v7219 = vmul.f32 %v7216, %v7218
        %v7220 = vadd.f32 %v7219, 0.0036580483
        %v7221 = vmul.f32 %v7216, %v7220
        %v7222 = vadd.f32 %v7221, 0.05243302
        %v7223 = vmul.f32 %v7216, %v7222
        %v7224 = vadd.f32 %v7223, 0.18741608
        %v7225 = vmul.f32 %v7216, %v7224
        %v7226 = vadd.f32 %v7225, 1.1283791
        %v7227 = vmul.f32 %v3644, %v7226
        %v7228 = vmul.f32 %v7216, 3.8918573e-05
        %v7229 = vadd.f32 %v7228, 0.001143296
        %v7230 = vmul.f32 %v7216, %v7229
        %v7231 = vadd.f32 %v7230, 0.014752088
        %v7232 = vmul.f32 %v7216, %v7231
        %v7233 = vadd.f32 %v7232, 0.112945676
        %v7234 = vmul.f32 %v7216, %v7233
        %v7235 = vadd.f32 %v7234, 0.4994258
        %v7236 = vmul.f32 %v7216, %v7235
        %v7237 = vadd.f32 %v7236, 1.0
        %v7238 = vrcp.pop %v7237
        %v7239 = vmul.f32 %v7237, %v7238
        %v7240 = vsub.f32 1.0, %v7239
        %v7241 = vmul.f32 %v7238, %v7240
        %v7242 = vadd.f32 %v7238, %v7241
        %vm7243 = vweird.f32 %v7237
        %vm7244 = vweird.f32 %v7238
        %vm7245 = vmor %vm7243, %vm7244
        %v7246 = vsel %vm7245, %v7238, %v7242
        %v7247 = vand.u32 2147483647, %v7237
        %vm7248 = vcmp.eq.f32.partialorder %v7247, 8.507059e+37
        %v7249 = vand.u32 %v7237, 2147483648
        %v7250 = vor.u32 1.1754944e-38, %v7249
        %v7251 = vsel %vm7248, %v7250, %v7246
        %v7252 = vmul.f32 %v7227, %v7251
        %v7253 = vmin.f32 %v7252, 1.0
        %v7254 = vmax.f32 %v7253, -1.0
        %v7255 = vmul.f32 %v3645, %v3645
        %v7256 = vmin.f32 16.0, %v7255
        %v7257 = vmul.f32 %v7256, 2.1237322e-06
        %v7258 = vadd.f32 %v7257, 0.00028619796
        %v7259 = vmul.f32 %v7256, %v7258
        %v7260 = vadd.f32 %v7259, 0.0036580483
        %v7261 = vmul.f32 %v7256, %v7260
        %v7262 = vadd.f32 %v7261, 0.05243302
        %v7263 = vmul.f32 %v7256, %v7262
        %v7264 = vadd.f32 %v7263, 0.18741608
        %v7265 = vmul.f32 %v7256, %v7264
        %v7266 = vadd.f32 %v7265, 1.1283791
        %v7267 = vmul.f32 %v3645, %v7266
        %v7268 = vmul.f32 %v7256, 3.8918573e-05
        %v7269 = vadd.f32 %v7268, 0.001143296
        %v7270 = vmul.f32 %v7256, %v7269
        %v7271 = vadd.f32 %v7270, 0.014752088
        %v7272 = vmul.f32 %v7256, %v7271
        %v7273 = vadd.f32 %v7272, 0.112945676
        %v7274 = vmul.f32 %v7256, %v7273
        %v7275 = vadd.f32 %v7274, 0.4994258
        %v7276 = vmul.f32 %v7256, %v7275
        %v7277 = vadd.f32 %v7276, 1.0
        %v7278 = vrcp.pop %v7277
        %v7279 = vmul.f32 %v7277, %v7278
        %v7280 = vsub.f32 1.0, %v7279
        %v7281 = vmul.f32 %v7278, %v7280
        %v7282 = vadd.f32 %v7278, %v7281
        %vm7283 = vweird.f32 %v7277
        %vm7284 = vweird.f32 %v7278
        %vm7285 = vmor %vm7283, %vm7284
        %v7286 = vsel %vm7285, %v7278, %v7282
        %v7287 = vand.u32 2147483647, %v7277
        %vm7288 = vcmp.eq.f32.partialorder %v7287, 8.507059e+37
        %v7289 = vand.u32 %v7277, 2147483648
        %v7290 = vor.u32 1.1754944e-38, %v7289
        %v7291 = vsel %vm7288, %v7290, %v7286
        %v7292 = vmul.f32 %v7267, %v7291
        %v7293 = vmin.f32 %v7292, 1.0
        %v7294 = vmax.f32 %v7293, -1.0
        %v7295 = vmul.f32 %v3646, %v3646
        %v7296 = vmin.f32 16.0, %v7295
        %v7297 = vmul.f32 %v7296, 2.1237322e-06
        %v7298 = vadd.f32 %v7297, 0.00028619796
        %v7299 = vmul.f32 %v7296, %v7298
        %v7300 = vadd.f32 %v7299, 0.0036580483
        %v7301 = vmul.f32 %v7296, %v7300
        %v7302 = vadd.f32 %v7301, 0.05243302
        %v7303 = vmul.f32 %v7296, %v7302
        %v7304 = vadd.f32 %v7303, 0.18741608
        %v7305 = vmul.f32 %v7296, %v7304
        %v7306 = vadd.f32 %v7305, 1.1283791
        %v7307 = vmul.f32 %v3646, %v7306
        %v7308 = vmul.f32 %v7296, 3.8918573e-05
        %v7309 = vadd.f32 %v7308, 0.001143296
        %v7310 = vmul.f32 %v7296, %v7309
        %v7311 = vadd.f32 %v7310, 0.014752088
        %v7312 = vmul.f32 %v7296, %v7311
        %v7313 = vadd.f32 %v7312, 0.112945676
        %v7314 = vmul.f32 %v7296, %v7313
        %v7315 = vadd.f32 %v7314, 0.4994258
        %v7316 = vmul.f32 %v7296, %v7315
        %v7317 = vadd.f32 %v7316, 1.0
        %v7318 = vrcp.pop %v7317
        %v7319 = vmul.f32 %v7317, %v7318
        %v7320 = vsub.f32 1.0, %v7319
        %v7321 = vmul.f32 %v7318, %v7320
        %v7322 = vadd.f32 %v7318, %v7321
        %vm7323 = vweird.f32 %v7317
        %vm7324 = vweird.f32 %v7318
        %vm7325 = vmor %vm7323, %vm7324
        %v7326 = vsel %vm7325, %v7318, %v7322
        %v7327 = vand.u32 2147483647, %v7317
        %vm7328 = vcmp.eq.f32.partialorder %v7327, 8.507059e+37
        %v7329 = vand.u32 %v7317, 2147483648
        %v7330 = vor.u32 1.1754944e-38, %v7329
        %v7331 = vsel %vm7328, %v7330, %v7326
        %v7332 = vmul.f32 %v7307, %v7331
        %v7333 = vmin.f32 %v7332, 1.0
        %v7334 = vmax.f32 %v7333, -1.0
        %v7335 = vmul.f32 %v3647, %v3647
        %v7336 = vmin.f32 16.0, %v7335
        %v7337 = vmul.f32 %v7336, 2.1237322e-06
        %v7338 = vadd.f32 %v7337, 0.00028619796
        %v7339 = vmul.f32 %v7336, %v7338
        %v7340 = vadd.f32 %v7339, 0.0036580483
        %v7341 = vmul.f32 %v7336, %v7340
        %v7342 = vadd.f32 %v7341, 0.05243302
        %v7343 = vmul.f32 %v7336, %v7342
        %v7344 = vadd.f32 %v7343, 0.18741608
        %v7345 = vmul.f32 %v7336, %v7344
        %v7346 = vadd.f32 %v7345, 1.1283791
        %v7347 = vmul.f32 %v3647, %v7346
        %v7348 = vmul.f32 %v7336, 3.8918573e-05
        %v7349 = vadd.f32 %v7348, 0.001143296
        %v7350 = vmul.f32 %v7336, %v7349
        %v7351 = vadd.f32 %v7350, 0.014752088
        %v7352 = vmul.f32 %v7336, %v7351
        %v7353 = vadd.f32 %v7352, 0.112945676
        %v7354 = vmul.f32 %v7336, %v7353
        %v7355 = vadd.f32 %v7354, 0.4994258
        %v7356 = vmul.f32 %v7336, %v7355
        %v7357 = vadd.f32 %v7356, 1.0
        %v7358 = vrcp.pop %v7357
        %v7359 = vmul.f32 %v7357, %v7358
        %v7360 = vsub.f32 1.0, %v7359
        %v7361 = vmul.f32 %v7358, %v7360
        %v7362 = vadd.f32 %v7358, %v7361
        %vm7363 = vweird.f32 %v7357
        %vm7364 = vweird.f32 %v7358
        %vm7365 = vmor %vm7363, %vm7364
        %v7366 = vsel %vm7365, %v7358, %v7362
        %v7367 = vand.u32 2147483647, %v7357
        %vm7368 = vcmp.eq.f32.partialorder %v7367, 8.507059e+37
        %v7369 = vand.u32 %v7357, 2147483648
        %v7370 = vor.u32 1.1754944e-38, %v7369
        %v7371 = vsel %vm7368, %v7370, %v7366
        %v7372 = vmul.f32 %v7347, %v7371
        %v7373 = vmin.f32 %v7372, 1.0
        %v7374 = vmax.f32 %v7373, -1.0
        %v7375 = vmul.f32 %v3648, %v3648
        %v7376 = vmin.f32 16.0, %v7375
        %v7377 = vmul.f32 %v7376, 2.1237322e-06
        %v7378 = vadd.f32 %v7377, 0.00028619796
        %v7379 = vmul.f32 %v7376, %v7378
        %v7380 = vadd.f32 %v7379, 0.0036580483
        %v7381 = vmul.f32 %v7376, %v7380
        %v7382 = vadd.f32 %v7381, 0.05243302
        %v7383 = vmul.f32 %v7376, %v7382
        %v7384 = vadd.f32 %v7383, 0.18741608
        %v7385 = vmul.f32 %v7376, %v7384
        %v7386 = vadd.f32 %v7385, 1.1283791
        %v7387 = vmul.f32 %v3648, %v7386
        %v7388 = vmul.f32 %v7376, 3.8918573e-05
        %v7389 = vadd.f32 %v7388, 0.001143296
        %v7390 = vmul.f32 %v7376, %v7389
        %v7391 = vadd.f32 %v7390, 0.014752088
        %v7392 = vmul.f32 %v7376, %v7391
        %v7393 = vadd.f32 %v7392, 0.112945676
        %v7394 = vmul.f32 %v7376, %v7393
        %v7395 = vadd.f32 %v7394, 0.4994258
        %v7396 = vmul.f32 %v7376, %v7395
        %v7397 = vadd.f32 %v7396, 1.0
        %v7398 = vrcp.pop %v7397
        %v7399 = vmul.f32 %v7397, %v7398
        %v7400 = vsub.f32 1.0, %v7399
        %v7401 = vmul.f32 %v7398, %v7400
        %v7402 = vadd.f32 %v7398, %v7401
        %vm7403 = vweird.f32 %v7397
        %vm7404 = vweird.f32 %v7398
        %vm7405 = vmor %vm7403, %vm7404
        %v7406 = vsel %vm7405, %v7398, %v7402
        %v7407 = vand.u32 2147483647, %v7397
        %vm7408 = vcmp.eq.f32.partialorder %v7407, 8.507059e+37
        %v7409 = vand.u32 %v7397, 2147483648
        %v7410 = vor.u32 1.1754944e-38, %v7409
        %v7411 = vsel %vm7408, %v7410, %v7406
        %v7412 = vmul.f32 %v7387, %v7411
        %v7413 = vmin.f32 %v7412, 1.0
        %v7414 = vmax.f32 %v7413, -1.0
        %v7415 = vmul.f32 %v3649, %v3649
        %v7416 = vmin.f32 16.0, %v7415
        %v7417 = vmul.f32 %v7416, 2.1237322e-06
        %v7418 = vadd.f32 %v7417, 0.00028619796
        %v7419 = vmul.f32 %v7416, %v7418
        %v7420 = vadd.f32 %v7419, 0.0036580483
        %v7421 = vmul.f32 %v7416, %v7420
        %v7422 = vadd.f32 %v7421, 0.05243302
        %v7423 = vmul.f32 %v7416, %v7422
        %v7424 = vadd.f32 %v7423, 0.18741608
        %v7425 = vmul.f32 %v7416, %v7424
        %v7426 = vadd.f32 %v7425, 1.1283791
        %v7427 = vmul.f32 %v3649, %v7426
        %v7428 = vmul.f32 %v7416, 3.8918573e-05
        %v7429 = vadd.f32 %v7428, 0.001143296
        %v7430 = vmul.f32 %v7416, %v7429
        %v7431 = vadd.f32 %v7430, 0.014752088
        %v7432 = vmul.f32 %v7416, %v7431
        %v7433 = vadd.f32 %v7432, 0.112945676
        %v7434 = vmul.f32 %v7416, %v7433
        %v7435 = vadd.f32 %v7434, 0.4994258
        %v7436 = vmul.f32 %v7416, %v7435
        %v7437 = vadd.f32 %v7436, 1.0
        %v7438 = vrcp.pop %v7437
        %v7439 = vmul.f32 %v7437, %v7438
        %v7440 = vsub.f32 1.0, %v7439
        %v7441 = vmul.f32 %v7438, %v7440
        %v7442 = vadd.f32 %v7438, %v7441
        %vm7443 = vweird.f32 %v7437
        %vm7444 = vweird.f32 %v7438
        %vm7445 = vmor %vm7443, %vm7444
        %v7446 = vsel %vm7445, %v7438, %v7442
        %v7447 = vand.u32 2147483647, %v7437
        %vm7448 = vcmp.eq.f32.partialorder %v7447, 8.507059e+37
        %v7449 = vand.u32 %v7437, 2147483648
        %v7450 = vor.u32 1.1754944e-38, %v7449
        %v7451 = vsel %vm7448, %v7450, %v7446
        %v7452 = vmul.f32 %v7427, %v7451
        %v7453 = vmin.f32 %v7452, 1.0
        %v7454 = vmax.f32 %v7453, -1.0
        %v7455 = vmul.f32 %v3650, %v3650
        %v7456 = vmin.f32 16.0, %v7455
        %v7457 = vmul.f32 %v7456, 2.1237322e-06
        %v7458 = vadd.f32 %v7457, 0.00028619796
        %v7459 = vmul.f32 %v7456, %v7458
        %v7460 = vadd.f32 %v7459, 0.0036580483
        %v7461 = vmul.f32 %v7456, %v7460
        %v7462 = vadd.f32 %v7461, 0.05243302
        %v7463 = vmul.f32 %v7456, %v7462
        %v7464 = vadd.f32 %v7463, 0.18741608
        %v7465 = vmul.f32 %v7456, %v7464
        %v7466 = vadd.f32 %v7465, 1.1283791
        %v7467 = vmul.f32 %v3650, %v7466
        %v7468 = vmul.f32 %v7456, 3.8918573e-05
        %v7469 = vadd.f32 %v7468, 0.001143296
        %v7470 = vmul.f32 %v7456, %v7469
        %v7471 = vadd.f32 %v7470, 0.014752088
        %v7472 = vmul.f32 %v7456, %v7471
        %v7473 = vadd.f32 %v7472, 0.112945676
        %v7474 = vmul.f32 %v7456, %v7473
        %v7475 = vadd.f32 %v7474, 0.4994258
        %v7476 = vmul.f32 %v7456, %v7475
        %v7477 = vadd.f32 %v7476, 1.0
        %v7478 = vrcp.pop %v7477
        %v7479 = vmul.f32 %v7477, %v7478
        %v7480 = vsub.f32 1.0, %v7479
        %v7481 = vmul.f32 %v7478, %v7480
        %v7482 = vadd.f32 %v7478, %v7481
        %vm7483 = vweird.f32 %v7477
        %vm7484 = vweird.f32 %v7478
        %vm7485 = vmor %vm7483, %vm7484
        %v7486 = vsel %vm7485, %v7478, %v7482
        %v7487 = vand.u32 2147483647, %v7477
        %vm7488 = vcmp.eq.f32.partialorder %v7487, 8.507059e+37
        %v7489 = vand.u32 %v7477, 2147483648
        %v7490 = vor.u32 1.1754944e-38, %v7489
        %v7491 = vsel %vm7488, %v7490, %v7486
        %v7492 = vmul.f32 %v7467, %v7491
        %v7493 = vmin.f32 %v7492, 1.0
        %v7494 = vmax.f32 %v7493, -1.0
        %v7495 = vmul.f32 %v3651, %v3651
        %v7496 = vmin.f32 16.0, %v7495
        %v7497 = vmul.f32 %v7496, 2.1237322e-06
        %v7498 = vadd.f32 %v7497, 0.00028619796
        %v7499 = vmul.f32 %v7496, %v7498
        %v7500 = vadd.f32 %v7499, 0.0036580483
        %v7501 = vmul.f32 %v7496, %v7500
        %v7502 = vadd.f32 %v7501, 0.05243302
        %v7503 = vmul.f32 %v7496, %v7502
        %v7504 = vadd.f32 %v7503, 0.18741608
        %v7505 = vmul.f32 %v7496, %v7504
        %v7506 = vadd.f32 %v7505, 1.1283791
        %v7507 = vmul.f32 %v3651, %v7506
        %v7508 = vmul.f32 %v7496, 3.8918573e-05
        %v7509 = vadd.f32 %v7508, 0.001143296
        %v7510 = vmul.f32 %v7496, %v7509
        %v7511 = vadd.f32 %v7510, 0.014752088
        %v7512 = vmul.f32 %v7496, %v7511
        %v7513 = vadd.f32 %v7512, 0.112945676
        %v7514 = vmul.f32 %v7496, %v7513
        %v7515 = vadd.f32 %v7514, 0.4994258
        %v7516 = vmul.f32 %v7496, %v7515
        %v7517 = vadd.f32 %v7516, 1.0
        %v7518 = vrcp.pop %v7517
        %v7519 = vmul.f32 %v7517, %v7518
        %v7520 = vsub.f32 1.0, %v7519
        %v7521 = vmul.f32 %v7518, %v7520
        %v7522 = vadd.f32 %v7518, %v7521
        %vm7523 = vweird.f32 %v7517
        %vm7524 = vweird.f32 %v7518
        %vm7525 = vmor %vm7523, %vm7524
        %v7526 = vsel %vm7525, %v7518, %v7522
        %v7527 = vand.u32 2147483647, %v7517
        %vm7528 = vcmp.eq.f32.partialorder %v7527, 8.507059e+37
        %v7529 = vand.u32 %v7517, 2147483648
        %v7530 = vor.u32 1.1754944e-38, %v7529
        %v7531 = vsel %vm7528, %v7530, %v7526
        %v7532 = vmul.f32 %v7507, %v7531
        %v7533 = vmin.f32 %v7532, 1.0
        %v7534 = vmax.f32 %v7533, -1.0
        %v7535 = vmul.f32 %v3652, %v3652
        %v7536 = vmin.f32 16.0, %v7535
        %v7537 = vmul.f32 %v7536, 2.1237322e-06
        %v7538 = vadd.f32 %v7537, 0.00028619796
        %v7539 = vmul.f32 %v7536, %v7538
        %v7540 = vadd.f32 %v7539, 0.0036580483
        %v7541 = vmul.f32 %v7536, %v7540
        %v7542 = vadd.f32 %v7541, 0.05243302
        %v7543 = vmul.f32 %v7536, %v7542
        %v7544 = vadd.f32 %v7543, 0.18741608
        %v7545 = vmul.f32 %v7536, %v7544
        %v7546 = vadd.f32 %v7545, 1.1283791
        %v7547 = vmul.f32 %v3652, %v7546
        %v7548 = vmul.f32 %v7536, 3.8918573e-05
        %v7549 = vadd.f32 %v7548, 0.001143296
        %v7550 = vmul.f32 %v7536, %v7549
        %v7551 = vadd.f32 %v7550, 0.014752088
        %v7552 = vmul.f32 %v7536, %v7551
        %v7553 = vadd.f32 %v7552, 0.112945676
        %v7554 = vmul.f32 %v7536, %v7553
        %v7555 = vadd.f32 %v7554, 0.4994258
        %v7556 = vmul.f32 %v7536, %v7555
        %v7557 = vadd.f32 %v7556, 1.0
        %v7558 = vrcp.pop %v7557
        %v7559 = vmul.f32 %v7557, %v7558
        %v7560 = vsub.f32 1.0, %v7559
        %v7561 = vmul.f32 %v7558, %v7560
        %v7562 = vadd.f32 %v7558, %v7561
        %vm7563 = vweird.f32 %v7557
        %vm7564 = vweird.f32 %v7558
        %vm7565 = vmor %vm7563, %vm7564
        %v7566 = vsel %vm7565, %v7558, %v7562
        %v7567 = vand.u32 2147483647, %v7557
        %vm7568 = vcmp.eq.f32.partialorder %v7567, 8.507059e+37
        %v7569 = vand.u32 %v7557, 2147483648
        %v7570 = vor.u32 1.1754944e-38, %v7569
        %v7571 = vsel %vm7568, %v7570, %v7566
        %v7572 = vmul.f32 %v7547, %v7571
        %v7573 = vmin.f32 %v7572, 1.0
        %v7574 = vmax.f32 %v7573, -1.0
        %v7575 = vmul.f32 %v3653, %v3653
        %v7576 = vmin.f32 16.0, %v7575
        %v7577 = vmul.f32 %v7576, 2.1237322e-06
        %v7578 = vadd.f32 %v7577, 0.00028619796
        %v7579 = vmul.f32 %v7576, %v7578
        %v7580 = vadd.f32 %v7579, 0.0036580483
        %v7581 = vmul.f32 %v7576, %v7580
        %v7582 = vadd.f32 %v7581, 0.05243302
        %v7583 = vmul.f32 %v7576, %v7582
        %v7584 = vadd.f32 %v7583, 0.18741608
        %v7585 = vmul.f32 %v7576, %v7584
        %v7586 = vadd.f32 %v7585, 1.1283791
        %v7587 = vmul.f32 %v3653, %v7586
        %v7588 = vmul.f32 %v7576, 3.8918573e-05
        %v7589 = vadd.f32 %v7588, 0.001143296
        %v7590 = vmul.f32 %v7576, %v7589
        %v7591 = vadd.f32 %v7590, 0.014752088
        %v7592 = vmul.f32 %v7576, %v7591
        %v7593 = vadd.f32 %v7592, 0.112945676
        %v7594 = vmul.f32 %v7576, %v7593
        %v7595 = vadd.f32 %v7594, 0.4994258
        %v7596 = vmul.f32 %v7576, %v7595
        %v7597 = vadd.f32 %v7596, 1.0
        %v7598 = vrcp.pop %v7597
        %v7599 = vmul.f32 %v7597, %v7598
        %v7600 = vsub.f32 1.0, %v7599
        %v7601 = vmul.f32 %v7598, %v7600
        %v7602 = vadd.f32 %v7598, %v7601
        %vm7603 = vweird.f32 %v7597
        %vm7604 = vweird.f32 %v7598
        %vm7605 = vmor %vm7603, %vm7604
        %v7606 = vsel %vm7605, %v7598, %v7602
        %v7607 = vand.u32 2147483647, %v7597
        %vm7608 = vcmp.eq.f32.partialorder %v7607, 8.507059e+37
        %v7609 = vand.u32 %v7597, 2147483648
        %v7610 = vor.u32 1.1754944e-38, %v7609
        %v7611 = vsel %vm7608, %v7610, %v7606
        %v7612 = vmul.f32 %v7587, %v7611
        %v7613 = vmin.f32 %v7612, 1.0
        %v7614 = vmax.f32 %v7613, -1.0
        %v7615 = vmul.f32 %v3654, %v3654
        %v7616 = vmin.f32 16.0, %v7615
        %v7617 = vmul.f32 %v7616, 2.1237322e-06
        %v7618 = vadd.f32 %v7617, 0.00028619796
        %v7619 = vmul.f32 %v7616, %v7618
        %v7620 = vadd.f32 %v7619, 0.0036580483
        %v7621 = vmul.f32 %v7616, %v7620
        %v7622 = vadd.f32 %v7621, 0.05243302
        %v7623 = vmul.f32 %v7616, %v7622
        %v7624 = vadd.f32 %v7623, 0.18741608
        %v7625 = vmul.f32 %v7616, %v7624
        %v7626 = vadd.f32 %v7625, 1.1283791
        %v7627 = vmul.f32 %v3654, %v7626
        %v7628 = vmul.f32 %v7616, 3.8918573e-05
        %v7629 = vadd.f32 %v7628, 0.001143296
        %v7630 = vmul.f32 %v7616, %v7629
        %v7631 = vadd.f32 %v7630, 0.014752088
        %v7632 = vmul.f32 %v7616, %v7631
        %v7633 = vadd.f32 %v7632, 0.112945676
        %v7634 = vmul.f32 %v7616, %v7633
        %v7635 = vadd.f32 %v7634, 0.4994258
        %v7636 = vmul.f32 %v7616, %v7635
        %v7637 = vadd.f32 %v7636, 1.0
        %v7638 = vrcp.pop %v7637
        %v7639 = vmul.f32 %v7637, %v7638
        %v7640 = vsub.f32 1.0, %v7639
        %v7641 = vmul.f32 %v7638, %v7640
        %v7642 = vadd.f32 %v7638, %v7641
        %vm7643 = vweird.f32 %v7637
        %vm7644 = vweird.f32 %v7638
        %vm7645 = vmor %vm7643, %vm7644
        %v7646 = vsel %vm7645, %v7638, %v7642
        %v7647 = vand.u32 2147483647, %v7637
        %vm7648 = vcmp.eq.f32.partialorder %v7647, 8.507059e+37
        %v7649 = vand.u32 %v7637, 2147483648
        %v7650 = vor.u32 1.1754944e-38, %v7649
        %v7651 = vsel %vm7648, %v7650, %v7646
        %v7652 = vmul.f32 %v7627, %v7651
        %v7653 = vmin.f32 %v7652, 1.0
        %v7654 = vmax.f32 %v7653, -1.0
        %v7655 = vadd.f32 %v3694, 1.0
        %v7656 = vadd.f32 %v3734, 1.0
        %v7657 = vadd.f32 %v3774, 1.0
        %v7658 = vadd.f32 %v3814, 1.0
        %v7659 = vadd.f32 %v3854, 1.0
        %v7660 = vadd.f32 %v3894, 1.0
        %v7661 = vadd.f32 %v3934, 1.0
        %v7662 = vadd.f32 %v3974, 1.0
        %v7663 = vadd.f32 %v4014, 1.0
        %v7664 = vadd.f32 %v4054, 1.0
        %v7665 = vadd.f32 %v4094, 1.0
        %v7666 = vadd.f32 %v4134, 1.0
        %v7667 = vadd.f32 %v4174, 1.0
        %v7668 = vadd.f32 %v4214, 1.0
        %v7669 = vadd.f32 %v4254, 1.0
        %v7670 = vadd.f32 %v4294, 1.0
        %v7671 = vadd.f32 %v4334, 1.0
        %v7672 = vadd.f32 %v4374, 1.0
        %v7673 = vadd.f32 %v4414, 1.0
        %v7674 = vadd.f32 %v4454, 1.0
        %v7675 = vadd.f32 %v4494, 1.0
        %v7676 = vadd.f32 %v4534, 1.0
        %v7677 = vadd.f32 %v4574, 1.0
        %v7678 = vadd.f32 %v4614, 1.0
        %v7679 = vadd.f32 %v4654, 1.0
        %v7680 = vadd.f32 %v4694, 1.0
        %v7681 = vadd.f32 %v4734, 1.0
        %v7682 = vadd.f32 %v4774, 1.0
        %v7683 = vadd.f32 %v4814, 1.0
        %v7684 = vadd.f32 %v4854, 1.0
        %v7685 = vadd.f32 %v4894, 1.0
        %v7686 = vadd.f32 %v4934, 1.0
        %v7687 = vadd.f32 %v4974, 1.0
        %v7688 = vadd.f32 %v5014, 1.0
        %v7689 = vadd.f32 %v5054, 1.0
        %v7690 = vadd.f32 %v5094, 1.0
        %v7691 = vadd.f32 %v5134, 1.0
        %v7692 = vadd.f32 %v5174, 1.0
        %v7693 = vadd.f32 %v5214, 1.0
        %v7694 = vadd.f32 %v5254, 1.0
        %v7695 = vadd.f32 %v5294, 1.0
        %v7696 = vadd.f32 %v5334, 1.0
        %v7697 = vadd.f32 %v5374, 1.0
        %v7698 = vadd.f32 %v5414, 1.0
        %v7699 = vadd.f32 %v5454, 1.0
        %v7700 = vadd.f32 %v5494, 1.0
        %v7701 = vadd.f32 %v5534, 1.0
        %v7702 = vadd.f32 %v5574, 1.0
        %v7703 = vadd.f32 %v5614, 1.0
        %v7704 = vadd.f32 %v5654, 1.0
        %v7705 = vadd.f32 %v5694, 1.0
        %v7706 = vadd.f32 %v5734, 1.0
        %v7707 = vadd.f32 %v5774, 1.0
        %v7708 = vadd.f32 %v5814, 1.0
        %v7709 = vadd.f32 %v5854, 1.0
        %v7710 = vadd.f32 %v5894, 1.0
        %v7711 = vadd.f32 %v5934, 1.0
        %v7712 = vadd.f32 %v5974, 1.0
        %v7713 = vadd.f32 %v6014, 1.0
        %v7714 = vadd.f32 %v6054, 1.0
        %v7715 = vadd.f32 %v6094, 1.0
        %v7716 = vadd.f32 %v6134, 1.0
        %v7717 = vadd.f32 %v6174, 1.0
        %v7718 = vadd.f32 %v6214, 1.0
        %v7719 = vadd.f32 %v6254, 1.0
        %v7720 = vadd.f32 %v6294, 1.0
        %v7721 = vadd.f32 %v6334, 1.0
        %v7722 = vadd.f32 %v6374, 1.0
        %v7723 = vadd.f32 %v6414, 1.0
        %v7724 = vadd.f32 %v6454, 1.0
        %v7725 = vadd.f32 %v6494, 1.0
        %v7726 = vadd.f32 %v6534, 1.0
        %v7727 = vadd.f32 %v6574, 1.0
        %v7728 = vadd.f32 %v6614, 1.0
        %v7729 = vadd.f32 %v6654, 1.0
        %v7730 = vadd.f32 %v6694, 1.0
        %v7731 = vadd.f32 %v6734, 1.0
        %v7732 = vadd.f32 %v6774, 1.0
        %v7733 = vadd.f32 %v6814, 1.0
        %v7734 = vadd.f32 %v6854, 1.0
        %v7735 = vadd.f32 %v6894, 1.0
        %v7736 = vadd.f32 %v6934, 1.0
        %v7737 = vadd.f32 %v6974, 1.0
        %v7738 = vadd.f32 %v7014, 1.0
        %v7739 = vadd.f32 %v7054, 1.0
        %v7740 = vadd.f32 %v7094, 1.0
        %v7741 = vadd.f32 %v7134, 1.0
        %v7742 = vadd.f32 %v7174, 1.0
        %v7743 = vadd.f32 %v7214, 1.0
        %v7744 = vadd.f32 %v7254, 1.0
        %v7745 = vadd.f32 %v7294, 1.0
        %v7746 = vadd.f32 %v7334, 1.0
        %v7747 = vadd.f32 %v7374, 1.0
        %v7748 = vadd.f32 %v7414, 1.0
        %v7749 = vadd.f32 %v7454, 1.0
        %v7750 = vadd.f32 %v7494, 1.0
        %v7751 = vadd.f32 %v7534, 1.0
        %v7752 = vadd.f32 %v7574, 1.0
        %v7753 = vadd.f32 %v7614, 1.0
        %v7754 = vadd.f32 %v7654, 1.0
        %v7755 = vmul.f32 %v3455, %v7655
        %v7756 = vmul.f32 %v3456, %v7656
        %v7757 = vmul.f32 %v3457, %v7657
        %v7758 = vmul.f32 %v3458, %v7658
        %v7759 = vmul.f32 %v3459, %v7659
        %v7760 = vmul.f32 %v3460, %v7660
        %v7761 = vmul.f32 %v3461, %v7661
        %v7762 = vmul.f32 %v3462, %v7662
        %v7763 = vmul.f32 %v3463, %v7663
        %v7764 = vmul.f32 %v3464, %v7664
        %v7765 = vmul.f32 %v3465, %v7665
        %v7766 = vmul.f32 %v3466, %v7666
        %v7767 = vmul.f32 %v3467, %v7667
        %v7768 = vmul.f32 %v3468, %v7668
        %v7769 = vmul.f32 %v3469, %v7669
        %v7770 = vmul.f32 %v3470, %v7670
        %v7771 = vmul.f32 %v3471, %v7671
        %v7772 = vmul.f32 %v3472, %v7672
        %v7773 = vmul.f32 %v3473, %v7673
        %v7774 = vmul.f32 %v3474, %v7674
        %v7775 = vmul.f32 %v3475, %v7675
        %v7776 = vmul.f32 %v3476, %v7676
        %v7777 = vmul.f32 %v3477, %v7677
        %v7778 = vmul.f32 %v3478, %v7678
        %v7779 = vmul.f32 %v3479, %v7679
        %v7780 = vmul.f32 %v3480, %v7680
        %v7781 = vmul.f32 %v3481, %v7681
        %v7782 = vmul.f32 %v3482, %v7682
        %v7783 = vmul.f32 %v3483, %v7683
        %v7784 = vmul.f32 %v3484, %v7684
        %v7785 = vmul.f32 %v3485, %v7685
        %v7786 = vmul.f32 %v3486, %v7686
        %v7787 = vmul.f32 %v3487, %v7687
        %v7788 = vmul.f32 %v3488, %v7688
        %v7789 = vmul.f32 %v3489, %v7689
        %v7790 = vmul.f32 %v3490, %v7690
        %v7791 = vmul.f32 %v3491, %v7691
        %v7792 = vmul.f32 %v3492, %v7692
        %v7793 = vmul.f32 %v3493, %v7693
        %v7794 = vmul.f32 %v3494, %v7694
        %v7795 = vmul.f32 %v3495, %v7695
        %v7796 = vmul.f32 %v3496, %v7696
        %v7797 = vmul.f32 %v3497, %v7697
        %v7798 = vmul.f32 %v3498, %v7698
        %v7799 = vmul.f32 %v3499, %v7699
        %v7800 = vmul.f32 %v3500, %v7700
        %v7801 = vmul.f32 %v3501, %v7701
        %v7802 = vmul.f32 %v3502, %v7702
        %v7803 = vmul.f32 %v3503, %v7703
        %v7804 = vmul.f32 %v3504, %v7704
        %v7805 = vmul.f32 %v3505, %v7705
        %v7806 = vmul.f32 %v3506, %v7706
        %v7807 = vmul.f32 %v3507, %v7707
        %v7808 = vmul.f32 %v3508, %v7708
        %v7809 = vmul.f32 %v3509, %v7709
        %v7810 = vmul.f32 %v3510, %v7710
        %v7811 = vmul.f32 %v3511, %v7711
        %v7812 = vmul.f32 %v3512, %v7712
        %v7813 = vmul.f32 %v3513, %v7713
        %v7814 = vmul.f32 %v3514, %v7714
        %v7815 = vmul.f32 %v3515, %v7715
        %v7816 = vmul.f32 %v3516, %v7716
        %v7817 = vmul.f32 %v3517, %v7717
        %v7818 = vmul.f32 %v3518, %v7718
        %v7819 = vmul.f32 %v3519, %v7719
        %v7820 = vmul.f32 %v3520, %v7720
        %v7821 = vmul.f32 %v3521, %v7721
        %v7822 = vmul.f32 %v3522, %v7722
        %v7823 = vmul.f32 %v3523, %v7723
        %v7824 = vmul.f32 %v3524, %v7724
        %v7825 = vmul.f32 %v3525, %v7725
        %v7826 = vmul.f32 %v3526, %v7726
        %v7827 = vmul.f32 %v3527, %v7727
        %v7828 = vmul.f32 %v3528, %v7728
        %v7829 = vmul.f32 %v3529, %v7729
        %v7830 = vmul.f32 %v3530, %v7730
        %v7831 = vmul.f32 %v3531, %v7731
        %v7832 = vmul.f32 %v3532, %v7732
        %v7833 = vmul.f32 %v3533, %v7733
        %v7834 = vmul.f32 %v3534, %v7734
        %v7835 = vmul.f32 %v3535, %v7735
        %v7836 = vmul.f32 %v3536, %v7736
        %v7837 = vmul.f32 %v3537, %v7737
        %v7838 = vmul.f32 %v3538, %v7738
        %v7839 = vmul.f32 %v3539, %v7739
        %v7840 = vmul.f32 %v3540, %v7740
        %v7841 = vmul.f32 %v3541, %v7741
        %v7842 = vmul.f32 %v3542, %v7742
        %v7843 = vmul.f32 %v3543, %v7743
        %v7844 = vmul.f32 %v3544, %v7744
        %v7845 = vmul.f32 %v3545, %v7745
        %v7846 = vmul.f32 %v3546, %v7746
        %v7847 = vmul.f32 %v3547, %v7747
        %v7848 = vmul.f32 %v3548, %v7748
        %v7849 = vmul.f32 %v3549, %v7749
        %v7850 = vmul.f32 %v3550, %v7750
        %v7851 = vmul.f32 %v3551, %v7751
        %v7852 = vmul.f32 %v3552, %v7752
        %v7853 = vmul.f32 %v3553, %v7753
        %v7854 = vmul.f32 %v3554, %v7754
        %7855 = vst [vmem:[%s286] sm:$0xff] %v7755
        %7856 = vst [vmem:[%s286 + $0x8] sm:$0xff] %v7756
        %7857 = vst [vmem:[%s286 + $0x10] sm:$0xff] %v7757
        %7858 = vst [vmem:[%s286 + $0x18] sm:$0xff] %v7758
        %7859 = vst [vmem:[%s286 + $0x20] sm:$0xff] %v7759
        %7860 = vst [vmem:[%s286 + $0x28] sm:$0xff] %v7760
        %7861 = vst [vmem:[%s286 + $0x30] sm:$0xff] %v7761
        %7862 = vst [vmem:[%s286 + $0x38] sm:$0xff] %v7762
        %7863 = vst [vmem:[%s286 + $0x40] sm:$0xff] %v7763
        %7864 = vst [vmem:[%s286 + $0x48] sm:$0xff] %v7764
        %7865 = vst [vmem:[%s286 + $0x50] sm:$0xff] %v7765
        %7866 = vst [vmem:[%s286 + $0x58] sm:$0xff] %v7766
        %7867 = vst [vmem:[%s286 + $0x60] sm:$0xff] %v7767
        %7868 = vst [vmem:[%s286 + $0x68] sm:$0xff] %v7768
        %7869 = vst [vmem:[%s286 + $0x70] sm:$0xff] %v7769
        %7870 = vst [vmem:[%s286 + $0x78] sm:$0xff] %v7770
        %7871 = vst [vmem:[%s286 + $0x80] sm:$0xff] %v7771
        %7872 = vst [vmem:[%s286 + $0x88] sm:$0xff] %v7772
        %7873 = vst [vmem:[%s286 + $0x90] sm:$0xff] %v7773
        %7874 = vst [vmem:[%s286 + $0x98] sm:$0xff] %v7774
        %7875 = vst [vmem:[%s286 + $0xa0] sm:$0xff] %v7775
        %7876 = vst [vmem:[%s286 + $0xa8] sm:$0xff] %v7776
        %7877 = vst [vmem:[%s286 + $0xb0] sm:$0xff] %v7777
        %7878 = vst [vmem:[%s286 + $0xb8] sm:$0xff] %v7778
        %7879 = vst [vmem:[%s286 + $0xc0] sm:$0xff] %v7779
        %7880 = vst [vmem:[%s286 + $0xc8] sm:$0xff] %v7780
        %7881 = vst [vmem:[%s286 + $0xd0] sm:$0xff] %v7781
        %7882 = vst [vmem:[%s286 + $0xd8] sm:$0xff] %v7782
        %7883 = vst [vmem:[%s286 + $0xe0] sm:$0xff] %v7783
        %7884 = vst [vmem:[%s286 + $0xe8] sm:$0xff] %v7784
        %7885 = vst [vmem:[%s286 + $0xf0] sm:$0xff] %v7785
        %7886 = vst [vmem:[%s286 + $0xf8] sm:$0xff] %v7786
        %7887 = vst [vmem:[%s286 + $0x100] sm:$0xff] %v7787
        %7888 = vst [vmem:[%s286 + $0x108] sm:$0xff] %v7788
        %7889 = vst [vmem:[%s286 + $0x110] sm:$0xff] %v7789
        %7890 = vst [vmem:[%s286 + $0x118] sm:$0xff] %v7790
        %7891 = vst [vmem:[%s286 + $0x120] sm:$0xff] %v7791
        %7892 = vst [vmem:[%s286 + $0x128] sm:$0xff] %v7792
        %7893 = vst [vmem:[%s286 + $0x130] sm:$0xff] %v7793
        %7894 = vst [vmem:[%s286 + $0x138] sm:$0xff] %v7794
        %7895 = vst [vmem:[%s286 + $0x140] sm:$0xff] %v7795
        %7896 = vst [vmem:[%s286 + $0x148] sm:$0xff] %v7796
        %7897 = vst [vmem:[%s286 + $0x150] sm:$0xff] %v7797
        %7898 = vst [vmem:[%s286 + $0x158] sm:$0xff] %v7798
        %7899 = vst [vmem:[%s286 + $0x160] sm:$0xff] %v7799
        %7900 = vst [vmem:[%s286 + $0x168] sm:$0xff] %v7800
        %7901 = vst [vmem:[%s286 + $0x170] sm:$0xff] %v7801
        %7902 = vst [vmem:[%s286 + $0x178] sm:$0xff] %v7802
        %7903 = vst [vmem:[%s286 + $0x180] sm:$0xff] %v7803
        %7904 = vst [vmem:[%s286 + $0x188] sm:$0xff] %v7804
        %7905 = vst [vmem:[%s286 + $0x190] sm:$0xff] %v7805
        %7906 = vst [vmem:[%s286 + $0x198] sm:$0xff] %v7806
        %7907 = vst [vmem:[%s286 + $0x1a0] sm:$0xff] %v7807
        %7908 = vst [vmem:[%s286 + $0x1a8] sm:$0xff] %v7808
        %7909 = vst [vmem:[%s286 + $0x1b0] sm:$0xff] %v7809
        %7910 = vst [vmem:[%s286 + $0x1b8] sm:$0xff] %v7810
        %7911 = vst [vmem:[%s286 + $0x1c0] sm:$0xff] %v7811
        %7912 = vst [vmem:[%s286 + $0x1c8] sm:$0xff] %v7812
        %7913 = vst [vmem:[%s286 + $0x1d0] sm:$0xff] %v7813
        %7914 = vst [vmem:[%s286 + $0x1d8] sm:$0xff] %v7814
        %7915 = vst [vmem:[%s286 + $0x1e0] sm:$0xff] %v7815
        %7916 = vst [vmem:[%s286 + $0x1e8] sm:$0xff] %v7816
        %7917 = vst [vmem:[%s286 + $0x1f0] sm:$0xff] %v7817
        %7918 = vst [vmem:[%s286 + $0x1f8] sm:$0xff] %v7818
        %7919 = vst [vmem:[%s286 + $0x200] sm:$0xff] %v7819
        %7920 = vst [vmem:[%s286 + $0x208] sm:$0xff] %v7820
        %7921 = vst [vmem:[%s286 + $0x210] sm:$0xff] %v7821
        %7922 = vst [vmem:[%s286 + $0x218] sm:$0xff] %v7822
        %7923 = vst [vmem:[%s286 + $0x220] sm:$0xff] %v7823
        %7924 = vst [vmem:[%s286 + $0x228] sm:$0xff] %v7824
        %7925 = vst [vmem:[%s286 + $0x230] sm:$0xff] %v7825
        %7926 = vst [vmem:[%s286 + $0x238] sm:$0xff] %v7826
        %7927 = vst [vmem:[%s286 + $0x240] sm:$0xff] %v7827
        %7928 = vst [vmem:[%s286 + $0x248] sm:$0xff] %v7828
        %7929 = vst [vmem:[%s286 + $0x250] sm:$0xff] %v7829
        %7930 = vst [vmem:[%s286 + $0x258] sm:$0xff] %v7830
        %7931 = vst [vmem:[%s286 + $0x260] sm:$0xff] %v7831
        %7932 = vst [vmem:[%s286 + $0x268] sm:$0xff] %v7832
        %7933 = vst [vmem:[%s286 + $0x270] sm:$0xff] %v7833
        %7934 = vst [vmem:[%s286 + $0x278] sm:$0xff] %v7834
        %7935 = vst [vmem:[%s286 + $0x280] sm:$0xff] %v7835
        %7936 = vst [vmem:[%s286 + $0x288] sm:$0xff] %v7836
        %7937 = vst [vmem:[%s286 + $0x290] sm:$0xff] %v7837
        %7938 = vst [vmem:[%s286 + $0x298] sm:$0xff] %v7838
        %7939 = vst [vmem:[%s286 + $0x2a0] sm:$0xff] %v7839
        %7940 = vst [vmem:[%s286 + $0x2a8] sm:$0xff] %v7840
        %7941 = vst [vmem:[%s286 + $0x2b0] sm:$0xff] %v7841
        %7942 = vst [vmem:[%s286 + $0x2b8] sm:$0xff] %v7842
        %7943 = vst [vmem:[%s286 + $0x2c0] sm:$0xff] %v7843
        %7944 = vst [vmem:[%s286 + $0x2c8] sm:$0xff] %v7844
        %7945 = vst [vmem:[%s286 + $0x2d0] sm:$0xff] %v7845
        %7946 = vst [vmem:[%s286 + $0x2d8] sm:$0xff] %v7846
        %7947 = vst [vmem:[%s286 + $0x2e0] sm:$0xff] %v7847
        %7948 = vst [vmem:[%s286 + $0x2e8] sm:$0xff] %v7848
        %7949 = vst [vmem:[%s286 + $0x2f0] sm:$0xff] %v7849
        %7950 = vst [vmem:[%s286 + $0x2f8] sm:$0xff] %v7850
        %7951 = vst [vmem:[%s286 + $0x300] sm:$0xf] %v7851
        %7952 = vst [vmem:[%s286 + $0x308] sm:$0xf] %v7852
        %7953 = vst [vmem:[%s286 + $0x310] sm:$0xf] %v7853
        %7954 = vst [vmem:[%s286 + $0x318] sm:$0xf] %v7854
        %s7955 = sand.u32 %s166, 1
        %s7956 = sand.u32 %s166, 1
        %s7957 = smul.addr %s7956, 800
        %s7958 = scalar_lea.vmem [#allocation5], %s7957
        // Predicated region
        $region49: #{layernorm_linear_gelu.1} parent=39 // pred_check
          %p7959 = pneg %p176
        $region50: #{layernorm_linear_gelu.1} parent=39 // pred_check_branch
          %7961 = sbr.rel (%p7959) target = $region52
        $region51: #{layernorm_linear_gelu.1} parent=39 // pred_region
          %s7962 = smul.u32 %s23, 2
          %s7963 = sadd.s32 %s7962, %s24
          %s7964 = smul.u32 4, %s7963
          %s7965 = smul.addr %s7964, 8
          %s7966 = scalar_lea.vmem %s5, %s7965
          // Predicated region
          $region53: #{layernorm_linear_gelu.1} parent=51 // pred_check
            _
          $region54: #{layernorm_linear_gelu.1} parent=51 // pred_check_branch
            %7968 = sbr.rel (0) target = $region56
          $region55: #{layernorm_linear_gelu.1} parent=51 // pred_region
            // Predicated region
            $region57: #{layernorm_linear_gelu.1} parent=55 // pred_check
              _
            $region58: #{layernorm_linear_gelu.1} parent=55 // pred_check_branch
              %7970 = sbr.rel (0) target = $region60
            $region59: #{layernorm_linear_gelu.1} parent=55 // pred_region
              loop: start=0, step=1, limit=1
              $region61: #{layernorm_linear_gelu.1} parent=59 // loop_pre_header
                _
              $region62: #{layernorm_linear_gelu.1} parent=59 // loop_header
                %s7972 = sphi 0, %s7976
                %p7973 = scmp.ge.s32.totalorder %s7972, 1
                %s7977 = sphi %s7958, %s7958
                %s7978 = sphi %s7966, %s7966
              $region63: #{layernorm_linear_gelu.1} parent=59 // loop_header_branch
                %7975 = sbr.rel (%p7973) target = $region67
              $region64: #{layernorm_linear_gelu.1} parent=59 // loop_body
                %v7979 = vld [vmem:[%s7977] sm:$0xff]
                %7980 = vst [vmem:[%s7978] sm:$0xff] %v7979
                %v7981 = vld [vmem:[%s7977 + $0x8] sm:$0xff]
                %7982 = vst [vmem:[%s7978 + $0x8] sm:$0xff] %v7981
                %v7983 = vld [vmem:[%s7977 + $0x10] sm:$0xff]
                %7984 = vst [vmem:[%s7978 + $0x10] sm:$0xff] %v7983
                %v7985 = vld [vmem:[%s7977 + $0x18] sm:$0xff]
                %7986 = vst [vmem:[%s7978 + $0x18] sm:$0xff] %v7985
                %v7987 = vld [vmem:[%s7977 + $0x20] sm:$0xff]
                %7988 = vst [vmem:[%s7978 + $0x80] sm:$0xff] %v7987
                %v7989 = vld [vmem:[%s7977 + $0x28] sm:$0xff]
                %7990 = vst [vmem:[%s7978 + $0x88] sm:$0xff] %v7989
                %v7991 = vld [vmem:[%s7977 + $0x30] sm:$0xff]
                %7992 = vst [vmem:[%s7978 + $0x90] sm:$0xff] %v7991
                %v7993 = vld [vmem:[%s7977 + $0x38] sm:$0xff]
                %7994 = vst [vmem:[%s7978 + $0x98] sm:$0xff] %v7993
                %v7995 = vld [vmem:[%s7977 + $0x40] sm:$0xff]
                %7996 = vst [vmem:[%s7978 + $0x100] sm:$0xff] %v7995
                %v7997 = vld [vmem:[%s7977 + $0x48] sm:$0xff]
                %7998 = vst [vmem:[%s7978 + $0x108] sm:$0xff] %v7997
                %v7999 = vld [vmem:[%s7977 + $0x50] sm:$0xff]
                %8000 = vst [vmem:[%s7978 + $0x110] sm:$0xff] %v7999
                %v8001 = vld [vmem:[%s7977 + $0x58] sm:$0xff]
                %8002 = vst [vmem:[%s7978 + $0x118] sm:$0xff] %v8001
                %v8003 = vld [vmem:[%s7977 + $0x60] sm:$0xff]
                %8004 = vst [vmem:[%s7978 + $0x180] sm:$0xff] %v8003
                %v8005 = vld [vmem:[%s7977 + $0x68] sm:$0xff]
                %8006 = vst [vmem:[%s7978 + $0x188] sm:$0xff] %v8005
                %v8007 = vld [vmem:[%s7977 + $0x70] sm:$0xff]
                %8008 = vst [vmem:[%s7978 + $0x190] sm:$0xff] %v8007
                %v8009 = vld [vmem:[%s7977 + $0x78] sm:$0xff]
                %8010 = vst [vmem:[%s7978 + $0x198] sm:$0xff] %v8009
                %v8011 = vld [vmem:[%s7977 + $0x80] sm:$0xff]
                %8012 = vst [vmem:[%s7978 + $0x200] sm:$0xff] %v8011
                %v8013 = vld [vmem:[%s7977 + $0x88] sm:$0xff]
                %8014 = vst [vmem:[%s7978 + $0x208] sm:$0xff] %v8013
                %v8015 = vld [vmem:[%s7977 + $0x90] sm:$0xff]
                %8016 = vst [vmem:[%s7978 + $0x210] sm:$0xff] %v8015
                %v8017 = vld [vmem:[%s7977 + $0x98] sm:$0xff]
                %8018 = vst [vmem:[%s7978 + $0x218] sm:$0xff] %v8017
                %v8019 = vld [vmem:[%s7977 + $0xa0] sm:$0xff]
                %8020 = vst [vmem:[%s7978 + $0x280] sm:$0xff] %v8019
                %v8021 = vld [vmem:[%s7977 + $0xa8] sm:$0xff]
                %8022 = vst [vmem:[%s7978 + $0x288] sm:$0xff] %v8021
                %v8023 = vld [vmem:[%s7977 + $0xb0] sm:$0xff]
                %8024 = vst [vmem:[%s7978 + $0x290] sm:$0xff] %v8023
                %v8025 = vld [vmem:[%s7977 + $0xb8] sm:$0xff]
                %8026 = vst [vmem:[%s7978 + $0x298] sm:$0xff] %v8025
                %v8027 = vld [vmem:[%s7977 + $0xc0] sm:$0xff]
                %8028 = vst [vmem:[%s7978 + $0x300] sm:$0xff] %v8027
                %v8029 = vld [vmem:[%s7977 + $0xc8] sm:$0xff]
                %8030 = vst [vmem:[%s7978 + $0x308] sm:$0xff] %v8029
                %v8031 = vld [vmem:[%s7977 + $0xd0] sm:$0xff]
                %8032 = vst [vmem:[%s7978 + $0x310] sm:$0xff] %v8031
                %v8033 = vld [vmem:[%s7977 + $0xd8] sm:$0xff]
                %8034 = vst [vmem:[%s7978 + $0x318] sm:$0xff] %v8033
                %v8035 = vld [vmem:[%s7977 + $0xe0] sm:$0xff]
                %8036 = vst [vmem:[%s7978 + $0x380] sm:$0xff] %v8035
                %v8037 = vld [vmem:[%s7977 + $0xe8] sm:$0xff]
                %8038 = vst [vmem:[%s7978 + $0x388] sm:$0xff] %v8037
                %v8039 = vld [vmem:[%s7977 + $0xf0] sm:$0xff]
                %8040 = vst [vmem:[%s7978 + $0x390] sm:$0xff] %v8039
                %v8041 = vld [vmem:[%s7977 + $0xf8] sm:$0xff]
                %8042 = vst [vmem:[%s7978 + $0x398] sm:$0xff] %v8041
                %v8043 = vld [vmem:[%s7977 + $0x100] sm:$0xff]
                %8044 = vst [vmem:[%s7978 + $0x400] sm:$0xff] %v8043
                %v8045 = vld [vmem:[%s7977 + $0x108] sm:$0xff]
                %8046 = vst [vmem:[%s7978 + $0x408] sm:$0xff] %v8045
                %v8047 = vld [vmem:[%s7977 + $0x110] sm:$0xff]
                %8048 = vst [vmem:[%s7978 + $0x410] sm:$0xff] %v8047
                %v8049 = vld [vmem:[%s7977 + $0x118] sm:$0xff]
                %8050 = vst [vmem:[%s7978 + $0x418] sm:$0xff] %v8049
                %v8051 = vld [vmem:[%s7977 + $0x120] sm:$0xff]
                %8052 = vst [vmem:[%s7978 + $0x480] sm:$0xff] %v8051
                %v8053 = vld [vmem:[%s7977 + $0x128] sm:$0xff]
                %8054 = vst [vmem:[%s7978 + $0x488] sm:$0xff] %v8053
                %v8055 = vld [vmem:[%s7977 + $0x130] sm:$0xff]
                %8056 = vst [vmem:[%s7978 + $0x490] sm:$0xff] %v8055
                %v8057 = vld [vmem:[%s7977 + $0x138] sm:$0xff]
                %8058 = vst [vmem:[%s7978 + $0x498] sm:$0xff] %v8057
                %v8059 = vld [vmem:[%s7977 + $0x140] sm:$0xff]
                %8060 = vst [vmem:[%s7978 + $0x500] sm:$0xff] %v8059
                %v8061 = vld [vmem:[%s7977 + $0x148] sm:$0xff]
                %8062 = vst [vmem:[%s7978 + $0x508] sm:$0xff] %v8061
                %v8063 = vld [vmem:[%s7977 + $0x150] sm:$0xff]
                %8064 = vst [vmem:[%s7978 + $0x510] sm:$0xff] %v8063
                %v8065 = vld [vmem:[%s7977 + $0x158] sm:$0xff]
                %8066 = vst [vmem:[%s7978 + $0x518] sm:$0xff] %v8065
                %v8067 = vld [vmem:[%s7977 + $0x160] sm:$0xff]
                %8068 = vst [vmem:[%s7978 + $0x580] sm:$0xff] %v8067
                %v8069 = vld [vmem:[%s7977 + $0x168] sm:$0xff]
                %8070 = vst [vmem:[%s7978 + $0x588] sm:$0xff] %v8069
                %v8071 = vld [vmem:[%s7977 + $0x170] sm:$0xff]
                %8072 = vst [vmem:[%s7978 + $0x590] sm:$0xff] %v8071
                %v8073 = vld [vmem:[%s7977 + $0x178] sm:$0xff]
                %8074 = vst [vmem:[%s7978 + $0x598] sm:$0xff] %v8073
                %v8075 = vld [vmem:[%s7977 + $0x180] sm:$0xff]
                %8076 = vst [vmem:[%s7978 + $0x600] sm:$0xff] %v8075
                %v8077 = vld [vmem:[%s7977 + $0x188] sm:$0xff]
                %8078 = vst [vmem:[%s7978 + $0x608] sm:$0xff] %v8077
                %v8079 = vld [vmem:[%s7977 + $0x190] sm:$0xff]
                %8080 = vst [vmem:[%s7978 + $0x610] sm:$0xff] %v8079
                %v8081 = vld [vmem:[%s7977 + $0x198] sm:$0xff]
                %8082 = vst [vmem:[%s7978 + $0x618] sm:$0xff] %v8081
                %v8083 = vld [vmem:[%s7977 + $0x1a0] sm:$0xff]
                %8084 = vst [vmem:[%s7978 + $0x680] sm:$0xff] %v8083
                %v8085 = vld [vmem:[%s7977 + $0x1a8] sm:$0xff]
                %8086 = vst [vmem:[%s7978 + $0x688] sm:$0xff] %v8085
                %v8087 = vld [vmem:[%s7977 + $0x1b0] sm:$0xff]
                %8088 = vst [vmem:[%s7978 + $0x690] sm:$0xff] %v8087
                %v8089 = vld [vmem:[%s7977 + $0x1b8] sm:$0xff]
                %8090 = vst [vmem:[%s7978 + $0x698] sm:$0xff] %v8089
                %v8091 = vld [vmem:[%s7977 + $0x1c0] sm:$0xff]
                %8092 = vst [vmem:[%s7978 + $0x700] sm:$0xff] %v8091
                %v8093 = vld [vmem:[%s7977 + $0x1c8] sm:$0xff]
                %8094 = vst [vmem:[%s7978 + $0x708] sm:$0xff] %v8093
                %v8095 = vld [vmem:[%s7977 + $0x1d0] sm:$0xff]
                %8096 = vst [vmem:[%s7978 + $0x710] sm:$0xff] %v8095
                %v8097 = vld [vmem:[%s7977 + $0x1d8] sm:$0xff]
                %8098 = vst [vmem:[%s7978 + $0x718] sm:$0xff] %v8097
                %v8099 = vld [vmem:[%s7977 + $0x1e0] sm:$0xff]
                %8100 = vst [vmem:[%s7978 + $0x780] sm:$0xff] %v8099
                %v8101 = vld [vmem:[%s7977 + $0x1e8] sm:$0xff]
                %8102 = vst [vmem:[%s7978 + $0x788] sm:$0xff] %v8101
                %v8103 = vld [vmem:[%s7977 + $0x1f0] sm:$0xff]
                %8104 = vst [vmem:[%s7978 + $0x790] sm:$0xff] %v8103
                %v8105 = vld [vmem:[%s7977 + $0x1f8] sm:$0xff]
                %8106 = vst [vmem:[%s7978 + $0x798] sm:$0xff] %v8105
                %v8107 = vld [vmem:[%s7977 + $0x200] sm:$0xff]
                %8108 = vst [vmem:[%s7978 + $0x800] sm:$0xff] %v8107
                %v8109 = vld [vmem:[%s7977 + $0x208] sm:$0xff]
                %8110 = vst [vmem:[%s7978 + $0x808] sm:$0xff] %v8109
                %v8111 = vld [vmem:[%s7977 + $0x210] sm:$0xff]
                %8112 = vst [vmem:[%s7978 + $0x810] sm:$0xff] %v8111
                %v8113 = vld [vmem:[%s7977 + $0x218] sm:$0xff]
                %8114 = vst [vmem:[%s7978 + $0x818] sm:$0xff] %v8113
                %v8115 = vld [vmem:[%s7977 + $0x220] sm:$0xff]
                %8116 = vst [vmem:[%s7978 + $0x880] sm:$0xff] %v8115
                %v8117 = vld [vmem:[%s7977 + $0x228] sm:$0xff]
                %8118 = vst [vmem:[%s7978 + $0x888] sm:$0xff] %v8117
                %v8119 = vld [vmem:[%s7977 + $0x230] sm:$0xff]
                %8120 = vst [vmem:[%s7978 + $0x890] sm:$0xff] %v8119
                %v8121 = vld [vmem:[%s7977 + $0x238] sm:$0xff]
                %8122 = vst [vmem:[%s7978 + $0x898] sm:$0xff] %v8121
                %v8123 = vld [vmem:[%s7977 + $0x240] sm:$0xff]
                %8124 = vst [vmem:[%s7978 + $0x900] sm:$0xff] %v8123
                %v8125 = vld [vmem:[%s7977 + $0x248] sm:$0xff]
                %8126 = vst [vmem:[%s7978 + $0x908] sm:$0xff] %v8125
                %v8127 = vld [vmem:[%s7977 + $0x250] sm:$0xff]
                %8128 = vst [vmem:[%s7978 + $0x910] sm:$0xff] %v8127
                %v8129 = vld [vmem:[%s7977 + $0x258] sm:$0xff]
                %8130 = vst [vmem:[%s7978 + $0x918] sm:$0xff] %v8129
                %v8131 = vld [vmem:[%s7977 + $0x260] sm:$0xff]
                %8132 = vst [vmem:[%s7978 + $0x980] sm:$0xff] %v8131
                %v8133 = vld [vmem:[%s7977 + $0x268] sm:$0xff]
                %8134 = vst [vmem:[%s7978 + $0x988] sm:$0xff] %v8133
                %v8135 = vld [vmem:[%s7977 + $0x270] sm:$0xff]
                %8136 = vst [vmem:[%s7978 + $0x990] sm:$0xff] %v8135
                %v8137 = vld [vmem:[%s7977 + $0x278] sm:$0xff]
                %8138 = vst [vmem:[%s7978 + $0x998] sm:$0xff] %v8137
                %v8139 = vld [vmem:[%s7977 + $0x280] sm:$0xff]
                %8140 = vst [vmem:[%s7978 + $0xa00] sm:$0xff] %v8139
                %v8141 = vld [vmem:[%s7977 + $0x288] sm:$0xff]
                %8142 = vst [vmem:[%s7978 + $0xa08] sm:$0xff] %v8141
                %v8143 = vld [vmem:[%s7977 + $0x290] sm:$0xff]
                %8144 = vst [vmem:[%s7978 + $0xa10] sm:$0xff] %v8143
                %v8145 = vld [vmem:[%s7977 + $0x298] sm:$0xff]
                %8146 = vst [vmem:[%s7978 + $0xa18] sm:$0xff] %v8145
                %v8147 = vld [vmem:[%s7977 + $0x2a0] sm:$0xff]
                %8148 = vst [vmem:[%s7978 + $0xa80] sm:$0xff] %v8147
                %v8149 = vld [vmem:[%s7977 + $0x2a8] sm:$0xff]
                %8150 = vst [vmem:[%s7978 + $0xa88] sm:$0xff] %v8149
                %v8151 = vld [vmem:[%s7977 + $0x2b0] sm:$0xff]
                %8152 = vst [vmem:[%s7978 + $0xa90] sm:$0xff] %v8151
                %v8153 = vld [vmem:[%s7977 + $0x2b8] sm:$0xff]
                %8154 = vst [vmem:[%s7978 + $0xa98] sm:$0xff] %v8153
                %v8155 = vld [vmem:[%s7977 + $0x2c0] sm:$0xff]
                %8156 = vst [vmem:[%s7978 + $0xb00] sm:$0xff] %v8155
                %v8157 = vld [vmem:[%s7977 + $0x2c8] sm:$0xff]
                %8158 = vst [vmem:[%s7978 + $0xb08] sm:$0xff] %v8157
                %v8159 = vld [vmem:[%s7977 + $0x2d0] sm:$0xff]
                %8160 = vst [vmem:[%s7978 + $0xb10] sm:$0xff] %v8159
                %v8161 = vld [vmem:[%s7977 + $0x2d8] sm:$0xff]
                %8162 = vst [vmem:[%s7978 + $0xb18] sm:$0xff] %v8161
                %v8163 = vld [vmem:[%s7977 + $0x2e0] sm:$0xff]
                %8164 = vst [vmem:[%s7978 + $0xb80] sm:$0xff] %v8163
                %v8165 = vld [vmem:[%s7977 + $0x2e8] sm:$0xff]
                %8166 = vst [vmem:[%s7978 + $0xb88] sm:$0xff] %v8165
                %v8167 = vld [vmem:[%s7977 + $0x2f0] sm:$0xff]
                %8168 = vst [vmem:[%s7978 + $0xb90] sm:$0xff] %v8167
                %v8169 = vld [vmem:[%s7977 + $0x2f8] sm:$0xff]
                %8170 = vst [vmem:[%s7978 + $0xb98] sm:$0xff] %v8169
                %v8171 = vld [vmem:[%s7977 + $0x300] sm:$0xff]
                %8172 = vst [vmem:[%s7978 + $0xc00] sm:$0xff] %v8171
                %v8173 = vld [vmem:[%s7977 + $0x308] sm:$0xff]
                %8174 = vst [vmem:[%s7978 + $0xc08] sm:$0xff] %v8173
                %v8175 = vld [vmem:[%s7977 + $0x310] sm:$0xff]
                %8176 = vst [vmem:[%s7978 + $0xc10] sm:$0xff] %v8175
                %v8177 = vld [vmem:[%s7977 + $0x318] sm:$0xff]
                %8178 = vst [vmem:[%s7978 + $0xc18] sm:$0xff] %v8177
              $region65: #{layernorm_linear_gelu.1} parent=59 // loop_footer
                %s7976 = sadd.s32 1, %s7972
              $region66: #{layernorm_linear_gelu.1} parent=59 // loop_footer_branch
                %7971 = sbr.rel target = $region62
              $region67: #{layernorm_linear_gelu.1} parent=59 // loop_exit
                _
            $region60: #{layernorm_linear_gelu.1} parent=55 // pred_fallthru
              _
            // Predicated region
            $region68: #{layernorm_linear_gelu.1} parent=55 // pred_check
              _
            $region69: #{layernorm_linear_gelu.1} parent=55 // pred_check_branch
              %8180 = sbr.rel target = $region71
            $region70: #{layernorm_linear_gelu.1} parent=55 // pred_region
              _
            $region71: #{layernorm_linear_gelu.1} parent=55 // pred_fallthru
              _
          $region56: #{layernorm_linear_gelu.1} parent=51 // pred_fallthru
            _
          %8181 = vnop
        $region52: #{layernorm_linear_gelu.1} parent=39 // pred_fallthru
          _
      $region40: #{layernorm_linear_gelu.1} parent=5 // pred_fallthru
        _
      %p8182 = scmp.le.s32.totalorder 2, %s14
      // Predicated region
      $region72: #{layernorm_linear_gelu.1} parent=5 // pred_check
        %p8183 = pneg %p8182
      $region73: #{layernorm_linear_gelu.1} parent=5 // pred_check_branch
        %8185 = sbr.rel (%p8183) target = $region75
      $region74: #{layernorm_linear_gelu.1} parent=5 // pred_region
        %s8186 = ssub.s32 %s14, 2
        // Predicated region
        $region76: #{layernorm_linear_gelu.1} parent=74 // pred_check
          %p8187 = pneg %p182
        $region77: #{layernorm_linear_gelu.1} parent=74 // pred_check_branch
          %8189 = sbr.rel (%p8187) target = $region79
        $region78: #{layernorm_linear_gelu.1} parent=74 // pred_region
          %s8190 = sand.u32 %s167, 1
          %s8191 = sand.u32 %s167, 1
          %s8192 = smul.addr %s8191, 800
          %s8193 = scalar_lea.vmem [#allocation5], %s8192
        $region79: #{layernorm_linear_gelu.1} parent=74 // pred_fallthru
          _
      $region75: #{layernorm_linear_gelu.1} parent=5 // pred_fallthru
        _
    $region6: #{layernorm_linear_gelu.1} parent=1 // loop_footer
      %s18 = sadd.s32 1, %s14
    $region7: #{layernorm_linear_gelu.1} parent=1 // loop_footer_branch
      %13 = sbr.rel target = $region3
    $region8: #{layernorm_linear_gelu.1} parent=1 // loop_exit
      _
    %8194 = vsyncpa [#allocation4], 1
    %s8195 = scalar_lea.sflag [#allocation4], 1
    %8196 = vsyncpa %s8195, 1

</llo_original>
